<compile_context>
chip_gen: v7x
topology: tpu7x:2x2x1
jax: 0.10.0
libtpu: 0.0.40
codegen_flags: <defaults>
</compile_context>

<pallas_src>
import math

import numpy as np
import jax
import jax.numpy as jnp
from jax.experimental import pallas as pl
from jax.experimental.pallas import tpu as pltpu

# ----------------------------- configuration (small) -----------------------------
B = 2                 # batch
ENC_IN = 4            # N (number of series / nodes)
NUM_TIME_FEAT = 2     # C - 1 time features
SEQ_LEN = 24          # L1 (history length)
PRED_LEN = 8          # L2 (prediction length / predict_step)
D_MODEL = 32
D_INNER = 64          # d_inner_hid (FFN hidden)
D_K = 16
D_V = 16
N_HEAD = 2
N_LAYER = 2
WINDOW_SIZE = [2, 2, 2]
INNER_SIZE = 3
D_BOTTLENECK = 16     # d_bottleneck for the CSCM (Bottleneck_Construct)


# ----------------------------- static helpers (numpy) -----------------------------
def get_mask(input_size, window_size, inner_size):
    """Pyraformer PAM mask; returned mask is float32 with 1.0 == BLOCKED."""
    all_size = [input_size]
    for w in window_size:
        all_size.append(all_size[-1] // w)
    seq_length = sum(all_size)
    mask = np.zeros((seq_length, seq_length), dtype=np.float32)

    inner_window = inner_size // 2
    for layer_idx in range(len(all_size)):
        start = sum(all_size[:layer_idx])
        for i in range(start, start + all_size[layer_idx]):
            left_side = max(i - inner_window, start)
            right_side = min(i + inner_window + 1, start + all_size[layer_idx])
            mask[i, left_side:right_side] = 1

    for layer_idx in range(1, len(all_size)):
        start = sum(all_size[:layer_idx])
        for i in range(start, start + all_size[layer_idx]):
            left_side = (start - all_size[layer_idx - 1]) + (i - start) * window_size[layer_idx - 1]
            if i == (start + all_size[layer_idx] - 1):
                right_side = start
            else:
                right_side = (start - all_size[layer_idx - 1]) + (i - start + 1) * window_size[layer_idx - 1]
            mask[i, left_side:right_side] = 1
            mask[left_side:right_side, i] = 1

    mask = 1.0 - mask   # 1.0 -> blocked (masked_fill(-1e9))
    return mask, all_size


def refer_points(all_sizes, window_size):
    input_size = all_sizes[0]
    indexes = np.zeros((input_size, len(all_sizes)), dtype=np.int64)
    for i in range(input_size):
        indexes[i][0] = i
        former_index = i
        for j in range(1, len(all_sizes)):
            start = sum(all_sizes[:j])
            inner_layer_idx = former_index - (start - all_sizes[j - 1])
            former_index = start + min(inner_layer_idx // window_size[j - 1], all_sizes[j] - 1)
            indexes[i][j] = former_index
    return indexes


def positional_embedding(max_len, d_model):
    pe = np.zeros((max_len, d_model), dtype=np.float32)
    position = np.arange(0, max_len, dtype=np.float32)[:, None]
    div_term = np.exp(np.arange(0, d_model, 2, dtype=np.float32) * -(math.log(10000.0) / d_model))
    pe[:, 0::2] = np.sin(position * div_term)
    pe[:, 1::2] = np.cos(position * div_term)
    return pe


# ----------------------------- parameter init (deterministic) -----------------------------
def init_params(key):
    keys = list(jax.random.split(key, 128))
    kit = iter(keys)

    def nrm(shape, scale=0.1):
        return scale * jax.random.normal(next(kit), shape, dtype=jnp.float32)

    p = {}
    # DataEmbedding
    p["tok_w"] = nrm((D_MODEL, ENC_IN, 3))          # Conv1d weight [out, in, k]
    p["tok_b"] = nrm((D_MODEL,))
    p["time_w"] = nrm((NUM_TIME_FEAT, D_MODEL))     # stored [in, out]
    p["time_b"] = nrm((D_MODEL,))
    # CSCM (Bottleneck_Construct)
    p["down_w"] = nrm((D_MODEL, D_BOTTLENECK))
    p["down_b"] = nrm((D_BOTTLENECK,))
    p["conv_w"] = [nrm((D_BOTTLENECK, D_BOTTLENECK, w)) for w in WINDOW_SIZE]
    p["conv_b"] = [nrm((D_BOTTLENECK,)) for _ in WINDOW_SIZE]
    p["bn_gamma"] = [jnp.ones((D_BOTTLENECK,), jnp.float32) for _ in WINDOW_SIZE]
    p["bn_beta"] = [jnp.zeros((D_BOTTLENECK,), jnp.float32) for _ in WINDOW_SIZE]
    p["bn_mean"] = [jnp.zeros((D_BOTTLENECK,), jnp.float32) for _ in WINDOW_SIZE]
    p["bn_var"] = [jnp.ones((D_BOTTLENECK,), jnp.float32) for _ in WINDOW_SIZE]
    p["up_w"] = nrm((D_BOTTLENECK, D_MODEL))
    p["up_b"] = nrm((D_MODEL,))
    p["cscm_ln_g"] = jnp.ones((D_MODEL,), jnp.float32)
    p["cscm_ln_b"] = jnp.zeros((D_MODEL,), jnp.float32)
    # Encoder layers
    layers = []
    for _ in range(N_LAYER):
        layers.append({
            "wq": nrm((D_MODEL, N_HEAD * D_K)),
            "wk": nrm((D_MODEL, N_HEAD * D_K)),
            "wv": nrm((D_MODEL, N_HEAD * D_V)),
            "fc_w": nrm((N_HEAD * D_V, D_MODEL)),
            "fc_b": nrm((D_MODEL,)),
            "ln1_g": jnp.ones((D_MODEL,), jnp.float32),
            "ln1_b": jnp.zeros((D_MODEL,), jnp.float32),
            "w1": nrm((D_MODEL, D_INNER)),
            "b1": nrm((D_INNER,)),
            "w2": nrm((D_INNER, D_MODEL)),
            "b2": nrm((D_MODEL,)),
            "ln2_g": jnp.ones((D_MODEL,), jnp.float32),
            "ln2_b": jnp.zeros((D_MODEL,), jnp.float32),
        })
    p["layers"] = layers
    # Predictor: Linear(4*d_model, predict_step*enc_in, bias=False)
    p["pred_w"] = nrm((4 * D_MODEL, PRED_LEN * ENC_IN))
    return p


# ----------------------------- fused Pallas kernel -----------------------------
def make_fused_kernel(lengths, window_size):
    """One kernel: embedding -> CSCM -> N_LAYER encoder layers -> gather -> predictor.

    Batch is folded into the row (sequence) axis: layout is scale-major,
    batch-major within each scale, so every matmul processes the whole batch.
    """
    n_scale = len(window_size)
    n_pyra = len(lengths)
    seg_len = [B * L for L in lengths]
    seg_off = [0]
    for sl in seg_len:
        seg_off.append(seg_off[-1] + sl)

    def kernel(xcat_ref, wcat_ref, embb_ref,
               down_w_ref, down_b_ref,
               sel0_ref, cw0_ref, cb0_ref,
               sel1_ref, cw1_ref, cb1_ref,
               sel2_ref, cw2_ref, cb2_ref,
               up_w_ref, up_b_ref, cln_g_ref, cln_b_ref,
               mask_ref,
               wq_ref, wk_ref, wv_ref, fcw_ref, fcb_ref,
               ln1g_ref, ln1b_ref, w1_ref, b1_ref, w2_ref, b2_ref,
               ln2g_ref, ln2b_ref,
               gsel_ref, predw_ref,
               out_ref, seq_ref):

        def layer_norm(z, g, bias, eps):
            mu = jnp.mean(z, axis=-1, keepdims=True)
            var = jnp.mean((z - mu) ** 2, axis=-1, keepdims=True)
            return (z - mu) * jax.lax.rsqrt(var + eps) * g + bias

        # ---- DataEmbedding: token-conv taps + time features + positional, ONE matmul ----
        emb = (jnp.dot(xcat_ref[...], wcat_ref[...], preferred_element_type=jnp.float32)
               + embb_ref[...])                              # [B*L0, d_model]

        # ---- CSCM (Bottleneck_Construct), batch folded into rows ----
        cg = cln_g_ref[...]
        cb = cln_b_ref[...]
        seq_ref[0:seg_off[1], :] = layer_norm(emb, cg, cb, 1e-5)
        t = jnp.dot(emb, down_w_ref[...], preferred_element_type=jnp.float32) + down_b_ref[...]
        up_w = up_w_ref[...]
        up_b = up_b_ref[...]
        scale_refs = ((sel0_ref, cw0_ref, cb0_ref),
                      (sel1_ref, cw1_ref, cb1_ref),
                      (sel2_ref, cw2_ref, cb2_ref))
        for i in range(n_scale):
            sel_r, cw_r, cbias_r = scale_refs[i]
            conv = None
            for k in range(window_size[i]):                  # strided conv (k = stride = w)
                xk = jnp.dot(sel_r[k], t, preferred_element_type=jnp.float32)
                part = jnp.dot(xk, cw_r[k], preferred_element_type=jnp.float32)
                conv = part if conv is None else conv + part
            conv = conv + cbias_r[...]                       # eval-mode BN folded on host
            conv = jnp.where(conv > 0, conv, jnp.exp(jnp.minimum(conv, 0.0)) - 1.0)   # ELU
            t = conv
            u = jnp.dot(conv, up_w, preferred_element_type=jnp.float32) + up_b
            seq_ref[seg_off[i + 1]:seg_off[i + 2], :] = layer_norm(u, cg, cb, 1e-5)

        # ---- Encoder layers (post-norm MHA + FFN), whole batch in one attention ----
        mask_add = mask_ref[...]                             # additive: -1e9 on blocked/cross-batch
        x = seq_ref[...]                                     # [B*S, d_model]
        for l in range(N_LAYER):
            o = None
            for h in range(N_HEAD):                          # per-head weights pre-split (no lane slices)
                qh = jnp.dot(x, wq_ref[l, h], preferred_element_type=jnp.float32)   # 1/sqrt(dk) folded
                kh = jnp.dot(x, wk_ref[l, h], preferred_element_type=jnp.float32)
                vh = jnp.dot(x, wv_ref[l, h], preferred_element_type=jnp.float32)
                s = jax.lax.dot_general(qh, kh, (((1,), (1,)), ((), ())),
                                        preferred_element_type=jnp.float32) + mask_add
                m = jnp.max(s, axis=-1, keepdims=True)
                e = jnp.exp(s - m)
                p = e * pl.reciprocal(jnp.sum(e, axis=-1, keepdims=True), approx=True)
                oh = jnp.dot(p, vh, preferred_element_type=jnp.float32)              # [B*S, d_v]
                oc = jnp.dot(oh, fcw_ref[l, h], preferred_element_type=jnp.float32)  # head-merge FC
                o = oc if o is None else o + oc
            o = layer_norm(o + fcb_ref[l] + x, ln1g_ref[l], ln1b_ref[l], 1e-6)

            h1 = jnp.dot(o, w1_ref[l], preferred_element_type=jnp.float32) + b1_ref[l]
            # TODO(synk): PyTorch F.gelu defaults to the exact erf form; tanh approximation
            # is used here for Mosaic lowering portability.
            h1 = jax.nn.gelu(h1, approximate=True)
            h2 = jnp.dot(h1, w2_ref[l], preferred_element_type=jnp.float32) + b2_ref[l]
            x = layer_norm(h2 + o, ln2g_ref[l], ln2b_ref[l], 1e-6)

        # ---- FC decoder: gather pyramid rows of the last input position + predictor ----
        pred = None
        for j in range(n_pyra):
            rows = jnp.dot(gsel_ref[j], x, preferred_element_type=jnp.float32)     # [B, D]
            pj = jnp.dot(rows, predw_ref[j], preferred_element_type=jnp.float32)   # [B, L2*N]
            pred = pj if pred is None else pred + pj
        out_ref[...] = pred

    return kernel


# ----------------------------- host-side operand preparation (done once) -----------------------------
def build_operands(params, statics):
    lengths = statics["all_size"]
    n_pyra = len(lengths)
    seg_len = [B * L for L in lengths]
    S_tot = sum(seg_len)
    ops = {}

    # DataEmbedding: conv taps flattened [3*enc_in, d_model] + time-feature linear, fused
    w_tok = jnp.transpose(params["tok_w"], (2, 1, 0)).reshape(3 * ENC_IN, D_MODEL)
    ops["w_cat"] = jnp.concatenate([w_tok, params["time_w"]], axis=0)        # [3N+ntf, D]
    bias = params["tok_b"] + params["time_b"]
    ops["emb_bias"] = jnp.tile(statics["pos_emb"] + bias[None, :], (B, 1))   # [B*L0, D]

    # CSCM: down/up proj + folded (conv + eval-mode BN), block-diag one-hot stride selectors
    ops["down_w"] = params["down_w"]
    ops["down_b"] = params["down_b"][None, :]
    sels, cws, cbs = [], [], []
    for i, w in enumerate(WINDOW_SIZE):
        L_in, L_out = lengths[i], lengths[i + 1]
        sel = np.zeros((w, B * L_out, B * L_in), dtype=np.float32)
        for k in range(w):
            for b in range(B):
                for t in range(L_out):
                    sel[k, b * L_out + t, b * L_in + t * w + k] = 1.0
        sels.append(jnp.asarray(sel))
        g_eff = params["bn_gamma"][i] / jnp.sqrt(params["bn_var"][i] + 1e-5)
        b_eff = params["bn_beta"][i] - params["bn_mean"][i] * g_eff
        cws.append(jnp.transpose(params["conv_w"][i], (2, 1, 0)) * g_eff[None, None, :])  # [k,cin,cout]
        cbs.append((params["conv_b"][i] * g_eff + b_eff)[None, :])
    ops["sels"], ops["cws"], ops["cbs"] = sels, cws, cbs
    ops["up_w"] = params["up_w"]
    ops["up_b"] = params["up_b"][None, :]
    ops["cln_g"] = params["cscm_ln_g"][None, :]
    ops["cln_b"] = params["cscm_ln_b"][None, :]

    # Batched additive attention mask for the scale-major/batch-major-within-scale layout:
    # blocked (== -1e9) for pyramid-blocked pairs AND for any cross-batch pair.
    orig_idx = np.zeros(S_tot, dtype=np.int64)
    bat_idx = np.zeros(S_tot, dtype=np.int64)
    p = 0
    for s, L in enumerate(lengths):
        base = sum(lengths[:s])
        for b in range(B):
            for t in range(L):
                orig_idx[p] = base + t
                bat_idx[p] = b
                p += 1
    mask_pyr = np.asarray(statics["mask"])            # 1.0 == blocked
    blocked = np.where(bat_idx[:, None] == bat_idx[None, :],
                       mask_pyr[orig_idx][:, orig_idx], 1.0)
    ops["mask_add"] = jnp.asarray((-1e9 * blocked).astype(np.float32))

    # Encoder layer weights: stacked over layers, per-head pre-split; 1/sqrt(dk) folded in Wq
    scale_inv = 1.0 / math.sqrt(D_K)

    def stack(fn):
        return jnp.stack([fn(lp) for lp in params["layers"]], axis=0)

    ops["wq"] = stack(lambda lp: jnp.stack(
        [lp["wq"][:, h * D_K:(h + 1) * D_K] * scale_inv for h in range(N_HEAD)], 0))
    ops["wk"] = stack(lambda lp: jnp.stack(
        [lp["wk"][:, h * D_K:(h + 1) * D_K] for h in range(N_HEAD)], 0))
    ops["wv"] = stack(lambda lp: jnp.stack(
        [lp["wv"][:, h * D_V:(h + 1) * D_V] for h in range(N_HEAD)], 0))
    ops["fcw"] = stack(lambda lp: jnp.stack(
        [lp["fc_w"][h * D_V:(h + 1) * D_V, :] for h in range(N_HEAD)], 0))
    ops["fcb"] = stack(lambda lp: lp["fc_b"][None, :])
    ops["ln1g"] = stack(lambda lp: lp["ln1_g"][None, :])
    ops["ln1b"] = stack(lambda lp: lp["ln1_b"][None, :])
    ops["w1"] = stack(lambda lp: lp["w1"])
    ops["b1"] = stack(lambda lp: lp["b1"][None, :])
    ops["w2"] = stack(lambda lp: lp["w2"])
    ops["b2"] = stack(lambda lp: lp["b2"][None, :])
    ops["ln2g"] = stack(lambda lp: lp["ln2_g"][None, :])
    ops["ln2b"] = stack(lambda lp: lp["ln2_b"][None, :])

    # FC-decoder gather (last input position across the pyramid) as one-hot selectors over
    # the batched layout, and predictor weight split into per-scale row blocks.
    gather_orig = [int(v) for v in statics["refer_idx"][-1]]   # scale-j pyramid index, j=0..3
    gsel = np.zeros((n_pyra, B, S_tot), dtype=np.float32)
    for j, oi in enumerate(gather_orig):
        t_in = oi - sum(lengths[:j])
        base = sum(seg_len[:j])
        for b in range(B):
            gsel[j, b, base + b * lengths[j] + t_in] = 1.0
    ops["gsel"] = jnp.asarray(gsel)
    ops["predw"] = params["pred_w"].reshape(n_pyra, D_MODEL, PRED_LEN * ENC_IN)
    return ops


# ----------------------------- forward pass -----------------------------
def pyraformer_forward(ops, statics, history_data, future_data):
    lengths = statics["all_size"]
    S_tot = sum(B * L for L in lengths)
    Bsz = history_data.shape[0]
    L0 = SEQ_LEN + 1

    # --- data_transformation_4_xformer (start_token_len=0) ---
    x_enc = history_data[..., 0]                      # [B, L1, N]
    x_mark_enc = history_data[:, :, 0, 1:]            # [B, L1, C-1]
    x_mark_dec = future_data[:, :, 0, 1:]             # [B, L2, C-1]

    # --- append predict token ---
    x_enc = jnp.concatenate([x_enc, jnp.zeros((Bsz, 1, x_enc.shape[-1]), x_enc.dtype)], axis=1)
    x_mark_enc = jnp.concatenate([x_mark_enc, x_mark_dec[:, 0:1, :]], axis=1)

    # circular Conv1d(k=3, pad=1) taps flattened into the feature axis; fold batch into rows
    x_rolled = jnp.concatenate(
        [jnp.roll(x_enc, 1, axis=1), x_enc, jnp.roll(x_enc, -1, axis=1)], axis=-1)    # [B, L0, 3N]
    x_cat = jnp.concatenate([x_rolled, x_mark_enc], axis=-1).reshape(Bsz * L0, -1)    # [B*L0, 3N+ntf]

    kernel = make_fused_kernel(tuple(lengths), tuple(WINDOW_SIZE))

    inputs = [
        x_cat, ops["w_cat"], ops["emb_bias"],
        ops["down_w"], ops["down_b"],
        ops["sels"][0], ops["cws"][0], ops["cbs"][0],
        ops["sels"][1], ops["cws"][1], ops["cbs"][1],
        ops["sels"][2], ops["cws"][2], ops["cbs"][2],
        ops["up_w"], ops["up_b"], ops["cln_g"], ops["cln_b"],
        ops["mask_add"],
        ops["wq"], ops["wk"], ops["wv"], ops["fcw"], ops["fcb"],
        ops["ln1g"], ops["ln1b"], ops["w1"], ops["b1"], ops["w2"], ops["b2"],
        ops["ln2g"], ops["ln2b"],
        ops["gsel"], ops["predw"],
    ]

    pred_flat = pl.pallas_call(
        kernel,
        out_shape=jax.ShapeDtypeStruct((Bsz, PRED_LEN * ENC_IN), jnp.float32),
        scratch_shapes=[pltpu.VMEM((S_tot, D_MODEL), jnp.float32)],
    )(*inputs)

    return pred_flat.reshape(Bsz, PRED_LEN, ENC_IN)[..., None]   # [B, L2, N, 1]


# ----------------------------- main -----------------------------
if __name__ == "__main__":
    mask_np, all_size = get_mask(SEQ_LEN + 1, WINDOW_SIZE, INNER_SIZE)   # FC decoder: input_size + 1
    refer_idx = refer_points(all_size, WINDOW_SIZE)
    pos_np = positional_embedding(5000, D_MODEL)[:SEQ_LEN + 1]

    statics = {
        "mask": mask_np,
        "all_size": all_size,
        "refer_idx": refer_idx,
        "pos_emb": jnp.asarray(pos_np),
    }

    key = jax.random.PRNGKey(0)
    k1, k2, k3 = jax.random.split(key, 3)
    history_data = jax.random.normal(k1, (B, SEQ_LEN, ENC_IN, 1 + NUM_TIME_FEAT), dtype=jnp.float32)
    future_data = jax.random.normal(k2, (B, PRED_LEN, ENC_IN, 1 + NUM_TIME_FEAT), dtype=jnp.float32)
    params = init_params(k3)

    # Static/folded operands are built once; the forward (input glue + fused kernel) is jitted.
    ops = build_operands(params, statics)
    fwd = jax.jit(lambda h, f: pyraformer_forward(ops, statics, h, f))

    out = jax.block_until_ready(fwd(history_data, future_data))
    assert out.shape == (B, PRED_LEN, ENC_IN, 1), out.shape
    assert bool(jnp.all(jnp.isfinite(out)))
    print("KERNEL_OK")
</pallas_src>

<mosaic_0001>
module attributes {stable_mosaic.version = 11 : i64} {
  func.func @kernel(%arg0: memref<50x14xf32, #tpu.memory_space<vmem>>, %arg1: memref<14x32xf32, #tpu.memory_space<vmem>>, %arg2: memref<50x32xf32, #tpu.memory_space<vmem>>, %arg3: memref<32x16xf32, #tpu.memory_space<vmem>>, %arg4: memref<1x16xf32, #tpu.memory_space<vmem>>, %arg5: memref<2x24x50xf32, #tpu.memory_space<vmem>>, %arg6: memref<2x16x16xf32, #tpu.memory_space<vmem>>, %arg7: memref<1x16xf32, #tpu.memory_space<vmem>>, %arg8: memref<2x12x24xf32, #tpu.memory_space<vmem>>, %arg9: memref<2x16x16xf32, #tpu.memory_space<vmem>>, %arg10: memref<1x16xf32, #tpu.memory_space<vmem>>, %arg11: memref<2x6x12xf32, #tpu.memory_space<vmem>>, %arg12: memref<2x16x16xf32, #tpu.memory_space<vmem>>, %arg13: memref<1x16xf32, #tpu.memory_space<vmem>>, %arg14: memref<16x32xf32, #tpu.memory_space<vmem>>, %arg15: memref<1x32xf32, #tpu.memory_space<vmem>>, %arg16: memref<1x32xf32, #tpu.memory_space<vmem>>, %arg17: memref<1x32xf32, #tpu.memory_space<vmem>>, %arg18: memref<92x92xf32, #tpu.memory_space<vmem>>, %arg19: memref<2x2x32x16xf32, #tpu.memory_space<vmem>>, %arg20: memref<2x2x32x16xf32, #tpu.memory_space<vmem>>, %arg21: memref<2x2x32x16xf32, #tpu.memory_space<vmem>>, %arg22: memref<2x2x16x32xf32, #tpu.memory_space<vmem>>, %arg23: memref<2x1x32xf32, #tpu.memory_space<vmem>>, %arg24: memref<2x1x32xf32, #tpu.memory_space<vmem>>, %arg25: memref<2x1x32xf32, #tpu.memory_space<vmem>>, %arg26: memref<2x32x64xf32, #tpu.memory_space<vmem>>, %arg27: memref<2x1x64xf32, #tpu.memory_space<vmem>>, %arg28: memref<2x64x32xf32, #tpu.memory_space<vmem>>, %arg29: memref<2x1x32xf32, #tpu.memory_space<vmem>>, %arg30: memref<2x1x32xf32, #tpu.memory_space<vmem>>, %arg31: memref<2x1x32xf32, #tpu.memory_space<vmem>>, %arg32: memref<4x2x92xf32, #tpu.memory_space<vmem>>, %arg33: memref<4x32x32xf32, #tpu.memory_space<vmem>>, %arg34: memref<2x32xf32, #tpu.memory_space<vmem>>, %arg35: memref<92x32xf32, #tpu.memory_space<vmem>>) attributes {dimension_semantics = [], scalar_prefetch = 0 : i64, scratch_operands = 1 : i64, tpu.core_type = #tpu.core_type<tc>} {
    %c0 = arith.constant 0 : index
    %c0_0 = arith.constant 0 : index
    %0 = vector.load %arg0[%c0, %c0_0] : memref<50x14xf32, #tpu.memory_space<vmem>>, vector<50x14xf32>
    %c0_1 = arith.constant 0 : index
    %c0_2 = arith.constant 0 : index
    %1 = vector.load %arg1[%c0_1, %c0_2] : memref<14x32xf32, #tpu.memory_space<vmem>>, vector<14x32xf32>
    %cst = arith.constant dense<0.000000e+00> : vector<50x32xf32>
    %2 = tpu.matmul %0, %1, %cst {dimension_numbers = #tpu.dot_dimension_numbers<[1], [0], [0], [1], [0, 0, 1, 1], [], []>} : vector<50x14xf32>, vector<14x32xf32>, vector<50x32xf32> -> vector<50x32xf32>
    %c0_3 = arith.constant 0 : index
    %c0_4 = arith.constant 0 : index
    %3 = vector.load %arg2[%c0_3, %c0_4] : memref<50x32xf32, #tpu.memory_space<vmem>>, vector<50x32xf32>
    %4 = arith.addf %2, %3 : vector<50x32xf32>
    %c0_5 = arith.constant 0 : index
    %c0_6 = arith.constant 0 : index
    %5 = vector.load %arg16[%c0_5, %c0_6] : memref<1x32xf32, #tpu.memory_space<vmem>>, vector<1x32xf32>
    %c0_7 = arith.constant 0 : index
    %c0_8 = arith.constant 0 : index
    %6 = vector.load %arg17[%c0_7, %c0_8] : memref<1x32xf32, #tpu.memory_space<vmem>>, vector<1x32xf32>
    %cst_9 = arith.constant dense<0.000000e+00> : vector<50xf32>
    %7 = vector.multi_reduction <add>, %4, %cst_9 [1] : vector<50x32xf32> to vector<50xf32>
    %8 = vector.shape_cast %7 : vector<50xf32> to vector<50x1xf32>
    %cst_10 = arith.constant 3.200000e+01 : f32
    %9 = vector.broadcast %cst_10 : f32 to vector<50x1xf32>
    %10 = arith.divf %8, %9 : vector<50x1xf32>
    %11 = vector.broadcast %10 : vector<50x1xf32> to vector<50x32xf32>
    %12 = arith.subf %4, %11 : vector<50x32xf32>
    %13 = arith.mulf %12, %12 : vector<50x32xf32>
    %cst_11 = arith.constant dense<0.000000e+00> : vector<50xf32>
    %14 = vector.multi_reduction <add>, %13, %cst_11 [1] : vector<50x32xf32> to vector<50xf32>
    %15 = vector.shape_cast %14 : vector<50xf32> to vector<50x1xf32>
    %cst_12 = arith.constant 3.200000e+01 : f32
    %16 = vector.broadcast %cst_12 : f32 to vector<50x1xf32>
    %17 = arith.divf %15, %16 : vector<50x1xf32>
    %18 = vector.broadcast %10 : vector<50x1xf32> to vector<50x32xf32>
    %19 = arith.subf %4, %18 : vector<50x32xf32>
    %cst_13 = arith.constant 9.99999974E-6 : f32
    %20 = vector.broadcast %cst_13 : f32 to vector<50x1xf32>
    %21 = arith.addf %17, %20 : vector<50x1xf32>
    %22 = math.rsqrt %21 : vector<50x1xf32>
    %23 = vector.broadcast %22 : vector<50x1xf32> to vector<50x32xf32>
    %24 = arith.mulf %19, %23 : vector<50x32xf32>
    %25 = vector.broadcast %5 : vector<1x32xf32> to vector<50x32xf32>
    %26 = arith.mulf %24, %25 : vector<50x32xf32>
    %27 = vector.broadcast %6 : vector<1x32xf32> to vector<50x32xf32>
    %28 = arith.addf %26, %27 : vector<50x32xf32>
    %c0_14 = arith.constant 0 : index
    %c0_15 = arith.constant 0 : index
    %29 = vector.load %arg35[%c0_14, %c0_15] : memref<92x32xf32, #tpu.memory_space<vmem>>, vector<50x32xf32>
    tpu.vector_store %arg35[%c0_14, %c0_15], %28 {strides = array<i32>} : memref<92x32xf32, #tpu.memory_space<vmem>>, vector<50x32xf32>,
    %c0_16 = arith.constant 0 : index
    %c0_17 = arith.constant 0 : index
    %30 = vector.load %arg3[%c0_16, %c0_17] : memref<32x16xf32, #tpu.memory_space<vmem>>, vector<32x16xf32>
    %cst_18 = arith.constant dense<0.000000e+00> : vector<50x16xf32>
    %31 = tpu.matmul %4, %30, %cst_18 {dimension_numbers = #tpu.dot_dimension_numbers<[1], [0], [0], [1], [0, 0, 1, 1], [], []>} : vector<50x32xf32>, vector<32x16xf32>, vector<50x16xf32> -> vector<50x16xf32>
    %c0_19 = arith.constant 0 : index
    %c0_20 = arith.constant 0 : index
    %32 = vector.load %arg4[%c0_19, %c0_20] : memref<1x16xf32, #tpu.memory_space<vmem>>, vector<1x16xf32>
    %33 = vector.broadcast %32 : vector<1x16xf32> to vector<50x16xf32>
    %34 = arith.addf %31, %33 : vector<50x16xf32>
    %c0_21 = arith.constant 0 : index
    %c0_22 = arith.constant 0 : index
    %35 = vector.load %arg14[%c0_21, %c0_22] : memref<16x32xf32, #tpu.memory_space<vmem>>, vector<16x32xf32>
    %c0_23 = arith.constant 0 : index
    %c0_24 = arith.constant 0 : index
    %36 = vector.load %arg15[%c0_23, %c0_24] : memref<1x32xf32, #tpu.memory_space<vmem>>, vector<1x32xf32>
    %c0_25 = arith.constant 0 : index
    %c0_26 = arith.constant 0 : index
    %c0_27 = arith.constant 0 : index
    %37 = vector.load %arg5[%c0_25, %c0_26, %c0_27] : memref<2x24x50xf32, #tpu.memory_space<vmem>>, vector<1x24x50xf32>
    %38 = vector.shape_cast %37 : vector<1x24x50xf32> to vector<24x50xf32>
    %cst_28 = arith.constant dense<0.000000e+00> : vector<24x16xf32>
    %39 = tpu.matmul %38, %34, %cst_28 {dimension_numbers = #tpu.dot_dimension_numbers<[1], [0], [0], [1], [0, 0, 1, 1], [], []>} : vector<24x50xf32>, vector<50x16xf32>, vector<24x16xf32> -> vector<24x16xf32>
    %c0_29 = arith.constant 0 : index
    %c0_30 = arith.constant 0 : index
    %c0_31 = arith.constant 0 : index
    %40 = vector.load %arg6[%c0_29, %c0_30, %c0_31] : memref<2x16x16xf32, #tpu.memory_space<vmem>>, vector<1x16x16xf32>
    %41 = vector.shape_cast %40 : vector<1x16x16xf32> to vector<16x16xf32>
    %cst_32 = arith.constant dense<0.000000e+00> : vector<24x16xf32>
    %42 = tpu.matmul %39, %41, %cst_32 {dimension_numbers = #tpu.dot_dimension_numbers<[1], [0], [0], [1], [0, 0, 1, 1], [], []>} : vector<24x16xf32>, vector<16x16xf32>, vector<24x16xf32> -> vector<24x16xf32>
    %c1 = arith.constant 1 : index
    %c0_33 = arith.constant 0 : index
    %c0_34 = arith.constant 0 : index
    %43 = vector.load %arg5[%c1, %c0_33, %c0_34] : memref<2x24x50xf32, #tpu.memory_space<vmem>>, vector<1x24x50xf32>
    %44 = vector.shape_cast %43 : vector<1x24x50xf32> to vector<24x50xf32>
    %cst_35 = arith.constant dense<0.000000e+00> : vector<24x16xf32>
    %45 = tpu.matmul %44, %34, %cst_35 {dimension_numbers = #tpu.dot_dimension_numbers<[1], [0], [0], [1], [0, 0, 1, 1], [], []>} : vector<24x50xf32>, vector<50x16xf32>, vector<24x16xf32> -> vector<24x16xf32>
    %c1_36 = arith.constant 1 : index
    %c0_37 = arith.constant 0 : index
    %c0_38 = arith.constant 0 : index
    %46 = vector.load %arg6[%c1_36, %c0_37, %c0_38] : memref<2x16x16xf32, #tpu.memory_space<vmem>>, vector<1x16x16xf32>
    %47 = vector.shape_cast %46 : vector<1x16x16xf32> to vector<16x16xf32>
    %cst_39 = arith.constant dense<0.000000e+00> : vector<24x16xf32>
    %48 = tpu.matmul %45, %47, %cst_39 {dimension_numbers = #tpu.dot_dimension_numbers<[1], [0], [0], [1], [0, 0, 1, 1], [], []>} : vector<24x16xf32>, vector<16x16xf32>, vector<24x16xf32> -> vector<24x16xf32>
    %49 = arith.addf %42, %48 : vector<24x16xf32>
    %c0_40 = arith.constant 0 : index
    %c0_41 = arith.constant 0 : index
    %50 = vector.load %arg7[%c0_40, %c0_41] : memref<1x16xf32, #tpu.memory_space<vmem>>, vector<1x16xf32>
    %51 = vector.broadcast %50 : vector<1x16xf32> to vector<24x16xf32>
    %52 = arith.addf %49, %51 : vector<24x16xf32>
    %cst_42 = arith.constant 0.000000e+00 : f32
    %53 = vector.broadcast %cst_42 : f32 to vector<24x16xf32>
    %54 = arith.cmpf ogt, %52, %53 : vector<24x16xf32>
    %cst_43 = arith.constant 0.000000e+00 : f32
    %55 = vector.broadcast %cst_43 : f32 to vector<24x16xf32>
    %56 = arith.minimumf %52, %55 : vector<24x16xf32>
    %57 = math.exp %56 : vector<24x16xf32>
    %cst_44 = arith.constant 1.000000e+00 : f32
    %58 = vector.broadcast %cst_44 : f32 to vector<24x16xf32>
    %59 = arith.subf %57, %58 : vector<24x16xf32>
    %60 = arith.select %54, %52, %59 : vector<24x16xi1>, vector<24x16xf32>
    %cst_45 = arith.constant dense<0.000000e+00> : vector<24x32xf32>
    %61 = tpu.matmul %60, %35, %cst_45 {dimension_numbers = #tpu.dot_dimension_numbers<[1], [0], [0], [1], [0, 0, 1, 1], [], []>} : vector<24x16xf32>, vector<16x32xf32>, vector<24x32xf32> -> vector<24x32xf32>
    %62 = vector.broadcast %36 : vector<1x32xf32> to vector<24x32xf32>
    %63 = arith.addf %61, %62 : vector<24x32xf32>
    %cst_46 = arith.constant dense<0.000000e+00> : vector<24xf32>
    %64 = vector.multi_reduction <add>, %63, %cst_46 [1] : vector<24x32xf32> to vector<24xf32>
    %65 = vector.shape_cast %64 : vector<24xf32> to vector<24x1xf32>
    %cst_47 = arith.constant 3.200000e+01 : f32
    %66 = vector.broadcast %cst_47 : f32 to vector<24x1xf32>
    %67 = arith.divf %65, %66 : vector<24x1xf32>
    %68 = vector.broadcast %67 : vector<24x1xf32> to vector<24x32xf32>
    %69 = arith.subf %63, %68 : vector<24x32xf32>
    %70 = arith.mulf %69, %69 : vector<24x32xf32>
    %cst_48 = arith.constant dense<0.000000e+00> : vector<24xf32>
    %71 = vector.multi_reduction <add>, %70, %cst_48 [1] : vector<24x32xf32> to vector<24xf32>
    %72 = vector.shape_cast %71 : vector<24xf32> to vector<24x1xf32>
    %cst_49 = arith.constant 3.200000e+01 : f32
    %73 = vector.broadcast %cst_49 : f32 to vector<24x1xf32>
    %74 = arith.divf %72, %73 : vector<24x1xf32>
    %75 = vector.broadcast %67 : vector<24x1xf32> to vector<24x32xf32>
    %76 = arith.subf %63, %75 : vector<24x32xf32>
    %cst_50 = arith.constant 9.99999974E-6 : f32
    %77 = vector.broadcast %cst_50 : f32 to vector<24x1xf32>
    %78 = arith.addf %74, %77 : vector<24x1xf32>
    %79 = math.rsqrt %78 : vector<24x1xf32>
    %80 = vector.broadcast %79 : vector<24x1xf32> to vector<24x32xf32>
    %81 = arith.mulf %76, %80 : vector<24x32xf32>
    %82 = vector.broadcast %5 : vector<1x32xf32> to vector<24x32xf32>
    %83 = arith.mulf %81, %82 : vector<24x32xf32>
    %84 = vector.broadcast %6 : vector<1x32xf32> to vector<24x32xf32>
    %85 = arith.addf %83, %84 : vector<24x32xf32>
    %c50 = arith.constant 50 : index
    %c0_51 = arith.constant 0 : index
    %86 = vector.load %arg35[%c50, %c0_51] : memref<92x32xf32, #tpu.memory_space<vmem>>, vector<24x32xf32>
    tpu.vector_store %arg35[%c50, %c0_51], %85 {strides = array<i32>} : memref<92x32xf32, #tpu.memory_space<vmem>>, vector<24x32xf32>,
    %c0_52 = arith.constant 0 : index
    %c0_53 = arith.constant 0 : index
    %c0_54 = arith.constant 0 : index
    %87 = vector.load %arg8[%c0_52, %c0_53, %c0_54] : memref<2x12x24xf32, #tpu.memory_space<vmem>>, vector<1x12x24xf32>
    %88 = vector.shape_cast %87 : vector<1x12x24xf32> to vector<12x24xf32>
    %cst_55 = arith.constant dense<0.000000e+00> : vector<12x16xf32>
    %89 = tpu.matmul %88, %60, %cst_55 {dimension_numbers = #tpu.dot_dimension_numbers<[1], [0], [0], [1], [0, 0, 1, 1], [], []>} : vector<12x24xf32>, vector<24x16xf32>, vector<12x16xf32> -> vector<12x16xf32>
    %c0_56 = arith.constant 0 : index
    %c0_57 = arith.constant 0 : index
    %c0_58 = arith.constant 0 : index
    %90 = vector.load %arg9[%c0_56, %c0_57, %c0_58] : memref<2x16x16xf32, #tpu.memory_space<vmem>>, vector<1x16x16xf32>
    %91 = vector.shape_cast %90 : vector<1x16x16xf32> to vector<16x16xf32>
    %cst_59 = arith.constant dense<0.000000e+00> : vector<12x16xf32>
    %92 = tpu.matmul %89, %91, %cst_59 {dimension_numbers = #tpu.dot_dimension_numbers<[1], [0], [0], [1], [0, 0, 1, 1], [], []>} : vector<12x16xf32>, vector<16x16xf32>, vector<12x16xf32> -> vector<12x16xf32>
    %c1_60 = arith.constant 1 : index
    %c0_61 = arith.constant 0 : index
    %c0_62 = arith.constant 0 : index
    %93 = vector.load %arg8[%c1_60, %c0_61, %c0_62] : memref<2x12x24xf32, #tpu.memory_space<vmem>>, vector<1x12x24xf32>
    %94 = vector.shape_cast %93 : vector<1x12x24xf32> to vector<12x24xf32>
    %cst_63 = arith.constant dense<0.000000e+00> : vector<12x16xf32>
    %95 = tpu.matmul %94, %60, %cst_63 {dimension_numbers = #tpu.dot_dimension_numbers<[1], [0], [0], [1], [0, 0, 1, 1], [], []>} : vector<12x24xf32>, vector<24x16xf32>, vector<12x16xf32> -> vector<12x16xf32>
    %c1_64 = arith.constant 1 : index
    %c0_65 = arith.constant 0 : index
    %c0_66 = arith.constant 0 : index
    %96 = vector.load %arg9[%c1_64, %c0_65, %c0_66] : memref<2x16x16xf32, #tpu.memory_space<vmem>>, vector<1x16x16xf32>
    %97 = vector.shape_cast %96 : vector<1x16x16xf32> to vector<16x16xf32>
    %cst_67 = arith.constant dense<0.000000e+00> : vector<12x16xf32>
    %98 = tpu.matmul %95, %97, %cst_67 {dimension_numbers = #tpu.dot_dimension_numbers<[1], [0], [0], [1], [0, 0, 1, 1], [], []>} : vector<12x16xf32>, vector<16x16xf32>, vector<12x16xf32> -> vector<12x16xf32>
    %99 = arith.addf %92, %98 : vector<12x16xf32>
    %c0_68 = arith.constant 0 : index
    %c0_69 = arith.constant 0 : index
    %100 = vector.load %arg10[%c0_68, %c0_69] : memref<1x16xf32, #tpu.memory_space<vmem>>, vector<1x16xf32>
    %101 = vector.broadcast %100 : vector<1x16xf32> to vector<12x16xf32>
    %102 = arith.addf %99, %101 : vector<12x16xf32>
    %cst_70 = arith.constant 0.000000e+00 : f32
    %103 = vector.broadcast %cst_70 : f32 to vector<12x16xf32>
    %104 = arith.cmpf ogt, %102, %103 : vector<12x16xf32>
    %cst_71 = arith.constant 0.000000e+00 : f32
    %105 = vector.broadcast %cst_71 : f32 to vector<12x16xf32>
    %106 = arith.minimumf %102, %105 : vector<12x16xf32>
    %107 = math.exp %106 : vector<12x16xf32>
    %cst_72 = arith.constant 1.000000e+00 : f32
    %108 = vector.broadcast %cst_72 : f32 to vector<12x16xf32>
    %109 = arith.subf %107, %108 : vector<12x16xf32>
    %110 = arith.select %104, %102, %109 : vector<12x16xi1>, vector<12x16xf32>
    %cst_73 = arith.constant dense<0.000000e+00> : vector<12x32xf32>
    %111 = tpu.matmul %110, %35, %cst_73 {dimension_numbers = #tpu.dot_dimension_numbers<[1], [0], [0], [1], [0, 0, 1, 1], [], []>} : vector<12x16xf32>, vector<16x32xf32>, vector<12x32xf32> -> vector<12x32xf32>
    %112 = vector.broadcast %36 : vector<1x32xf32> to vector<12x32xf32>
    %113 = arith.addf %111, %112 : vector<12x32xf32>
    %cst_74 = arith.constant dense<0.000000e+00> : vector<12xf32>
    %114 = vector.multi_reduction <add>, %113, %cst_74 [1] : vector<12x32xf32> to vector<12xf32>
    %115 = vector.shape_cast %114 : vector<12xf32> to vector<12x1xf32>
    %cst_75 = arith.constant 3.200000e+01 : f32
    %116 = vector.broadcast %cst_75 : f32 to vector<12x1xf32>
    %117 = arith.divf %115, %116 : vector<12x1xf32>
    %118 = vector.broadcast %117 : vector<12x1xf32> to vector<12x32xf32>
    %119 = arith.subf %113, %118 : vector<12x32xf32>
    %120 = arith.mulf %119, %119 : vector<12x32xf32>
    %cst_76 = arith.constant dense<0.000000e+00> : vector<12xf32>
    %121 = vector.multi_reduction <add>, %120, %cst_76 [1] : vector<12x32xf32> to vector<12xf32>
    %122 = vector.shape_cast %121 : vector<12xf32> to vector<12x1xf32>
    %cst_77 = arith.constant 3.200000e+01 : f32
    %123 = vector.broadcast %cst_77 : f32 to vector<12x1xf32>
    %124 = arith.divf %122, %123 : vector<12x1xf32>
    %125 = vector.broadcast %117 : vector<12x1xf32> to vector<12x32xf32>
    %126 = arith.subf %113, %125 : vector<12x32xf32>
    %cst_78 = arith.constant 9.99999974E-6 : f32
    %127 = vector.broadcast %cst_78 : f32 to vector<12x1xf32>
    %128 = arith.addf %124, %127 : vector<12x1xf32>
    %129 = math.rsqrt %128 : vector<12x1xf32>
    %130 = vector.broadcast %129 : vector<12x1xf32> to vector<12x32xf32>
    %131 = arith.mulf %126, %130 : vector<12x32xf32>
    %132 = vector.broadcast %5 : vector<1x32xf32> to vector<12x32xf32>
    %133 = arith.mulf %131, %132 : vector<12x32xf32>
    %134 = vector.broadcast %6 : vector<1x32xf32> to vector<12x32xf32>
    %135 = arith.addf %133, %134 : vector<12x32xf32>
    %c74 = arith.constant 74 : index
    %c0_79 = arith.constant 0 : index
    %136 = vector.load %arg35[%c74, %c0_79] : memref<92x32xf32, #tpu.memory_space<vmem>>, vector<12x32xf32>
    tpu.vector_store %arg35[%c74, %c0_79], %135 {strides = array<i32>} : memref<92x32xf32, #tpu.memory_space<vmem>>, vector<12x32xf32>,
    %c0_80 = arith.constant 0 : index
    %c0_81 = arith.constant 0 : index
    %c0_82 = arith.constant 0 : index
    %137 = vector.load %arg11[%c0_80, %c0_81, %c0_82] : memref<2x6x12xf32, #tpu.memory_space<vmem>>, vector<1x6x12xf32>
    %138 = vector.shape_cast %137 : vector<1x6x12xf32> to vector<6x12xf32>
    %cst_83 = arith.constant dense<0.000000e+00> : vector<6x16xf32>
    %139 = tpu.matmul %138, %110, %cst_83 {dimension_numbers = #tpu.dot_dimension_numbers<[1], [0], [0], [1], [0, 0, 1, 1], [], []>} : vector<6x12xf32>, vector<12x16xf32>, vector<6x16xf32> -> vector<6x16xf32>
    %c0_84 = arith.constant 0 : index
    %c0_85 = arith.constant 0 : index
    %c0_86 = arith.constant 0 : index
    %140 = vector.load %arg12[%c0_84, %c0_85, %c0_86] : memref<2x16x16xf32, #tpu.memory_space<vmem>>, vector<1x16x16xf32>
    %141 = vector.shape_cast %140 : vector<1x16x16xf32> to vector<16x16xf32>
    %cst_87 = arith.constant dense<0.000000e+00> : vector<6x16xf32>
    %142 = tpu.matmul %139, %141, %cst_87 {dimension_numbers = #tpu.dot_dimension_numbers<[1], [0], [0], [1], [0, 0, 1, 1], [], []>} : vector<6x16xf32>, vector<16x16xf32>, vector<6x16xf32> -> vector<6x16xf32>
    %c1_88 = arith.constant 1 : index
    %c0_89 = arith.constant 0 : index
    %c0_90 = arith.constant 0 : index
    %143 = vector.load %arg11[%c1_88, %c0_89, %c0_90] : memref<2x6x12xf32, #tpu.memory_space<vmem>>, vector<1x6x12xf32>
    %144 = vector.shape_cast %143 : vector<1x6x12xf32> to vector<6x12xf32>
    %cst_91 = arith.constant dense<0.000000e+00> : vector<6x16xf32>
    %145 = tpu.matmul %144, %110, %cst_91 {dimension_numbers = #tpu.dot_dimension_numbers<[1], [0], [0], [1], [0, 0, 1, 1], [], []>} : vector<6x12xf32>, vector<12x16xf32>, vector<6x16xf32> -> vector<6x16xf32>
    %c1_92 = arith.constant 1 : index
    %c0_93 = arith.constant 0 : index
    %c0_94 = arith.constant 0 : index
    %146 = vector.load %arg12[%c1_92, %c0_93, %c0_94] : memref<2x16x16xf32, #tpu.memory_space<vmem>>, vector<1x16x16xf32>
    %147 = vector.shape_cast %146 : vector<1x16x16xf32> to vector<16x16xf32>
    %cst_95 = arith.constant dense<0.000000e+00> : vector<6x16xf32>
    %148 = tpu.matmul %145, %147, %cst_95 {dimension_numbers = #tpu.dot_dimension_numbers<[1], [0], [0], [1], [0, 0, 1, 1], [], []>} : vector<6x16xf32>, vector<16x16xf32>, vector<6x16xf32> -> vector<6x16xf32>
    %149 = arith.addf %142, %148 : vector<6x16xf32>
    %c0_96 = arith.constant 0 : index
    %c0_97 = arith.constant 0 : index
    %150 = vector.load %arg13[%c0_96, %c0_97] : memref<1x16xf32, #tpu.memory_space<vmem>>, vector<1x16xf32>
    %151 = vector.broadcast %150 : vector<1x16xf32> to vector<6x16xf32>
    %152 = arith.addf %149, %151 : vector<6x16xf32>
    %cst_98 = arith.constant 0.000000e+00 : f32
    %153 = vector.broadcast %cst_98 : f32 to vector<6x16xf32>
    %154 = arith.cmpf ogt, %152, %153 : vector<6x16xf32>
    %cst_99 = arith.constant 0.000000e+00 : f32
    %155 = vector.broadcast %cst_99 : f32 to vector<6x16xf32>
    %156 = arith.minimumf %152, %155 : vector<6x16xf32>
    %157 = math.exp %156 : vector<6x16xf32>
    %cst_100 = arith.constant 1.000000e+00 : f32
    %158 = vector.broadcast %cst_100 : f32 to vector<6x16xf32>
    %159 = arith.subf %157, %158 : vector<6x16xf32>
    %160 = arith.select %154, %152, %159 : vector<6x16xi1>, vector<6x16xf32>
    %cst_101 = arith.constant dense<0.000000e+00> : vector<6x32xf32>
    %161 = tpu.matmul %160, %35, %cst_101 {dimension_numbers = #tpu.dot_dimension_numbers<[1], [0], [0], [1], [0, 0, 1, 1], [], []>} : vector<6x16xf32>, vector<16x32xf32>, vector<6x32xf32> -> vector<6x32xf32>
    %162 = vector.broadcast %36 : vector<1x32xf32> to vector<6x32xf32>
    %163 = arith.addf %161, %162 : vector<6x32xf32>
    %cst_102 = arith.constant dense<0.000000e+00> : vector<6xf32>
    %164 = vector.multi_reduction <add>, %163, %cst_102 [1] : vector<6x32xf32> to vector<6xf32>
    %165 = vector.shape_cast %164 : vector<6xf32> to vector<6x1xf32>
    %cst_103 = arith.constant 3.200000e+01 : f32
    %166 = vector.broadcast %cst_103 : f32 to vector<6x1xf32>
    %167 = arith.divf %165, %166 : vector<6x1xf32>
    %168 = vector.broadcast %167 : vector<6x1xf32> to vector<6x32xf32>
    %169 = arith.subf %163, %168 : vector<6x32xf32>
    %170 = arith.mulf %169, %169 : vector<6x32xf32>
    %cst_104 = arith.constant dense<0.000000e+00> : vector<6xf32>
    %171 = vector.multi_reduction <add>, %170, %cst_104 [1] : vector<6x32xf32> to vector<6xf32>
    %172 = vector.shape_cast %171 : vector<6xf32> to vector<6x1xf32>
    %cst_105 = arith.constant 3.200000e+01 : f32
    %173 = vector.broadcast %cst_105 : f32 to vector<6x1xf32>
    %174 = arith.divf %172, %173 : vector<6x1xf32>
    %175 = vector.broadcast %167 : vector<6x1xf32> to vector<6x32xf32>
    %176 = arith.subf %163, %175 : vector<6x32xf32>
    %cst_106 = arith.constant 9.99999974E-6 : f32
    %177 = vector.broadcast %cst_106 : f32 to vector<6x1xf32>
    %178 = arith.addf %174, %177 : vector<6x1xf32>
    %179 = math.rsqrt %178 : vector<6x1xf32>
    %180 = vector.broadcast %179 : vector<6x1xf32> to vector<6x32xf32>
    %181 = arith.mulf %176, %180 : vector<6x32xf32>
    %182 = vector.broadcast %5 : vector<1x32xf32> to vector<6x32xf32>
    %183 = arith.mulf %181, %182 : vector<6x32xf32>
    %184 = vector.broadcast %6 : vector<1x32xf32> to vector<6x32xf32>
    %185 = arith.addf %183, %184 : vector<6x32xf32>
    %c86 = arith.constant 86 : index
    %c0_107 = arith.constant 0 : index
    %186 = vector.load %arg35[%c86, %c0_107] : memref<92x32xf32, #tpu.memory_space<vmem>>, vector<6x32xf32>
    tpu.vector_store %arg35[%c86, %c0_107], %185 {strides = array<i32>} : memref<92x32xf32, #tpu.memory_space<vmem>>, vector<6x32xf32>,
    %c0_108 = arith.constant 0 : index
    %c0_109 = arith.constant 0 : index
    %187 = vector.load %arg18[%c0_108, %c0_109] : memref<92x92xf32, #tpu.memory_space<vmem>>, vector<92x92xf32>
    %c0_110 = arith.constant 0 : index
    %c0_111 = arith.constant 0 : index
    %188 = vector.load %arg35[%c0_110, %c0_111] : memref<92x32xf32, #tpu.memory_space<vmem>>, vector<92x32xf32>
    %c0_112 = arith.constant 0 : index
    %c0_113 = arith.constant 0 : index
    %c0_114 = arith.constant 0 : index
    %c0_115 = arith.constant 0 : index
    %189 = vector.load %arg19[%c0_112, %c0_113, %c0_114, %c0_115] : memref<2x2x32x16xf32, #tpu.memory_space<vmem>>, vector<1x1x32x16xf32>
    %190 = vector.shape_cast %189 : vector<1x1x32x16xf32> to vector<32x16xf32>
    %cst_116 = arith.constant dense<0.000000e+00> : vector<92x16xf32>
    %191 = tpu.matmul %188, %190, %cst_116 {dimension_numbers = #tpu.dot_dimension_numbers<[1], [0], [0], [1], [0, 0, 1, 1], [], []>} : vector<92x32xf32>, vector<32x16xf32>, vector<92x16xf32> -> vector<92x16xf32>
    %c0_117 = arith.constant 0 : index
    %c0_118 = arith.constant 0 : index
    %c0_119 = arith.constant 0 : index
    %c0_120 = arith.constant 0 : index
    %192 = vector.load %arg20[%c0_117, %c0_118, %c0_119, %c0_120] : memref<2x2x32x16xf32, #tpu.memory_space<vmem>>, vector<1x1x32x16xf32>
    %193 = vector.shape_cast %192 : vector<1x1x32x16xf32> to vector<32x16xf32>
    %cst_121 = arith.constant dense<0.000000e+00> : vector<92x16xf32>
    %194 = tpu.matmul %188, %193, %cst_121 {dimension_numbers = #tpu.dot_dimension_numbers<[1], [0], [0], [1], [0, 0, 1, 1], [], []>} : vector<92x32xf32>, vector<32x16xf32>, vector<92x16xf32> -> vector<92x16xf32>
    %c0_122 = arith.constant 0 : index
    %c0_123 = arith.constant 0 : index
    %c0_124 = arith.constant 0 : index
    %c0_125 = arith.constant 0 : index
    %195 = vector.load %arg21[%c0_122, %c0_123, %c0_124, %c0_125] : memref<2x2x32x16xf32, #tpu.memory_space<vmem>>, vector<1x1x32x16xf32>
    %196 = vector.shape_cast %195 : vector<1x1x32x16xf32> to vector<32x16xf32>
    %cst_126 = arith.constant dense<0.000000e+00> : vector<92x16xf32>
    %197 = tpu.matmul %188, %196, %cst_126 {dimension_numbers = #tpu.dot_dimension_numbers<[1], [0], [0], [1], [0, 0, 1, 1], [], []>} : vector<92x32xf32>, vector<32x16xf32>, vector<92x16xf32> -> vector<92x16xf32>
    %cst_127 = arith.constant dense<0.000000e+00> : vector<92x92xf32>
    %198 = tpu.matmul %191, %194, %cst_127 {dimension_numbers = #tpu.dot_dimension_numbers<[1], [1], [0], [0], [0, 0, 1, 0], [], []>} : vector<92x16xf32>, vector<92x16xf32>, vector<92x92xf32> -> vector<92x92xf32>
    %199 = arith.addf %198, %187 : vector<92x92xf32>
    %cst_128 = arith.constant dense<0xFF800000> : vector<92xf32>
    %200 = vector.multi_reduction <maximumf>, %199, %cst_128 [1] : vector<92x92xf32> to vector<92xf32>
    %201 = vector.shape_cast %200 : vector<92xf32> to vector<92x1xf32>
    %202 = vector.broadcast %201 : vector<92x1xf32> to vector<92x92xf32>
    %203 = arith.subf %199, %202 : vector<92x92xf32>
    %204 = math.exp %203 : vector<92x92xf32>
    %cst_129 = arith.constant dense<0.000000e+00> : vector<92xf32>
    %205 = vector.multi_reduction <add>, %204, %cst_129 [1] : vector<92x92xf32> to vector<92xf32>
    %206 = vector.shape_cast %205 : vector<92xf32> to vector<92x1xf32>
    %207 = tpu.reciprocal %206 {approx = true} : vector<92x1xf32> -> vector<92x1xf32>
    %208 = vector.broadcast %207 : vector<92x1xf32> to vector<92x92xf32>
    %209 = arith.mulf %204, %208 : vector<92x92xf32>
    %cst_130 = arith.constant dense<0.000000e+00> : vector<92x16xf32>
    %210 = tpu.matmul %209, %197, %cst_130 {dimension_numbers = #tpu.dot_dimension_numbers<[1], [0], [0], [1], [0, 0, 1, 1], [], []>} : vector<92x92xf32>, vector<92x16xf32>, vector<92x16xf32> -> vector<92x16xf32>
    %c0_131 = arith.constant 0 : index
    %c0_132 = arith.constant 0 : index
    %c0_133 = arith.constant 0 : index
    %c0_134 = arith.constant 0 : index
    %211 = vector.load %arg22[%c0_131, %c0_132, %c0_133, %c0_134] : memref<2x2x16x32xf32, #tpu.memory_space<vmem>>, vector<1x1x16x32xf32>
    %212 = vector.shape_cast %211 : vector<1x1x16x32xf32> to vector<16x32xf32>
    %cst_135 = arith.constant dense<0.000000e+00> : vector<92x32xf32>
    %213 = tpu.matmul %210, %212, %cst_135 {dimension_numbers = #tpu.dot_dimension_numbers<[1], [0], [0], [1], [0, 0, 1, 1], [], []>} : vector<92x16xf32>, vector<16x32xf32>, vector<92x32xf32> -> vector<92x32xf32>
    %c0_136 = arith.constant 0 : index
    %c1_137 = arith.constant 1 : index
    %c0_138 = arith.constant 0 : index
    %c0_139 = arith.constant 0 : index
    %214 = vector.load %arg19[%c0_136, %c1_137, %c0_138, %c0_139] : memref<2x2x32x16xf32, #tpu.memory_space<vmem>>, vector<1x1x32x16xf32>
    %215 = vector.shape_cast %214 : vector<1x1x32x16xf32> to vector<32x16xf32>
    %cst_140 = arith.constant dense<0.000000e+00> : vector<92x16xf32>
    %216 = tpu.matmul %188, %215, %cst_140 {dimension_numbers = #tpu.dot_dimension_numbers<[1], [0], [0], [1], [0, 0, 1, 1], [], []>} : vector<92x32xf32>, vector<32x16xf32>, vector<92x16xf32> -> vector<92x16xf32>
    %c0_141 = arith.constant 0 : index
    %c1_142 = arith.constant 1 : index
    %c0_143 = arith.constant 0 : index
    %c0_144 = arith.constant 0 : index
    %217 = vector.load %arg20[%c0_141, %c1_142, %c0_143, %c0_144] : memref<2x2x32x16xf32, #tpu.memory_space<vmem>>, vector<1x1x32x16xf32>
    %218 = vector.shape_cast %217 : vector<1x1x32x16xf32> to vector<32x16xf32>
    %cst_145 = arith.constant dense<0.000000e+00> : vector<92x16xf32>
    %219 = tpu.matmul %188, %218, %cst_145 {dimension_numbers = #tpu.dot_dimension_numbers<[1], [0], [0], [1], [0, 0, 1, 1], [], []>} : vector<92x32xf32>, vector<32x16xf32>, vector<92x16xf32> -> vector<92x16xf32>
    %c0_146 = arith.constant 0 : index
    %c1_147 = arith.constant 1 : index
    %c0_148 = arith.constant 0 : index
    %c0_149 = arith.constant 0 : index
    %220 = vector.load %arg21[%c0_146, %c1_147, %c0_148, %c0_149] : memref<2x2x32x16xf32, #tpu.memory_space<vmem>>, vector<1x1x32x16xf32>
    %221 = vector.shape_cast %220 : vector<1x1x32x16xf32> to vector<32x16xf32>
    %cst_150 = arith.constant dense<0.000000e+00> : vector<92x16xf32>
    %222 = tpu.matmul %188, %221, %cst_150 {dimension_numbers = #tpu.dot_dimension_numbers<[1], [0], [0], [1], [0, 0, 1, 1], [], []>} : vector<92x32xf32>, vector<32x16xf32>, vector<92x16xf32> -> vector<92x16xf32>
    %cst_151 = arith.constant dense<0.000000e+00> : vector<92x92xf32>
    %223 = tpu.matmul %216, %219, %cst_151 {dimension_numbers = #tpu.dot_dimension_numbers<[1], [1], [0], [0], [0, 0, 1, 0], [], []>} : vector<92x16xf32>, vector<92x16xf32>, vector<92x92xf32> -> vector<92x92xf32>
    %224 = arith.addf %223, %187 : vector<92x92xf32>
    %cst_152 = arith.constant dense<0xFF800000> : vector<92xf32>
    %225 = vector.multi_reduction <maximumf>, %224, %cst_152 [1] : vector<92x92xf32> to vector<92xf32>
    %226 = vector.shape_cast %225 : vector<92xf32> to vector<92x1xf32>
    %227 = vector.broadcast %226 : vector<92x1xf32> to vector<92x92xf32>
    %228 = arith.subf %224, %227 : vector<92x92xf32>
    %229 = math.exp %228 : vector<92x92xf32>
    %cst_153 = arith.constant dense<0.000000e+00> : vector<92xf32>
    %230 = vector.multi_reduction <add>, %229, %cst_153 [1] : vector<92x92xf32> to vector<92xf32>
    %231 = vector.shape_cast %230 : vector<92xf32> to vector<92x1xf32>
    %232 = tpu.reciprocal %231 {approx = true} : vector<92x1xf32> -> vector<92x1xf32>
    %233 = vector.broadcast %232 : vector<92x1xf32> to vector<92x92xf32>
    %234 = arith.mulf %229, %233 : vector<92x92xf32>
    %cst_154 = arith.constant dense<0.000000e+00> : vector<92x16xf32>
    %235 = tpu.matmul %234, %222, %cst_154 {dimension_numbers = #tpu.dot_dimension_numbers<[1], [0], [0], [1], [0, 0, 1, 1], [], []>} : vector<92x92xf32>, vector<92x16xf32>, vector<92x16xf32> -> vector<92x16xf32>
    %c0_155 = arith.constant 0 : index
    %c1_156 = arith.constant 1 : index
    %c0_157 = arith.constant 0 : index
    %c0_158 = arith.constant 0 : index
    %236 = vector.load %arg22[%c0_155, %c1_156, %c0_157, %c0_158] : memref<2x2x16x32xf32, #tpu.memory_space<vmem>>, vector<1x1x16x32xf32>
    %237 = vector.shape_cast %236 : vector<1x1x16x32xf32> to vector<16x32xf32>
    %cst_159 = arith.constant dense<0.000000e+00> : vector<92x32xf32>
    %238 = tpu.matmul %235, %237, %cst_159 {dimension_numbers = #tpu.dot_dimension_numbers<[1], [0], [0], [1], [0, 0, 1, 1], [], []>} : vector<92x16xf32>, vector<16x32xf32>, vector<92x32xf32> -> vector<92x32xf32>
    %239 = arith.addf %213, %238 : vector<92x32xf32>
    %c0_160 = arith.constant 0 : index
    %c0_161 = arith.constant 0 : index
    %c0_162 = arith.constant 0 : index
    %240 = vector.load %arg23[%c0_160, %c0_161, %c0_162] : memref<2x1x32xf32, #tpu.memory_space<vmem>>, vector<1x1x32xf32>
    %241 = vector.shape_cast %240 : vector<1x1x32xf32> to vector<1x32xf32>
    %242 = vector.broadcast %241 : vector<1x32xf32> to vector<92x32xf32>
    %243 = arith.addf %239, %242 : vector<92x32xf32>
    %244 = arith.addf %243, %188 : vector<92x32xf32>
    %c0_163 = arith.constant 0 : index
    %c0_164 = arith.constant 0 : index
    %c0_165 = arith.constant 0 : index
    %245 = vector.load %arg24[%c0_163, %c0_164, %c0_165] : memref<2x1x32xf32, #tpu.memory_space<vmem>>, vector<1x1x32xf32>
    %246 = vector.shape_cast %245 : vector<1x1x32xf32> to vector<1x32xf32>
    %c0_166 = arith.constant 0 : index
    %c0_167 = arith.constant 0 : index
    %c0_168 = arith.constant 0 : index
    %247 = vector.load %arg25[%c0_166, %c0_167, %c0_168] : memref<2x1x32xf32, #tpu.memory_space<vmem>>, vector<1x1x32xf32>
    %248 = vector.shape_cast %247 : vector<1x1x32xf32> to vector<1x32xf32>
    %cst_169 = arith.constant dense<0.000000e+00> : vector<92xf32>
    %249 = vector.multi_reduction <add>, %244, %cst_169 [1] : vector<92x32xf32> to vector<92xf32>
    %250 = vector.shape_cast %249 : vector<92xf32> to vector<92x1xf32>
    %cst_170 = arith.constant 3.200000e+01 : f32
    %251 = vector.broadcast %cst_170 : f32 to vector<92x1xf32>
    %252 = arith.divf %250, %251 : vector<92x1xf32>
    %253 = vector.broadcast %252 : vector<92x1xf32> to vector<92x32xf32>
    %254 = arith.subf %244, %253 : vector<92x32xf32>
    %255 = arith.mulf %254, %254 : vector<92x32xf32>
    %cst_171 = arith.constant dense<0.000000e+00> : vector<92xf32>
    %256 = vector.multi_reduction <add>, %255, %cst_171 [1] : vector<92x32xf32> to vector<92xf32>
    %257 = vector.shape_cast %256 : vector<92xf32> to vector<92x1xf32>
    %cst_172 = arith.constant 3.200000e+01 : f32
    %258 = vector.broadcast %cst_172 : f32 to vector<92x1xf32>
    %259 = arith.divf %257, %258 : vector<92x1xf32>
    %260 = vector.broadcast %252 : vector<92x1xf32> to vector<92x32xf32>
    %261 = arith.subf %244, %260 : vector<92x32xf32>
    %cst_173 = arith.constant 9.99999997E-7 : f32
    %262 = vector.broadcast %cst_173 : f32 to vector<92x1xf32>
    %263 = arith.addf %259, %262 : vector<92x1xf32>
    %264 = math.rsqrt %263 : vector<92x1xf32>
    %265 = vector.broadcast %264 : vector<92x1xf32> to vector<92x32xf32>
    %266 = arith.mulf %261, %265 : vector<92x32xf32>
    %267 = vector.broadcast %246 : vector<1x32xf32> to vector<92x32xf32>
    %268 = arith.mulf %266, %267 : vector<92x32xf32>
    %269 = vector.broadcast %248 : vector<1x32xf32> to vector<92x32xf32>
    %270 = arith.addf %268, %269 : vector<92x32xf32>
    %c0_174 = arith.constant 0 : index
    %c0_175 = arith.constant 0 : index
    %c0_176 = arith.constant 0 : index
    %271 = vector.load %arg26[%c0_174, %c0_175, %c0_176] : memref<2x32x64xf32, #tpu.memory_space<vmem>>, vector<1x32x64xf32>
    %272 = vector.shape_cast %271 : vector<1x32x64xf32> to vector<32x64xf32>
    %cst_177 = arith.constant dense<0.000000e+00> : vector<92x64xf32>
    %273 = tpu.matmul %270, %272, %cst_177 {dimension_numbers = #tpu.dot_dimension_numbers<[1], [0], [0], [1], [0, 0, 1, 1], [], []>} : vector<92x32xf32>, vector<32x64xf32>, vector<92x64xf32> -> vector<92x64xf32>
    %c0_178 = arith.constant 0 : index
    %c0_179 = arith.constant 0 : index
    %c0_180 = arith.constant 0 : index
    %274 = vector.load %arg27[%c0_178, %c0_179, %c0_180] : memref<2x1x64xf32, #tpu.memory_space<vmem>>, vector<1x1x64xf32>
    %275 = vector.shape_cast %274 : vector<1x1x64xf32> to vector<1x64xf32>
    %276 = vector.broadcast %275 : vector<1x64xf32> to vector<92x64xf32>
    %277 = arith.addf %273, %276 : vector<92x64xf32>
    %278 = arith.mulf %277, %277 : vector<92x64xf32>
    %279 = arith.mulf %277, %278 : vector<92x64xf32>
    %cst_181 = arith.constant 4.471500e-02 : f32
    %280 = vector.broadcast %cst_181 : f32 to vector<92x64xf32>
    %281 = arith.mulf %280, %279 : vector<92x64xf32>
    %282 = arith.addf %277, %281 : vector<92x64xf32>
    %cst_182 = arith.constant 0.797884583 : f32
    %283 = vector.broadcast %cst_182 : f32 to vector<92x64xf32>
    %284 = arith.mulf %283, %282 : vector<92x64xf32>
    %285 = math.tanh %284 : vector<92x64xf32>
    %cst_183 = arith.constant 1.000000e+00 : f32
    %286 = vector.broadcast %cst_183 : f32 to vector<92x64xf32>
    %287 = arith.addf %286, %285 : vector<92x64xf32>
    %cst_184 = arith.constant 5.000000e-01 : f32
    %288 = vector.broadcast %cst_184 : f32 to vector<92x64xf32>
    %289 = arith.mulf %288, %287 : vector<92x64xf32>
    %290 = arith.mulf %277, %289 : vector<92x64xf32>
    %c0_185 = arith.constant 0 : index
    %c0_186 = arith.constant 0 : index
    %c0_187 = arith.constant 0 : index
    %291 = vector.load %arg28[%c0_185, %c0_186, %c0_187] : memref<2x64x32xf32, #tpu.memory_space<vmem>>, vector<1x64x32xf32>
    %292 = vector.shape_cast %291 : vector<1x64x32xf32> to vector<64x32xf32>
    %cst_188 = arith.constant dense<0.000000e+00> : vector<92x32xf32>
    %293 = tpu.matmul %290, %292, %cst_188 {dimension_numbers = #tpu.dot_dimension_numbers<[1], [0], [0], [1], [0, 0, 1, 1], [], []>} : vector<92x64xf32>, vector<64x32xf32>, vector<92x32xf32> -> vector<92x32xf32>
    %c0_189 = arith.constant 0 : index
    %c0_190 = arith.constant 0 : index
    %c0_191 = arith.constant 0 : index
    %294 = vector.load %arg29[%c0_189, %c0_190, %c0_191] : memref<2x1x32xf32, #tpu.memory_space<vmem>>, vector<1x1x32xf32>
    %295 = vector.shape_cast %294 : vector<1x1x32xf32> to vector<1x32xf32>
    %296 = vector.broadcast %295 : vector<1x32xf32> to vector<92x32xf32>
    %297 = arith.addf %293, %296 : vector<92x32xf32>
    %298 = arith.addf %297, %270 : vector<92x32xf32>
    %c0_192 = arith.constant 0 : index
    %c0_193 = arith.constant 0 : index
    %c0_194 = arith.constant 0 : index
    %299 = vector.load %arg30[%c0_192, %c0_193, %c0_194] : memref<2x1x32xf32, #tpu.memory_space<vmem>>, vector<1x1x32xf32>
    %300 = vector.shape_cast %299 : vector<1x1x32xf32> to vector<1x32xf32>
    %c0_195 = arith.constant 0 : index
    %c0_196 = arith.constant 0 : index
    %c0_197 = arith.constant 0 : index
    %301 = vector.load %arg31[%c0_195, %c0_196, %c0_197] : memref<2x1x32xf32, #tpu.memory_space<vmem>>, vector<1x1x32xf32>
    %302 = vector.shape_cast %301 : vector<1x1x32xf32> to vector<1x32xf32>
    %cst_198 = arith.constant dense<0.000000e+00> : vector<92xf32>
    %303 = vector.multi_reduction <add>, %298, %cst_198 [1] : vector<92x32xf32> to vector<92xf32>
    %304 = vector.shape_cast %303 : vector<92xf32> to vector<92x1xf32>
    %cst_199 = arith.constant 3.200000e+01 : f32
    %305 = vector.broadcast %cst_199 : f32 to vector<92x1xf32>
    %306 = arith.divf %304, %305 : vector<92x1xf32>
    %307 = vector.broadcast %306 : vector<92x1xf32> to vector<92x32xf32>
    %308 = arith.subf %298, %307 : vector<92x32xf32>
    %309 = arith.mulf %308, %308 : vector<92x32xf32>
    %cst_200 = arith.constant dense<0.000000e+00> : vector<92xf32>
    %310 = vector.multi_reduction <add>, %309, %cst_200 [1] : vector<92x32xf32> to vector<92xf32>
    %311 = vector.shape_cast %310 : vector<92xf32> to vector<92x1xf32>
    %cst_201 = arith.constant 3.200000e+01 : f32
    %312 = vector.broadcast %cst_201 : f32 to vector<92x1xf32>
    %313 = arith.divf %311, %312 : vector<92x1xf32>
    %314 = vector.broadcast %306 : vector<92x1xf32> to vector<92x32xf32>
    %315 = arith.subf %298, %314 : vector<92x32xf32>
    %cst_202 = arith.constant 9.99999997E-7 : f32
    %316 = vector.broadcast %cst_202 : f32 to vector<92x1xf32>
    %317 = arith.addf %313, %316 : vector<92x1xf32>
    %318 = math.rsqrt %317 : vector<92x1xf32>
    %319 = vector.broadcast %318 : vector<92x1xf32> to vector<92x32xf32>
    %320 = arith.mulf %315, %319 : vector<92x32xf32>
    %321 = vector.broadcast %300 : vector<1x32xf32> to vector<92x32xf32>
    %322 = arith.mulf %320, %321 : vector<92x32xf32>
    %323 = vector.broadcast %302 : vector<1x32xf32> to vector<92x32xf32>
    %324 = arith.addf %322, %323 : vector<92x32xf32>
    %c1_203 = arith.constant 1 : index
    %c0_204 = arith.constant 0 : index
    %c0_205 = arith.constant 0 : index
    %c0_206 = arith.constant 0 : index
    %325 = vector.load %arg19[%c1_203, %c0_204, %c0_205, %c0_206] : memref<2x2x32x16xf32, #tpu.memory_space<vmem>>, vector<1x1x32x16xf32>
    %326 = vector.shape_cast %325 : vector<1x1x32x16xf32> to vector<32x16xf32>
    %cst_207 = arith.constant dense<0.000000e+00> : vector<92x16xf32>
    %327 = tpu.matmul %324, %326, %cst_207 {dimension_numbers = #tpu.dot_dimension_numbers<[1], [0], [0], [1], [0, 0, 1, 1], [], []>} : vector<92x32xf32>, vector<32x16xf32>, vector<92x16xf32> -> vector<92x16xf32>
    %c1_208 = arith.constant 1 : index
    %c0_209 = arith.constant 0 : index
    %c0_210 = arith.constant 0 : index
    %c0_211 = arith.constant 0 : index
    %328 = vector.load %arg20[%c1_208, %c0_209, %c0_210, %c0_211] : memref<2x2x32x16xf32, #tpu.memory_space<vmem>>, vector<1x1x32x16xf32>
    %329 = vector.shape_cast %328 : vector<1x1x32x16xf32> to vector<32x16xf32>
    %cst_212 = arith.constant dense<0.000000e+00> : vector<92x16xf32>
    %330 = tpu.matmul %324, %329, %cst_212 {dimension_numbers = #tpu.dot_dimension_numbers<[1], [0], [0], [1], [0, 0, 1, 1], [], []>} : vector<92x32xf32>, vector<32x16xf32>, vector<92x16xf32> -> vector<92x16xf32>
    %c1_213 = arith.constant 1 : index
    %c0_214 = arith.constant 0 : index
    %c0_215 = arith.constant 0 : index
    %c0_216 = arith.constant 0 : index
    %331 = vector.load %arg21[%c1_213, %c0_214, %c0_215, %c0_216] : memref<2x2x32x16xf32, #tpu.memory_space<vmem>>, vector<1x1x32x16xf32>
    %332 = vector.shape_cast %331 : vector<1x1x32x16xf32> to vector<32x16xf32>
    %cst_217 = arith.constant dense<0.000000e+00> : vector<92x16xf32>
    %333 = tpu.matmul %324, %332, %cst_217 {dimension_numbers = #tpu.dot_dimension_numbers<[1], [0], [0], [1], [0, 0, 1, 1], [], []>} : vector<92x32xf32>, vector<32x16xf32>, vector<92x16xf32> -> vector<92x16xf32>
    %cst_218 = arith.constant dense<0.000000e+00> : vector<92x92xf32>
    %334 = tpu.matmul %327, %330, %cst_218 {dimension_numbers = #tpu.dot_dimension_numbers<[1], [1], [0], [0], [0, 0, 1, 0], [], []>} : vector<92x16xf32>, vector<92x16xf32>, vector<92x92xf32> -> vector<92x92xf32>
    %335 = arith.addf %334, %187 : vector<92x92xf32>
    %cst_219 = arith.constant dense<0xFF800000> : vector<92xf32>
    %336 = vector.multi_reduction <maximumf>, %335, %cst_219 [1] : vector<92x92xf32> to vector<92xf32>
    %337 = vector.shape_cast %336 : vector<92xf32> to vector<92x1xf32>
    %338 = vector.broadcast %337 : vector<92x1xf32> to vector<92x92xf32>
    %339 = arith.subf %335, %338 : vector<92x92xf32>
    %340 = math.exp %339 : vector<92x92xf32>
    %cst_220 = arith.constant dense<0.000000e+00> : vector<92xf32>
    %341 = vector.multi_reduction <add>, %340, %cst_220 [1] : vector<92x92xf32> to vector<92xf32>
    %342 = vector.shape_cast %341 : vector<92xf32> to vector<92x1xf32>
    %343 = tpu.reciprocal %342 {approx = true} : vector<92x1xf32> -> vector<92x1xf32>
    %344 = vector.broadcast %343 : vector<92x1xf32> to vector<92x92xf32>
    %345 = arith.mulf %340, %344 : vector<92x92xf32>
    %cst_221 = arith.constant dense<0.000000e+00> : vector<92x16xf32>
    %346 = tpu.matmul %345, %333, %cst_221 {dimension_numbers = #tpu.dot_dimension_numbers<[1], [0], [0], [1], [0, 0, 1, 1], [], []>} : vector<92x92xf32>, vector<92x16xf32>, vector<92x16xf32> -> vector<92x16xf32>
    %c1_222 = arith.constant 1 : index
    %c0_223 = arith.constant 0 : index
    %c0_224 = arith.constant 0 : index
    %c0_225 = arith.constant 0 : index
    %347 = vector.load %arg22[%c1_222, %c0_223, %c0_224, %c0_225] : memref<2x2x16x32xf32, #tpu.memory_space<vmem>>, vector<1x1x16x32xf32>
    %348 = vector.shape_cast %347 : vector<1x1x16x32xf32> to vector<16x32xf32>
    %cst_226 = arith.constant dense<0.000000e+00> : vector<92x32xf32>
    %349 = tpu.matmul %346, %348, %cst_226 {dimension_numbers = #tpu.dot_dimension_numbers<[1], [0], [0], [1], [0, 0, 1, 1], [], []>} : vector<92x16xf32>, vector<16x32xf32>, vector<92x32xf32> -> vector<92x32xf32>
    %c1_227 = arith.constant 1 : index
    %c1_228 = arith.constant 1 : index
    %c0_229 = arith.constant 0 : index
    %c0_230 = arith.constant 0 : index
    %350 = vector.load %arg19[%c1_227, %c1_228, %c0_229, %c0_230] : memref<2x2x32x16xf32, #tpu.memory_space<vmem>>, vector<1x1x32x16xf32>
    %351 = vector.shape_cast %350 : vector<1x1x32x16xf32> to vector<32x16xf32>
    %cst_231 = arith.constant dense<0.000000e+00> : vector<92x16xf32>
    %352 = tpu.matmul %324, %351, %cst_231 {dimension_numbers = #tpu.dot_dimension_numbers<[1], [0], [0], [1], [0, 0, 1, 1], [], []>} : vector<92x32xf32>, vector<32x16xf32>, vector<92x16xf32> -> vector<92x16xf32>
    %c1_232 = arith.constant 1 : index
    %c1_233 = arith.constant 1 : index
    %c0_234 = arith.constant 0 : index
    %c0_235 = arith.constant 0 : index
    %353 = vector.load %arg20[%c1_232, %c1_233, %c0_234, %c0_235] : memref<2x2x32x16xf32, #tpu.memory_space<vmem>>, vector<1x1x32x16xf32>
    %354 = vector.shape_cast %353 : vector<1x1x32x16xf32> to vector<32x16xf32>
    %cst_236 = arith.constant dense<0.000000e+00> : vector<92x16xf32>
    %355 = tpu.matmul %324, %354, %cst_236 {dimension_numbers = #tpu.dot_dimension_numbers<[1], [0], [0], [1], [0, 0, 1, 1], [], []>} : vector<92x32xf32>, vector<32x16xf32>, vector<92x16xf32> -> vector<92x16xf32>
    %c1_237 = arith.constant 1 : index
    %c1_238 = arith.constant 1 : index
    %c0_239 = arith.constant 0 : index
    %c0_240 = arith.constant 0 : index
    %356 = vector.load %arg21[%c1_237, %c1_238, %c0_239, %c0_240] : memref<2x2x32x16xf32, #tpu.memory_space<vmem>>, vector<1x1x32x16xf32>
    %357 = vector.shape_cast %356 : vector<1x1x32x16xf32> to vector<32x16xf32>
    %cst_241 = arith.constant dense<0.000000e+00> : vector<92x16xf32>
    %358 = tpu.matmul %324, %357, %cst_241 {dimension_numbers = #tpu.dot_dimension_numbers<[1], [0], [0], [1], [0, 0, 1, 1], [], []>} : vector<92x32xf32>, vector<32x16xf32>, vector<92x16xf32> -> vector<92x16xf32>
    %cst_242 = arith.constant dense<0.000000e+00> : vector<92x92xf32>
    %359 = tpu.matmul %352, %355, %cst_242 {dimension_numbers = #tpu.dot_dimension_numbers<[1], [1], [0], [0], [0, 0, 1, 0], [], []>} : vector<92x16xf32>, vector<92x16xf32>, vector<92x92xf32> -> vector<92x92xf32>
    %360 = arith.addf %359, %187 : vector<92x92xf32>
    %cst_243 = arith.constant dense<0xFF800000> : vector<92xf32>
    %361 = vector.multi_reduction <maximumf>, %360, %cst_243 [1] : vector<92x92xf32> to vector<92xf32>
    %362 = vector.shape_cast %361 : vector<92xf32> to vector<92x1xf32>
    %363 = vector.broadcast %362 : vector<92x1xf32> to vector<92x92xf32>
    %364 = arith.subf %360, %363 : vector<92x92xf32>
    %365 = math.exp %364 : vector<92x92xf32>
    %cst_244 = arith.constant dense<0.000000e+00> : vector<92xf32>
    %366 = vector.multi_reduction <add>, %365, %cst_244 [1] : vector<92x92xf32> to vector<92xf32>
    %367 = vector.shape_cast %366 : vector<92xf32> to vector<92x1xf32>
    %368 = tpu.reciprocal %367 {approx = true} : vector<92x1xf32> -> vector<92x1xf32>
    %369 = vector.broadcast %368 : vector<92x1xf32> to vector<92x92xf32>
    %370 = arith.mulf %365, %369 : vector<92x92xf32>
    %cst_245 = arith.constant dense<0.000000e+00> : vector<92x16xf32>
    %371 = tpu.matmul %370, %358, %cst_245 {dimension_numbers = #tpu.dot_dimension_numbers<[1], [0], [0], [1], [0, 0, 1, 1], [], []>} : vector<92x92xf32>, vector<92x16xf32>, vector<92x16xf32> -> vector<92x16xf32>
    %c1_246 = arith.constant 1 : index
    %c1_247 = arith.constant 1 : index
    %c0_248 = arith.constant 0 : index
    %c0_249 = arith.constant 0 : index
    %372 = vector.load %arg22[%c1_246, %c1_247, %c0_248, %c0_249] : memref<2x2x16x32xf32, #tpu.memory_space<vmem>>, vector<1x1x16x32xf32>
    %373 = vector.shape_cast %372 : vector<1x1x16x32xf32> to vector<16x32xf32>
    %cst_250 = arith.constant dense<0.000000e+00> : vector<92x32xf32>
    %374 = tpu.matmul %371, %373, %cst_250 {dimension_numbers = #tpu.dot_dimension_numbers<[1], [0], [0], [1], [0, 0, 1, 1], [], []>} : vector<92x16xf32>, vector<16x32xf32>, vector<92x32xf32> -> vector<92x32xf32>
    %375 = arith.addf %349, %374 : vector<92x32xf32>
    %c1_251 = arith.constant 1 : index
    %c0_252 = arith.constant 0 : index
    %c0_253 = arith.constant 0 : index
    %376 = vector.load %arg23[%c1_251, %c0_252, %c0_253] : memref<2x1x32xf32, #tpu.memory_space<vmem>>, vector<1x1x32xf32>
    %377 = vector.shape_cast %376 : vector<1x1x32xf32> to vector<1x32xf32>
    %378 = vector.broadcast %377 : vector<1x32xf32> to vector<92x32xf32>
    %379 = arith.addf %375, %378 : vector<92x32xf32>
    %380 = arith.addf %379, %324 : vector<92x32xf32>
    %c1_254 = arith.constant 1 : index
    %c0_255 = arith.constant 0 : index
    %c0_256 = arith.constant 0 : index
    %381 = vector.load %arg24[%c1_254, %c0_255, %c0_256] : memref<2x1x32xf32, #tpu.memory_space<vmem>>, vector<1x1x32xf32>
    %382 = vector.shape_cast %381 : vector<1x1x32xf32> to vector<1x32xf32>
    %c1_257 = arith.constant 1 : index
    %c0_258 = arith.constant 0 : index
    %c0_259 = arith.constant 0 : index
    %383 = vector.load %arg25[%c1_257, %c0_258, %c0_259] : memref<2x1x32xf32, #tpu.memory_space<vmem>>, vector<1x1x32xf32>
    %384 = vector.shape_cast %383 : vector<1x1x32xf32> to vector<1x32xf32>
    %cst_260 = arith.constant dense<0.000000e+00> : vector<92xf32>
    %385 = vector.multi_reduction <add>, %380, %cst_260 [1] : vector<92x32xf32> to vector<92xf32>
    %386 = vector.shape_cast %385 : vector<92xf32> to vector<92x1xf32>
    %cst_261 = arith.constant 3.200000e+01 : f32
    %387 = vector.broadcast %cst_261 : f32 to vector<92x1xf32>
    %388 = arith.divf %386, %387 : vector<92x1xf32>
    %389 = vector.broadcast %388 : vector<92x1xf32> to vector<92x32xf32>
    %390 = arith.subf %380, %389 : vector<92x32xf32>
    %391 = arith.mulf %390, %390 : vector<92x32xf32>
    %cst_262 = arith.constant dense<0.000000e+00> : vector<92xf32>
    %392 = vector.multi_reduction <add>, %391, %cst_262 [1] : vector<92x32xf32> to vector<92xf32>
    %393 = vector.shape_cast %392 : vector<92xf32> to vector<92x1xf32>
    %cst_263 = arith.constant 3.200000e+01 : f32
    %394 = vector.broadcast %cst_263 : f32 to vector<92x1xf32>
    %395 = arith.divf %393, %394 : vector<92x1xf32>
    %396 = vector.broadcast %388 : vector<92x1xf32> to vector<92x32xf32>
    %397 = arith.subf %380, %396 : vector<92x32xf32>
    %cst_264 = arith.constant 9.99999997E-7 : f32
    %398 = vector.broadcast %cst_264 : f32 to vector<92x1xf32>
    %399 = arith.addf %395, %398 : vector<92x1xf32>
    %400 = math.rsqrt %399 : vector<92x1xf32>
    %401 = vector.broadcast %400 : vector<92x1xf32> to vector<92x32xf32>
    %402 = arith.mulf %397, %401 : vector<92x32xf32>
    %403 = vector.broadcast %382 : vector<1x32xf32> to vector<92x32xf32>
    %404 = arith.mulf %402, %403 : vector<92x32xf32>
    %405 = vector.broadcast %384 : vector<1x32xf32> to vector<92x32xf32>
    %406 = arith.addf %404, %405 : vector<92x32xf32>
    %c1_265 = arith.constant 1 : index
    %c0_266 = arith.constant 0 : index
    %c0_267 = arith.constant 0 : index
    %407 = vector.load %arg26[%c1_265, %c0_266, %c0_267] : memref<2x32x64xf32, #tpu.memory_space<vmem>>, vector<1x32x64xf32>
    %408 = vector.shape_cast %407 : vector<1x32x64xf32> to vector<32x64xf32>
    %cst_268 = arith.constant dense<0.000000e+00> : vector<92x64xf32>
    %409 = tpu.matmul %406, %408, %cst_268 {dimension_numbers = #tpu.dot_dimension_numbers<[1], [0], [0], [1], [0, 0, 1, 1], [], []>} : vector<92x32xf32>, vector<32x64xf32>, vector<92x64xf32> -> vector<92x64xf32>
    %c1_269 = arith.constant 1 : index
    %c0_270 = arith.constant 0 : index
    %c0_271 = arith.constant 0 : index
    %410 = vector.load %arg27[%c1_269, %c0_270, %c0_271] : memref<2x1x64xf32, #tpu.memory_space<vmem>>, vector<1x1x64xf32>
    %411 = vector.shape_cast %410 : vector<1x1x64xf32> to vector<1x64xf32>
    %412 = vector.broadcast %411 : vector<1x64xf32> to vector<92x64xf32>
    %413 = arith.addf %409, %412 : vector<92x64xf32>
    %414 = arith.mulf %413, %413 : vector<92x64xf32>
    %415 = arith.mulf %413, %414 : vector<92x64xf32>
    %cst_272 = arith.constant 4.471500e-02 : f32
    %416 = vector.broadcast %cst_272 : f32 to vector<92x64xf32>
    %417 = arith.mulf %416, %415 : vector<92x64xf32>
    %418 = arith.addf %413, %417 : vector<92x64xf32>
    %cst_273 = arith.constant 0.797884583 : f32
    %419 = vector.broadcast %cst_273 : f32 to vector<92x64xf32>
    %420 = arith.mulf %419, %418 : vector<92x64xf32>
    %421 = math.tanh %420 : vector<92x64xf32>
    %cst_274 = arith.constant 1.000000e+00 : f32
    %422 = vector.broadcast %cst_274 : f32 to vector<92x64xf32>
    %423 = arith.addf %422, %421 : vector<92x64xf32>
    %cst_275 = arith.constant 5.000000e-01 : f32
    %424 = vector.broadcast %cst_275 : f32 to vector<92x64xf32>
    %425 = arith.mulf %424, %423 : vector<92x64xf32>
    %426 = arith.mulf %413, %425 : vector<92x64xf32>
    %c1_276 = arith.constant 1 : index
    %c0_277 = arith.constant 0 : index
    %c0_278 = arith.constant 0 : index
    %427 = vector.load %arg28[%c1_276, %c0_277, %c0_278] : memref<2x64x32xf32, #tpu.memory_space<vmem>>, vector<1x64x32xf32>
    %428 = vector.shape_cast %427 : vector<1x64x32xf32> to vector<64x32xf32>
    %cst_279 = arith.constant dense<0.000000e+00> : vector<92x32xf32>
    %429 = tpu.matmul %426, %428, %cst_279 {dimension_numbers = #tpu.dot_dimension_numbers<[1], [0], [0], [1], [0, 0, 1, 1], [], []>} : vector<92x64xf32>, vector<64x32xf32>, vector<92x32xf32> -> vector<92x32xf32>
    %c1_280 = arith.constant 1 : index
    %c0_281 = arith.constant 0 : index
    %c0_282 = arith.constant 0 : index
    %430 = vector.load %arg29[%c1_280, %c0_281, %c0_282] : memref<2x1x32xf32, #tpu.memory_space<vmem>>, vector<1x1x32xf32>
    %431 = vector.shape_cast %430 : vector<1x1x32xf32> to vector<1x32xf32>
    %432 = vector.broadcast %431 : vector<1x32xf32> to vector<92x32xf32>
    %433 = arith.addf %429, %432 : vector<92x32xf32>
    %434 = arith.addf %433, %406 : vector<92x32xf32>
    %c1_283 = arith.constant 1 : index
    %c0_284 = arith.constant 0 : index
    %c0_285 = arith.constant 0 : index
    %435 = vector.load %arg30[%c1_283, %c0_284, %c0_285] : memref<2x1x32xf32, #tpu.memory_space<vmem>>, vector<1x1x32xf32>
    %436 = vector.shape_cast %435 : vector<1x1x32xf32> to vector<1x32xf32>
    %c1_286 = arith.constant 1 : index
    %c0_287 = arith.constant 0 : index
    %c0_288 = arith.constant 0 : index
    %437 = vector.load %arg31[%c1_286, %c0_287, %c0_288] : memref<2x1x32xf32, #tpu.memory_space<vmem>>, vector<1x1x32xf32>
    %438 = vector.shape_cast %437 : vector<1x1x32xf32> to vector<1x32xf32>
    %cst_289 = arith.constant dense<0.000000e+00> : vector<92xf32>
    %439 = vector.multi_reduction <add>, %434, %cst_289 [1] : vector<92x32xf32> to vector<92xf32>
    %440 = vector.shape_cast %439 : vector<92xf32> to vector<92x1xf32>
    %cst_290 = arith.constant 3.200000e+01 : f32
    %441 = vector.broadcast %cst_290 : f32 to vector<92x1xf32>
    %442 = arith.divf %440, %441 : vector<92x1xf32>
    %443 = vector.broadcast %442 : vector<92x1xf32> to vector<92x32xf32>
    %444 = arith.subf %434, %443 : vector<92x32xf32>
    %445 = arith.mulf %444, %444 : vector<92x32xf32>
    %cst_291 = arith.constant dense<0.000000e+00> : vector<92xf32>
    %446 = vector.multi_reduction <add>, %445, %cst_291 [1] : vector<92x32xf32> to vector<92xf32>
    %447 = vector.shape_cast %446 : vector<92xf32> to vector<92x1xf32>
    %cst_292 = arith.constant 3.200000e+01 : f32
    %448 = vector.broadcast %cst_292 : f32 to vector<92x1xf32>
    %449 = arith.divf %447, %448 : vector<92x1xf32>
    %450 = vector.broadcast %442 : vector<92x1xf32> to vector<92x32xf32>
    %451 = arith.subf %434, %450 : vector<92x32xf32>
    %cst_293 = arith.constant 9.99999997E-7 : f32
    %452 = vector.broadcast %cst_293 : f32 to vector<92x1xf32>
    %453 = arith.addf %449, %452 : vector<92x1xf32>
    %454 = math.rsqrt %453 : vector<92x1xf32>
    %455 = vector.broadcast %454 : vector<92x1xf32> to vector<92x32xf32>
    %456 = arith.mulf %451, %455 : vector<92x32xf32>
    %457 = vector.broadcast %436 : vector<1x32xf32> to vector<92x32xf32>
    %458 = arith.mulf %456, %457 : vector<92x32xf32>
    %459 = vector.broadcast %438 : vector<1x32xf32> to vector<92x32xf32>
    %460 = arith.addf %458, %459 : vector<92x32xf32>
    %c0_294 = arith.constant 0 : index
    %c0_295 = arith.constant 0 : index
    %c0_296 = arith.constant 0 : index
    %461 = vector.load %arg32[%c0_294, %c0_295, %c0_296] : memref<4x2x92xf32, #tpu.memory_space<vmem>>, vector<1x2x92xf32>
    %462 = vector.shape_cast %461 : vector<1x2x92xf32> to vector<2x92xf32>
    %cst_297 = arith.constant dense<0.000000e+00> : vector<2x32xf32>
    %463 = tpu.matmul %462, %460, %cst_297 {dimension_numbers = #tpu.dot_dimension_numbers<[1], [0], [0], [1], [0, 0, 1, 1], [], []>} : vector<2x92xf32>, vector<92x32xf32>, vector<2x32xf32> -> vector<2x32xf32>
    %c0_298 = arith.constant 0 : index
    %c0_299 = arith.constant 0 : index
    %c0_300 = arith.constant 0 : index
    %464 = vector.load %arg33[%c0_298, %c0_299, %c0_300] : memref<4x32x32xf32, #tpu.memory_space<vmem>>, vector<1x32x32xf32>
    %465 = vector.shape_cast %464 : vector<1x32x32xf32> to vector<32x32xf32>
    %cst_301 = arith.constant dense<0.000000e+00> : vector<2x32xf32>
    %466 = tpu.matmul %463, %465, %cst_301 {dimension_numbers = #tpu.dot_dimension_numbers<[1], [0], [0], [1], [0, 0, 1, 1], [], []>} : vector<2x32xf32>, vector<32x32xf32>, vector<2x32xf32> -> vector<2x32xf32>
    %c1_302 = arith.constant 1 : index
    %c0_303 = arith.constant 0 : index
    %c0_304 = arith.constant 0 : index
    %467 = vector.load %arg32[%c1_302, %c0_303, %c0_304] : memref<4x2x92xf32, #tpu.memory_space<vmem>>, vector<1x2x92xf32>
    %468 = vector.shape_cast %467 : vector<1x2x92xf32> to vector<2x92xf32>
    %cst_305 = arith.constant dense<0.000000e+00> : vector<2x32xf32>
    %469 = tpu.matmul %468, %460, %cst_305 {dimension_numbers = #tpu.dot_dimension_numbers<[1], [0], [0], [1], [0, 0, 1, 1], [], []>} : vector<2x92xf32>, vector<92x32xf32>, vector<2x32xf32> -> vector<2x32xf32>
    %c1_306 = arith.constant 1 : index
    %c0_307 = arith.constant 0 : index
    %c0_308 = arith.constant 0 : index
    %470 = vector.load %arg33[%c1_306, %c0_307, %c0_308] : memref<4x32x32xf32, #tpu.memory_space<vmem>>, vector<1x32x32xf32>
    %471 = vector.shape_cast %470 : vector<1x32x32xf32> to vector<32x32xf32>
    %cst_309 = arith.constant dense<0.000000e+00> : vector<2x32xf32>
    %472 = tpu.matmul %469, %471, %cst_309 {dimension_numbers = #tpu.dot_dimension_numbers<[1], [0], [0], [1], [0, 0, 1, 1], [], []>} : vector<2x32xf32>, vector<32x32xf32>, vector<2x32xf32> -> vector<2x32xf32>
    %473 = arith.addf %466, %472 : vector<2x32xf32>
    %c2 = arith.constant 2 : index
    %c0_310 = arith.constant 0 : index
    %c0_311 = arith.constant 0 : index
    %474 = vector.load %arg32[%c2, %c0_310, %c0_311] : memref<4x2x92xf32, #tpu.memory_space<vmem>>, vector<1x2x92xf32>
    %475 = vector.shape_cast %474 : vector<1x2x92xf32> to vector<2x92xf32>
    %cst_312 = arith.constant dense<0.000000e+00> : vector<2x32xf32>
    %476 = tpu.matmul %475, %460, %cst_312 {dimension_numbers = #tpu.dot_dimension_numbers<[1], [0], [0], [1], [0, 0, 1, 1], [], []>} : vector<2x92xf32>, vector<92x32xf32>, vector<2x32xf32> -> vector<2x32xf32>
    %c2_313 = arith.constant 2 : index
    %c0_314 = arith.constant 0 : index
    %c0_315 = arith.constant 0 : index
    %477 = vector.load %arg33[%c2_313, %c0_314, %c0_315] : memref<4x32x32xf32, #tpu.memory_space<vmem>>, vector<1x32x32xf32>
    %478 = vector.shape_cast %477 : vector<1x32x32xf32> to vector<32x32xf32>
    %cst_316 = arith.constant dense<0.000000e+00> : vector<2x32xf32>
    %479 = tpu.matmul %476, %478, %cst_316 {dimension_numbers = #tpu.dot_dimension_numbers<[1], [0], [0], [1], [0, 0, 1, 1], [], []>} : vector<2x32xf32>, vector<32x32xf32>, vector<2x32xf32> -> vector<2x32xf32>
    %480 = arith.addf %473, %479 : vector<2x32xf32>
    %c3 = arith.constant 3 : index
    %c0_317 = arith.constant 0 : index
    %c0_318 = arith.constant 0 : index
    %481 = vector.load %arg32[%c3, %c0_317, %c0_318] : memref<4x2x92xf32, #tpu.memory_space<vmem>>, vector<1x2x92xf32>
    %482 = vector.shape_cast %481 : vector<1x2x92xf32> to vector<2x92xf32>
    %cst_319 = arith.constant dense<0.000000e+00> : vector<2x32xf32>
    %483 = tpu.matmul %482, %460, %cst_319 {dimension_numbers = #tpu.dot_dimension_numbers<[1], [0], [0], [1], [0, 0, 1, 1], [], []>} : vector<2x92xf32>, vector<92x32xf32>, vector<2x32xf32> -> vector<2x32xf32>
    %c3_320 = arith.constant 3 : index
    %c0_321 = arith.constant 0 : index
    %c0_322 = arith.constant 0 : index
    %484 = vector.load %arg33[%c3_320, %c0_321, %c0_322] : memref<4x32x32xf32, #tpu.memory_space<vmem>>, vector<1x32x32xf32>
    %485 = vector.shape_cast %484 : vector<1x32x32xf32> to vector<32x32xf32>
    %cst_323 = arith.constant dense<0.000000e+00> : vector<2x32xf32>
    %486 = tpu.matmul %483, %485, %cst_323 {dimension_numbers = #tpu.dot_dimension_numbers<[1], [0], [0], [1], [0, 0, 1, 1], [], []>} : vector<2x32xf32>, vector<32x32xf32>, vector<2x32xf32> -> vector<2x32xf32>
    %487 = arith.addf %480, %486 : vector<2x32xf32>
    %c0_324 = arith.constant 0 : index
    %c0_325 = arith.constant 0 : index
    %488 = vector.load %arg34[%c0_324, %c0_325] : memref<2x32xf32, #tpu.memory_space<vmem>>, vector<2x32xf32>
    tpu.vector_store %arg34[%c0_324, %c0_325], %487 {strides = array<i32>} : memref<2x32xf32, #tpu.memory_space<vmem>>, vector<2x32xf32>,
    return
  }
}

</mosaic_0001>

<llo_original>
// kernel: _lambda_.1
$region0: #{_lambda_.1}
  #allocation0 [shape = 'u32[]', space=smem, size = 0x4, offset = 0x4, fixed_abs, tag = 'smem constant byte address 0x4 - core index']
  #allocation1 [shape = 'u32[144,128]{1,0:T(1,128)}', space=vmem, size = 0x12000, scoped, tag = 'internal scratch']
  #allocation2 [shape = 'f32[92,32]{1,0:T(8,128)}', space=vmem, size = 0xc000, scoped, tag = 'scratch operand']
  %s0 = inlined_call_operand.smem [shape: u32[35], index: -1, kind: input, shape index: {}]
  %s1 = sld [smem:[%s0]]
  %s2 = scalar_lea.smem %s0, 1
  %s3 = sld [smem:[%s2]]
  %s4 = scalar_lea.smem %s0, 2
  %s5 = sld [smem:[%s4]]
  %s6 = scalar_lea.smem %s0, 3
  %s7 = sld [smem:[%s6]]
  %s8 = scalar_lea.smem %s0, 4
  %s9 = sld [smem:[%s8]]
  %s10 = scalar_lea.smem %s0, 5
  %s11 = sld [smem:[%s10]]
  %s12 = scalar_lea.smem %s0, 6
  %s13 = sld [smem:[%s12]]
  %s14 = scalar_lea.smem %s0, 7
  %s15 = sld [smem:[%s14]]
  %s16 = scalar_lea.smem %s0, 8
  %s17 = sld [smem:[%s16]]
  %s18 = scalar_lea.smem %s0, 9
  %s19 = sld [smem:[%s18]]
  %s20 = scalar_lea.smem %s0, 10
  %s21 = sld [smem:[%s20]]
  %s22 = scalar_lea.smem %s0, 11
  %s23 = sld [smem:[%s22]]
  %s24 = scalar_lea.smem %s0, 12
  %s25 = sld [smem:[%s24]]
  %s26 = scalar_lea.smem %s0, 13
  %s27 = sld [smem:[%s26]]
  %s28 = scalar_lea.smem %s0, 14
  %s29 = sld [smem:[%s28]]
  %s30 = scalar_lea.smem %s0, 15
  %s31 = sld [smem:[%s30]]
  %s32 = scalar_lea.smem %s0, 16
  %s33 = sld [smem:[%s32]]
  %s34 = scalar_lea.smem %s0, 17
  %s35 = sld [smem:[%s34]]
  %s36 = scalar_lea.smem %s0, 18
  %s37 = sld [smem:[%s36]]
  %s38 = scalar_lea.smem %s0, 19
  %s39 = sld [smem:[%s38]]
  %s40 = scalar_lea.smem %s0, 20
  %s41 = sld [smem:[%s40]]
  %s42 = scalar_lea.smem %s0, 21
  %s43 = sld [smem:[%s42]]
  %s44 = scalar_lea.smem %s0, 22
  %s45 = sld [smem:[%s44]]
  %s46 = scalar_lea.smem %s0, 23
  %s47 = sld [smem:[%s46]]
  %s48 = scalar_lea.smem %s0, 24
  %s49 = sld [smem:[%s48]]
  %s50 = scalar_lea.smem %s0, 25
  %s51 = sld [smem:[%s50]]
  %s52 = scalar_lea.smem %s0, 26
  %s53 = sld [smem:[%s52]]
  %s54 = scalar_lea.smem %s0, 27
  %s55 = sld [smem:[%s54]]
  %s56 = scalar_lea.smem %s0, 28
  %s57 = sld [smem:[%s56]]
  %s58 = scalar_lea.smem %s0, 29
  %s59 = sld [smem:[%s58]]
  %s60 = scalar_lea.smem %s0, 30
  %s61 = sld [smem:[%s60]]
  %s62 = scalar_lea.smem %s0, 31
  %s63 = sld [smem:[%s62]]
  %s64 = scalar_lea.smem %s0, 32
  %s65 = sld [smem:[%s64]]
  %s66 = scalar_lea.smem %s0, 33
  %s67 = sld [smem:[%s66]]
  %s68 = scalar_lea.smem %s0, 34
  %s69 = sld [smem:[%s68]]
  %s70 = sld [smem:[#allocation0]]
  $region230: #{_lambda_.1} parent=0
    _
  %s72 = ssub.s32 1, %s70
  %s73 = scalar_select 0, %s72, %s70
  $region1: #{_lambda_.1} parent=0
    #allocation3 [shape = 'u8[8192]{0}', space=vmem, size = 0x2000, scoped, tag = 'input window, operand 1, single buffered']
    #allocation4 [shape = 's32[1]{0}', space=sflag, size = 0x4, scoped, tag = 'scoped memory for _lambda_.1']
    #allocation5 [shape = 'u8[24576]{0}', space=vmem, size = 0x6000, scoped, tag = 'input window, operand 5, single buffered']
    #allocation6 [shape = 's32[1]{0}', space=sflag, size = 0x4, scoped, tag = 'scoped memory for _lambda_.1']
    #allocation7 [shape = 'u8[16384]{0}', space=vmem, size = 0x4000, scoped, tag = 'input window, operand 6, single buffered']
    #allocation8 [shape = 'u8[512]{0}', space=vmem, size = 0x400, scoped, tag = 'input window, operand 7, single buffered']
    #allocation9 [shape = 's32[1]{0}', space=sflag, size = 0x4, scoped, tag = 'scoped memory for _lambda_.1']
    #allocation10 [shape = 'u8[16384]{0}', space=vmem, size = 0x4000, scoped, tag = 'input window, operand 8, single buffered']
    #allocation11 [shape = 'u8[16384]{0}', space=vmem, size = 0x4000, scoped, tag = 'input window, operand 9, single buffered']
    #allocation12 [shape = 's32[1]{0}', space=sflag, size = 0x4, scoped, tag = 'scoped memory for _lambda_.1']
    #allocation13 [shape = 'u8[512]{0}', space=vmem, size = 0x400, scoped, tag = 'input window, operand 10, single buffered']
    #allocation14 [shape = 'u8[8192]{0}', space=vmem, size = 0x2000, scoped, tag = 'input window, operand 11, single buffered']
    #allocation15 [shape = 's32[1]{0}', space=sflag, size = 0x4, scoped, tag = 'scoped memory for _lambda_.1']
    #allocation16 [shape = 'u8[16384]{0}', space=vmem, size = 0x4000, scoped, tag = 'input window, operand 12, single buffered']
    #allocation17 [shape = 'u8[512]{0}', space=vmem, size = 0x400, scoped, tag = 'input window, operand 13, single buffered']
    #allocation18 [shape = 's32[1]{0}', space=sflag, size = 0x4, scoped, tag = 'scoped memory for _lambda_.1']
    #allocation19 [shape = 'u8[8192]{0}', space=vmem, size = 0x2000, scoped, tag = 'input window, operand 14, single buffered']
    #allocation20 [shape = 'u8[512]{0}', space=vmem, size = 0x400, scoped, tag = 'input window, operand 15, single buffered']
    #allocation21 [shape = 's32[1]{0}', space=sflag, size = 0x4, scoped, tag = 'scoped memory for _lambda_.1']
    #allocation22 [shape = 'u8[65536]{0}', space=vmem, size = 0x10000, scoped, tag = 'input window, operand 21, single buffered']
    #allocation23 [shape = 'u8[32768]{0}', space=vmem, size = 0x8000, scoped, tag = 'input window, operand 22, single buffered']
    #allocation24 [shape = 's32[1]{0}', space=sflag, size = 0x4, scoped, tag = 'scoped memory for _lambda_.1']
    #allocation25 [shape = 'u8[1024]{0}', space=vmem, size = 0x400, scoped, tag = 'input window, operand 23, single buffered']
    #allocation26 [shape = 'u8[32768]{0}', space=vmem, size = 0x8000, scoped, tag = 'input window, operand 26, single buffered']
    #allocation27 [shape = 's32[1]{0}', space=sflag, size = 0x4, scoped, tag = 'scoped memory for _lambda_.1']
    #allocation28 [shape = 'u8[1024]{0}', space=vmem, size = 0x400, scoped, tag = 'input window, operand 27, single buffered']
    #allocation29 [shape = 'u8[65536]{0}', space=vmem, size = 0x10000, scoped, tag = 'input window, operand 28, single buffered']
    #allocation30 [shape = 's32[1]{0}', space=sflag, size = 0x4, scoped, tag = 'scoped memory for _lambda_.1']
    #allocation31 [shape = 'u8[1024]{0}', space=vmem, size = 0x400, scoped, tag = 'input window, operand 29, single buffered']
    #allocation32 [shape = 'u8[4096]{0}', space=vmem, size = 0x1000, scoped, tag = 'input window, operand 32, single buffered']
    #allocation33 [shape = 's32[1]{0}', space=sflag, size = 0x4, scoped, tag = 'scoped memory for _lambda_.1']
    #allocation34 [shape = 'u8[65536]{0}', space=vmem, size = 0x10000, scoped, tag = 'input window, operand 33, single buffered']
    %74 = vsyncpa [#allocation4], 0
    %75 = vsyncpa [#allocation6], 0
    %76 = vsyncpa [#allocation9], 0
    %77 = vsyncpa [#allocation12], 0
    %78 = vsyncpa [#allocation15], 0
    %79 = vsyncpa [#allocation18], 0
    %80 = vsyncpa [#allocation21], 0
    %81 = vsyncpa [#allocation24], 0
    %82 = vsyncpa [#allocation27], 0
    %83 = vsyncpa [#allocation30], 0
    %84 = vsyncpa [#allocation33], 0
    // Predicated region
    $region2: #{_lambda_.1} parent=1 // pred_check
      _
    $region3: #{_lambda_.1} parent=1 // pred_check_branch
      %86 = sbr.rel (0) target = $region5
    $region4: #{_lambda_.1} parent=1 // pred_region
      _
    $region5: #{_lambda_.1} parent=1 // pred_fallthru
      _
    // Predicated region
    $region6: #{_lambda_.1} parent=1 // pred_check
      _
    $region7: #{_lambda_.1} parent=1 // pred_check_branch
      %88 = sbr.rel (0) target = $region9
    $region8: #{_lambda_.1} parent=1 // pred_region
      %s90 = ssub.s32 256, 256
      %91 = vsyncadd [#allocation4], %s90
      %s92 = sshll.u32 [#allocation3], 4
      %s93 = int_to_ptr.vmem [resolvable:$true] %s92
      %98 = dma.hbm_to_vmem [thread:$0]  %s3, 256, %s93, [#allocation4], 128, 128, 8
    $region9: #{_lambda_.1} parent=1 // pred_fallthru
      _
    // Predicated region
    $region10: #{_lambda_.1} parent=1 // pred_check
      _
    $region11: #{_lambda_.1} parent=1 // pred_check_branch
      %100 = sbr.rel (0) target = $region13
    $region12: #{_lambda_.1} parent=1 // pred_region
      _
    $region13: #{_lambda_.1} parent=1 // pred_fallthru
      _
    // Predicated region
    $region14: #{_lambda_.1} parent=1 // pred_check
      _
    $region15: #{_lambda_.1} parent=1 // pred_check_branch
      %102 = sbr.rel (0) target = $region17
    $region16: #{_lambda_.1} parent=1 // pred_region
      _
    $region17: #{_lambda_.1} parent=1 // pred_fallthru
      _
    // Predicated region
    $region18: #{_lambda_.1} parent=1 // pred_check
      _
    $region19: #{_lambda_.1} parent=1 // pred_check_branch
      %104 = sbr.rel (0) target = $region21
    $region20: #{_lambda_.1} parent=1 // pred_region
      _
    $region21: #{_lambda_.1} parent=1 // pred_fallthru
      _
    // Predicated region
    $region22: #{_lambda_.1} parent=1 // pred_check
      _
    $region23: #{_lambda_.1} parent=1 // pred_check_branch
      %106 = sbr.rel (0) target = $region25
    $region24: #{_lambda_.1} parent=1 // pred_region
      %s108 = ssub.s32 768, 768
      %109 = vsyncadd [#allocation6], %s108
      %s110 = sshll.u32 [#allocation5], 4
      %s111 = int_to_ptr.vmem [resolvable:$true] %s110
      %116 = dma.hbm_to_vmem [thread:$0]  %s11, 768, %s111, [#allocation6], 128, 128, 8
    $region25: #{_lambda_.1} parent=1 // pred_fallthru
      _
    // Predicated region
    $region26: #{_lambda_.1} parent=1 // pred_check
      _
    $region27: #{_lambda_.1} parent=1 // pred_check_branch
      %118 = sbr.rel (0) target = $region29
    $region28: #{_lambda_.1} parent=1 // pred_region
      %s120 = ssub.s32 512, 512
      %121 = vsyncadd [#allocation6], %s120
      %s122 = sshll.u32 [#allocation7], 4
      %s123 = int_to_ptr.vmem [resolvable:$true] %s122
      %128 = dma.hbm_to_vmem [thread:$0]  %s13, 512, %s123, [#allocation6], 128, 128, 8
    $region29: #{_lambda_.1} parent=1 // pred_fallthru
      _
    // Predicated region
    $region30: #{_lambda_.1} parent=1 // pred_check
      _
    $region31: #{_lambda_.1} parent=1 // pred_check_branch
      %130 = sbr.rel (0) target = $region33
    $region32: #{_lambda_.1} parent=1 // pred_region
      %s132 = ssub.s32 16, 16
      %133 = vsyncadd [#allocation9], %s132
      %s135 = sshll.u32 [#allocation8], 4
      %s136 = int_to_ptr.vmem [resolvable:$true] %s135
      %138 = dma.hbm_to_vmem [thread:$0]  %s15, 16, %s136, [#allocation9]
    $region33: #{_lambda_.1} parent=1 // pred_fallthru
      _
    // Predicated region
    $region34: #{_lambda_.1} parent=1 // pred_check
      _
    $region35: #{_lambda_.1} parent=1 // pred_check_branch
      %140 = sbr.rel (0) target = $region37
    $region36: #{_lambda_.1} parent=1 // pred_region
      %s142 = ssub.s32 512, 512
      %143 = vsyncadd [#allocation9], %s142
      %s144 = sshll.u32 [#allocation10], 4
      %s145 = int_to_ptr.vmem [resolvable:$true] %s144
      %150 = dma.hbm_to_vmem [thread:$0]  %s17, 512, %s145, [#allocation9], 128, 128, 8
    $region37: #{_lambda_.1} parent=1 // pred_fallthru
      _
    // Predicated region
    $region38: #{_lambda_.1} parent=1 // pred_check
      _
    $region39: #{_lambda_.1} parent=1 // pred_check_branch
      %152 = sbr.rel (0) target = $region41
    $region40: #{_lambda_.1} parent=1 // pred_region
      %s154 = ssub.s32 512, 512
      %155 = vsyncadd [#allocation12], %s154
      %s156 = sshll.u32 [#allocation11], 4
      %s157 = int_to_ptr.vmem [resolvable:$true] %s156
      %162 = dma.hbm_to_vmem [thread:$0]  %s19, 512, %s157, [#allocation12], 128, 128, 8
    $region41: #{_lambda_.1} parent=1 // pred_fallthru
      _
    // Predicated region
    $region42: #{_lambda_.1} parent=1 // pred_check
      _
    $region43: #{_lambda_.1} parent=1 // pred_check_branch
      %164 = sbr.rel (0) target = $region45
    $region44: #{_lambda_.1} parent=1 // pred_region
      %s166 = ssub.s32 16, 16
      %167 = vsyncadd [#allocation12], %s166
      %s169 = sshll.u32 [#allocation13], 4
      %s170 = int_to_ptr.vmem [resolvable:$true] %s169
      %172 = dma.hbm_to_vmem [thread:$0]  %s21, 16, %s170, [#allocation12]
    $region45: #{_lambda_.1} parent=1 // pred_fallthru
      _
    // Predicated region
    $region46: #{_lambda_.1} parent=1 // pred_check
      _
    $region47: #{_lambda_.1} parent=1 // pred_check_branch
      %174 = sbr.rel (0) target = $region49
    $region48: #{_lambda_.1} parent=1 // pred_region
      %s176 = ssub.s32 256, 256
      %177 = vsyncadd [#allocation15], %s176
      %s178 = sshll.u32 [#allocation14], 4
      %s179 = int_to_ptr.vmem [resolvable:$true] %s178
      %184 = dma.hbm_to_vmem [thread:$0]  %s23, 256, %s179, [#allocation15], 128, 128, 8
    $region49: #{_lambda_.1} parent=1 // pred_fallthru
      _
    // Predicated region
    $region50: #{_lambda_.1} parent=1 // pred_check
      _
    $region51: #{_lambda_.1} parent=1 // pred_check_branch
      %186 = sbr.rel (0) target = $region53
    $region52: #{_lambda_.1} parent=1 // pred_region
      %s188 = ssub.s32 512, 512
      %189 = vsyncadd [#allocation15], %s188
      %s190 = sshll.u32 [#allocation16], 4
      %s191 = int_to_ptr.vmem [resolvable:$true] %s190
      %196 = dma.hbm_to_vmem [thread:$0]  %s25, 512, %s191, [#allocation15], 128, 128, 8
    $region53: #{_lambda_.1} parent=1 // pred_fallthru
      _
    // Predicated region
    $region54: #{_lambda_.1} parent=1 // pred_check
      _
    $region55: #{_lambda_.1} parent=1 // pred_check_branch
      %198 = sbr.rel (0) target = $region57
    $region56: #{_lambda_.1} parent=1 // pred_region
      %s200 = ssub.s32 16, 16
      %201 = vsyncadd [#allocation18], %s200
      %s203 = sshll.u32 [#allocation17], 4
      %s204 = int_to_ptr.vmem [resolvable:$true] %s203
      %206 = dma.hbm_to_vmem [thread:$0]  %s27, 16, %s204, [#allocation18]
    $region57: #{_lambda_.1} parent=1 // pred_fallthru
      _
    // Predicated region
    $region58: #{_lambda_.1} parent=1 // pred_check
      _
    $region59: #{_lambda_.1} parent=1 // pred_check_branch
      %208 = sbr.rel (0) target = $region61
    $region60: #{_lambda_.1} parent=1 // pred_region
      %s210 = ssub.s32 256, 256
      %211 = vsyncadd [#allocation18], %s210
      %s212 = sshll.u32 [#allocation19], 4
      %s213 = int_to_ptr.vmem [resolvable:$true] %s212
      %218 = dma.hbm_to_vmem [thread:$0]  %s29, 256, %s213, [#allocation18], 128, 128, 8
    $region61: #{_lambda_.1} parent=1 // pred_fallthru
      _
    // Predicated region
    $region62: #{_lambda_.1} parent=1 // pred_check
      _
    $region63: #{_lambda_.1} parent=1 // pred_check_branch
      %220 = sbr.rel (0) target = $region65
    $region64: #{_lambda_.1} parent=1 // pred_region
      %s222 = ssub.s32 16, 16
      %223 = vsyncadd [#allocation21], %s222
      %s225 = sshll.u32 [#allocation20], 4
      %s226 = int_to_ptr.vmem [resolvable:$true] %s225
      %228 = dma.hbm_to_vmem [thread:$0]  %s31, 16, %s226, [#allocation21]
    $region65: #{_lambda_.1} parent=1 // pred_fallthru
      _
    // Predicated region
    $region66: #{_lambda_.1} parent=1 // pred_check
      _
    $region67: #{_lambda_.1} parent=1 // pred_check_branch
      %230 = sbr.rel (0) target = $region69
    $region68: #{_lambda_.1} parent=1 // pred_region
      _
    $region69: #{_lambda_.1} parent=1 // pred_fallthru
      _
    // Predicated region
    $region70: #{_lambda_.1} parent=1 // pred_check
      _
    $region71: #{_lambda_.1} parent=1 // pred_check_branch
      %232 = sbr.rel (0) target = $region73
    $region72: #{_lambda_.1} parent=1 // pred_region
      _
    $region73: #{_lambda_.1} parent=1 // pred_fallthru
      _
    // Predicated region
    $region74: #{_lambda_.1} parent=1 // pred_check
      _
    $region75: #{_lambda_.1} parent=1 // pred_check_branch
      %234 = sbr.rel (0) target = $region77
    $region76: #{_lambda_.1} parent=1 // pred_region
      _
    $region77: #{_lambda_.1} parent=1 // pred_fallthru
      _
    // Predicated region
    $region78: #{_lambda_.1} parent=1 // pred_check
      _
    $region79: #{_lambda_.1} parent=1 // pred_check_branch
      %236 = sbr.rel (0) target = $region81
    $region80: #{_lambda_.1} parent=1 // pred_region
      _
    $region81: #{_lambda_.1} parent=1 // pred_fallthru
      _
    // Predicated region
    $region82: #{_lambda_.1} parent=1 // pred_check
      _
    $region83: #{_lambda_.1} parent=1 // pred_check_branch
      %238 = sbr.rel (0) target = $region85
    $region84: #{_lambda_.1} parent=1 // pred_region
      _
    $region85: #{_lambda_.1} parent=1 // pred_fallthru
      _
    // Predicated region
    $region86: #{_lambda_.1} parent=1 // pred_check
      _
    $region87: #{_lambda_.1} parent=1 // pred_check_branch
      %240 = sbr.rel (0) target = $region89
    $region88: #{_lambda_.1} parent=1 // pred_region
      %s242 = ssub.s32 2048, 2048
      %243 = vsyncadd [#allocation21], %s242
      %s244 = sshll.u32 [#allocation22], 4
      %s245 = int_to_ptr.vmem [resolvable:$true] %s244
      %250 = dma.hbm_to_vmem [thread:$0]  %s43, 2048, %s245, [#allocation21], 128, 128, 8
    $region89: #{_lambda_.1} parent=1 // pred_fallthru
      _
    // Predicated region
    $region90: #{_lambda_.1} parent=1 // pred_check
      _
    $region91: #{_lambda_.1} parent=1 // pred_check_branch
      %252 = sbr.rel (0) target = $region93
    $region92: #{_lambda_.1} parent=1 // pred_region
      %s254 = ssub.s32 1024, 1024
      %255 = vsyncadd [#allocation24], %s254
      %s256 = sshll.u32 [#allocation23], 4
      %s257 = int_to_ptr.vmem [resolvable:$true] %s256
      %262 = dma.hbm_to_vmem [thread:$0]  %s45, 1024, %s257, [#allocation24], 128, 128, 8
    $region93: #{_lambda_.1} parent=1 // pred_fallthru
      _
    // Predicated region
    $region94: #{_lambda_.1} parent=1 // pred_check
      _
    $region95: #{_lambda_.1} parent=1 // pred_check_branch
      %264 = sbr.rel (0) target = $region97
    $region96: #{_lambda_.1} parent=1 // pred_region
      %s266 = ssub.s32 32, 32
      %267 = vsyncadd [#allocation24], %s266
      %s268 = sshll.u32 [#allocation25], 4
      %s269 = int_to_ptr.vmem [resolvable:$true] %s268
      %274 = dma.hbm_to_vmem [thread:$0]  %s47, 32, %s269, [#allocation24], 16, 16, 1
    $region97: #{_lambda_.1} parent=1 // pred_fallthru
      _
    // Predicated region
    $region98: #{_lambda_.1} parent=1 // pred_check
      _
    $region99: #{_lambda_.1} parent=1 // pred_check_branch
      %276 = sbr.rel (0) target = $region101
    $region100: #{_lambda_.1} parent=1 // pred_region
      _
    $region101: #{_lambda_.1} parent=1 // pred_fallthru
      _
    // Predicated region
    $region102: #{_lambda_.1} parent=1 // pred_check
      _
    $region103: #{_lambda_.1} parent=1 // pred_check_branch
      %278 = sbr.rel (0) target = $region105
    $region104: #{_lambda_.1} parent=1 // pred_region
      _
    $region105: #{_lambda_.1} parent=1 // pred_fallthru
      _
    // Predicated region
    $region106: #{_lambda_.1} parent=1 // pred_check
      _
    $region107: #{_lambda_.1} parent=1 // pred_check_branch
      %280 = sbr.rel (0) target = $region109
    $region108: #{_lambda_.1} parent=1 // pred_region
      %s282 = ssub.s32 1024, 1024
      %283 = vsyncadd [#allocation27], %s282
      %s284 = sshll.u32 [#allocation26], 4
      %s285 = int_to_ptr.vmem [resolvable:$true] %s284
      %290 = dma.hbm_to_vmem [thread:$0]  %s53, 1024, %s285, [#allocation27], 128, 128, 8
    $region109: #{_lambda_.1} parent=1 // pred_fallthru
      _
    // Predicated region
    $region110: #{_lambda_.1} parent=1 // pred_check
      _
    $region111: #{_lambda_.1} parent=1 // pred_check_branch
      %292 = sbr.rel (0) target = $region113
    $region112: #{_lambda_.1} parent=1 // pred_region
      %s294 = ssub.s32 32, 32
      %295 = vsyncadd [#allocation27], %s294
      %s296 = sshll.u32 [#allocation28], 4
      %s297 = int_to_ptr.vmem [resolvable:$true] %s296
      %302 = dma.hbm_to_vmem [thread:$0]  %s55, 32, %s297, [#allocation27], 16, 16, 1
    $region113: #{_lambda_.1} parent=1 // pred_fallthru
      _
    // Predicated region
    $region114: #{_lambda_.1} parent=1 // pred_check
      _
    $region115: #{_lambda_.1} parent=1 // pred_check_branch
      %304 = sbr.rel (0) target = $region117
    $region116: #{_lambda_.1} parent=1 // pred_region
      %s306 = ssub.s32 2048, 2048
      %307 = vsyncadd [#allocation30], %s306
      %s308 = sshll.u32 [#allocation29], 4
      %s309 = int_to_ptr.vmem [resolvable:$true] %s308
      %314 = dma.hbm_to_vmem [thread:$0]  %s57, 2048, %s309, [#allocation30], 128, 128, 8
    $region117: #{_lambda_.1} parent=1 // pred_fallthru
      _
    // Predicated region
    $region118: #{_lambda_.1} parent=1 // pred_check
      _
    $region119: #{_lambda_.1} parent=1 // pred_check_branch
      %316 = sbr.rel (0) target = $region121
    $region120: #{_lambda_.1} parent=1 // pred_region
      %s318 = ssub.s32 32, 32
      %319 = vsyncadd [#allocation30], %s318
      %s320 = sshll.u32 [#allocation31], 4
      %s321 = int_to_ptr.vmem [resolvable:$true] %s320
      %326 = dma.hbm_to_vmem [thread:$0]  %s59, 32, %s321, [#allocation30], 16, 16, 1
    $region121: #{_lambda_.1} parent=1 // pred_fallthru
      _
    // Predicated region
    $region122: #{_lambda_.1} parent=1 // pred_check
      _
    $region123: #{_lambda_.1} parent=1 // pred_check_branch
      %328 = sbr.rel (0) target = $region125
    $region124: #{_lambda_.1} parent=1 // pred_region
      _
    $region125: #{_lambda_.1} parent=1 // pred_fallthru
      _
    // Predicated region
    $region126: #{_lambda_.1} parent=1 // pred_check
      _
    $region127: #{_lambda_.1} parent=1 // pred_check_branch
      %330 = sbr.rel (0) target = $region129
    $region128: #{_lambda_.1} parent=1 // pred_region
      _
    $region129: #{_lambda_.1} parent=1 // pred_fallthru
      _
    // Predicated region
    $region130: #{_lambda_.1} parent=1 // pred_check
      _
    $region131: #{_lambda_.1} parent=1 // pred_check_branch
      %332 = sbr.rel (0) target = $region133
    $region132: #{_lambda_.1} parent=1 // pred_region
      %s334 = ssub.s32 128, 128
      %335 = vsyncadd [#allocation33], %s334
      %s336 = sshll.u32 [#allocation32], 4
      %s337 = int_to_ptr.vmem [resolvable:$true] %s336
      %342 = dma.hbm_to_vmem [thread:$0]  %s65, 128, %s337, [#allocation33], 32, 32, 2
    $region133: #{_lambda_.1} parent=1 // pred_fallthru
      _
    // Predicated region
    $region134: #{_lambda_.1} parent=1 // pred_check
      _
    $region135: #{_lambda_.1} parent=1 // pred_check_branch
      %344 = sbr.rel (0) target = $region137
    $region136: #{_lambda_.1} parent=1 // pred_region
      %s346 = ssub.s32 2048, 2048
      %347 = vsyncadd [#allocation33], %s346
      %s348 = sshll.u32 [#allocation34], 4
      %s349 = int_to_ptr.vmem [resolvable:$true] %s348
      %354 = dma.hbm_to_vmem [thread:$0]  %s67, 2048, %s349, [#allocation33], 128, 128, 8
    $region137: #{_lambda_.1} parent=1 // pred_fallthru
      _
    // Predicated region
    $region138: #{_lambda_.1} parent=1 // pred_check
      _
    $region139: #{_lambda_.1} parent=1 // pred_check_branch
      %356 = sbr.rel (0) target = $region141
    $region140: #{_lambda_.1} parent=1 // pred_region
      %357 = dma.done [#allocation4], 256
    $region141: #{_lambda_.1} parent=1 // pred_fallthru
      _
    // Predicated region
    $region142: #{_lambda_.1} parent=1 // pred_check
      _
    $region143: #{_lambda_.1} parent=1 // pred_check_branch
      %359 = sbr.rel (0) target = $region145
    $region144: #{_lambda_.1} parent=1 // pred_region
      %360 = dma.done [#allocation6], 768
    $region145: #{_lambda_.1} parent=1 // pred_fallthru
      _
    // Predicated region
    $region146: #{_lambda_.1} parent=1 // pred_check
      _
    $region147: #{_lambda_.1} parent=1 // pred_check_branch
      %362 = sbr.rel (0) target = $region149
    $region148: #{_lambda_.1} parent=1 // pred_region
      %363 = dma.done [#allocation6], 512
    $region149: #{_lambda_.1} parent=1 // pred_fallthru
      _
    // Predicated region
    $region150: #{_lambda_.1} parent=1 // pred_check
      _
    $region151: #{_lambda_.1} parent=1 // pred_check_branch
      %365 = sbr.rel (0) target = $region153
    $region152: #{_lambda_.1} parent=1 // pred_region
      %366 = dma.done [#allocation9], 16
    $region153: #{_lambda_.1} parent=1 // pred_fallthru
      _
    // Predicated region
    $region154: #{_lambda_.1} parent=1 // pred_check
      _
    $region155: #{_lambda_.1} parent=1 // pred_check_branch
      %368 = sbr.rel (0) target = $region157
    $region156: #{_lambda_.1} parent=1 // pred_region
      %369 = dma.done [#allocation9], 512
    $region157: #{_lambda_.1} parent=1 // pred_fallthru
      _
    // Predicated region
    $region158: #{_lambda_.1} parent=1 // pred_check
      _
    $region159: #{_lambda_.1} parent=1 // pred_check_branch
      %371 = sbr.rel (0) target = $region161
    $region160: #{_lambda_.1} parent=1 // pred_region
      %372 = dma.done [#allocation12], 512
    $region161: #{_lambda_.1} parent=1 // pred_fallthru
      _
    // Predicated region
    $region162: #{_lambda_.1} parent=1 // pred_check
      _
    $region163: #{_lambda_.1} parent=1 // pred_check_branch
      %374 = sbr.rel (0) target = $region165
    $region164: #{_lambda_.1} parent=1 // pred_region
      %375 = dma.done [#allocation12], 16
    $region165: #{_lambda_.1} parent=1 // pred_fallthru
      _
    // Predicated region
    $region166: #{_lambda_.1} parent=1 // pred_check
      _
    $region167: #{_lambda_.1} parent=1 // pred_check_branch
      %377 = sbr.rel (0) target = $region169
    $region168: #{_lambda_.1} parent=1 // pred_region
      %378 = dma.done [#allocation15], 256
    $region169: #{_lambda_.1} parent=1 // pred_fallthru
      _
    // Predicated region
    $region170: #{_lambda_.1} parent=1 // pred_check
      _
    $region171: #{_lambda_.1} parent=1 // pred_check_branch
      %380 = sbr.rel (0) target = $region173
    $region172: #{_lambda_.1} parent=1 // pred_region
      %381 = dma.done [#allocation15], 512
    $region173: #{_lambda_.1} parent=1 // pred_fallthru
      _
    // Predicated region
    $region174: #{_lambda_.1} parent=1 // pred_check
      _
    $region175: #{_lambda_.1} parent=1 // pred_check_branch
      %383 = sbr.rel (0) target = $region177
    $region176: #{_lambda_.1} parent=1 // pred_region
      %384 = dma.done [#allocation18], 16
    $region177: #{_lambda_.1} parent=1 // pred_fallthru
      _
    // Predicated region
    $region178: #{_lambda_.1} parent=1 // pred_check
      _
    $region179: #{_lambda_.1} parent=1 // pred_check_branch
      %386 = sbr.rel (0) target = $region181
    $region180: #{_lambda_.1} parent=1 // pred_region
      %387 = dma.done [#allocation18], 256
    $region181: #{_lambda_.1} parent=1 // pred_fallthru
      _
    // Predicated region
    $region182: #{_lambda_.1} parent=1 // pred_check
      _
    $region183: #{_lambda_.1} parent=1 // pred_check_branch
      %389 = sbr.rel (0) target = $region185
    $region184: #{_lambda_.1} parent=1 // pred_region
      %390 = dma.done [#allocation21], 16
    $region185: #{_lambda_.1} parent=1 // pred_fallthru
      _
    // Predicated region
    $region186: #{_lambda_.1} parent=1 // pred_check
      _
    $region187: #{_lambda_.1} parent=1 // pred_check_branch
      %392 = sbr.rel (0) target = $region189
    $region188: #{_lambda_.1} parent=1 // pred_region
      %393 = dma.done [#allocation21], 2048
    $region189: #{_lambda_.1} parent=1 // pred_fallthru
      _
    // Predicated region
    $region190: #{_lambda_.1} parent=1 // pred_check
      _
    $region191: #{_lambda_.1} parent=1 // pred_check_branch
      %395 = sbr.rel (0) target = $region193
    $region192: #{_lambda_.1} parent=1 // pred_region
      %396 = dma.done [#allocation24], 1024
    $region193: #{_lambda_.1} parent=1 // pred_fallthru
      _
    // Predicated region
    $region194: #{_lambda_.1} parent=1 // pred_check
      _
    $region195: #{_lambda_.1} parent=1 // pred_check_branch
      %398 = sbr.rel (0) target = $region197
    $region196: #{_lambda_.1} parent=1 // pred_region
      %399 = dma.done [#allocation24], 32
    $region197: #{_lambda_.1} parent=1 // pred_fallthru
      _
    // Predicated region
    $region198: #{_lambda_.1} parent=1 // pred_check
      _
    $region199: #{_lambda_.1} parent=1 // pred_check_branch
      %401 = sbr.rel (0) target = $region201
    $region200: #{_lambda_.1} parent=1 // pred_region
      %402 = dma.done [#allocation27], 1024
    $region201: #{_lambda_.1} parent=1 // pred_fallthru
      _
    // Predicated region
    $region202: #{_lambda_.1} parent=1 // pred_check
      _
    $region203: #{_lambda_.1} parent=1 // pred_check_branch
      %404 = sbr.rel (0) target = $region205
    $region204: #{_lambda_.1} parent=1 // pred_region
      %405 = dma.done [#allocation27], 32
    $region205: #{_lambda_.1} parent=1 // pred_fallthru
      _
    // Predicated region
    $region206: #{_lambda_.1} parent=1 // pred_check
      _
    $region207: #{_lambda_.1} parent=1 // pred_check_branch
      %407 = sbr.rel (0) target = $region209
    $region208: #{_lambda_.1} parent=1 // pred_region
      %408 = dma.done [#allocation30], 2048
    $region209: #{_lambda_.1} parent=1 // pred_fallthru
      _
    // Predicated region
    $region210: #{_lambda_.1} parent=1 // pred_check
      _
    $region211: #{_lambda_.1} parent=1 // pred_check_branch
      %410 = sbr.rel (0) target = $region213
    $region212: #{_lambda_.1} parent=1 // pred_region
      %411 = dma.done [#allocation30], 32
    $region213: #{_lambda_.1} parent=1 // pred_fallthru
      _
    // Predicated region
    $region214: #{_lambda_.1} parent=1 // pred_check
      _
    $region215: #{_lambda_.1} parent=1 // pred_check_branch
      %413 = sbr.rel (0) target = $region217
    $region216: #{_lambda_.1} parent=1 // pred_region
      %414 = dma.done [#allocation33], 128
    $region217: #{_lambda_.1} parent=1 // pred_fallthru
      _
    // Predicated region
    $region218: #{_lambda_.1} parent=1 // pred_check
      _
    $region219: #{_lambda_.1} parent=1 // pred_check_branch
      %416 = sbr.rel (0) target = $region221
    $region220: #{_lambda_.1} parent=1 // pred_region
      %417 = dma.done [#allocation33], 2048
    $region221: #{_lambda_.1} parent=1 // pred_fallthru
      _
    %v418 = vld [vmem:[%s1] sm:$0xff]
    %v419 = vld [vmem:[%s1 + $0x8] sm:$0xff]
    %v420 = vld [vmem:[%s1 + $0x10] sm:$0xff]
    %v421 = vld [vmem:[%s1 + $0x18] sm:$0xff]
    %v422 = vld [vmem:[%s1 + $0x20] sm:$0xff]
    %v423 = vld [vmem:[%s1 + $0x28] sm:$0xff]
    %v424 = vld [vmem:[%s1 + $0x30] sm:$0x3]
    %v425 = vld [vmem:[#allocation3] sm:$0xff]
    %v426 = vld [vmem:[#allocation3 + $0x8] sm:$0x3f]
    %v427 = vld [vmem:[%s5] sm:$0xff]
    %v428 = vld [vmem:[%s5 + $0x8] sm:$0xff]
    %v429 = vld [vmem:[%s5 + $0x10] sm:$0xff]
    %v430 = vld [vmem:[%s5 + $0x18] sm:$0xff]
    %v431 = vld [vmem:[%s5 + $0x20] sm:$0xff]
    %v432 = vld [vmem:[%s5 + $0x28] sm:$0xff]
    %v433 = vld [vmem:[%s5 + $0x30] sm:$0x3]
    %vm434 = vcmask 113664
    %v436 = vsel %vm434, %v418, 0
    %v439 = vsel %vm434, %v419, 0
    %v442 = vsel %vm434, %v420, 0
    %v445 = vsel %vm434, %v421, 0
    %v448 = vsel %vm434, %v422, 0
    %v451 = vsel %vm434, %v423, 0
    %v454 = vsel %vm434, %v424, 0
    %vm456 = vcmask 1045504
    %v458 = vsel %vm456, %v426, 0
    %460 = vmatprep.subr.mxu0 0.0
    %461 = vmatpush1.msra.mxu0 %v425
    %462 = vmatprep.subr.mxu0 0.0
    %463 = vmatpush1.msra.mxu0 %v458
    %464 = vmatprep.subr.mxu0 0.0
    %465 = vmatpush1.msra.mxu0 0.0
    %466 = vmatprep.subr.mxu0 0.0
    %467 = vmatpush1.msra.mxu0 0.0
    %468 = vmatprep.subr.mxu0 0.0
    %469 = vmatpush1.msra.mxu0 0.0
    %470 = vmatprep.subr.mxu0 0.0
    %471 = vmatpush1.msra.mxu0 0.0
    %472 = vmatprep.subr.mxu0 0.0
    %473 = vmatpush1.msra.mxu0 0.0
    %474 = vmatprep.subr.mxu0 0.0
    %475 = vmatpush1.msra.mxu0 0.0
    %476 = vmatprep.subr.mxu0 0.0
    %477 = vmatpush1.msra.mxu0 0.0
    %478 = vmatprep.subr.mxu0 0.0
    %479 = vmatpush1.msra.mxu0 0.0
    %480 = vmatprep.subr.mxu0 0.0
    %481 = vmatpush1.msra.mxu0 0.0
    %482 = vmatprep.subr.mxu0 0.0
    %483 = vmatpush1.msra.mxu0 0.0
    %484 = vmatprep.subr.mxu0 0.0
    %485 = vmatpush1.msra.mxu0 0.0
    %486 = vmatprep.subr.mxu0 0.0
    %487 = vmatpush1.msra.mxu0 0.0
    %488 = vmatprep.subr.mxu0 0.0
    %489 = vmatpush1.msra.mxu0 0.0
    %490 = vmatprep.subr.mxu0 0.0
    %491 = vmatpush1.msra.mxu0 0.0
    %492 = vmatprep.subr.mxu0 0.0
    %493 = vmatpush1.msra.mxu0 0.0
    %494 = vmatprep.subr.mxu0 0.0
    %495 = vmatpush1.msra.mxu0 0.0
    %496 = vmatprep.subr.mxu0 0.0
    %497 = vmatpush1.msra.mxu0 0.0
    %498 = vmatprep.subr.mxu0 0.0
    %499 = vmatpush1.msra.mxu0 0.0
    %500 = vmatprep.subr.mxu0 0.0
    %501 = vmatpush1.msra.mxu0 0.0
    %502 = vmatprep.subr.mxu0 0.0
    %503 = vmatpush1.msra.mxu0 0.0
    %504 = vmatprep.subr.mxu0 0.0
    %505 = vmatpush1.msra.mxu0 0.0
    %506 = vmatprep.subr.mxu0 0.0
    %507 = vmatpush1.msra.mxu0 0.0
    %508 = vmatprep.subr.mxu0 0.0
    %509 = vmatpush1.msra.mxu0 0.0
    %510 = vmatprep.subr.mxu0 0.0
    %511 = vmatpush1.msra.mxu0 0.0
    %512 = vmatprep.subr.mxu0 0.0
    %513 = vmatpush1.msra.mxu0 0.0
    %514 = vmatprep.subr.mxu0 0.0
    %515 = vmatpush1.msra.mxu0 0.0
    %516 = vmatprep.subr.mxu0 0.0
    %517 = vmatpush1.msra.mxu0 0.0
    %518 = vmatprep.subr.mxu0 0.0
    %519 = vmatpush1.msra.mxu0 0.0
    %520 = vmatprep.subr.mxu0 0.0
    %521 = vmatpush1.msra.mxu0 0.0
    %522 = vmatprep.subr.mxu0 0.0
    %523 = vmatpush1.msra.mxu0 0.0
    %524 = vmatprep.mubr.f32.mxu0 0.0
    %525 = vmatmul.mubr.f32.gmra.mrb[0].mxu0 %v436
    %v526 = vpop.f32.mrb[0].mxu0
    %v527 = vadd.f32 %v427, %v526
    %v528 = vpop.f32.mrb[0].mxu0
    %529 = vmatprep.mubr.f32.mxu0 0.0
    %530 = vmatmul.mubr.f32.gmra.mrb[0].mxu0 %v439
    %v531 = vpop.f32.mrb[0].mxu0
    %v532 = vadd.f32 %v428, %v531
    %v533 = vpop.f32.mrb[0].mxu0
    %534 = vmatprep.mubr.f32.mxu0 0.0
    %535 = vmatmul.mubr.f32.gmra.mrb[0].mxu0 %v442
    %v536 = vpop.f32.mrb[0].mxu0
    %v537 = vadd.f32 %v429, %v536
    %v538 = vpop.f32.mrb[0].mxu0
    %539 = vmatprep.mubr.f32.mxu0 0.0
    %540 = vmatmul.mubr.f32.gmra.mrb[0].mxu0 %v445
    %v541 = vpop.f32.mrb[0].mxu0
    %v542 = vadd.f32 %v430, %v541
    %v543 = vpop.f32.mrb[0].mxu0
    %544 = vmatprep.mubr.f32.mxu0 0.0
    %545 = vmatmul.mubr.f32.gmra.mrb[0].mxu0 %v448
    %v546 = vpop.f32.mrb[0].mxu0
    %v547 = vadd.f32 %v431, %v546
    %v548 = vpop.f32.mrb[0].mxu0
    %549 = vmatprep.mubr.f32.mxu0 0.0
    %550 = vmatmul.mubr.f32.gmra.mrb[0].mxu0 %v451
    %v551 = vpop.f32.mrb[0].mxu0
    %v552 = vadd.f32 %v432, %v551
    %v553 = vpop.f32.mrb[0].mxu0
    %554 = vmatprep.mubr.f32.mxu0 0.0
    %555 = vmatmul.mubr.f32.gmra.mrb[0].mxu0 %v454
    %v556 = vpop.f32.mrb[0].mxu0
    %v557 = vadd.f32 %v433, %v556
    %v558 = vpop.f32.mrb[0].mxu0
    %559 = vdwg.mxu0
    %v560 = vld [vmem:[%s33] sm:$0x1]
    %v561 = vld [vmem:[%s35] sm:$0x1]
    %vm562 = vcmask 261120
    %v563 = vsel %vm562, %v527, 0.0
    %564 = vadd.xlane.f32.xlu0 %v563
    %v565 = vpop.xlane.xlu0 %564
    %v566 = vsel %vm562, %v532, 0.0
    %567 = vadd.xlane.f32.xlu0 %v566
    %v568 = vpop.xlane.xlu0 %567
    %v569 = vsel %vm562, %v537, 0.0
    %570 = vadd.xlane.f32.xlu0 %v569
    %v571 = vpop.xlane.xlu0 %570
    %v572 = vsel %vm562, %v542, 0.0
    %573 = vadd.xlane.f32.xlu0 %v572
    %v574 = vpop.xlane.xlu0 %573
    %v575 = vsel %vm562, %v547, 0.0
    %576 = vadd.xlane.f32.xlu0 %v575
    %v577 = vpop.xlane.xlu0 %576
    %v578 = vsel %vm562, %v552, 0.0
    %579 = vadd.xlane.f32.xlu0 %v578
    %v580 = vpop.xlane.xlu0 %579
    %vm581 = vcmask 254976
    %v582 = vsel %vm581, %v557, 0.0
    %583 = vadd.xlane.f32.xlu0 %v582
    %v584 = vpop.xlane.xlu0 %583
    %v585 = vrcp.pop 32.0
    %v586 = vmul.f32 %v565, %v585
    %v587 = vmul.f32 %v568, %v585
    %v588 = vmul.f32 %v571, %v585
    %v589 = vmul.f32 %v574, %v585
    %v590 = vmul.f32 %v577, %v585
    %v591 = vmul.f32 %v580, %v585
    %v592 = vmul.f32 %v584, %v585
    %v593 = vsub.f32 %v527, %v586
    %v594 = vsub.f32 %v532, %v587
    %v595 = vsub.f32 %v537, %v588
    %v596 = vsub.f32 %v542, %v589
    %v597 = vsub.f32 %v547, %v590
    %v598 = vsub.f32 %v552, %v591
    %v599 = vsub.f32 %v557, %v592
    %v600 = vmul.f32 %v593, %v593
    %v601 = vmul.f32 %v594, %v594
    %v602 = vmul.f32 %v595, %v595
    %v603 = vmul.f32 %v596, %v596
    %v604 = vmul.f32 %v597, %v597
    %v605 = vmul.f32 %v598, %v598
    %v606 = vmul.f32 %v599, %v599
    %v607 = vsel %vm562, %v600, 0.0
    %608 = vadd.xlane.f32.xlu0 %v607
    %v609 = vpop.xlane.xlu0 %608
    %v610 = vsel %vm562, %v601, 0.0
    %611 = vadd.xlane.f32.xlu0 %v610
    %v612 = vpop.xlane.xlu0 %611
    %v613 = vsel %vm562, %v602, 0.0
    %614 = vadd.xlane.f32.xlu0 %v613
    %v615 = vpop.xlane.xlu0 %614
    %v616 = vsel %vm562, %v603, 0.0
    %617 = vadd.xlane.f32.xlu0 %v616
    %v618 = vpop.xlane.xlu0 %617
    %v619 = vsel %vm562, %v604, 0.0
    %620 = vadd.xlane.f32.xlu0 %v619
    %v621 = vpop.xlane.xlu0 %620
    %v622 = vsel %vm562, %v605, 0.0
    %623 = vadd.xlane.f32.xlu0 %v622
    %v624 = vpop.xlane.xlu0 %623
    %v625 = vsel %vm581, %v606, 0.0
    %626 = vadd.xlane.f32.xlu0 %v625
    %v627 = vpop.xlane.xlu0 %626
    %v628 = vmul.f32 %v609, %v585
    %v629 = vmul.f32 %v612, %v585
    %v630 = vmul.f32 %v615, %v585
    %v631 = vmul.f32 %v618, %v585
    %v632 = vmul.f32 %v621, %v585
    %v633 = vmul.f32 %v624, %v585
    %v634 = vmul.f32 %v627, %v585
    %v635 = vadd.f32 %v628, 1e-05
    %v636 = vadd.f32 %v629, 1e-05
    %v637 = vadd.f32 %v630, 1e-05
    %v638 = vadd.f32 %v631, 1e-05
    %v639 = vadd.f32 %v632, 1e-05
    %v640 = vadd.f32 %v633, 1e-05
    %v641 = vadd.f32 %v634, 1e-05
    %v642 = vrsqrt.pop %v635
    %v643 = vrsqrt.pop %v636
    %v644 = vrsqrt.pop %v637
    %v645 = vrsqrt.pop %v638
    %v646 = vrsqrt.pop %v639
    %v647 = vrsqrt.pop %v640
    %v648 = vrsqrt.pop %v641
    %v649 = vmul.f32 %v593, %v642
    %v650 = vmul.f32 %v594, %v643
    %v651 = vmul.f32 %v595, %v644
    %v652 = vmul.f32 %v596, %v645
    %v653 = vmul.f32 %v597, %v646
    %v654 = vmul.f32 %v598, %v647
    %v655 = vmul.f32 %v599, %v648
    %v657 = vlaneseq
    %v658 = vshrl.u32 %v657, 7
    %v659 = vsub.s32 0, %v658
    %v660 = vrot.slane %v560, %v659
    %v662 = vmul.f32 %v649, %v660
    %v663 = vmul.f32 %v650, %v660
    %v664 = vmul.f32 %v651, %v660
    %v665 = vmul.f32 %v652, %v660
    %v666 = vmul.f32 %v653, %v660
    %v667 = vmul.f32 %v654, %v660
    %v668 = vmul.f32 %v655, %v660
    %v670 = vlaneseq
    %v671 = vshrl.u32 %v670, 7
    %v672 = vsub.s32 0, %v671
    %v673 = vrot.slane %v561, %v672
    %v675 = vadd.f32 %v662, %v673
    %v676 = vadd.f32 %v663, %v673
    %v677 = vadd.f32 %v664, %v673
    %v678 = vadd.f32 %v665, %v673
    %v679 = vadd.f32 %v666, %v673
    %v680 = vadd.f32 %v667, %v673
    %v681 = vadd.f32 %v668, %v673
    %682 = vst.msk [vmem:[#allocation2] sm:$0xff] %vm562, %v675
    %683 = vst.msk [vmem:[#allocation2 + $0x8] sm:$0xff] %vm562, %v676
    %684 = vst.msk [vmem:[#allocation2 + $0x10] sm:$0xff] %vm562, %v677
    %685 = vst.msk [vmem:[#allocation2 + $0x18] sm:$0xff] %vm562, %v678
    %686 = vst.msk [vmem:[#allocation2 + $0x20] sm:$0xff] %vm562, %v679
    %687 = vst.msk [vmem:[#allocation2 + $0x28] sm:$0xff] %vm562, %v680
    %688 = vst.msk [vmem:[#allocation2 + $0x30] sm:$0x3] %vm581, %v681
    %v689 = vld [vmem:[%s7] sm:$0xff]
    %v690 = vld [vmem:[%s7 + $0x8] sm:$0xff]
    %v691 = vld [vmem:[%s7 + $0x10] sm:$0xff]
    %v692 = vld [vmem:[%s7 + $0x18] sm:$0xff]
    %v693 = vld [vmem:[%s9] sm:$0x1]
    %v695 = vlaneseq
    %v696 = vshrl.u32 %v695, 7
    %v697 = vsub.s32 0, %v696
    %v698 = vrot.slane %v693, %v697
    %v701 = vsel %vm562, %v527, 0
    %v704 = vsel %vm562, %v532, 0
    %v707 = vsel %vm562, %v537, 0
    %v710 = vsel %vm562, %v542, 0
    %v713 = vsel %vm562, %v547, 0
    %v716 = vsel %vm562, %v552, 0
    %v719 = vsel %vm562, %v557, 0
    %721 = vmatprep.subr.mxu0 0.0
    %722 = vmatpush1.msra.mxu0 %v689
    %723 = vmatprep.subr.mxu0 0.0
    %724 = vmatpush1.msra.mxu0 %v690
    %725 = vmatprep.subr.mxu0 0.0
    %726 = vmatpush1.msra.mxu0 %v691
    %727 = vmatprep.subr.mxu0 0.0
    %728 = vmatpush1.msra.mxu0 %v692
    %729 = vmatprep.subr.mxu0 0.0
    %730 = vmatpush1.msra.mxu0 0.0
    %731 = vmatprep.subr.mxu0 0.0
    %732 = vmatpush1.msra.mxu0 0.0
    %733 = vmatprep.subr.mxu0 0.0
    %734 = vmatpush1.msra.mxu0 0.0
    %735 = vmatprep.subr.mxu0 0.0
    %736 = vmatpush1.msra.mxu0 0.0
    %737 = vmatprep.subr.mxu0 0.0
    %738 = vmatpush1.msra.mxu0 0.0
    %739 = vmatprep.subr.mxu0 0.0
    %740 = vmatpush1.msra.mxu0 0.0
    %741 = vmatprep.subr.mxu0 0.0
    %742 = vmatpush1.msra.mxu0 0.0
    %743 = vmatprep.subr.mxu0 0.0
    %744 = vmatpush1.msra.mxu0 0.0
    %745 = vmatprep.subr.mxu0 0.0
    %746 = vmatpush1.msra.mxu0 0.0
    %747 = vmatprep.subr.mxu0 0.0
    %748 = vmatpush1.msra.mxu0 0.0
    %749 = vmatprep.subr.mxu0 0.0
    %750 = vmatpush1.msra.mxu0 0.0
    %751 = vmatprep.subr.mxu0 0.0
    %752 = vmatpush1.msra.mxu0 0.0
    %753 = vmatprep.subr.mxu0 0.0
    %754 = vmatpush1.msra.mxu0 0.0
    %755 = vmatprep.subr.mxu0 0.0
    %756 = vmatpush1.msra.mxu0 0.0
    %757 = vmatprep.subr.mxu0 0.0
    %758 = vmatpush1.msra.mxu0 0.0
    %759 = vmatprep.subr.mxu0 0.0
    %760 = vmatpush1.msra.mxu0 0.0
    %761 = vmatprep.subr.mxu0 0.0
    %762 = vmatpush1.msra.mxu0 0.0
    %763 = vmatprep.subr.mxu0 0.0
    %764 = vmatpush1.msra.mxu0 0.0
    %765 = vmatprep.subr.mxu0 0.0
    %766 = vmatpush1.msra.mxu0 0.0
    %767 = vmatprep.subr.mxu0 0.0
    %768 = vmatpush1.msra.mxu0 0.0
    %769 = vmatprep.subr.mxu0 0.0
    %770 = vmatpush1.msra.mxu0 0.0
    %771 = vmatprep.subr.mxu0 0.0
    %772 = vmatpush1.msra.mxu0 0.0
    %773 = vmatprep.subr.mxu0 0.0
    %774 = vmatpush1.msra.mxu0 0.0
    %775 = vmatprep.subr.mxu0 0.0
    %776 = vmatpush1.msra.mxu0 0.0
    %777 = vmatprep.subr.mxu0 0.0
    %778 = vmatpush1.msra.mxu0 0.0
    %779 = vmatprep.subr.mxu0 0.0
    %780 = vmatpush1.msra.mxu0 0.0
    %781 = vmatprep.subr.mxu0 0.0
    %782 = vmatpush1.msra.mxu0 0.0
    %783 = vmatprep.subr.mxu0 0.0
    %784 = vmatpush1.msra.mxu0 0.0
    %785 = vmatprep.mubr.f32.mxu0 0.0
    %786 = vmatmul.mubr.f32.gmra.mrb[0].mxu0 %v701
    %v787 = vpop.f32.mrb[0].mxu0
    %v788 = vadd.f32 %v698, %v787
    %v789 = vpop.f32.mrb[0].mxu0
    %790 = vmatprep.mubr.f32.mxu0 0.0
    %791 = vmatmul.mubr.f32.gmra.mrb[0].mxu0 %v704
    %v792 = vpop.f32.mrb[0].mxu0
    %v793 = vadd.f32 %v698, %v792
    %v794 = vpop.f32.mrb[0].mxu0
    %795 = vmatprep.mubr.f32.mxu0 0.0
    %796 = vmatmul.mubr.f32.gmra.mrb[0].mxu0 %v707
    %v797 = vpop.f32.mrb[0].mxu0
    %v798 = vadd.f32 %v698, %v797
    %v799 = vpop.f32.mrb[0].mxu0
    %800 = vmatprep.mubr.f32.mxu0 0.0
    %801 = vmatmul.mubr.f32.gmra.mrb[0].mxu0 %v710
    %v802 = vpop.f32.mrb[0].mxu0
    %v803 = vadd.f32 %v698, %v802
    %v804 = vpop.f32.mrb[0].mxu0
    %805 = vmatprep.mubr.f32.mxu0 0.0
    %806 = vmatmul.mubr.f32.gmra.mrb[0].mxu0 %v713
    %v807 = vpop.f32.mrb[0].mxu0
    %v808 = vadd.f32 %v698, %v807
    %v809 = vpop.f32.mrb[0].mxu0
    %810 = vmatprep.mubr.f32.mxu0 0.0
    %811 = vmatmul.mubr.f32.gmra.mrb[0].mxu0 %v716
    %v812 = vpop.f32.mrb[0].mxu0
    %v813 = vadd.f32 %v698, %v812
    %v814 = vpop.f32.mrb[0].mxu0
    %815 = vmatprep.mubr.f32.mxu0 0.0
    %816 = vmatmul.mubr.f32.gmra.mrb[0].mxu0 %v719
    %v817 = vpop.f32.mrb[0].mxu0
    %v818 = vadd.f32 %v698, %v817
    %v819 = vpop.f32.mrb[0].mxu0
    %820 = vdwg.mxu0
    %v821 = vld [vmem:[#allocation19] sm:$0xff]
    %v822 = vld [vmem:[#allocation19 + $0x8] sm:$0xff]
    %v823 = vld [vmem:[#allocation20] sm:$0x1]
    %v824 = vld [vmem:[#allocation5] sm:$0xff]
    %v825 = vld [vmem:[#allocation5 + $0x8] sm:$0xff]
    %v826 = vld [vmem:[#allocation5 + $0x10] sm:$0xff]
    %vm827 = vcmask 408576
    %v829 = vsel %vm827, %v824, 0
    %v832 = vsel %vm827, %v825, 0
    %v835 = vsel %vm827, %v826, 0
    %vm837 = vcmask 1041408
    %v839 = vsel %vm837, %v818, 0
    %841 = vmatprep.subr.mxu0 0.0
    %842 = vmatpush1.msra.mxu0 %v788
    %843 = vmatprep.subr.mxu0 0.0
    %844 = vmatpush1.msra.mxu0 %v793
    %845 = vmatprep.subr.mxu0 0.0
    %846 = vmatpush1.msra.mxu0 %v798
    %847 = vmatprep.subr.mxu0 0.0
    %848 = vmatpush1.msra.mxu0 %v803
    %849 = vmatprep.subr.mxu0 0.0
    %850 = vmatpush1.msra.mxu0 %v808
    %851 = vmatprep.subr.mxu0 0.0
    %852 = vmatpush1.msra.mxu0 %v813
    %853 = vmatprep.subr.mxu0 0.0
    %854 = vmatpush1.msra.mxu0 %v839
    %855 = vmatprep.subr.mxu0 0.0
    %856 = vmatpush1.msra.mxu0 0.0
    %857 = vmatprep.subr.mxu0 0.0
    %858 = vmatpush1.msra.mxu0 0.0
    %859 = vmatprep.subr.mxu0 0.0
    %860 = vmatpush1.msra.mxu0 0.0
    %861 = vmatprep.subr.mxu0 0.0
    %862 = vmatpush1.msra.mxu0 0.0
    %863 = vmatprep.subr.mxu0 0.0
    %864 = vmatpush1.msra.mxu0 0.0
    %865 = vmatprep.subr.mxu0 0.0
    %866 = vmatpush1.msra.mxu0 0.0
    %867 = vmatprep.subr.mxu0 0.0
    %868 = vmatpush1.msra.mxu0 0.0
    %869 = vmatprep.subr.mxu0 0.0
    %870 = vmatpush1.msra.mxu0 0.0
    %871 = vmatprep.subr.mxu0 0.0
    %872 = vmatpush1.msra.mxu0 0.0
    %873 = vmatprep.subr.mxu0 0.0
    %874 = vmatpush1.msra.mxu0 0.0
    %875 = vmatprep.subr.mxu0 0.0
    %876 = vmatpush1.msra.mxu0 0.0
    %877 = vmatprep.subr.mxu0 0.0
    %878 = vmatpush1.msra.mxu0 0.0
    %879 = vmatprep.subr.mxu0 0.0
    %880 = vmatpush1.msra.mxu0 0.0
    %881 = vmatprep.subr.mxu0 0.0
    %882 = vmatpush1.msra.mxu0 0.0
    %883 = vmatprep.subr.mxu0 0.0
    %884 = vmatpush1.msra.mxu0 0.0
    %885 = vmatprep.subr.mxu0 0.0
    %886 = vmatpush1.msra.mxu0 0.0
    %887 = vmatprep.subr.mxu0 0.0
    %888 = vmatpush1.msra.mxu0 0.0
    %889 = vmatprep.subr.mxu0 0.0
    %890 = vmatpush1.msra.mxu0 0.0
    %891 = vmatprep.subr.mxu0 0.0
    %892 = vmatpush1.msra.mxu0 0.0
    %893 = vmatprep.subr.mxu0 0.0
    %894 = vmatpush1.msra.mxu0 0.0
    %895 = vmatprep.subr.mxu0 0.0
    %896 = vmatpush1.msra.mxu0 0.0
    %897 = vmatprep.subr.mxu0 0.0
    %898 = vmatpush1.msra.mxu0 0.0
    %899 = vmatprep.subr.mxu0 0.0
    %900 = vmatpush1.msra.mxu0 0.0
    %901 = vmatprep.subr.mxu0 0.0
    %902 = vmatpush1.msra.mxu0 0.0
    %903 = vmatprep.subr.mxu0 0.0
    %904 = vmatpush1.msra.mxu0 0.0
    %905 = vmatprep.mubr.f32.mxu0 0.0
    %906 = vmatmul.mubr.f32.gmra.mrb[0].mxu0 %v829
    %v907 = vpop.f32.mrb[0].mxu0
    %v908 = vadd.f32 0.0, %v907
    %v909 = vpop.f32.mrb[0].mxu0
    %910 = vmatprep.mubr.f32.mxu0 0.0
    %911 = vmatmul.mubr.f32.gmra.mrb[0].mxu0 %v832
    %v912 = vpop.f32.mrb[0].mxu0
    %v913 = vadd.f32 0.0, %v912
    %v914 = vpop.f32.mrb[0].mxu0
    %915 = vmatprep.mubr.f32.mxu0 0.0
    %916 = vmatmul.mubr.f32.gmra.mrb[0].mxu0 %v835
    %v917 = vpop.f32.mrb[0].mxu0
    %v918 = vadd.f32 0.0, %v917
    %v919 = vpop.f32.mrb[0].mxu0
    %920 = vdwg.mxu0
    %v921 = vld [vmem:[#allocation7] sm:$0xff]
    %v922 = vld [vmem:[#allocation7 + $0x8] sm:$0xff]
    %s923 = scalar_lea.vmem [#allocation5], 24
    %v924 = vld [vmem:[%s923] sm:$0xff]
    %v925 = vld [vmem:[%s923 + $0x8] sm:$0xff]
    %v926 = vld [vmem:[%s923 + $0x10] sm:$0xff]
    %v928 = vsel %vm827, %v924, 0
    %v931 = vsel %vm827, %v925, 0
    %v934 = vsel %vm827, %v926, 0
    %936 = vmatprep.subr.mxu0 0.0
    %937 = vmatpush1.msra.mxu0 %v788
    %938 = vmatprep.subr.mxu0 0.0
    %939 = vmatpush1.msra.mxu0 %v793
    %940 = vmatprep.subr.mxu0 0.0
    %941 = vmatpush1.msra.mxu0 %v798
    %942 = vmatprep.subr.mxu0 0.0
    %943 = vmatpush1.msra.mxu0 %v803
    %944 = vmatprep.subr.mxu0 0.0
    %945 = vmatpush1.msra.mxu0 %v808
    %946 = vmatprep.subr.mxu0 0.0
    %947 = vmatpush1.msra.mxu0 %v813
    %948 = vmatprep.subr.mxu0 0.0
    %949 = vmatpush1.msra.mxu0 %v839
    %950 = vmatprep.subr.mxu0 0.0
    %951 = vmatpush1.msra.mxu0 0.0
    %952 = vmatprep.subr.mxu0 0.0
    %953 = vmatpush1.msra.mxu0 0.0
    %954 = vmatprep.subr.mxu0 0.0
    %955 = vmatpush1.msra.mxu0 0.0
    %956 = vmatprep.subr.mxu0 0.0
    %957 = vmatpush1.msra.mxu0 0.0
    %958 = vmatprep.subr.mxu0 0.0
    %959 = vmatpush1.msra.mxu0 0.0
    %960 = vmatprep.subr.mxu0 0.0
    %961 = vmatpush1.msra.mxu0 0.0
    %962 = vmatprep.subr.mxu0 0.0
    %963 = vmatpush1.msra.mxu0 0.0
    %964 = vmatprep.subr.mxu0 0.0
    %965 = vmatpush1.msra.mxu0 0.0
    %966 = vmatprep.subr.mxu0 0.0
    %967 = vmatpush1.msra.mxu0 0.0
    %968 = vmatprep.subr.mxu0 0.0
    %969 = vmatpush1.msra.mxu0 0.0
    %970 = vmatprep.subr.mxu0 0.0
    %971 = vmatpush1.msra.mxu0 0.0
    %972 = vmatprep.subr.mxu0 0.0
    %973 = vmatpush1.msra.mxu0 0.0
    %974 = vmatprep.subr.mxu0 0.0
    %975 = vmatpush1.msra.mxu0 0.0
    %976 = vmatprep.subr.mxu0 0.0
    %977 = vmatpush1.msra.mxu0 0.0
    %978 = vmatprep.subr.mxu0 0.0
    %979 = vmatpush1.msra.mxu0 0.0
    %980 = vmatprep.subr.mxu0 0.0
    %981 = vmatpush1.msra.mxu0 0.0
    %982 = vmatprep.subr.mxu0 0.0
    %983 = vmatpush1.msra.mxu0 0.0
    %984 = vmatprep.subr.mxu0 0.0
    %985 = vmatpush1.msra.mxu0 0.0
    %986 = vmatprep.subr.mxu0 0.0
    %987 = vmatpush1.msra.mxu0 0.0
    %988 = vmatprep.subr.mxu0 0.0
    %989 = vmatpush1.msra.mxu0 0.0
    %990 = vmatprep.subr.mxu0 0.0
    %991 = vmatpush1.msra.mxu0 0.0
    %992 = vmatprep.subr.mxu0 0.0
    %993 = vmatpush1.msra.mxu0 0.0
    %994 = vmatprep.subr.mxu0 0.0
    %995 = vmatpush1.msra.mxu0 0.0
    %996 = vmatprep.subr.mxu0 0.0
    %997 = vmatpush1.msra.mxu0 0.0
    %998 = vmatprep.subr.mxu0 0.0
    %999 = vmatpush1.msra.mxu0 0.0
    %1000 = vmatprep.mubr.f32.mxu0 0.0
    %1001 = vmatmul.mubr.f32.gmra.mrb[0].mxu0 %v928
    %v1002 = vpop.f32.mrb[0].mxu0
    %v1003 = vadd.f32 0.0, %v1002
    %v1004 = vpop.f32.mrb[0].mxu0
    %1005 = vmatprep.mubr.f32.mxu0 0.0
    %1006 = vmatmul.mubr.f32.gmra.mrb[0].mxu0 %v931
    %v1007 = vpop.f32.mrb[0].mxu0
    %v1008 = vadd.f32 0.0, %v1007
    %v1009 = vpop.f32.mrb[0].mxu0
    %1010 = vmatprep.mubr.f32.mxu0 0.0
    %1011 = vmatmul.mubr.f32.gmra.mrb[0].mxu0 %v934
    %v1012 = vpop.f32.mrb[0].mxu0
    %v1013 = vadd.f32 0.0, %v1012
    %v1014 = vpop.f32.mrb[0].mxu0
    %1015 = vdwg.mxu0
    %s1016 = scalar_lea.vmem [#allocation7], 16
    %v1017 = vld [vmem:[%s1016] sm:$0xff]
    %v1018 = vld [vmem:[%s1016 + $0x8] sm:$0xff]
    %vm1019 = vcmask 130048
    %v1021 = vsel %vm1019, %v1003, 0
    %v1024 = vsel %vm1019, %v1008, 0
    %v1027 = vsel %vm1019, %v1013, 0
    %1029 = vmatprep.subr.mxu0 0.0
    %1030 = vmatpush1.msra.mxu0 %v1017
    %1031 = vmatprep.subr.mxu0 0.0
    %1032 = vmatpush1.msra.mxu0 %v1018
    %1033 = vmatprep.subr.mxu0 0.0
    %1034 = vmatpush1.msra.mxu0 0.0
    %1035 = vmatprep.subr.mxu0 0.0
    %1036 = vmatpush1.msra.mxu0 0.0
    %1037 = vmatprep.subr.mxu0 0.0
    %1038 = vmatpush1.msra.mxu0 0.0
    %1039 = vmatprep.subr.mxu0 0.0
    %1040 = vmatpush1.msra.mxu0 0.0
    %1041 = vmatprep.subr.mxu0 0.0
    %1042 = vmatpush1.msra.mxu0 0.0
    %1043 = vmatprep.subr.mxu0 0.0
    %1044 = vmatpush1.msra.mxu0 0.0
    %1045 = vmatprep.subr.mxu0 0.0
    %1046 = vmatpush1.msra.mxu0 0.0
    %1047 = vmatprep.subr.mxu0 0.0
    %1048 = vmatpush1.msra.mxu0 0.0
    %1049 = vmatprep.subr.mxu0 0.0
    %1050 = vmatpush1.msra.mxu0 0.0
    %1051 = vmatprep.subr.mxu0 0.0
    %1052 = vmatpush1.msra.mxu0 0.0
    %1053 = vmatprep.subr.mxu0 0.0
    %1054 = vmatpush1.msra.mxu0 0.0
    %1055 = vmatprep.subr.mxu0 0.0
    %1056 = vmatpush1.msra.mxu0 0.0
    %1057 = vmatprep.subr.mxu0 0.0
    %1058 = vmatpush1.msra.mxu0 0.0
    %1059 = vmatprep.subr.mxu0 0.0
    %1060 = vmatpush1.msra.mxu0 0.0
    %1061 = vmatprep.subr.mxu0 0.0
    %1062 = vmatpush1.msra.mxu0 0.0
    %1063 = vmatprep.subr.mxu0 0.0
    %1064 = vmatpush1.msra.mxu0 0.0
    %1065 = vmatprep.subr.mxu0 0.0
    %1066 = vmatpush1.msra.mxu0 0.0
    %1067 = vmatprep.subr.mxu0 0.0
    %1068 = vmatpush1.msra.mxu0 0.0
    %1069 = vmatprep.subr.mxu0 0.0
    %1070 = vmatpush1.msra.mxu0 0.0
    %1071 = vmatprep.subr.mxu0 0.0
    %1072 = vmatpush1.msra.mxu0 0.0
    %1073 = vmatprep.subr.mxu0 0.0
    %1074 = vmatpush1.msra.mxu0 0.0
    %1075 = vmatprep.subr.mxu0 0.0
    %1076 = vmatpush1.msra.mxu0 0.0
    %1077 = vmatprep.subr.mxu0 0.0
    %1078 = vmatpush1.msra.mxu0 0.0
    %1079 = vmatprep.subr.mxu0 0.0
    %1080 = vmatpush1.msra.mxu0 0.0
    %1081 = vmatprep.subr.mxu0 0.0
    %1082 = vmatpush1.msra.mxu0 0.0
    %1083 = vmatprep.subr.mxu0 0.0
    %1084 = vmatpush1.msra.mxu0 0.0
    %1085 = vmatprep.subr.mxu0 0.0
    %1086 = vmatpush1.msra.mxu0 0.0
    %1087 = vmatprep.subr.mxu0 0.0
    %1088 = vmatpush1.msra.mxu0 0.0
    %1089 = vmatprep.subr.mxu0 0.0
    %1090 = vmatpush1.msra.mxu0 0.0
    %1091 = vmatprep.subr.mxu0 0.0
    %1092 = vmatpush1.msra.mxu0 0.0
    %1093 = vmatprep.mubr.f32.mxu0 0.0
    %1094 = vmatmul.mubr.f32.gmra.mrb[0].mxu0 %v1021
    %v1095 = vpop.f32.mrb[0].mxu0
    %v1096 = vadd.f32 0.0, %v1095
    %v1097 = vpop.f32.mrb[0].mxu0
    %1098 = vmatprep.mubr.f32.mxu0 0.0
    %1099 = vmatmul.mubr.f32.gmra.mrb[0].mxu0 %v1024
    %v1100 = vpop.f32.mrb[0].mxu0
    %v1101 = vadd.f32 0.0, %v1100
    %v1102 = vpop.f32.mrb[0].mxu0
    %1103 = vmatprep.mubr.f32.mxu0 0.0
    %1104 = vmatmul.mubr.f32.gmra.mrb[0].mxu0 %v1027
    %v1105 = vpop.f32.mrb[0].mxu0
    %v1106 = vadd.f32 0.0, %v1105
    %v1107 = vpop.f32.mrb[0].mxu0
    %1108 = vdwg.mxu0
    %v1110 = vsel %vm1019, %v908, 0
    %v1113 = vsel %vm1019, %v913, 0
    %v1116 = vsel %vm1019, %v918, 0
    %1118 = vmatprep.subr.mxu0 0.0
    %1119 = vmatpush1.msra.mxu0 %v921
    %1120 = vmatprep.subr.mxu0 0.0
    %1121 = vmatpush1.msra.mxu0 %v922
    %1122 = vmatprep.subr.mxu0 0.0
    %1123 = vmatpush1.msra.mxu0 0.0
    %1124 = vmatprep.subr.mxu0 0.0
    %1125 = vmatpush1.msra.mxu0 0.0
    %1126 = vmatprep.subr.mxu0 0.0
    %1127 = vmatpush1.msra.mxu0 0.0
    %1128 = vmatprep.subr.mxu0 0.0
    %1129 = vmatpush1.msra.mxu0 0.0
    %1130 = vmatprep.subr.mxu0 0.0
    %1131 = vmatpush1.msra.mxu0 0.0
    %1132 = vmatprep.subr.mxu0 0.0
    %1133 = vmatpush1.msra.mxu0 0.0
    %1134 = vmatprep.subr.mxu0 0.0
    %1135 = vmatpush1.msra.mxu0 0.0
    %1136 = vmatprep.subr.mxu0 0.0
    %1137 = vmatpush1.msra.mxu0 0.0
    %1138 = vmatprep.subr.mxu0 0.0
    %1139 = vmatpush1.msra.mxu0 0.0
    %1140 = vmatprep.subr.mxu0 0.0
    %1141 = vmatpush1.msra.mxu0 0.0
    %1142 = vmatprep.subr.mxu0 0.0
    %1143 = vmatpush1.msra.mxu0 0.0
    %1144 = vmatprep.subr.mxu0 0.0
    %1145 = vmatpush1.msra.mxu0 0.0
    %1146 = vmatprep.subr.mxu0 0.0
    %1147 = vmatpush1.msra.mxu0 0.0
    %1148 = vmatprep.subr.mxu0 0.0
    %1149 = vmatpush1.msra.mxu0 0.0
    %1150 = vmatprep.subr.mxu0 0.0
    %1151 = vmatpush1.msra.mxu0 0.0
    %1152 = vmatprep.subr.mxu0 0.0
    %1153 = vmatpush1.msra.mxu0 0.0
    %1154 = vmatprep.subr.mxu0 0.0
    %1155 = vmatpush1.msra.mxu0 0.0
    %1156 = vmatprep.subr.mxu0 0.0
    %1157 = vmatpush1.msra.mxu0 0.0
    %1158 = vmatprep.subr.mxu0 0.0
    %1159 = vmatpush1.msra.mxu0 0.0
    %1160 = vmatprep.subr.mxu0 0.0
    %1161 = vmatpush1.msra.mxu0 0.0
    %1162 = vmatprep.subr.mxu0 0.0
    %1163 = vmatpush1.msra.mxu0 0.0
    %1164 = vmatprep.subr.mxu0 0.0
    %1165 = vmatpush1.msra.mxu0 0.0
    %1166 = vmatprep.subr.mxu0 0.0
    %1167 = vmatpush1.msra.mxu0 0.0
    %1168 = vmatprep.subr.mxu0 0.0
    %1169 = vmatpush1.msra.mxu0 0.0
    %1170 = vmatprep.subr.mxu0 0.0
    %1171 = vmatpush1.msra.mxu0 0.0
    %1172 = vmatprep.subr.mxu0 0.0
    %1173 = vmatpush1.msra.mxu0 0.0
    %1174 = vmatprep.subr.mxu0 0.0
    %1175 = vmatpush1.msra.mxu0 0.0
    %1176 = vmatprep.subr.mxu0 0.0
    %1177 = vmatpush1.msra.mxu0 0.0
    %1178 = vmatprep.subr.mxu0 0.0
    %1179 = vmatpush1.msra.mxu0 0.0
    %1180 = vmatprep.subr.mxu0 0.0
    %1181 = vmatpush1.msra.mxu0 0.0
    %1182 = vmatprep.mubr.f32.mxu0 0.0
    %1183 = vmatmul.mubr.f32.gmra.mrb[0].mxu0 %v1110
    %v1184 = vpop.f32.mrb[0].mxu0
    %v1185 = vadd.f32 %v1096, %v1184
    %v1186 = vpop.f32.mrb[0].mxu0
    %1187 = vmatprep.mubr.f32.mxu0 0.0
    %1188 = vmatmul.mubr.f32.gmra.mrb[0].mxu0 %v1113
    %v1189 = vpop.f32.mrb[0].mxu0
    %v1190 = vadd.f32 %v1101, %v1189
    %v1191 = vpop.f32.mrb[0].mxu0
    %1192 = vmatprep.mubr.f32.mxu0 0.0
    %1193 = vmatmul.mubr.f32.gmra.mrb[0].mxu0 %v1116
    %v1194 = vpop.f32.mrb[0].mxu0
    %v1195 = vadd.f32 %v1106, %v1194
    %v1196 = vpop.f32.mrb[0].mxu0
    %1197 = vdwg.mxu0
    %v1198 = vld [vmem:[#allocation8] sm:$0x1]
    %v1200 = vlaneseq
    %v1201 = vshrl.u32 %v1200, 7
    %v1202 = vsub.s32 0, %v1201
    %v1203 = vrot.slane %v1198, %v1202
    %v1205 = vadd.f32 %v1185, %v1203
    %v1206 = vadd.f32 %v1190, %v1203
    %v1207 = vadd.f32 %v1195, %v1203
    %vm1208 = vcmp.gt.f32.partialorder %v1205, 0.0
    %vm1209 = vcmp.gt.f32.partialorder %v1206, 0.0
    %vm1210 = vcmp.gt.f32.partialorder %v1207, 0.0
    %v1211 = vmin.f32 %v1205, 0.0
    %v1212 = vmin.f32 %v1206, 0.0
    %v1213 = vmin.f32 %v1207, 0.0
    %v1214 = vmul.f32 %v1211, 1.442695
    %v1215 = vpow.pop %v1214
    %v1216 = vmul.f32 %v1212, 1.442695
    %v1217 = vpow.pop %v1216
    %v1218 = vmul.f32 %v1213, 1.442695
    %v1219 = vpow.pop %v1218
    %v1220 = vsub.f32 %v1215, 1.0
    %v1221 = vsub.f32 %v1217, 1.0
    %v1222 = vsub.f32 %v1219, 1.0
    %v1223 = vsel %vm1208, %v1205, %v1220
    %v1224 = vsel %vm1209, %v1206, %v1221
    %v1225 = vsel %vm1210, %v1207, %v1222
    %v1227 = vlaneseq
    %v1228 = vshrl.u32 %v1227, 7
    %v1229 = vsub.s32 0, %v1228
    %v1230 = vrot.slane %v823, %v1229
    %v1233 = vsel %vm1019, %v1223, 0
    %v1236 = vsel %vm1019, %v1224, 0
    %v1239 = vsel %vm1019, %v1225, 0
    %1241 = vmatprep.subr.mxu0 0.0
    %1242 = vmatpush1.msra.mxu0 %v821
    %1243 = vmatprep.subr.mxu0 0.0
    %1244 = vmatpush1.msra.mxu0 %v822
    %1245 = vmatprep.subr.mxu0 0.0
    %1246 = vmatpush1.msra.mxu0 0.0
    %1247 = vmatprep.subr.mxu0 0.0
    %1248 = vmatpush1.msra.mxu0 0.0
    %1249 = vmatprep.subr.mxu0 0.0
    %1250 = vmatpush1.msra.mxu0 0.0
    %1251 = vmatprep.subr.mxu0 0.0
    %1252 = vmatpush1.msra.mxu0 0.0
    %1253 = vmatprep.subr.mxu0 0.0
    %1254 = vmatpush1.msra.mxu0 0.0
    %1255 = vmatprep.subr.mxu0 0.0
    %1256 = vmatpush1.msra.mxu0 0.0
    %1257 = vmatprep.subr.mxu0 0.0
    %1258 = vmatpush1.msra.mxu0 0.0
    %1259 = vmatprep.subr.mxu0 0.0
    %1260 = vmatpush1.msra.mxu0 0.0
    %1261 = vmatprep.subr.mxu0 0.0
    %1262 = vmatpush1.msra.mxu0 0.0
    %1263 = vmatprep.subr.mxu0 0.0
    %1264 = vmatpush1.msra.mxu0 0.0
    %1265 = vmatprep.subr.mxu0 0.0
    %1266 = vmatpush1.msra.mxu0 0.0
    %1267 = vmatprep.subr.mxu0 0.0
    %1268 = vmatpush1.msra.mxu0 0.0
    %1269 = vmatprep.subr.mxu0 0.0
    %1270 = vmatpush1.msra.mxu0 0.0
    %1271 = vmatprep.subr.mxu0 0.0
    %1272 = vmatpush1.msra.mxu0 0.0
    %1273 = vmatprep.subr.mxu0 0.0
    %1274 = vmatpush1.msra.mxu0 0.0
    %1275 = vmatprep.subr.mxu0 0.0
    %1276 = vmatpush1.msra.mxu0 0.0
    %1277 = vmatprep.subr.mxu0 0.0
    %1278 = vmatpush1.msra.mxu0 0.0
    %1279 = vmatprep.subr.mxu0 0.0
    %1280 = vmatpush1.msra.mxu0 0.0
    %1281 = vmatprep.subr.mxu0 0.0
    %1282 = vmatpush1.msra.mxu0 0.0
    %1283 = vmatprep.subr.mxu0 0.0
    %1284 = vmatpush1.msra.mxu0 0.0
    %1285 = vmatprep.subr.mxu0 0.0
    %1286 = vmatpush1.msra.mxu0 0.0
    %1287 = vmatprep.subr.mxu0 0.0
    %1288 = vmatpush1.msra.mxu0 0.0
    %1289 = vmatprep.subr.mxu0 0.0
    %1290 = vmatpush1.msra.mxu0 0.0
    %1291 = vmatprep.subr.mxu0 0.0
    %1292 = vmatpush1.msra.mxu0 0.0
    %1293 = vmatprep.subr.mxu0 0.0
    %1294 = vmatpush1.msra.mxu0 0.0
    %1295 = vmatprep.subr.mxu0 0.0
    %1296 = vmatpush1.msra.mxu0 0.0
    %1297 = vmatprep.subr.mxu0 0.0
    %1298 = vmatpush1.msra.mxu0 0.0
    %1299 = vmatprep.subr.mxu0 0.0
    %1300 = vmatpush1.msra.mxu0 0.0
    %1301 = vmatprep.subr.mxu0 0.0
    %1302 = vmatpush1.msra.mxu0 0.0
    %1303 = vmatprep.subr.mxu0 0.0
    %1304 = vmatpush1.msra.mxu0 0.0
    %1305 = vmatprep.mubr.f32.mxu0 0.0
    %1306 = vmatmul.mubr.f32.gmra.mrb[0].mxu0 %v1233
    %v1307 = vpop.f32.mrb[0].mxu0
    %v1308 = vadd.f32 %v1230, %v1307
    %v1309 = vpop.f32.mrb[0].mxu0
    %1310 = vmatprep.mubr.f32.mxu0 0.0
    %1311 = vmatmul.mubr.f32.gmra.mrb[0].mxu0 %v1236
    %v1312 = vpop.f32.mrb[0].mxu0
    %v1313 = vadd.f32 %v1230, %v1312
    %v1314 = vpop.f32.mrb[0].mxu0
    %1315 = vmatprep.mubr.f32.mxu0 0.0
    %1316 = vmatmul.mubr.f32.gmra.mrb[0].mxu0 %v1239
    %v1317 = vpop.f32.mrb[0].mxu0
    %v1318 = vadd.f32 %v1230, %v1317
    %v1319 = vpop.f32.mrb[0].mxu0
    %1320 = vdwg.mxu0
    %v1321 = vsel %vm562, %v1308, 0.0
    %1322 = vadd.xlane.f32.xlu0 %v1321
    %v1323 = vpop.xlane.xlu0 %1322
    %v1324 = vsel %vm562, %v1313, 0.0
    %1325 = vadd.xlane.f32.xlu0 %v1324
    %v1326 = vpop.xlane.xlu0 %1325
    %v1327 = vsel %vm562, %v1318, 0.0
    %1328 = vadd.xlane.f32.xlu0 %v1327
    %v1329 = vpop.xlane.xlu0 %1328
    %v1330 = vmul.f32 %v1323, %v585
    %v1331 = vmul.f32 %v1326, %v585
    %v1332 = vmul.f32 %v1329, %v585
    %v1333 = vsub.f32 %v1308, %v1330
    %v1334 = vsub.f32 %v1313, %v1331
    %v1335 = vsub.f32 %v1318, %v1332
    %v1336 = vmul.f32 %v1333, %v1333
    %v1337 = vmul.f32 %v1334, %v1334
    %v1338 = vmul.f32 %v1335, %v1335
    %v1339 = vsel %vm562, %v1336, 0.0
    %1340 = vadd.xlane.f32.xlu0 %v1339
    %v1341 = vpop.xlane.xlu0 %1340
    %v1342 = vsel %vm562, %v1337, 0.0
    %1343 = vadd.xlane.f32.xlu0 %v1342
    %v1344 = vpop.xlane.xlu0 %1343
    %v1345 = vsel %vm562, %v1338, 0.0
    %1346 = vadd.xlane.f32.xlu0 %v1345
    %v1347 = vpop.xlane.xlu0 %1346
    %v1348 = vmul.f32 %v1341, %v585
    %v1349 = vmul.f32 %v1344, %v585
    %v1350 = vmul.f32 %v1347, %v585
    %v1351 = vadd.f32 %v1348, 1e-05
    %v1352 = vadd.f32 %v1349, 1e-05
    %v1353 = vadd.f32 %v1350, 1e-05
    %v1354 = vrsqrt.pop %v1351
    %v1355 = vrsqrt.pop %v1352
    %v1356 = vrsqrt.pop %v1353
    %v1357 = vmul.f32 %v1333, %v1354
    %v1358 = vmul.f32 %v1334, %v1355
    %v1359 = vmul.f32 %v1335, %v1356
    %v1360 = vmul.f32 %v1357, %v660
    %v1361 = vmul.f32 %v1358, %v660
    %v1362 = vmul.f32 %v1359, %v660
    %v1363 = vadd.f32 %v1360, %v673
    %v1364 = vadd.f32 %v1361, %v673
    %v1365 = vadd.f32 %v1362, %v673
    %1366 = vst.msk [vmem:[#allocation2 + $0x32] sm:$0xff] %vm562, %v1363
    %1367 = vst.msk [vmem:[#allocation2 + $0x3a] sm:$0xff] %vm562, %v1364
    %1368 = vst.msk [vmem:[#allocation2 + $0x42] sm:$0xff] %vm562, %v1365
    %v1369 = vld [vmem:[#allocation10] sm:$0xff]
    %v1370 = vld [vmem:[#allocation10 + $0x8] sm:$0xf]
    %vm1371 = vcmask 195584
    %v1373 = vsel %vm1371, %v1369, 0
    %v1376 = vsel %vm1371, %v1370, 0
    %1378 = vmatprep.subr.mxu0 0.0
    %1379 = vmatpush1.msra.mxu0 %v1223
    %1380 = vmatprep.subr.mxu0 0.0
    %1381 = vmatpush1.msra.mxu0 %v1224
    %1382 = vmatprep.subr.mxu0 0.0
    %1383 = vmatpush1.msra.mxu0 %v1225
    %1384 = vmatprep.subr.mxu0 0.0
    %1385 = vmatpush1.msra.mxu0 0.0
    %1386 = vmatprep.subr.mxu0 0.0
    %1387 = vmatpush1.msra.mxu0 0.0
    %1388 = vmatprep.subr.mxu0 0.0
    %1389 = vmatpush1.msra.mxu0 0.0
    %1390 = vmatprep.subr.mxu0 0.0
    %1391 = vmatpush1.msra.mxu0 0.0
    %1392 = vmatprep.subr.mxu0 0.0
    %1393 = vmatpush1.msra.mxu0 0.0
    %1394 = vmatprep.subr.mxu0 0.0
    %1395 = vmatpush1.msra.mxu0 0.0
    %1396 = vmatprep.subr.mxu0 0.0
    %1397 = vmatpush1.msra.mxu0 0.0
    %1398 = vmatprep.subr.mxu0 0.0
    %1399 = vmatpush1.msra.mxu0 0.0
    %1400 = vmatprep.subr.mxu0 0.0
    %1401 = vmatpush1.msra.mxu0 0.0
    %1402 = vmatprep.subr.mxu0 0.0
    %1403 = vmatpush1.msra.mxu0 0.0
    %1404 = vmatprep.subr.mxu0 0.0
    %1405 = vmatpush1.msra.mxu0 0.0
    %1406 = vmatprep.subr.mxu0 0.0
    %1407 = vmatpush1.msra.mxu0 0.0
    %1408 = vmatprep.subr.mxu0 0.0
    %1409 = vmatpush1.msra.mxu0 0.0
    %1410 = vmatprep.subr.mxu0 0.0
    %1411 = vmatpush1.msra.mxu0 0.0
    %1412 = vmatprep.subr.mxu0 0.0
    %1413 = vmatpush1.msra.mxu0 0.0
    %1414 = vmatprep.subr.mxu0 0.0
    %1415 = vmatpush1.msra.mxu0 0.0
    %1416 = vmatprep.subr.mxu0 0.0
    %1417 = vmatpush1.msra.mxu0 0.0
    %1418 = vmatprep.subr.mxu0 0.0
    %1419 = vmatpush1.msra.mxu0 0.0
    %1420 = vmatprep.subr.mxu0 0.0
    %1421 = vmatpush1.msra.mxu0 0.0
    %1422 = vmatprep.subr.mxu0 0.0
    %1423 = vmatpush1.msra.mxu0 0.0
    %1424 = vmatprep.subr.mxu0 0.0
    %1425 = vmatpush1.msra.mxu0 0.0
    %1426 = vmatprep.subr.mxu0 0.0
    %1427 = vmatpush1.msra.mxu0 0.0
    %1428 = vmatprep.subr.mxu0 0.0
    %1429 = vmatpush1.msra.mxu0 0.0
    %1430 = vmatprep.subr.mxu0 0.0
    %1431 = vmatpush1.msra.mxu0 0.0
    %1432 = vmatprep.subr.mxu0 0.0
    %1433 = vmatpush1.msra.mxu0 0.0
    %1434 = vmatprep.subr.mxu0 0.0
    %1435 = vmatpush1.msra.mxu0 0.0
    %1436 = vmatprep.subr.mxu0 0.0
    %1437 = vmatpush1.msra.mxu0 0.0
    %1438 = vmatprep.subr.mxu0 0.0
    %1439 = vmatpush1.msra.mxu0 0.0
    %1440 = vmatprep.subr.mxu0 0.0
    %1441 = vmatpush1.msra.mxu0 0.0
    %1442 = vmatprep.mubr.f32.mxu0 0.0
    %1443 = vmatmul.mubr.f32.gmra.mrb[0].mxu0 %v1373
    %v1444 = vpop.f32.mrb[0].mxu0
    %v1445 = vadd.f32 0.0, %v1444
    %v1446 = vpop.f32.mrb[0].mxu0
    %1447 = vmatprep.mubr.f32.mxu0 0.0
    %1448 = vmatmul.mubr.f32.gmra.mrb[0].mxu0 %v1376
    %v1449 = vpop.f32.mrb[0].mxu0
    %v1450 = vadd.f32 0.0, %v1449
    %v1451 = vpop.f32.mrb[0].mxu0
    %1452 = vdwg.mxu0
    %v1453 = vld [vmem:[#allocation11] sm:$0xff]
    %v1454 = vld [vmem:[#allocation11 + $0x8] sm:$0xff]
    %s1455 = scalar_lea.vmem [#allocation10], 16
    %v1456 = vld [vmem:[%s1455] sm:$0xff]
    %v1457 = vld [vmem:[%s1455 + $0x8] sm:$0xf]
    %v1459 = vsel %vm1371, %v1456, 0
    %v1462 = vsel %vm1371, %v1457, 0
    %1464 = vmatprep.subr.mxu0 0.0
    %1465 = vmatpush1.msra.mxu0 %v1223
    %1466 = vmatprep.subr.mxu0 0.0
    %1467 = vmatpush1.msra.mxu0 %v1224
    %1468 = vmatprep.subr.mxu0 0.0
    %1469 = vmatpush1.msra.mxu0 %v1225
    %1470 = vmatprep.subr.mxu0 0.0
    %1471 = vmatpush1.msra.mxu0 0.0
    %1472 = vmatprep.subr.mxu0 0.0
    %1473 = vmatpush1.msra.mxu0 0.0
    %1474 = vmatprep.subr.mxu0 0.0
    %1475 = vmatpush1.msra.mxu0 0.0
    %1476 = vmatprep.subr.mxu0 0.0
    %1477 = vmatpush1.msra.mxu0 0.0
    %1478 = vmatprep.subr.mxu0 0.0
    %1479 = vmatpush1.msra.mxu0 0.0
    %1480 = vmatprep.subr.mxu0 0.0
    %1481 = vmatpush1.msra.mxu0 0.0
    %1482 = vmatprep.subr.mxu0 0.0
    %1483 = vmatpush1.msra.mxu0 0.0
    %1484 = vmatprep.subr.mxu0 0.0
    %1485 = vmatpush1.msra.mxu0 0.0
    %1486 = vmatprep.subr.mxu0 0.0
    %1487 = vmatpush1.msra.mxu0 0.0
    %1488 = vmatprep.subr.mxu0 0.0
    %1489 = vmatpush1.msra.mxu0 0.0
    %1490 = vmatprep.subr.mxu0 0.0
    %1491 = vmatpush1.msra.mxu0 0.0
    %1492 = vmatprep.subr.mxu0 0.0
    %1493 = vmatpush1.msra.mxu0 0.0
    %1494 = vmatprep.subr.mxu0 0.0
    %1495 = vmatpush1.msra.mxu0 0.0
    %1496 = vmatprep.subr.mxu0 0.0
    %1497 = vmatpush1.msra.mxu0 0.0
    %1498 = vmatprep.subr.mxu0 0.0
    %1499 = vmatpush1.msra.mxu0 0.0
    %1500 = vmatprep.subr.mxu0 0.0
    %1501 = vmatpush1.msra.mxu0 0.0
    %1502 = vmatprep.subr.mxu0 0.0
    %1503 = vmatpush1.msra.mxu0 0.0
    %1504 = vmatprep.subr.mxu0 0.0
    %1505 = vmatpush1.msra.mxu0 0.0
    %1506 = vmatprep.subr.mxu0 0.0
    %1507 = vmatpush1.msra.mxu0 0.0
    %1508 = vmatprep.subr.mxu0 0.0
    %1509 = vmatpush1.msra.mxu0 0.0
    %1510 = vmatprep.subr.mxu0 0.0
    %1511 = vmatpush1.msra.mxu0 0.0
    %1512 = vmatprep.subr.mxu0 0.0
    %1513 = vmatpush1.msra.mxu0 0.0
    %1514 = vmatprep.subr.mxu0 0.0
    %1515 = vmatpush1.msra.mxu0 0.0
    %1516 = vmatprep.subr.mxu0 0.0
    %1517 = vmatpush1.msra.mxu0 0.0
    %1518 = vmatprep.subr.mxu0 0.0
    %1519 = vmatpush1.msra.mxu0 0.0
    %1520 = vmatprep.subr.mxu0 0.0
    %1521 = vmatpush1.msra.mxu0 0.0
    %1522 = vmatprep.subr.mxu0 0.0
    %1523 = vmatpush1.msra.mxu0 0.0
    %1524 = vmatprep.subr.mxu0 0.0
    %1525 = vmatpush1.msra.mxu0 0.0
    %1526 = vmatprep.subr.mxu0 0.0
    %1527 = vmatpush1.msra.mxu0 0.0
    %1528 = vmatprep.mubr.f32.mxu0 0.0
    %1529 = vmatmul.mubr.f32.gmra.mrb[0].mxu0 %v1459
    %v1530 = vpop.f32.mrb[0].mxu0
    %v1531 = vadd.f32 0.0, %v1530
    %v1532 = vpop.f32.mrb[0].mxu0
    %1533 = vmatprep.mubr.f32.mxu0 0.0
    %1534 = vmatmul.mubr.f32.gmra.mrb[0].mxu0 %v1462
    %v1535 = vpop.f32.mrb[0].mxu0
    %v1536 = vadd.f32 0.0, %v1535
    %v1537 = vpop.f32.mrb[0].mxu0
    %1538 = vdwg.mxu0
    %s1539 = scalar_lea.vmem [#allocation11], 16
    %v1540 = vld [vmem:[%s1539] sm:$0xff]
    %v1541 = vld [vmem:[%s1539 + $0x8] sm:$0xff]
    %v1543 = vsel %vm1019, %v1531, 0
    %v1546 = vsel %vm1019, %v1536, 0
    %1548 = vmatprep.subr.mxu0 0.0
    %1549 = vmatpush1.msra.mxu0 %v1540
    %1550 = vmatprep.subr.mxu0 0.0
    %1551 = vmatpush1.msra.mxu0 %v1541
    %1552 = vmatprep.subr.mxu0 0.0
    %1553 = vmatpush1.msra.mxu0 0.0
    %1554 = vmatprep.subr.mxu0 0.0
    %1555 = vmatpush1.msra.mxu0 0.0
    %1556 = vmatprep.subr.mxu0 0.0
    %1557 = vmatpush1.msra.mxu0 0.0
    %1558 = vmatprep.subr.mxu0 0.0
    %1559 = vmatpush1.msra.mxu0 0.0
    %1560 = vmatprep.subr.mxu0 0.0
    %1561 = vmatpush1.msra.mxu0 0.0
    %1562 = vmatprep.subr.mxu0 0.0
    %1563 = vmatpush1.msra.mxu0 0.0
    %1564 = vmatprep.subr.mxu0 0.0
    %1565 = vmatpush1.msra.mxu0 0.0
    %1566 = vmatprep.subr.mxu0 0.0
    %1567 = vmatpush1.msra.mxu0 0.0
    %1568 = vmatprep.subr.mxu0 0.0
    %1569 = vmatpush1.msra.mxu0 0.0
    %1570 = vmatprep.subr.mxu0 0.0
    %1571 = vmatpush1.msra.mxu0 0.0
    %1572 = vmatprep.subr.mxu0 0.0
    %1573 = vmatpush1.msra.mxu0 0.0
    %1574 = vmatprep.subr.mxu0 0.0
    %1575 = vmatpush1.msra.mxu0 0.0
    %1576 = vmatprep.subr.mxu0 0.0
    %1577 = vmatpush1.msra.mxu0 0.0
    %1578 = vmatprep.subr.mxu0 0.0
    %1579 = vmatpush1.msra.mxu0 0.0
    %1580 = vmatprep.subr.mxu0 0.0
    %1581 = vmatpush1.msra.mxu0 0.0
    %1582 = vmatprep.subr.mxu0 0.0
    %1583 = vmatpush1.msra.mxu0 0.0
    %1584 = vmatprep.subr.mxu0 0.0
    %1585 = vmatpush1.msra.mxu0 0.0
    %1586 = vmatprep.subr.mxu0 0.0
    %1587 = vmatpush1.msra.mxu0 0.0
    %1588 = vmatprep.subr.mxu0 0.0
    %1589 = vmatpush1.msra.mxu0 0.0
    %1590 = vmatprep.subr.mxu0 0.0
    %1591 = vmatpush1.msra.mxu0 0.0
    %1592 = vmatprep.subr.mxu0 0.0
    %1593 = vmatpush1.msra.mxu0 0.0
    %1594 = vmatprep.subr.mxu0 0.0
    %1595 = vmatpush1.msra.mxu0 0.0
    %1596 = vmatprep.subr.mxu0 0.0
    %1597 = vmatpush1.msra.mxu0 0.0
    %1598 = vmatprep.subr.mxu0 0.0
    %1599 = vmatpush1.msra.mxu0 0.0
    %1600 = vmatprep.subr.mxu0 0.0
    %1601 = vmatpush1.msra.mxu0 0.0
    %1602 = vmatprep.subr.mxu0 0.0
    %1603 = vmatpush1.msra.mxu0 0.0
    %1604 = vmatprep.subr.mxu0 0.0
    %1605 = vmatpush1.msra.mxu0 0.0
    %1606 = vmatprep.subr.mxu0 0.0
    %1607 = vmatpush1.msra.mxu0 0.0
    %1608 = vmatprep.subr.mxu0 0.0
    %1609 = vmatpush1.msra.mxu0 0.0
    %1610 = vmatprep.subr.mxu0 0.0
    %1611 = vmatpush1.msra.mxu0 0.0
    %1612 = vmatprep.mubr.f32.mxu0 0.0
    %1613 = vmatmul.mubr.f32.gmra.mrb[0].mxu0 %v1543
    %v1614 = vpop.f32.mrb[0].mxu0
    %v1615 = vadd.f32 0.0, %v1614
    %v1616 = vpop.f32.mrb[0].mxu0
    %1617 = vmatprep.mubr.f32.mxu0 0.0
    %1618 = vmatmul.mubr.f32.gmra.mrb[0].mxu0 %v1546
    %v1619 = vpop.f32.mrb[0].mxu0
    %v1620 = vadd.f32 0.0, %v1619
    %v1621 = vpop.f32.mrb[0].mxu0
    %1622 = vdwg.mxu0
    %v1624 = vsel %vm1019, %v1445, 0
    %v1627 = vsel %vm1019, %v1450, 0
    %1629 = vmatprep.subr.mxu0 0.0
    %1630 = vmatpush1.msra.mxu0 %v1453
    %1631 = vmatprep.subr.mxu0 0.0
    %1632 = vmatpush1.msra.mxu0 %v1454
    %1633 = vmatprep.subr.mxu0 0.0
    %1634 = vmatpush1.msra.mxu0 0.0
    %1635 = vmatprep.subr.mxu0 0.0
    %1636 = vmatpush1.msra.mxu0 0.0
    %1637 = vmatprep.subr.mxu0 0.0
    %1638 = vmatpush1.msra.mxu0 0.0
    %1639 = vmatprep.subr.mxu0 0.0
    %1640 = vmatpush1.msra.mxu0 0.0
    %1641 = vmatprep.subr.mxu0 0.0
    %1642 = vmatpush1.msra.mxu0 0.0
    %1643 = vmatprep.subr.mxu0 0.0
    %1644 = vmatpush1.msra.mxu0 0.0
    %1645 = vmatprep.subr.mxu0 0.0
    %1646 = vmatpush1.msra.mxu0 0.0
    %1647 = vmatprep.subr.mxu0 0.0
    %1648 = vmatpush1.msra.mxu0 0.0
    %1649 = vmatprep.subr.mxu0 0.0
    %1650 = vmatpush1.msra.mxu0 0.0
    %1651 = vmatprep.subr.mxu0 0.0
    %1652 = vmatpush1.msra.mxu0 0.0
    %1653 = vmatprep.subr.mxu0 0.0
    %1654 = vmatpush1.msra.mxu0 0.0
    %1655 = vmatprep.subr.mxu0 0.0
    %1656 = vmatpush1.msra.mxu0 0.0
    %1657 = vmatprep.subr.mxu0 0.0
    %1658 = vmatpush1.msra.mxu0 0.0
    %1659 = vmatprep.subr.mxu0 0.0
    %1660 = vmatpush1.msra.mxu0 0.0
    %1661 = vmatprep.subr.mxu0 0.0
    %1662 = vmatpush1.msra.mxu0 0.0
    %1663 = vmatprep.subr.mxu0 0.0
    %1664 = vmatpush1.msra.mxu0 0.0
    %1665 = vmatprep.subr.mxu0 0.0
    %1666 = vmatpush1.msra.mxu0 0.0
    %1667 = vmatprep.subr.mxu0 0.0
    %1668 = vmatpush1.msra.mxu0 0.0
    %1669 = vmatprep.subr.mxu0 0.0
    %1670 = vmatpush1.msra.mxu0 0.0
    %1671 = vmatprep.subr.mxu0 0.0
    %1672 = vmatpush1.msra.mxu0 0.0
    %1673 = vmatprep.subr.mxu0 0.0
    %1674 = vmatpush1.msra.mxu0 0.0
    %1675 = vmatprep.subr.mxu0 0.0
    %1676 = vmatpush1.msra.mxu0 0.0
    %1677 = vmatprep.subr.mxu0 0.0
    %1678 = vmatpush1.msra.mxu0 0.0
    %1679 = vmatprep.subr.mxu0 0.0
    %1680 = vmatpush1.msra.mxu0 0.0
    %1681 = vmatprep.subr.mxu0 0.0
    %1682 = vmatpush1.msra.mxu0 0.0
    %1683 = vmatprep.subr.mxu0 0.0
    %1684 = vmatpush1.msra.mxu0 0.0
    %1685 = vmatprep.subr.mxu0 0.0
    %1686 = vmatpush1.msra.mxu0 0.0
    %1687 = vmatprep.subr.mxu0 0.0
    %1688 = vmatpush1.msra.mxu0 0.0
    %1689 = vmatprep.subr.mxu0 0.0
    %1690 = vmatpush1.msra.mxu0 0.0
    %1691 = vmatprep.subr.mxu0 0.0
    %1692 = vmatpush1.msra.mxu0 0.0
    %1693 = vmatprep.mubr.f32.mxu0 0.0
    %1694 = vmatmul.mubr.f32.gmra.mrb[0].mxu0 %v1624
    %v1695 = vpop.f32.mrb[0].mxu0
    %v1696 = vadd.f32 %v1615, %v1695
    %v1697 = vpop.f32.mrb[0].mxu0
    %1698 = vmatprep.mubr.f32.mxu0 0.0
    %1699 = vmatmul.mubr.f32.gmra.mrb[0].mxu0 %v1627
    %v1700 = vpop.f32.mrb[0].mxu0
    %v1701 = vadd.f32 %v1620, %v1700
    %v1702 = vpop.f32.mrb[0].mxu0
    %1703 = vdwg.mxu0
    %v1704 = vld [vmem:[#allocation13] sm:$0x1]
    %v1706 = vlaneseq
    %v1707 = vshrl.u32 %v1706, 7
    %v1708 = vsub.s32 0, %v1707
    %v1709 = vrot.slane %v1704, %v1708
    %v1711 = vadd.f32 %v1696, %v1709
    %v1712 = vadd.f32 %v1701, %v1709
    %vm1713 = vcmp.gt.f32.partialorder %v1711, 0.0
    %vm1714 = vcmp.gt.f32.partialorder %v1712, 0.0
    %v1715 = vmin.f32 %v1711, 0.0
    %v1716 = vmin.f32 %v1712, 0.0
    %v1717 = vmul.f32 %v1715, 1.442695
    %v1718 = vpow.pop %v1717
    %v1719 = vmul.f32 %v1716, 1.442695
    %v1720 = vpow.pop %v1719
    %v1721 = vsub.f32 %v1718, 1.0
    %v1722 = vsub.f32 %v1720, 1.0
    %v1723 = vsel %vm1713, %v1711, %v1721
    %v1724 = vsel %vm1714, %v1712, %v1722
    %v1726 = vsel %vm1019, %v1723, 0
    %v1729 = vsel %vm1019, %v1724, 0
    %1731 = vmatprep.subr.mxu0 0.0
    %1732 = vmatpush1.msra.mxu0 %v821
    %1733 = vmatprep.subr.mxu0 0.0
    %1734 = vmatpush1.msra.mxu0 %v822
    %1735 = vmatprep.subr.mxu0 0.0
    %1736 = vmatpush1.msra.mxu0 0.0
    %1737 = vmatprep.subr.mxu0 0.0
    %1738 = vmatpush1.msra.mxu0 0.0
    %1739 = vmatprep.subr.mxu0 0.0
    %1740 = vmatpush1.msra.mxu0 0.0
    %1741 = vmatprep.subr.mxu0 0.0
    %1742 = vmatpush1.msra.mxu0 0.0
    %1743 = vmatprep.subr.mxu0 0.0
    %1744 = vmatpush1.msra.mxu0 0.0
    %1745 = vmatprep.subr.mxu0 0.0
    %1746 = vmatpush1.msra.mxu0 0.0
    %1747 = vmatprep.subr.mxu0 0.0
    %1748 = vmatpush1.msra.mxu0 0.0
    %1749 = vmatprep.subr.mxu0 0.0
    %1750 = vmatpush1.msra.mxu0 0.0
    %1751 = vmatprep.subr.mxu0 0.0
    %1752 = vmatpush1.msra.mxu0 0.0
    %1753 = vmatprep.subr.mxu0 0.0
    %1754 = vmatpush1.msra.mxu0 0.0
    %1755 = vmatprep.subr.mxu0 0.0
    %1756 = vmatpush1.msra.mxu0 0.0
    %1757 = vmatprep.subr.mxu0 0.0
    %1758 = vmatpush1.msra.mxu0 0.0
    %1759 = vmatprep.subr.mxu0 0.0
    %1760 = vmatpush1.msra.mxu0 0.0
    %1761 = vmatprep.subr.mxu0 0.0
    %1762 = vmatpush1.msra.mxu0 0.0
    %1763 = vmatprep.subr.mxu0 0.0
    %1764 = vmatpush1.msra.mxu0 0.0
    %1765 = vmatprep.subr.mxu0 0.0
    %1766 = vmatpush1.msra.mxu0 0.0
    %1767 = vmatprep.subr.mxu0 0.0
    %1768 = vmatpush1.msra.mxu0 0.0
    %1769 = vmatprep.subr.mxu0 0.0
    %1770 = vmatpush1.msra.mxu0 0.0
    %1771 = vmatprep.subr.mxu0 0.0
    %1772 = vmatpush1.msra.mxu0 0.0
    %1773 = vmatprep.subr.mxu0 0.0
    %1774 = vmatpush1.msra.mxu0 0.0
    %1775 = vmatprep.subr.mxu0 0.0
    %1776 = vmatpush1.msra.mxu0 0.0
    %1777 = vmatprep.subr.mxu0 0.0
    %1778 = vmatpush1.msra.mxu0 0.0
    %1779 = vmatprep.subr.mxu0 0.0
    %1780 = vmatpush1.msra.mxu0 0.0
    %1781 = vmatprep.subr.mxu0 0.0
    %1782 = vmatpush1.msra.mxu0 0.0
    %1783 = vmatprep.subr.mxu0 0.0
    %1784 = vmatpush1.msra.mxu0 0.0
    %1785 = vmatprep.subr.mxu0 0.0
    %1786 = vmatpush1.msra.mxu0 0.0
    %1787 = vmatprep.subr.mxu0 0.0
    %1788 = vmatpush1.msra.mxu0 0.0
    %1789 = vmatprep.subr.mxu0 0.0
    %1790 = vmatpush1.msra.mxu0 0.0
    %1791 = vmatprep.subr.mxu0 0.0
    %1792 = vmatpush1.msra.mxu0 0.0
    %1793 = vmatprep.subr.mxu0 0.0
    %1794 = vmatpush1.msra.mxu0 0.0
    %1795 = vmatprep.mubr.f32.mxu0 0.0
    %1796 = vmatmul.mubr.f32.gmra.mrb[0].mxu0 %v1726
    %v1797 = vpop.f32.mrb[0].mxu0
    %v1798 = vadd.f32 %v1230, %v1797
    %v1799 = vpop.f32.mrb[0].mxu0
    %1800 = vmatprep.mubr.f32.mxu0 0.0
    %1801 = vmatmul.mubr.f32.gmra.mrb[0].mxu0 %v1729
    %v1802 = vpop.f32.mrb[0].mxu0
    %v1803 = vadd.f32 %v1230, %v1802
    %v1804 = vpop.f32.mrb[0].mxu0
    %1805 = vdwg.mxu0
    %v1806 = vsel %vm562, %v1798, 0.0
    %1807 = vadd.xlane.f32.xlu0 %v1806
    %v1808 = vpop.xlane.xlu0 %1807
    %vm1809 = vcmask 257024
    %v1810 = vsel %vm1809, %v1803, 0.0
    %1811 = vadd.xlane.f32.xlu0 %v1810
    %v1812 = vpop.xlane.xlu0 %1811
    %v1813 = vmul.f32 %v1808, %v585
    %v1814 = vmul.f32 %v1812, %v585
    %v1815 = vsub.f32 %v1798, %v1813
    %v1816 = vsub.f32 %v1803, %v1814
    %v1817 = vmul.f32 %v1815, %v1815
    %v1818 = vmul.f32 %v1816, %v1816
    %v1819 = vsel %vm562, %v1817, 0.0
    %1820 = vadd.xlane.f32.xlu0 %v1819
    %v1821 = vpop.xlane.xlu0 %1820
    %v1822 = vsel %vm1809, %v1818, 0.0
    %1823 = vadd.xlane.f32.xlu0 %v1822
    %v1824 = vpop.xlane.xlu0 %1823
    %v1825 = vmul.f32 %v1821, %v585
    %v1826 = vmul.f32 %v1824, %v585
    %v1827 = vadd.f32 %v1825, 1e-05
    %v1828 = vadd.f32 %v1826, 1e-05
    %v1829 = vrsqrt.pop %v1827
    %v1830 = vrsqrt.pop %v1828
    %v1831 = vmul.f32 %v1815, %v1829
    %v1832 = vmul.f32 %v1816, %v1830
    %v1833 = vmul.f32 %v1831, %v660
    %v1834 = vmul.f32 %v1832, %v660
    %v1835 = vadd.f32 %v1833, %v673
    %v1836 = vadd.f32 %v1834, %v673
    %1837 = vst.msk [vmem:[#allocation2 + $0x4a] sm:$0xff] %vm562, %v1835
    %1838 = vst.msk [vmem:[#allocation2 + $0x52] sm:$0xf] %vm1809, %v1836
    %v1839 = vld [vmem:[#allocation14] sm:$0x3f]
    %vm1840 = vcmask 97280
    %v1842 = vsel %vm1840, %v1839, 0
    %vm1844 = vcmask 1043456
    %v1845 = vsel %vm1844, %v1724, 0
    %1847 = vmatprep.subr.mxu0 0.0
    %1848 = vmatpush1.msra.mxu0 %v1723
    %1849 = vmatprep.subr.mxu0 0.0
    %1850 = vmatpush1.msra.mxu0 %v1845
    %1851 = vmatprep.subr.mxu0 0.0
    %1852 = vmatpush1.msra.mxu0 0.0
    %1853 = vmatprep.subr.mxu0 0.0
    %1854 = vmatpush1.msra.mxu0 0.0
    %1855 = vmatprep.subr.mxu0 0.0
    %1856 = vmatpush1.msra.mxu0 0.0
    %1857 = vmatprep.subr.mxu0 0.0
    %1858 = vmatpush1.msra.mxu0 0.0
    %1859 = vmatprep.subr.mxu0 0.0
    %1860 = vmatpush1.msra.mxu0 0.0
    %1861 = vmatprep.subr.mxu0 0.0
    %1862 = vmatpush1.msra.mxu0 0.0
    %1863 = vmatprep.subr.mxu0 0.0
    %1864 = vmatpush1.msra.mxu0 0.0
    %1865 = vmatprep.subr.mxu0 0.0
    %1866 = vmatpush1.msra.mxu0 0.0
    %1867 = vmatprep.subr.mxu0 0.0
    %1868 = vmatpush1.msra.mxu0 0.0
    %1869 = vmatprep.subr.mxu0 0.0
    %1870 = vmatpush1.msra.mxu0 0.0
    %1871 = vmatprep.subr.mxu0 0.0
    %1872 = vmatpush1.msra.mxu0 0.0
    %1873 = vmatprep.subr.mxu0 0.0
    %1874 = vmatpush1.msra.mxu0 0.0
    %1875 = vmatprep.subr.mxu0 0.0
    %1876 = vmatpush1.msra.mxu0 0.0
    %1877 = vmatprep.subr.mxu0 0.0
    %1878 = vmatpush1.msra.mxu0 0.0
    %1879 = vmatprep.subr.mxu0 0.0
    %1880 = vmatpush1.msra.mxu0 0.0
    %1881 = vmatprep.subr.mxu0 0.0
    %1882 = vmatpush1.msra.mxu0 0.0
    %1883 = vmatprep.subr.mxu0 0.0
    %1884 = vmatpush1.msra.mxu0 0.0
    %1885 = vmatprep.subr.mxu0 0.0
    %1886 = vmatpush1.msra.mxu0 0.0
    %1887 = vmatprep.subr.mxu0 0.0
    %1888 = vmatpush1.msra.mxu0 0.0
    %1889 = vmatprep.subr.mxu0 0.0
    %1890 = vmatpush1.msra.mxu0 0.0
    %1891 = vmatprep.subr.mxu0 0.0
    %1892 = vmatpush1.msra.mxu0 0.0
    %1893 = vmatprep.subr.mxu0 0.0
    %1894 = vmatpush1.msra.mxu0 0.0
    %1895 = vmatprep.subr.mxu0 0.0
    %1896 = vmatpush1.msra.mxu0 0.0
    %1897 = vmatprep.subr.mxu0 0.0
    %1898 = vmatpush1.msra.mxu0 0.0
    %1899 = vmatprep.subr.mxu0 0.0
    %1900 = vmatpush1.msra.mxu0 0.0
    %1901 = vmatprep.subr.mxu0 0.0
    %1902 = vmatpush1.msra.mxu0 0.0
    %1903 = vmatprep.subr.mxu0 0.0
    %1904 = vmatpush1.msra.mxu0 0.0
    %1905 = vmatprep.subr.mxu0 0.0
    %1906 = vmatpush1.msra.mxu0 0.0
    %1907 = vmatprep.subr.mxu0 0.0
    %1908 = vmatpush1.msra.mxu0 0.0
    %1909 = vmatprep.subr.mxu0 0.0
    %1910 = vmatpush1.msra.mxu0 0.0
    %1911 = vmatprep.mubr.f32.mxu0 0.0
    %1912 = vmatmul.mubr.f32.gmra.mrb[0].mxu0 %v1842
    %v1913 = vpop.f32.mrb[0].mxu0
    %v1914 = vadd.f32 0.0, %v1913
    %v1915 = vpop.f32.mrb[0].mxu0
    %1916 = vdwg.mxu0
    %v1917 = vld [vmem:[#allocation16] sm:$0xff]
    %v1918 = vld [vmem:[#allocation16 + $0x8] sm:$0xff]
    %s1919 = scalar_lea.vmem [#allocation14], 8
    %v1920 = vld [vmem:[%s1919] sm:$0x3f]
    %v1922 = vsel %vm1840, %v1920, 0
    %1924 = vmatprep.subr.mxu0 0.0
    %1925 = vmatpush1.msra.mxu0 %v1723
    %1926 = vmatprep.subr.mxu0 0.0
    %1927 = vmatpush1.msra.mxu0 %v1845
    %1928 = vmatprep.subr.mxu0 0.0
    %1929 = vmatpush1.msra.mxu0 0.0
    %1930 = vmatprep.subr.mxu0 0.0
    %1931 = vmatpush1.msra.mxu0 0.0
    %1932 = vmatprep.subr.mxu0 0.0
    %1933 = vmatpush1.msra.mxu0 0.0
    %1934 = vmatprep.subr.mxu0 0.0
    %1935 = vmatpush1.msra.mxu0 0.0
    %1936 = vmatprep.subr.mxu0 0.0
    %1937 = vmatpush1.msra.mxu0 0.0
    %1938 = vmatprep.subr.mxu0 0.0
    %1939 = vmatpush1.msra.mxu0 0.0
    %1940 = vmatprep.subr.mxu0 0.0
    %1941 = vmatpush1.msra.mxu0 0.0
    %1942 = vmatprep.subr.mxu0 0.0
    %1943 = vmatpush1.msra.mxu0 0.0
    %1944 = vmatprep.subr.mxu0 0.0
    %1945 = vmatpush1.msra.mxu0 0.0
    %1946 = vmatprep.subr.mxu0 0.0
    %1947 = vmatpush1.msra.mxu0 0.0
    %1948 = vmatprep.subr.mxu0 0.0
    %1949 = vmatpush1.msra.mxu0 0.0
    %1950 = vmatprep.subr.mxu0 0.0
    %1951 = vmatpush1.msra.mxu0 0.0
    %1952 = vmatprep.subr.mxu0 0.0
    %1953 = vmatpush1.msra.mxu0 0.0
    %1954 = vmatprep.subr.mxu0 0.0
    %1955 = vmatpush1.msra.mxu0 0.0
    %1956 = vmatprep.subr.mxu0 0.0
    %1957 = vmatpush1.msra.mxu0 0.0
    %1958 = vmatprep.subr.mxu0 0.0
    %1959 = vmatpush1.msra.mxu0 0.0
    %1960 = vmatprep.subr.mxu0 0.0
    %1961 = vmatpush1.msra.mxu0 0.0
    %1962 = vmatprep.subr.mxu0 0.0
    %1963 = vmatpush1.msra.mxu0 0.0
    %1964 = vmatprep.subr.mxu0 0.0
    %1965 = vmatpush1.msra.mxu0 0.0
    %1966 = vmatprep.subr.mxu0 0.0
    %1967 = vmatpush1.msra.mxu0 0.0
    %1968 = vmatprep.subr.mxu0 0.0
    %1969 = vmatpush1.msra.mxu0 0.0
    %1970 = vmatprep.subr.mxu0 0.0
    %1971 = vmatpush1.msra.mxu0 0.0
    %1972 = vmatprep.subr.mxu0 0.0
    %1973 = vmatpush1.msra.mxu0 0.0
    %1974 = vmatprep.subr.mxu0 0.0
    %1975 = vmatpush1.msra.mxu0 0.0
    %1976 = vmatprep.subr.mxu0 0.0
    %1977 = vmatpush1.msra.mxu0 0.0
    %1978 = vmatprep.subr.mxu0 0.0
    %1979 = vmatpush1.msra.mxu0 0.0
    %1980 = vmatprep.subr.mxu0 0.0
    %1981 = vmatpush1.msra.mxu0 0.0
    %1982 = vmatprep.subr.mxu0 0.0
    %1983 = vmatpush1.msra.mxu0 0.0
    %1984 = vmatprep.subr.mxu0 0.0
    %1985 = vmatpush1.msra.mxu0 0.0
    %1986 = vmatprep.subr.mxu0 0.0
    %1987 = vmatpush1.msra.mxu0 0.0
    %1988 = vmatprep.mubr.f32.mxu0 0.0
    %1989 = vmatmul.mubr.f32.gmra.mrb[0].mxu0 %v1922
    %v1990 = vpop.f32.mrb[0].mxu0
    %v1991 = vadd.f32 0.0, %v1990
    %v1992 = vpop.f32.mrb[0].mxu0
    %1993 = vdwg.mxu0
    %s1994 = scalar_lea.vmem [#allocation16], 16
    %v1995 = vld [vmem:[%s1994] sm:$0xff]
    %v1996 = vld [vmem:[%s1994 + $0x8] sm:$0xff]
    %v1998 = vsel %vm1019, %v1991, 0
    %2000 = vmatprep.subr.mxu0 0.0
    %2001 = vmatpush1.msra.mxu0 %v1995
    %2002 = vmatprep.subr.mxu0 0.0
    %2003 = vmatpush1.msra.mxu0 %v1996
    %2004 = vmatprep.subr.mxu0 0.0
    %2005 = vmatpush1.msra.mxu0 0.0
    %2006 = vmatprep.subr.mxu0 0.0
    %2007 = vmatpush1.msra.mxu0 0.0
    %2008 = vmatprep.subr.mxu0 0.0
    %2009 = vmatpush1.msra.mxu0 0.0
    %2010 = vmatprep.subr.mxu0 0.0
    %2011 = vmatpush1.msra.mxu0 0.0
    %2012 = vmatprep.subr.mxu0 0.0
    %2013 = vmatpush1.msra.mxu0 0.0
    %2014 = vmatprep.subr.mxu0 0.0
    %2015 = vmatpush1.msra.mxu0 0.0
    %2016 = vmatprep.subr.mxu0 0.0
    %2017 = vmatpush1.msra.mxu0 0.0
    %2018 = vmatprep.subr.mxu0 0.0
    %2019 = vmatpush1.msra.mxu0 0.0
    %2020 = vmatprep.subr.mxu0 0.0
    %2021 = vmatpush1.msra.mxu0 0.0
    %2022 = vmatprep.subr.mxu0 0.0
    %2023 = vmatpush1.msra.mxu0 0.0
    %2024 = vmatprep.subr.mxu0 0.0
    %2025 = vmatpush1.msra.mxu0 0.0
    %2026 = vmatprep.subr.mxu0 0.0
    %2027 = vmatpush1.msra.mxu0 0.0
    %2028 = vmatprep.subr.mxu0 0.0
    %2029 = vmatpush1.msra.mxu0 0.0
    %2030 = vmatprep.subr.mxu0 0.0
    %2031 = vmatpush1.msra.mxu0 0.0
    %2032 = vmatprep.subr.mxu0 0.0
    %2033 = vmatpush1.msra.mxu0 0.0
    %2034 = vmatprep.subr.mxu0 0.0
    %2035 = vmatpush1.msra.mxu0 0.0
    %2036 = vmatprep.subr.mxu0 0.0
    %2037 = vmatpush1.msra.mxu0 0.0
    %2038 = vmatprep.subr.mxu0 0.0
    %2039 = vmatpush1.msra.mxu0 0.0
    %2040 = vmatprep.subr.mxu0 0.0
    %2041 = vmatpush1.msra.mxu0 0.0
    %2042 = vmatprep.subr.mxu0 0.0
    %2043 = vmatpush1.msra.mxu0 0.0
    %2044 = vmatprep.subr.mxu0 0.0
    %2045 = vmatpush1.msra.mxu0 0.0
    %2046 = vmatprep.subr.mxu0 0.0
    %2047 = vmatpush1.msra.mxu0 0.0
    %2048 = vmatprep.subr.mxu0 0.0
    %2049 = vmatpush1.msra.mxu0 0.0
    %2050 = vmatprep.subr.mxu0 0.0
    %2051 = vmatpush1.msra.mxu0 0.0
    %2052 = vmatprep.subr.mxu0 0.0
    %2053 = vmatpush1.msra.mxu0 0.0
    %2054 = vmatprep.subr.mxu0 0.0
    %2055 = vmatpush1.msra.mxu0 0.0
    %2056 = vmatprep.subr.mxu0 0.0
    %2057 = vmatpush1.msra.mxu0 0.0
    %2058 = vmatprep.subr.mxu0 0.0
    %2059 = vmatpush1.msra.mxu0 0.0
    %2060 = vmatprep.subr.mxu0 0.0
    %2061 = vmatpush1.msra.mxu0 0.0
    %2062 = vmatprep.subr.mxu0 0.0
    %2063 = vmatpush1.msra.mxu0 0.0
    %2064 = vmatprep.mubr.f32.mxu0 0.0
    %2065 = vmatmul.mubr.f32.gmra.mrb[0].mxu0 %v1998
    %v2066 = vpop.f32.mrb[0].mxu0
    %v2067 = vadd.f32 0.0, %v2066
    %v2068 = vpop.f32.mrb[0].mxu0
    %2069 = vdwg.mxu0
    %v2071 = vsel %vm1019, %v1914, 0
    %2073 = vmatprep.subr.mxu0 0.0
    %2074 = vmatpush1.msra.mxu0 %v1917
    %2075 = vmatprep.subr.mxu0 0.0
    %2076 = vmatpush1.msra.mxu0 %v1918
    %2077 = vmatprep.subr.mxu0 0.0
    %2078 = vmatpush1.msra.mxu0 0.0
    %2079 = vmatprep.subr.mxu0 0.0
    %2080 = vmatpush1.msra.mxu0 0.0
    %2081 = vmatprep.subr.mxu0 0.0
    %2082 = vmatpush1.msra.mxu0 0.0
    %2083 = vmatprep.subr.mxu0 0.0
    %2084 = vmatpush1.msra.mxu0 0.0
    %2085 = vmatprep.subr.mxu0 0.0
    %2086 = vmatpush1.msra.mxu0 0.0
    %2087 = vmatprep.subr.mxu0 0.0
    %2088 = vmatpush1.msra.mxu0 0.0
    %2089 = vmatprep.subr.mxu0 0.0
    %2090 = vmatpush1.msra.mxu0 0.0
    %2091 = vmatprep.subr.mxu0 0.0
    %2092 = vmatpush1.msra.mxu0 0.0
    %2093 = vmatprep.subr.mxu0 0.0
    %2094 = vmatpush1.msra.mxu0 0.0
    %2095 = vmatprep.subr.mxu0 0.0
    %2096 = vmatpush1.msra.mxu0 0.0
    %2097 = vmatprep.subr.mxu0 0.0
    %2098 = vmatpush1.msra.mxu0 0.0
    %2099 = vmatprep.subr.mxu0 0.0
    %2100 = vmatpush1.msra.mxu0 0.0
    %2101 = vmatprep.subr.mxu0 0.0
    %2102 = vmatpush1.msra.mxu0 0.0
    %2103 = vmatprep.subr.mxu0 0.0
    %2104 = vmatpush1.msra.mxu0 0.0
    %2105 = vmatprep.subr.mxu0 0.0
    %2106 = vmatpush1.msra.mxu0 0.0
    %2107 = vmatprep.subr.mxu0 0.0
    %2108 = vmatpush1.msra.mxu0 0.0
    %2109 = vmatprep.subr.mxu0 0.0
    %2110 = vmatpush1.msra.mxu0 0.0
    %2111 = vmatprep.subr.mxu0 0.0
    %2112 = vmatpush1.msra.mxu0 0.0
    %2113 = vmatprep.subr.mxu0 0.0
    %2114 = vmatpush1.msra.mxu0 0.0
    %2115 = vmatprep.subr.mxu0 0.0
    %2116 = vmatpush1.msra.mxu0 0.0
    %2117 = vmatprep.subr.mxu0 0.0
    %2118 = vmatpush1.msra.mxu0 0.0
    %2119 = vmatprep.subr.mxu0 0.0
    %2120 = vmatpush1.msra.mxu0 0.0
    %2121 = vmatprep.subr.mxu0 0.0
    %2122 = vmatpush1.msra.mxu0 0.0
    %2123 = vmatprep.subr.mxu0 0.0
    %2124 = vmatpush1.msra.mxu0 0.0
    %2125 = vmatprep.subr.mxu0 0.0
    %2126 = vmatpush1.msra.mxu0 0.0
    %2127 = vmatprep.subr.mxu0 0.0
    %2128 = vmatpush1.msra.mxu0 0.0
    %2129 = vmatprep.subr.mxu0 0.0
    %2130 = vmatpush1.msra.mxu0 0.0
    %2131 = vmatprep.subr.mxu0 0.0
    %2132 = vmatpush1.msra.mxu0 0.0
    %2133 = vmatprep.subr.mxu0 0.0
    %2134 = vmatpush1.msra.mxu0 0.0
    %2135 = vmatprep.subr.mxu0 0.0
    %2136 = vmatpush1.msra.mxu0 0.0
    %2137 = vmatprep.mubr.f32.mxu0 0.0
    %2138 = vmatmul.mubr.f32.gmra.mrb[0].mxu0 %v2071
    %v2139 = vpop.f32.mrb[0].mxu0
    %v2140 = vadd.f32 %v2067, %v2139
    %v2141 = vpop.f32.mrb[0].mxu0
    %2142 = vdwg.mxu0
    %v2143 = vld [vmem:[#allocation17] sm:$0x1]
    %v2145 = vlaneseq
    %v2146 = vshrl.u32 %v2145, 7
    %v2147 = vsub.s32 0, %v2146
    %v2148 = vrot.slane %v2143, %v2147
    %v2150 = vadd.f32 %v2140, %v2148
    %vm2151 = vcmp.gt.f32.partialorder %v2150, 0.0
    %v2152 = vmin.f32 %v2150, 0.0
    %v2153 = vmul.f32 %v2152, 1.442695
    %v2154 = vpow.pop %v2153
    %v2155 = vsub.f32 %v2154, 1.0
    %v2156 = vsel %vm2151, %v2150, %v2155
    %v2158 = vsel %vm1019, %v2156, 0
    %2160 = vmatprep.subr.mxu0 0.0
    %2161 = vmatpush1.msra.mxu0 %v821
    %2162 = vmatprep.subr.mxu0 0.0
    %2163 = vmatpush1.msra.mxu0 %v822
    %2164 = vmatprep.subr.mxu0 0.0
    %2165 = vmatpush1.msra.mxu0 0.0
    %2166 = vmatprep.subr.mxu0 0.0
    %2167 = vmatpush1.msra.mxu0 0.0
    %2168 = vmatprep.subr.mxu0 0.0
    %2169 = vmatpush1.msra.mxu0 0.0
    %2170 = vmatprep.subr.mxu0 0.0
    %2171 = vmatpush1.msra.mxu0 0.0
    %2172 = vmatprep.subr.mxu0 0.0
    %2173 = vmatpush1.msra.mxu0 0.0
    %2174 = vmatprep.subr.mxu0 0.0
    %2175 = vmatpush1.msra.mxu0 0.0
    %2176 = vmatprep.subr.mxu0 0.0
    %2177 = vmatpush1.msra.mxu0 0.0
    %2178 = vmatprep.subr.mxu0 0.0
    %2179 = vmatpush1.msra.mxu0 0.0
    %2180 = vmatprep.subr.mxu0 0.0
    %2181 = vmatpush1.msra.mxu0 0.0
    %2182 = vmatprep.subr.mxu0 0.0
    %2183 = vmatpush1.msra.mxu0 0.0
    %2184 = vmatprep.subr.mxu0 0.0
    %2185 = vmatpush1.msra.mxu0 0.0
    %2186 = vmatprep.subr.mxu0 0.0
    %2187 = vmatpush1.msra.mxu0 0.0
    %2188 = vmatprep.subr.mxu0 0.0
    %2189 = vmatpush1.msra.mxu0 0.0
    %2190 = vmatprep.subr.mxu0 0.0
    %2191 = vmatpush1.msra.mxu0 0.0
    %2192 = vmatprep.subr.mxu0 0.0
    %2193 = vmatpush1.msra.mxu0 0.0
    %2194 = vmatprep.subr.mxu0 0.0
    %2195 = vmatpush1.msra.mxu0 0.0
    %2196 = vmatprep.subr.mxu0 0.0
    %2197 = vmatpush1.msra.mxu0 0.0
    %2198 = vmatprep.subr.mxu0 0.0
    %2199 = vmatpush1.msra.mxu0 0.0
    %2200 = vmatprep.subr.mxu0 0.0
    %2201 = vmatpush1.msra.mxu0 0.0
    %2202 = vmatprep.subr.mxu0 0.0
    %2203 = vmatpush1.msra.mxu0 0.0
    %2204 = vmatprep.subr.mxu0 0.0
    %2205 = vmatpush1.msra.mxu0 0.0
    %2206 = vmatprep.subr.mxu0 0.0
    %2207 = vmatpush1.msra.mxu0 0.0
    %2208 = vmatprep.subr.mxu0 0.0
    %2209 = vmatpush1.msra.mxu0 0.0
    %2210 = vmatprep.subr.mxu0 0.0
    %2211 = vmatpush1.msra.mxu0 0.0
    %2212 = vmatprep.subr.mxu0 0.0
    %2213 = vmatpush1.msra.mxu0 0.0
    %2214 = vmatprep.subr.mxu0 0.0
    %2215 = vmatpush1.msra.mxu0 0.0
    %2216 = vmatprep.subr.mxu0 0.0
    %2217 = vmatpush1.msra.mxu0 0.0
    %2218 = vmatprep.subr.mxu0 0.0
    %2219 = vmatpush1.msra.mxu0 0.0
    %2220 = vmatprep.subr.mxu0 0.0
    %2221 = vmatpush1.msra.mxu0 0.0
    %2222 = vmatprep.subr.mxu0 0.0
    %2223 = vmatpush1.msra.mxu0 0.0
    %2224 = vmatprep.mubr.f32.mxu0 0.0
    %2225 = vmatmul.mubr.f32.gmra.mrb[0].mxu0 %v2158
    %v2226 = vpop.f32.mrb[0].mxu0
    %v2227 = vadd.f32 %v1230, %v2226
    %v2228 = vpop.f32.mrb[0].mxu0
    %2229 = vdwg.mxu0
    %vm2230 = vcmask 259072
    %v2231 = vsel %vm2230, %v2227, 0.0
    %2232 = vadd.xlane.f32.xlu0 %v2231
    %v2233 = vpop.xlane.xlu0 %2232
    %v2234 = vmul.f32 %v2233, %v585
    %v2235 = vsub.f32 %v2227, %v2234
    %v2236 = vmul.f32 %v2235, %v2235
    %v2237 = vsel %vm2230, %v2236, 0.0
    %2238 = vadd.xlane.f32.xlu0 %v2237
    %v2239 = vpop.xlane.xlu0 %2238
    %v2240 = vmul.f32 %v2239, %v585
    %v2241 = vadd.f32 %v2240, 1e-05
    %v2242 = vrsqrt.pop %v2241
    %v2243 = vmul.f32 %v2235, %v2242
    %v2244 = vmul.f32 %v2243, %v660
    %v2245 = vadd.f32 %v2244, %v673
    %2246 = vst.msk [vmem:[#allocation2 + $0x56] sm:$0x3f] %vm2230, %v2245
    %v2247 = vld [vmem:[%s37] sm:$0xff]
    %v2248 = vld [vmem:[%s37 + $0x8] sm:$0xff]
    %v2249 = vld [vmem:[%s37 + $0x10] sm:$0xff]
    %v2250 = vld [vmem:[%s37 + $0x18] sm:$0xff]
    %v2251 = vld [vmem:[%s37 + $0x20] sm:$0xff]
    %v2252 = vld [vmem:[%s37 + $0x28] sm:$0xff]
    %v2253 = vld [vmem:[%s37 + $0x30] sm:$0xff]
    %v2254 = vld [vmem:[%s37 + $0x38] sm:$0xff]
    %v2255 = vld [vmem:[%s37 + $0x40] sm:$0xff]
    %v2256 = vld [vmem:[%s37 + $0x48] sm:$0xff]
    %v2257 = vld [vmem:[%s37 + $0x50] sm:$0xff]
    %v2258 = vld [vmem:[%s37 + $0x58] sm:$0xf]
    %v2259 = vld [vmem:[#allocation2] sm:$0xff]
    %v2260 = vld [vmem:[#allocation2 + $0x8] sm:$0xff]
    %v2261 = vld [vmem:[#allocation2 + $0x10] sm:$0xff]
    %v2262 = vld [vmem:[#allocation2 + $0x18] sm:$0xff]
    %v2263 = vld [vmem:[#allocation2 + $0x20] sm:$0xff]
    %v2264 = vld [vmem:[#allocation2 + $0x28] sm:$0xff]
    %v2265 = vld [vmem:[#allocation2 + $0x30] sm:$0xff]
    %v2266 = vld [vmem:[#allocation2 + $0x38] sm:$0xff]
    %v2267 = vld [vmem:[#allocation2 + $0x40] sm:$0xff]
    %v2268 = vld [vmem:[#allocation2 + $0x48] sm:$0xff]
    %v2269 = vld [vmem:[#allocation2 + $0x50] sm:$0xff]
    %v2270 = vld [vmem:[#allocation2 + $0x58] sm:$0xf]
    %v2271 = vld [vmem:[%s39] sm:$0xff]
    %v2272 = vld [vmem:[%s39 + $0x8] sm:$0xff]
    %v2273 = vld [vmem:[%s39 + $0x10] sm:$0xff]
    %v2274 = vld [vmem:[%s39 + $0x18] sm:$0xff]
    %v2276 = vsel %vm562, %v2259, 0
    %v2279 = vsel %vm562, %v2260, 0
    %v2282 = vsel %vm562, %v2261, 0
    %v2285 = vsel %vm562, %v2262, 0
    %v2288 = vsel %vm562, %v2263, 0
    %v2291 = vsel %vm562, %v2264, 0
    %v2294 = vsel %vm562, %v2265, 0
    %v2297 = vsel %vm562, %v2266, 0
    %v2300 = vsel %vm562, %v2267, 0
    %v2303 = vsel %vm562, %v2268, 0
    %v2306 = vsel %vm562, %v2269, 0
    %v2309 = vsel %vm562, %v2270, 0
    %2311 = vmatprep.subr.mxu0 0.0
    %2312 = vmatpush1.msra.mxu0 %v2271
    %2313 = vmatprep.subr.mxu0 0.0
    %2314 = vmatpush1.msra.mxu0 %v2272
    %2315 = vmatprep.subr.mxu0 0.0
    %2316 = vmatpush1.msra.mxu0 %v2273
    %2317 = vmatprep.subr.mxu0 0.0
    %2318 = vmatpush1.msra.mxu0 %v2274
    %2319 = vmatprep.subr.mxu0 0.0
    %2320 = vmatpush1.msra.mxu0 0.0
    %2321 = vmatprep.subr.mxu0 0.0
    %2322 = vmatpush1.msra.mxu0 0.0
    %2323 = vmatprep.subr.mxu0 0.0
    %2324 = vmatpush1.msra.mxu0 0.0
    %2325 = vmatprep.subr.mxu0 0.0
    %2326 = vmatpush1.msra.mxu0 0.0
    %2327 = vmatprep.subr.mxu0 0.0
    %2328 = vmatpush1.msra.mxu0 0.0
    %2329 = vmatprep.subr.mxu0 0.0
    %2330 = vmatpush1.msra.mxu0 0.0
    %2331 = vmatprep.subr.mxu0 0.0
    %2332 = vmatpush1.msra.mxu0 0.0
    %2333 = vmatprep.subr.mxu0 0.0
    %2334 = vmatpush1.msra.mxu0 0.0
    %2335 = vmatprep.subr.mxu0 0.0
    %2336 = vmatpush1.msra.mxu0 0.0
    %2337 = vmatprep.subr.mxu0 0.0
    %2338 = vmatpush1.msra.mxu0 0.0
    %2339 = vmatprep.subr.mxu0 0.0
    %2340 = vmatpush1.msra.mxu0 0.0
    %2341 = vmatprep.subr.mxu0 0.0
    %2342 = vmatpush1.msra.mxu0 0.0
    %2343 = vmatprep.subr.mxu0 0.0
    %2344 = vmatpush1.msra.mxu0 0.0
    %2345 = vmatprep.subr.mxu0 0.0
    %2346 = vmatpush1.msra.mxu0 0.0
    %2347 = vmatprep.subr.mxu0 0.0
    %2348 = vmatpush1.msra.mxu0 0.0
    %2349 = vmatprep.subr.mxu0 0.0
    %2350 = vmatpush1.msra.mxu0 0.0
    %2351 = vmatprep.subr.mxu0 0.0
    %2352 = vmatpush1.msra.mxu0 0.0
    %2353 = vmatprep.subr.mxu0 0.0
    %2354 = vmatpush1.msra.mxu0 0.0
    %2355 = vmatprep.subr.mxu0 0.0
    %2356 = vmatpush1.msra.mxu0 0.0
    %2357 = vmatprep.subr.mxu0 0.0
    %2358 = vmatpush1.msra.mxu0 0.0
    %2359 = vmatprep.subr.mxu0 0.0
    %2360 = vmatpush1.msra.mxu0 0.0
    %2361 = vmatprep.subr.mxu0 0.0
    %2362 = vmatpush1.msra.mxu0 0.0
    %2363 = vmatprep.subr.mxu0 0.0
    %2364 = vmatpush1.msra.mxu0 0.0
    %2365 = vmatprep.subr.mxu0 0.0
    %2366 = vmatpush1.msra.mxu0 0.0
    %2367 = vmatprep.subr.mxu0 0.0
    %2368 = vmatpush1.msra.mxu0 0.0
    %2369 = vmatprep.subr.mxu0 0.0
    %2370 = vmatpush1.msra.mxu0 0.0
    %2371 = vmatprep.subr.mxu0 0.0
    %2372 = vmatpush1.msra.mxu0 0.0
    %2373 = vmatprep.subr.mxu0 0.0
    %2374 = vmatpush1.msra.mxu0 0.0
    %2375 = vmatprep.mubr.f32.mxu0 0.0
    %2376 = vmatmul.mubr.f32.gmra.mrb[0].mxu0 %v2276
    %v2377 = vpop.f32.mrb[0].mxu0
    %v2378 = vadd.f32 0.0, %v2377
    %v2379 = vpop.f32.mrb[0].mxu0
    %2380 = vmatprep.mubr.f32.mxu0 0.0
    %2381 = vmatmul.mubr.f32.gmra.mrb[0].mxu0 %v2279
    %v2382 = vpop.f32.mrb[0].mxu0
    %v2383 = vadd.f32 0.0, %v2382
    %v2384 = vpop.f32.mrb[0].mxu0
    %2385 = vmatprep.mubr.f32.mxu0 0.0
    %2386 = vmatmul.mubr.f32.gmra.mrb[0].mxu0 %v2282
    %v2387 = vpop.f32.mrb[0].mxu0
    %v2388 = vadd.f32 0.0, %v2387
    %v2389 = vpop.f32.mrb[0].mxu0
    %2390 = vmatprep.mubr.f32.mxu0 0.0
    %2391 = vmatmul.mubr.f32.gmra.mrb[0].mxu0 %v2285
    %v2392 = vpop.f32.mrb[0].mxu0
    %v2393 = vadd.f32 0.0, %v2392
    %v2394 = vpop.f32.mrb[0].mxu0
    %2395 = vmatprep.mubr.f32.mxu0 0.0
    %2396 = vmatmul.mubr.f32.gmra.mrb[0].mxu0 %v2288
    %v2397 = vpop.f32.mrb[0].mxu0
    %v2398 = vadd.f32 0.0, %v2397
    %v2399 = vpop.f32.mrb[0].mxu0
    %2400 = vmatprep.mubr.f32.mxu0 0.0
    %2401 = vmatmul.mubr.f32.gmra.mrb[0].mxu0 %v2291
    %v2402 = vpop.f32.mrb[0].mxu0
    %v2403 = vadd.f32 0.0, %v2402
    %v2404 = vpop.f32.mrb[0].mxu0
    %2405 = vmatprep.mubr.f32.mxu0 0.0
    %2406 = vmatmul.mubr.f32.gmra.mrb[0].mxu0 %v2294
    %v2407 = vpop.f32.mrb[0].mxu0
    %v2408 = vadd.f32 0.0, %v2407
    %v2409 = vpop.f32.mrb[0].mxu0
    %2410 = vmatprep.mubr.f32.mxu0 0.0
    %2411 = vmatmul.mubr.f32.gmra.mrb[0].mxu0 %v2297
    %v2412 = vpop.f32.mrb[0].mxu0
    %v2413 = vadd.f32 0.0, %v2412
    %v2414 = vpop.f32.mrb[0].mxu0
    %2415 = vmatprep.mubr.f32.mxu0 0.0
    %2416 = vmatmul.mubr.f32.gmra.mrb[0].mxu0 %v2300
    %v2417 = vpop.f32.mrb[0].mxu0
    %v2418 = vadd.f32 0.0, %v2417
    %v2419 = vpop.f32.mrb[0].mxu0
    %2420 = vmatprep.mubr.f32.mxu0 0.0
    %2421 = vmatmul.mubr.f32.gmra.mrb[0].mxu0 %v2303
    %v2422 = vpop.f32.mrb[0].mxu0
    %v2423 = vadd.f32 0.0, %v2422
    %v2424 = vpop.f32.mrb[0].mxu0
    %2425 = vmatprep.mubr.f32.mxu0 0.0
    %2426 = vmatmul.mubr.f32.gmra.mrb[0].mxu0 %v2306
    %v2427 = vpop.f32.mrb[0].mxu0
    %v2428 = vadd.f32 0.0, %v2427
    %v2429 = vpop.f32.mrb[0].mxu0
    %2430 = vmatprep.mubr.f32.mxu0 0.0
    %2431 = vmatmul.mubr.f32.gmra.mrb[0].mxu0 %v2309
    %v2432 = vpop.f32.mrb[0].mxu0
    %v2433 = vadd.f32 0.0, %v2432
    %v2434 = vpop.f32.mrb[0].mxu0
    %2435 = vdwg.mxu0
    %v2436 = vld [vmem:[%s41] sm:$0xff]
    %v2437 = vld [vmem:[%s41 + $0x8] sm:$0xff]
    %v2438 = vld [vmem:[%s41 + $0x10] sm:$0xff]
    %v2439 = vld [vmem:[%s41 + $0x18] sm:$0xff]
    %2440 = vmatprep.subr.mxu0 0.0
    %2441 = vmatpush1.msra.mxu0 %v2436
    %2442 = vmatprep.subr.mxu0 0.0
    %2443 = vmatpush1.msra.mxu0 %v2437
    %2444 = vmatprep.subr.mxu0 0.0
    %2445 = vmatpush1.msra.mxu0 %v2438
    %2446 = vmatprep.subr.mxu0 0.0
    %2447 = vmatpush1.msra.mxu0 %v2439
    %2448 = vmatprep.subr.mxu0 0.0
    %2449 = vmatpush1.msra.mxu0 0.0
    %2450 = vmatprep.subr.mxu0 0.0
    %2451 = vmatpush1.msra.mxu0 0.0
    %2452 = vmatprep.subr.mxu0 0.0
    %2453 = vmatpush1.msra.mxu0 0.0
    %2454 = vmatprep.subr.mxu0 0.0
    %2455 = vmatpush1.msra.mxu0 0.0
    %2456 = vmatprep.subr.mxu0 0.0
    %2457 = vmatpush1.msra.mxu0 0.0
    %2458 = vmatprep.subr.mxu0 0.0
    %2459 = vmatpush1.msra.mxu0 0.0
    %2460 = vmatprep.subr.mxu0 0.0
    %2461 = vmatpush1.msra.mxu0 0.0
    %2462 = vmatprep.subr.mxu0 0.0
    %2463 = vmatpush1.msra.mxu0 0.0
    %2464 = vmatprep.subr.mxu0 0.0
    %2465 = vmatpush1.msra.mxu0 0.0
    %2466 = vmatprep.subr.mxu0 0.0
    %2467 = vmatpush1.msra.mxu0 0.0
    %2468 = vmatprep.subr.mxu0 0.0
    %2469 = vmatpush1.msra.mxu0 0.0
    %2470 = vmatprep.subr.mxu0 0.0
    %2471 = vmatpush1.msra.mxu0 0.0
    %2472 = vmatprep.subr.mxu0 0.0
    %2473 = vmatpush1.msra.mxu0 0.0
    %2474 = vmatprep.subr.mxu0 0.0
    %2475 = vmatpush1.msra.mxu0 0.0
    %2476 = vmatprep.subr.mxu0 0.0
    %2477 = vmatpush1.msra.mxu0 0.0
    %2478 = vmatprep.subr.mxu0 0.0
    %2479 = vmatpush1.msra.mxu0 0.0
    %2480 = vmatprep.subr.mxu0 0.0
    %2481 = vmatpush1.msra.mxu0 0.0
    %2482 = vmatprep.subr.mxu0 0.0
    %2483 = vmatpush1.msra.mxu0 0.0
    %2484 = vmatprep.subr.mxu0 0.0
    %2485 = vmatpush1.msra.mxu0 0.0
    %2486 = vmatprep.subr.mxu0 0.0
    %2487 = vmatpush1.msra.mxu0 0.0
    %2488 = vmatprep.subr.mxu0 0.0
    %2489 = vmatpush1.msra.mxu0 0.0
    %2490 = vmatprep.subr.mxu0 0.0
    %2491 = vmatpush1.msra.mxu0 0.0
    %2492 = vmatprep.subr.mxu0 0.0
    %2493 = vmatpush1.msra.mxu0 0.0
    %2494 = vmatprep.subr.mxu0 0.0
    %2495 = vmatpush1.msra.mxu0 0.0
    %2496 = vmatprep.subr.mxu0 0.0
    %2497 = vmatpush1.msra.mxu0 0.0
    %2498 = vmatprep.subr.mxu0 0.0
    %2499 = vmatpush1.msra.mxu0 0.0
    %2500 = vmatprep.subr.mxu0 0.0
    %2501 = vmatpush1.msra.mxu0 0.0
    %2502 = vmatprep.subr.mxu0 0.0
    %2503 = vmatpush1.msra.mxu0 0.0
    %2504 = vmatprep.mubr.f32.mxu0 0.0
    %2505 = vmatmul.mubr.f32.gmra.mrb[0].mxu0 %v2276
    %v2506 = vpop.f32.mrb[0].mxu0
    %v2507 = vadd.f32 0.0, %v2506
    %v2508 = vpop.f32.mrb[0].mxu0
    %2509 = vmatprep.mubr.f32.mxu0 0.0
    %2510 = vmatmul.mubr.f32.gmra.mrb[0].mxu0 %v2279
    %v2511 = vpop.f32.mrb[0].mxu0
    %v2512 = vadd.f32 0.0, %v2511
    %v2513 = vpop.f32.mrb[0].mxu0
    %2514 = vmatprep.mubr.f32.mxu0 0.0
    %2515 = vmatmul.mubr.f32.gmra.mrb[0].mxu0 %v2282
    %v2516 = vpop.f32.mrb[0].mxu0
    %v2517 = vadd.f32 0.0, %v2516
    %v2518 = vpop.f32.mrb[0].mxu0
    %2519 = vmatprep.mubr.f32.mxu0 0.0
    %2520 = vmatmul.mubr.f32.gmra.mrb[0].mxu0 %v2285
    %v2521 = vpop.f32.mrb[0].mxu0
    %v2522 = vadd.f32 0.0, %v2521
    %v2523 = vpop.f32.mrb[0].mxu0
    %2524 = vmatprep.mubr.f32.mxu0 0.0
    %2525 = vmatmul.mubr.f32.gmra.mrb[0].mxu0 %v2288
    %v2526 = vpop.f32.mrb[0].mxu0
    %v2527 = vadd.f32 0.0, %v2526
    %v2528 = vpop.f32.mrb[0].mxu0
    %2529 = vmatprep.mubr.f32.mxu0 0.0
    %2530 = vmatmul.mubr.f32.gmra.mrb[0].mxu0 %v2291
    %v2531 = vpop.f32.mrb[0].mxu0
    %v2532 = vadd.f32 0.0, %v2531
    %v2533 = vpop.f32.mrb[0].mxu0
    %2534 = vmatprep.mubr.f32.mxu0 0.0
    %2535 = vmatmul.mubr.f32.gmra.mrb[0].mxu0 %v2294
    %v2536 = vpop.f32.mrb[0].mxu0
    %v2537 = vadd.f32 0.0, %v2536
    %v2538 = vpop.f32.mrb[0].mxu0
    %2539 = vmatprep.mubr.f32.mxu0 0.0
    %2540 = vmatmul.mubr.f32.gmra.mrb[0].mxu0 %v2297
    %v2541 = vpop.f32.mrb[0].mxu0
    %v2542 = vadd.f32 0.0, %v2541
    %v2543 = vpop.f32.mrb[0].mxu0
    %2544 = vmatprep.mubr.f32.mxu0 0.0
    %2545 = vmatmul.mubr.f32.gmra.mrb[0].mxu0 %v2300
    %v2546 = vpop.f32.mrb[0].mxu0
    %v2547 = vadd.f32 0.0, %v2546
    %v2548 = vpop.f32.mrb[0].mxu0
    %2549 = vmatprep.mubr.f32.mxu0 0.0
    %2550 = vmatmul.mubr.f32.gmra.mrb[0].mxu0 %v2303
    %v2551 = vpop.f32.mrb[0].mxu0
    %v2552 = vadd.f32 0.0, %v2551
    %v2553 = vpop.f32.mrb[0].mxu0
    %2554 = vmatprep.mubr.f32.mxu0 0.0
    %2555 = vmatmul.mubr.f32.gmra.mrb[0].mxu0 %v2306
    %v2556 = vpop.f32.mrb[0].mxu0
    %v2557 = vadd.f32 0.0, %v2556
    %v2558 = vpop.f32.mrb[0].mxu0
    %2559 = vmatprep.mubr.f32.mxu0 0.0
    %2560 = vmatmul.mubr.f32.gmra.mrb[0].mxu0 %v2309
    %v2561 = vpop.f32.mrb[0].mxu0
    %v2562 = vadd.f32 0.0, %v2561
    %v2563 = vpop.f32.mrb[0].mxu0
    %2564 = vdwg.mxu0
    %v2565 = vld [vmem:[#allocation22] sm:$0xff]
    %v2566 = vld [vmem:[#allocation22 + $0x8] sm:$0xff]
    %v2567 = vld [vmem:[#allocation22 + $0x10] sm:$0xff]
    %v2568 = vld [vmem:[#allocation22 + $0x18] sm:$0xff]
    %2569 = vmatprep.subr.mxu0 0.0
    %2570 = vmatpush1.msra.mxu0 %v2565
    %2571 = vmatprep.subr.mxu0 0.0
    %2572 = vmatpush1.msra.mxu0 %v2566
    %2573 = vmatprep.subr.mxu0 0.0
    %2574 = vmatpush1.msra.mxu0 %v2567
    %2575 = vmatprep.subr.mxu0 0.0
    %2576 = vmatpush1.msra.mxu0 %v2568
    %2577 = vmatprep.subr.mxu0 0.0
    %2578 = vmatpush1.msra.mxu0 0.0
    %2579 = vmatprep.subr.mxu0 0.0
    %2580 = vmatpush1.msra.mxu0 0.0
    %2581 = vmatprep.subr.mxu0 0.0
    %2582 = vmatpush1.msra.mxu0 0.0
    %2583 = vmatprep.subr.mxu0 0.0
    %2584 = vmatpush1.msra.mxu0 0.0
    %2585 = vmatprep.subr.mxu0 0.0
    %2586 = vmatpush1.msra.mxu0 0.0
    %2587 = vmatprep.subr.mxu0 0.0
    %2588 = vmatpush1.msra.mxu0 0.0
    %2589 = vmatprep.subr.mxu0 0.0
    %2590 = vmatpush1.msra.mxu0 0.0
    %2591 = vmatprep.subr.mxu0 0.0
    %2592 = vmatpush1.msra.mxu0 0.0
    %2593 = vmatprep.subr.mxu0 0.0
    %2594 = vmatpush1.msra.mxu0 0.0
    %2595 = vmatprep.subr.mxu0 0.0
    %2596 = vmatpush1.msra.mxu0 0.0
    %2597 = vmatprep.subr.mxu0 0.0
    %2598 = vmatpush1.msra.mxu0 0.0
    %2599 = vmatprep.subr.mxu0 0.0
    %2600 = vmatpush1.msra.mxu0 0.0
    %2601 = vmatprep.subr.mxu0 0.0
    %2602 = vmatpush1.msra.mxu0 0.0
    %2603 = vmatprep.subr.mxu0 0.0
    %2604 = vmatpush1.msra.mxu0 0.0
    %2605 = vmatprep.subr.mxu0 0.0
    %2606 = vmatpush1.msra.mxu0 0.0
    %2607 = vmatprep.subr.mxu0 0.0
    %2608 = vmatpush1.msra.mxu0 0.0
    %2609 = vmatprep.subr.mxu0 0.0
    %2610 = vmatpush1.msra.mxu0 0.0
    %2611 = vmatprep.subr.mxu0 0.0
    %2612 = vmatpush1.msra.mxu0 0.0
    %2613 = vmatprep.subr.mxu0 0.0
    %2614 = vmatpush1.msra.mxu0 0.0
    %2615 = vmatprep.subr.mxu0 0.0
    %2616 = vmatpush1.msra.mxu0 0.0
    %2617 = vmatprep.subr.mxu0 0.0
    %2618 = vmatpush1.msra.mxu0 0.0
    %2619 = vmatprep.subr.mxu0 0.0
    %2620 = vmatpush1.msra.mxu0 0.0
    %2621 = vmatprep.subr.mxu0 0.0
    %2622 = vmatpush1.msra.mxu0 0.0
    %2623 = vmatprep.subr.mxu0 0.0
    %2624 = vmatpush1.msra.mxu0 0.0
    %2625 = vmatprep.subr.mxu0 0.0
    %2626 = vmatpush1.msra.mxu0 0.0
    %2627 = vmatprep.subr.mxu0 0.0
    %2628 = vmatpush1.msra.mxu0 0.0
    %2629 = vmatprep.subr.mxu0 0.0
    %2630 = vmatpush1.msra.mxu0 0.0
    %2631 = vmatprep.subr.mxu0 0.0
    %2632 = vmatpush1.msra.mxu0 0.0
    %2633 = vmatprep.mubr.f32.mxu0 0.0
    %2634 = vmatmul.mubr.f32.gmra.mrb[0].mxu0 %v2276
    %v2635 = vpop.f32.mrb[0].mxu0
    %v2636 = vadd.f32 0.0, %v2635
    %v2637 = vpop.f32.mrb[0].mxu0
    %2638 = vmatprep.mubr.f32.mxu0 0.0
    %2639 = vmatmul.mubr.f32.gmra.mrb[0].mxu0 %v2279
    %v2640 = vpop.f32.mrb[0].mxu0
    %v2641 = vadd.f32 0.0, %v2640
    %v2642 = vpop.f32.mrb[0].mxu0
    %2643 = vmatprep.mubr.f32.mxu0 0.0
    %2644 = vmatmul.mubr.f32.gmra.mrb[0].mxu0 %v2282
    %v2645 = vpop.f32.mrb[0].mxu0
    %v2646 = vadd.f32 0.0, %v2645
    %v2647 = vpop.f32.mrb[0].mxu0
    %2648 = vmatprep.mubr.f32.mxu0 0.0
    %2649 = vmatmul.mubr.f32.gmra.mrb[0].mxu0 %v2285
    %v2650 = vpop.f32.mrb[0].mxu0
    %v2651 = vadd.f32 0.0, %v2650
    %v2652 = vpop.f32.mrb[0].mxu0
    %2653 = vmatprep.mubr.f32.mxu0 0.0
    %2654 = vmatmul.mubr.f32.gmra.mrb[0].mxu0 %v2288
    %v2655 = vpop.f32.mrb[0].mxu0
    %v2656 = vadd.f32 0.0, %v2655
    %v2657 = vpop.f32.mrb[0].mxu0
    %2658 = vmatprep.mubr.f32.mxu0 0.0
    %2659 = vmatmul.mubr.f32.gmra.mrb[0].mxu0 %v2291
    %v2660 = vpop.f32.mrb[0].mxu0
    %v2661 = vadd.f32 0.0, %v2660
    %v2662 = vpop.f32.mrb[0].mxu0
    %2663 = vmatprep.mubr.f32.mxu0 0.0
    %2664 = vmatmul.mubr.f32.gmra.mrb[0].mxu0 %v2294
    %v2665 = vpop.f32.mrb[0].mxu0
    %v2666 = vadd.f32 0.0, %v2665
    %v2667 = vpop.f32.mrb[0].mxu0
    %2668 = vmatprep.mubr.f32.mxu0 0.0
    %2669 = vmatmul.mubr.f32.gmra.mrb[0].mxu0 %v2297
    %v2670 = vpop.f32.mrb[0].mxu0
    %v2671 = vadd.f32 0.0, %v2670
    %v2672 = vpop.f32.mrb[0].mxu0
    %2673 = vmatprep.mubr.f32.mxu0 0.0
    %2674 = vmatmul.mubr.f32.gmra.mrb[0].mxu0 %v2300
    %v2675 = vpop.f32.mrb[0].mxu0
    %v2676 = vadd.f32 0.0, %v2675
    %v2677 = vpop.f32.mrb[0].mxu0
    %2678 = vmatprep.mubr.f32.mxu0 0.0
    %2679 = vmatmul.mubr.f32.gmra.mrb[0].mxu0 %v2303
    %v2680 = vpop.f32.mrb[0].mxu0
    %v2681 = vadd.f32 0.0, %v2680
    %v2682 = vpop.f32.mrb[0].mxu0
    %2683 = vmatprep.mubr.f32.mxu0 0.0
    %2684 = vmatmul.mubr.f32.gmra.mrb[0].mxu0 %v2306
    %v2685 = vpop.f32.mrb[0].mxu0
    %v2686 = vadd.f32 0.0, %v2685
    %v2687 = vpop.f32.mrb[0].mxu0
    %2688 = vmatprep.mubr.f32.mxu0 0.0
    %2689 = vmatmul.mubr.f32.gmra.mrb[0].mxu0 %v2309
    %v2690 = vpop.f32.mrb[0].mxu0
    %v2691 = vadd.f32 0.0, %v2690
    %v2692 = vpop.f32.mrb[0].mxu0
    %2693 = vdwg.mxu0
    %v2695 = vsel %vm1019, %v2378, 0
    %v2698 = vsel %vm1019, %v2383, 0
    %v2701 = vsel %vm1019, %v2388, 0
    %v2704 = vsel %vm1019, %v2393, 0
    %v2707 = vsel %vm1019, %v2398, 0
    %v2710 = vsel %vm1019, %v2403, 0
    %v2713 = vsel %vm1019, %v2408, 0
    %v2716 = vsel %vm1019, %v2413, 0
    %v2719 = vsel %vm1019, %v2418, 0
    %v2722 = vsel %vm1019, %v2423, 0
    %v2725 = vsel %vm1019, %v2428, 0
    %v2728 = vsel %vm1019, %v2433, 0
    %v2731 = vsel %vm1019, %v2507, 0
    %v2734 = vsel %vm1019, %v2512, 0
    %v2737 = vsel %vm1019, %v2517, 0
    %v2740 = vsel %vm1019, %v2522, 0
    %v2743 = vsel %vm1019, %v2527, 0
    %v2746 = vsel %vm1019, %v2532, 0
    %v2749 = vsel %vm1019, %v2537, 0
    %v2752 = vsel %vm1019, %v2542, 0
    %v2755 = vsel %vm1019, %v2547, 0
    %v2758 = vsel %vm1019, %v2552, 0
    %v2761 = vsel %vm1019, %v2557, 0
    %v2764 = vsel %vm1019, %v2562, 0
    %2766 = vmatprep.subr.mxu0 0.0
    %2767 = vmatpush1.xpose.msra.mxu0 %v2731
    %2768 = vmatprep.subr.mxu0 0.0
    %2769 = vmatpush1.xpose.msra.mxu0 %v2734
    %2770 = vmatprep.subr.mxu0 0.0
    %2771 = vmatpush1.xpose.msra.mxu0 %v2737
    %2772 = vmatprep.subr.mxu0 0.0
    %2773 = vmatpush1.xpose.msra.mxu0 %v2740
    %2774 = vmatprep.subr.mxu0 0.0
    %2775 = vmatpush1.xpose.msra.mxu0 %v2743
    %2776 = vmatprep.subr.mxu0 0.0
    %2777 = vmatpush1.xpose.msra.mxu0 %v2746
    %2778 = vmatprep.subr.mxu0 0.0
    %2779 = vmatpush1.xpose.msra.mxu0 %v2749
    %2780 = vmatprep.subr.mxu0 0.0
    %2781 = vmatpush1.xpose.msra.mxu0 %v2752
    %2782 = vmatprep.subr.mxu0 0.0
    %2783 = vmatpush1.xpose.msra.mxu0 %v2755
    %2784 = vmatprep.subr.mxu0 0.0
    %2785 = vmatpush1.xpose.msra.mxu0 %v2758
    %2786 = vmatprep.subr.mxu0 0.0
    %2787 = vmatpush1.xpose.msra.mxu0 %v2761
    %2788 = vmatprep.subr.mxu0 0.0
    %2789 = vmatpush1.xpose.msra.mxu0 %v2764
    %2790 = vmatprep.subr.mxu0 0.0
    %2791 = vmatpush1.xpose.msra.mxu0 0.0
    %2792 = vmatprep.subr.mxu0 0.0
    %2793 = vmatpush1.xpose.msra.mxu0 0.0
    %2794 = vmatprep.subr.mxu0 0.0
    %2795 = vmatpush1.xpose.msra.mxu0 0.0
    %2796 = vmatprep.subr.mxu0 0.0
    %2797 = vmatpush1.xpose.msra.mxu0 0.0
    %2798 = vmatprep.subr.mxu0 0.0
    %2799 = vmatpush1.xpose.msra.mxu0 0.0
    %2800 = vmatprep.subr.mxu0 0.0
    %2801 = vmatpush1.xpose.msra.mxu0 0.0
    %2802 = vmatprep.subr.mxu0 0.0
    %2803 = vmatpush1.xpose.msra.mxu0 0.0
    %2804 = vmatprep.subr.mxu0 0.0
    %2805 = vmatpush1.xpose.msra.mxu0 0.0
    %2806 = vmatprep.subr.mxu0 0.0
    %2807 = vmatpush1.xpose.msra.mxu0 0.0
    %2808 = vmatprep.subr.mxu0 0.0
    %2809 = vmatpush1.xpose.msra.mxu0 0.0
    %2810 = vmatprep.subr.mxu0 0.0
    %2811 = vmatpush1.xpose.msra.mxu0 0.0
    %2812 = vmatprep.subr.mxu0 0.0
    %2813 = vmatpush1.xpose.msra.mxu0 0.0
    %2814 = vmatprep.subr.mxu0 0.0
    %2815 = vmatpush1.xpose.msra.mxu0 0.0
    %2816 = vmatprep.subr.mxu0 0.0
    %2817 = vmatpush1.xpose.msra.mxu0 0.0
    %2818 = vmatprep.subr.mxu0 0.0
    %2819 = vmatpush1.xpose.msra.mxu0 0.0
    %2820 = vmatprep.subr.mxu0 0.0
    %2821 = vmatpush1.xpose.msra.mxu0 0.0
    %2822 = vmatprep.subr.mxu0 0.0
    %2823 = vmatpush1.xpose.msra.mxu0 0.0
    %2824 = vmatprep.subr.mxu0 0.0
    %2825 = vmatpush1.xpose.msra.mxu0 0.0
    %2826 = vmatprep.subr.mxu0 0.0
    %2827 = vmatpush1.xpose.msra.mxu0 0.0
    %2828 = vmatprep.subr.mxu0 0.0
    %2829 = vmatpush1.xpose.msra.mxu0 0.0
    %2830 = vmatprep.mubr.f32.mxu0 0.0
    %2831 = vmatmul.mubr.f32.gmra.mrb[0].mxu0 %v2695
    %v2832 = vpop.f32.mrb[0].mxu0
    %v2833 = vadd.f32 %v2247, %v2832
    %v2834 = vpop.f32.mrb[0].mxu0
    %2835 = vmatprep.mubr.f32.mxu0 0.0
    %2836 = vmatmul.mubr.f32.gmra.mrb[0].mxu0 %v2698
    %v2837 = vpop.f32.mrb[0].mxu0
    %v2838 = vadd.f32 %v2248, %v2837
    %v2839 = vpop.f32.mrb[0].mxu0
    %2840 = vmatprep.mubr.f32.mxu0 0.0
    %2841 = vmatmul.mubr.f32.gmra.mrb[0].mxu0 %v2701
    %v2842 = vpop.f32.mrb[0].mxu0
    %v2843 = vadd.f32 %v2249, %v2842
    %v2844 = vpop.f32.mrb[0].mxu0
    %2845 = vmatprep.mubr.f32.mxu0 0.0
    %2846 = vmatmul.mubr.f32.gmra.mrb[0].mxu0 %v2704
    %v2847 = vpop.f32.mrb[0].mxu0
    %v2848 = vadd.f32 %v2250, %v2847
    %v2849 = vpop.f32.mrb[0].mxu0
    %2850 = vmatprep.mubr.f32.mxu0 0.0
    %2851 = vmatmul.mubr.f32.gmra.mrb[0].mxu0 %v2707
    %v2852 = vpop.f32.mrb[0].mxu0
    %v2853 = vadd.f32 %v2251, %v2852
    %v2854 = vpop.f32.mrb[0].mxu0
    %2855 = vmatprep.mubr.f32.mxu0 0.0
    %2856 = vmatmul.mubr.f32.gmra.mrb[0].mxu0 %v2710
    %v2857 = vpop.f32.mrb[0].mxu0
    %v2858 = vadd.f32 %v2252, %v2857
    %v2859 = vpop.f32.mrb[0].mxu0
    %2860 = vmatprep.mubr.f32.mxu0 0.0
    %2861 = vmatmul.mubr.f32.gmra.mrb[0].mxu0 %v2713
    %v2862 = vpop.f32.mrb[0].mxu0
    %v2863 = vadd.f32 %v2253, %v2862
    %v2864 = vpop.f32.mrb[0].mxu0
    %2865 = vmatprep.mubr.f32.mxu0 0.0
    %2866 = vmatmul.mubr.f32.gmra.mrb[0].mxu0 %v2716
    %v2867 = vpop.f32.mrb[0].mxu0
    %v2868 = vadd.f32 %v2254, %v2867
    %v2869 = vpop.f32.mrb[0].mxu0
    %2870 = vmatprep.mubr.f32.mxu0 0.0
    %2871 = vmatmul.mubr.f32.gmra.mrb[0].mxu0 %v2719
    %v2872 = vpop.f32.mrb[0].mxu0
    %v2873 = vadd.f32 %v2255, %v2872
    %v2874 = vpop.f32.mrb[0].mxu0
    %2875 = vmatprep.mubr.f32.mxu0 0.0
    %2876 = vmatmul.mubr.f32.gmra.mrb[0].mxu0 %v2722
    %v2877 = vpop.f32.mrb[0].mxu0
    %v2878 = vadd.f32 %v2256, %v2877
    %v2879 = vpop.f32.mrb[0].mxu0
    %2880 = vmatprep.mubr.f32.mxu0 0.0
    %2881 = vmatmul.mubr.f32.gmra.mrb[0].mxu0 %v2725
    %v2882 = vpop.f32.mrb[0].mxu0
    %v2883 = vadd.f32 %v2257, %v2882
    %v2884 = vpop.f32.mrb[0].mxu0
    %2885 = vmatprep.mubr.f32.mxu0 0.0
    %2886 = vmatmul.mubr.f32.gmra.mrb[0].mxu0 %v2728
    %v2887 = vpop.f32.mrb[0].mxu0
    %v2888 = vadd.f32 %v2258, %v2887
    %v2889 = vpop.f32.mrb[0].mxu0
    %2890 = vdwg.mxu0
    %vm2891 = vcmask 752640
    %v2892 = vsel %vm2891, %v2833, -inf
    %2893 = vmax.xlane.f32.xlu0 %v2892
    %v2894 = vpop.xlane.xlu0 %2893
    %v2895 = vsel %vm2891, %v2838, -inf
    %2896 = vmax.xlane.f32.xlu0 %v2895
    %v2897 = vpop.xlane.xlu0 %2896
    %v2898 = vsel %vm2891, %v2843, -inf
    %2899 = vmax.xlane.f32.xlu0 %v2898
    %v2900 = vpop.xlane.xlu0 %2899
    %v2901 = vsel %vm2891, %v2848, -inf
    %2902 = vmax.xlane.f32.xlu0 %v2901
    %v2903 = vpop.xlane.xlu0 %2902
    %v2904 = vsel %vm2891, %v2853, -inf
    %2905 = vmax.xlane.f32.xlu0 %v2904
    %v2906 = vpop.xlane.xlu0 %2905
    %v2907 = vsel %vm2891, %v2858, -inf
    %2908 = vmax.xlane.f32.xlu0 %v2907
    %v2909 = vpop.xlane.xlu0 %2908
    %v2910 = vsel %vm2891, %v2863, -inf
    %2911 = vmax.xlane.f32.xlu0 %v2910
    %v2912 = vpop.xlane.xlu0 %2911
    %v2913 = vsel %vm2891, %v2868, -inf
    %2914 = vmax.xlane.f32.xlu0 %v2913
    %v2915 = vpop.xlane.xlu0 %2914
    %v2916 = vsel %vm2891, %v2873, -inf
    %2917 = vmax.xlane.f32.xlu0 %v2916
    %v2918 = vpop.xlane.xlu0 %2917
    %v2919 = vsel %vm2891, %v2878, -inf
    %2920 = vmax.xlane.f32.xlu0 %v2919
    %v2921 = vpop.xlane.xlu0 %2920
    %v2922 = vsel %vm2891, %v2883, -inf
    %2923 = vmax.xlane.f32.xlu0 %v2922
    %v2924 = vpop.xlane.xlu0 %2923
    %vm2925 = vcmask 748544
    %v2926 = vsel %vm2925, %v2888, -inf
    %2927 = vmax.xlane.f32.xlu0 %v2926
    %v2928 = vpop.xlane.xlu0 %2927
    %v2929 = vsub.f32 %v2833, %v2894
    %v2930 = vsub.f32 %v2838, %v2897
    %v2931 = vsub.f32 %v2843, %v2900
    %v2932 = vsub.f32 %v2848, %v2903
    %v2933 = vsub.f32 %v2853, %v2906
    %v2934 = vsub.f32 %v2858, %v2909
    %v2935 = vsub.f32 %v2863, %v2912
    %v2936 = vsub.f32 %v2868, %v2915
    %v2937 = vsub.f32 %v2873, %v2918
    %v2938 = vsub.f32 %v2878, %v2921
    %v2939 = vsub.f32 %v2883, %v2924
    %v2940 = vsub.f32 %v2888, %v2928
    %v2941 = vmul.f32 %v2929, 1.442695
    %v2942 = vpow.pop %v2941
    %v2943 = vmul.f32 %v2930, 1.442695
    %v2944 = vpow.pop %v2943
    %v2945 = vmul.f32 %v2931, 1.442695
    %v2946 = vpow.pop %v2945
    %v2947 = vmul.f32 %v2932, 1.442695
    %v2948 = vpow.pop %v2947
    %v2949 = vmul.f32 %v2933, 1.442695
    %v2950 = vpow.pop %v2949
    %v2951 = vmul.f32 %v2934, 1.442695
    %v2952 = vpow.pop %v2951
    %v2953 = vmul.f32 %v2935, 1.442695
    %v2954 = vpow.pop %v2953
    %v2955 = vmul.f32 %v2936, 1.442695
    %v2956 = vpow.pop %v2955
    %v2957 = vmul.f32 %v2937, 1.442695
    %v2958 = vpow.pop %v2957
    %v2959 = vmul.f32 %v2938, 1.442695
    %v2960 = vpow.pop %v2959
    %v2961 = vmul.f32 %v2939, 1.442695
    %v2962 = vpow.pop %v2961
    %v2963 = vmul.f32 %v2940, 1.442695
    %v2964 = vpow.pop %v2963
    %v2965 = vsel %vm2891, %v2942, 0.0
    %2966 = vadd.xlane.f32.xlu0 %v2965
    %v2967 = vpop.xlane.xlu0 %2966
    %v2968 = vsel %vm2891, %v2944, 0.0
    %2969 = vadd.xlane.f32.xlu0 %v2968
    %v2970 = vpop.xlane.xlu0 %2969
    %v2971 = vsel %vm2891, %v2946, 0.0
    %2972 = vadd.xlane.f32.xlu0 %v2971
    %v2973 = vpop.xlane.xlu0 %2972
    %v2974 = vsel %vm2891, %v2948, 0.0
    %2975 = vadd.xlane.f32.xlu0 %v2974
    %v2976 = vpop.xlane.xlu0 %2975
    %v2977 = vsel %vm2891, %v2950, 0.0
    %2978 = vadd.xlane.f32.xlu0 %v2977
    %v2979 = vpop.xlane.xlu0 %2978
    %v2980 = vsel %vm2891, %v2952, 0.0
    %2981 = vadd.xlane.f32.xlu0 %v2980
    %v2982 = vpop.xlane.xlu0 %2981
    %v2983 = vsel %vm2891, %v2954, 0.0
    %2984 = vadd.xlane.f32.xlu0 %v2983
    %v2985 = vpop.xlane.xlu0 %2984
    %v2986 = vsel %vm2891, %v2956, 0.0
    %2987 = vadd.xlane.f32.xlu0 %v2986
    %v2988 = vpop.xlane.xlu0 %2987
    %v2989 = vsel %vm2891, %v2958, 0.0
    %2990 = vadd.xlane.f32.xlu0 %v2989
    %v2991 = vpop.xlane.xlu0 %2990
    %v2992 = vsel %vm2891, %v2960, 0.0
    %2993 = vadd.xlane.f32.xlu0 %v2992
    %v2994 = vpop.xlane.xlu0 %2993
    %v2995 = vsel %vm2891, %v2962, 0.0
    %2996 = vadd.xlane.f32.xlu0 %v2995
    %v2997 = vpop.xlane.xlu0 %2996
    %v2998 = vsel %vm2925, %v2964, 0.0
    %2999 = vadd.xlane.f32.xlu0 %v2998
    %v3000 = vpop.xlane.xlu0 %2999
    %v3001 = vrcp.pop %v2967
    %v3002 = vrcp.pop %v2970
    %v3003 = vrcp.pop %v2973
    %v3004 = vrcp.pop %v2976
    %v3005 = vrcp.pop %v2979
    %v3006 = vrcp.pop %v2982
    %v3007 = vrcp.pop %v2985
    %v3008 = vrcp.pop %v2988
    %v3009 = vrcp.pop %v2991
    %v3010 = vrcp.pop %v2994
    %v3011 = vrcp.pop %v2997
    %v3012 = vrcp.pop %v3000
    %v3013 = vmul.f32 %v2942, %v3001
    %v3014 = vmul.f32 %v2944, %v3002
    %v3015 = vmul.f32 %v2946, %v3003
    %v3016 = vmul.f32 %v2948, %v3004
    %v3017 = vmul.f32 %v2950, %v3005
    %v3018 = vmul.f32 %v2952, %v3006
    %v3019 = vmul.f32 %v2954, %v3007
    %v3020 = vmul.f32 %v2956, %v3008
    %v3021 = vmul.f32 %v2958, %v3009
    %v3022 = vmul.f32 %v2960, %v3010
    %v3023 = vmul.f32 %v2962, %v3011
    %v3024 = vmul.f32 %v2964, %v3012
    %v3026 = vsel %vm2891, %v3013, 0
    %v3029 = vsel %vm2891, %v3014, 0
    %v3032 = vsel %vm2891, %v3015, 0
    %v3035 = vsel %vm2891, %v3016, 0
    %v3038 = vsel %vm2891, %v3017, 0
    %v3041 = vsel %vm2891, %v3018, 0
    %v3044 = vsel %vm2891, %v3019, 0
    %v3047 = vsel %vm2891, %v3020, 0
    %v3050 = vsel %vm2891, %v3021, 0
    %v3053 = vsel %vm2891, %v3022, 0
    %v3056 = vsel %vm2891, %v3023, 0
    %v3059 = vsel %vm2891, %v3024, 0
    %v3062 = vsel %vm1844, %v2691, 0
    %3064 = vmatprep.subr.mxu0 0.0
    %3065 = vmatpush1.msra.mxu0 %v2636
    %3066 = vmatprep.subr.mxu0 0.0
    %3067 = vmatpush1.msra.mxu0 %v2641
    %3068 = vmatprep.subr.mxu0 0.0
    %3069 = vmatpush1.msra.mxu0 %v2646
    %3070 = vmatprep.subr.mxu0 0.0
    %3071 = vmatpush1.msra.mxu0 %v2651
    %3072 = vmatprep.subr.mxu0 0.0
    %3073 = vmatpush1.msra.mxu0 %v2656
    %3074 = vmatprep.subr.mxu0 0.0
    %3075 = vmatpush1.msra.mxu0 %v2661
    %3076 = vmatprep.subr.mxu0 0.0
    %3077 = vmatpush1.msra.mxu0 %v2666
    %3078 = vmatprep.subr.mxu0 0.0
    %3079 = vmatpush1.msra.mxu0 %v2671
    %3080 = vmatprep.subr.mxu0 0.0
    %3081 = vmatpush1.msra.mxu0 %v2676
    %3082 = vmatprep.subr.mxu0 0.0
    %3083 = vmatpush1.msra.mxu0 %v2681
    %3084 = vmatprep.subr.mxu0 0.0
    %3085 = vmatpush1.msra.mxu0 %v2686
    %3086 = vmatprep.subr.mxu0 0.0
    %3087 = vmatpush1.msra.mxu0 %v3062
    %3088 = vmatprep.subr.mxu0 0.0
    %3089 = vmatpush1.msra.mxu0 0.0
    %3090 = vmatprep.subr.mxu0 0.0
    %3091 = vmatpush1.msra.mxu0 0.0
    %3092 = vmatprep.subr.mxu0 0.0
    %3093 = vmatpush1.msra.mxu0 0.0
    %3094 = vmatprep.subr.mxu0 0.0
    %3095 = vmatpush1.msra.mxu0 0.0
    %3096 = vmatprep.subr.mxu0 0.0
    %3097 = vmatpush1.msra.mxu0 0.0
    %3098 = vmatprep.subr.mxu0 0.0
    %3099 = vmatpush1.msra.mxu0 0.0
    %3100 = vmatprep.subr.mxu0 0.0
    %3101 = vmatpush1.msra.mxu0 0.0
    %3102 = vmatprep.subr.mxu0 0.0
    %3103 = vmatpush1.msra.mxu0 0.0
    %3104 = vmatprep.subr.mxu0 0.0
    %3105 = vmatpush1.msra.mxu0 0.0
    %3106 = vmatprep.subr.mxu0 0.0
    %3107 = vmatpush1.msra.mxu0 0.0
    %3108 = vmatprep.subr.mxu0 0.0
    %3109 = vmatpush1.msra.mxu0 0.0
    %3110 = vmatprep.subr.mxu0 0.0
    %3111 = vmatpush1.msra.mxu0 0.0
    %3112 = vmatprep.subr.mxu0 0.0
    %3113 = vmatpush1.msra.mxu0 0.0
    %3114 = vmatprep.subr.mxu0 0.0
    %3115 = vmatpush1.msra.mxu0 0.0
    %3116 = vmatprep.subr.mxu0 0.0
    %3117 = vmatpush1.msra.mxu0 0.0
    %3118 = vmatprep.subr.mxu0 0.0
    %3119 = vmatpush1.msra.mxu0 0.0
    %3120 = vmatprep.subr.mxu0 0.0
    %3121 = vmatpush1.msra.mxu0 0.0
    %3122 = vmatprep.subr.mxu0 0.0
    %3123 = vmatpush1.msra.mxu0 0.0
    %3124 = vmatprep.subr.mxu0 0.0
    %3125 = vmatpush1.msra.mxu0 0.0
    %3126 = vmatprep.subr.mxu0 0.0
    %3127 = vmatpush1.msra.mxu0 0.0
    %3128 = vmatprep.mubr.f32.mxu0 0.0
    %3129 = vmatmul.mubr.f32.gmra.mrb[0].mxu0 %v3026
    %v3130 = vpop.f32.mrb[0].mxu0
    %v3131 = vadd.f32 0.0, %v3130
    %v3132 = vpop.f32.mrb[0].mxu0
    %3133 = vmatprep.mubr.f32.mxu0 0.0
    %3134 = vmatmul.mubr.f32.gmra.mrb[0].mxu0 %v3029
    %v3135 = vpop.f32.mrb[0].mxu0
    %v3136 = vadd.f32 0.0, %v3135
    %v3137 = vpop.f32.mrb[0].mxu0
    %3138 = vmatprep.mubr.f32.mxu0 0.0
    %3139 = vmatmul.mubr.f32.gmra.mrb[0].mxu0 %v3032
    %v3140 = vpop.f32.mrb[0].mxu0
    %v3141 = vadd.f32 0.0, %v3140
    %v3142 = vpop.f32.mrb[0].mxu0
    %3143 = vmatprep.mubr.f32.mxu0 0.0
    %3144 = vmatmul.mubr.f32.gmra.mrb[0].mxu0 %v3035
    %v3145 = vpop.f32.mrb[0].mxu0
    %v3146 = vadd.f32 0.0, %v3145
    %v3147 = vpop.f32.mrb[0].mxu0
    %3148 = vmatprep.mubr.f32.mxu0 0.0
    %3149 = vmatmul.mubr.f32.gmra.mrb[0].mxu0 %v3038
    %v3150 = vpop.f32.mrb[0].mxu0
    %v3151 = vadd.f32 0.0, %v3150
    %v3152 = vpop.f32.mrb[0].mxu0
    %3153 = vmatprep.mubr.f32.mxu0 0.0
    %3154 = vmatmul.mubr.f32.gmra.mrb[0].mxu0 %v3041
    %v3155 = vpop.f32.mrb[0].mxu0
    %v3156 = vadd.f32 0.0, %v3155
    %v3157 = vpop.f32.mrb[0].mxu0
    %3158 = vmatprep.mubr.f32.mxu0 0.0
    %3159 = vmatmul.mubr.f32.gmra.mrb[0].mxu0 %v3044
    %v3160 = vpop.f32.mrb[0].mxu0
    %v3161 = vadd.f32 0.0, %v3160
    %v3162 = vpop.f32.mrb[0].mxu0
    %3163 = vmatprep.mubr.f32.mxu0 0.0
    %3164 = vmatmul.mubr.f32.gmra.mrb[0].mxu0 %v3047
    %v3165 = vpop.f32.mrb[0].mxu0
    %v3166 = vadd.f32 0.0, %v3165
    %v3167 = vpop.f32.mrb[0].mxu0
    %3168 = vmatprep.mubr.f32.mxu0 0.0
    %3169 = vmatmul.mubr.f32.gmra.mrb[0].mxu0 %v3050
    %v3170 = vpop.f32.mrb[0].mxu0
    %v3171 = vadd.f32 0.0, %v3170
    %v3172 = vpop.f32.mrb[0].mxu0
    %3173 = vmatprep.mubr.f32.mxu0 0.0
    %3174 = vmatmul.mubr.f32.gmra.mrb[0].mxu0 %v3053
    %v3175 = vpop.f32.mrb[0].mxu0
    %v3176 = vadd.f32 0.0, %v3175
    %v3177 = vpop.f32.mrb[0].mxu0
    %3178 = vmatprep.mubr.f32.mxu0 0.0
    %3179 = vmatmul.mubr.f32.gmra.mrb[0].mxu0 %v3056
    %v3180 = vpop.f32.mrb[0].mxu0
    %v3181 = vadd.f32 0.0, %v3180
    %v3182 = vpop.f32.mrb[0].mxu0
    %3183 = vmatprep.mubr.f32.mxu0 0.0
    %3184 = vmatmul.mubr.f32.gmra.mrb[0].mxu0 %v3059
    %v3185 = vpop.f32.mrb[0].mxu0
    %v3186 = vadd.f32 0.0, %v3185
    %v3187 = vpop.f32.mrb[0].mxu0
    %3188 = vdwg.mxu0
    %v3189 = vld [vmem:[#allocation23] sm:$0xff]
    %v3190 = vld [vmem:[#allocation23 + $0x8] sm:$0xff]
    %s3191 = scalar_lea.vmem %s39, 32
    %v3192 = vld [vmem:[%s3191] sm:$0xff]
    %v3193 = vld [vmem:[%s3191 + $0x8] sm:$0xff]
    %v3194 = vld [vmem:[%s3191 + $0x10] sm:$0xff]
    %v3195 = vld [vmem:[%s3191 + $0x18] sm:$0xff]
    %3196 = vmatprep.subr.mxu0 0.0
    %3197 = vmatpush1.msra.mxu0 %v3192
    %3198 = vmatprep.subr.mxu0 0.0
    %3199 = vmatpush1.msra.mxu0 %v3193
    %3200 = vmatprep.subr.mxu0 0.0
    %3201 = vmatpush1.msra.mxu0 %v3194
    %3202 = vmatprep.subr.mxu0 0.0
    %3203 = vmatpush1.msra.mxu0 %v3195
    %3204 = vmatprep.subr.mxu0 0.0
    %3205 = vmatpush1.msra.mxu0 0.0
    %3206 = vmatprep.subr.mxu0 0.0
    %3207 = vmatpush1.msra.mxu0 0.0
    %3208 = vmatprep.subr.mxu0 0.0
    %3209 = vmatpush1.msra.mxu0 0.0
    %3210 = vmatprep.subr.mxu0 0.0
    %3211 = vmatpush1.msra.mxu0 0.0
    %3212 = vmatprep.subr.mxu0 0.0
    %3213 = vmatpush1.msra.mxu0 0.0
    %3214 = vmatprep.subr.mxu0 0.0
    %3215 = vmatpush1.msra.mxu0 0.0
    %3216 = vmatprep.subr.mxu0 0.0
    %3217 = vmatpush1.msra.mxu0 0.0
    %3218 = vmatprep.subr.mxu0 0.0
    %3219 = vmatpush1.msra.mxu0 0.0
    %3220 = vmatprep.subr.mxu0 0.0
    %3221 = vmatpush1.msra.mxu0 0.0
    %3222 = vmatprep.subr.mxu0 0.0
    %3223 = vmatpush1.msra.mxu0 0.0
    %3224 = vmatprep.subr.mxu0 0.0
    %3225 = vmatpush1.msra.mxu0 0.0
    %3226 = vmatprep.subr.mxu0 0.0
    %3227 = vmatpush1.msra.mxu0 0.0
    %3228 = vmatprep.subr.mxu0 0.0
    %3229 = vmatpush1.msra.mxu0 0.0
    %3230 = vmatprep.subr.mxu0 0.0
    %3231 = vmatpush1.msra.mxu0 0.0
    %3232 = vmatprep.subr.mxu0 0.0
    %3233 = vmatpush1.msra.mxu0 0.0
    %3234 = vmatprep.subr.mxu0 0.0
    %3235 = vmatpush1.msra.mxu0 0.0
    %3236 = vmatprep.subr.mxu0 0.0
    %3237 = vmatpush1.msra.mxu0 0.0
    %3238 = vmatprep.subr.mxu0 0.0
    %3239 = vmatpush1.msra.mxu0 0.0
    %3240 = vmatprep.subr.mxu0 0.0
    %3241 = vmatpush1.msra.mxu0 0.0
    %3242 = vmatprep.subr.mxu0 0.0
    %3243 = vmatpush1.msra.mxu0 0.0
    %3244 = vmatprep.subr.mxu0 0.0
    %3245 = vmatpush1.msra.mxu0 0.0
    %3246 = vmatprep.subr.mxu0 0.0
    %3247 = vmatpush1.msra.mxu0 0.0
    %3248 = vmatprep.subr.mxu0 0.0
    %3249 = vmatpush1.msra.mxu0 0.0
    %3250 = vmatprep.subr.mxu0 0.0
    %3251 = vmatpush1.msra.mxu0 0.0
    %3252 = vmatprep.subr.mxu0 0.0
    %3253 = vmatpush1.msra.mxu0 0.0
    %3254 = vmatprep.subr.mxu0 0.0
    %3255 = vmatpush1.msra.mxu0 0.0
    %3256 = vmatprep.subr.mxu0 0.0
    %3257 = vmatpush1.msra.mxu0 0.0
    %3258 = vmatprep.subr.mxu0 0.0
    %3259 = vmatpush1.msra.mxu0 0.0
    %3260 = vmatprep.mubr.f32.mxu0 0.0
    %3261 = vmatmul.mubr.f32.gmra.mrb[0].mxu0 %v2276
    %v3262 = vpop.f32.mrb[0].mxu0
    %v3263 = vadd.f32 0.0, %v3262
    %v3264 = vpop.f32.mrb[0].mxu0
    %3265 = vmatprep.mubr.f32.mxu0 0.0
    %3266 = vmatmul.mubr.f32.gmra.mrb[0].mxu0 %v2279
    %v3267 = vpop.f32.mrb[0].mxu0
    %v3268 = vadd.f32 0.0, %v3267
    %v3269 = vpop.f32.mrb[0].mxu0
    %3270 = vmatprep.mubr.f32.mxu0 0.0
    %3271 = vmatmul.mubr.f32.gmra.mrb[0].mxu0 %v2282
    %v3272 = vpop.f32.mrb[0].mxu0
    %v3273 = vadd.f32 0.0, %v3272
    %v3274 = vpop.f32.mrb[0].mxu0
    %3275 = vmatprep.mubr.f32.mxu0 0.0
    %3276 = vmatmul.mubr.f32.gmra.mrb[0].mxu0 %v2285
    %v3277 = vpop.f32.mrb[0].mxu0
    %v3278 = vadd.f32 0.0, %v3277
    %v3279 = vpop.f32.mrb[0].mxu0
    %3280 = vmatprep.mubr.f32.mxu0 0.0
    %3281 = vmatmul.mubr.f32.gmra.mrb[0].mxu0 %v2288
    %v3282 = vpop.f32.mrb[0].mxu0
    %v3283 = vadd.f32 0.0, %v3282
    %v3284 = vpop.f32.mrb[0].mxu0
    %3285 = vmatprep.mubr.f32.mxu0 0.0
    %3286 = vmatmul.mubr.f32.gmra.mrb[0].mxu0 %v2291
    %v3287 = vpop.f32.mrb[0].mxu0
    %v3288 = vadd.f32 0.0, %v3287
    %v3289 = vpop.f32.mrb[0].mxu0
    %3290 = vmatprep.mubr.f32.mxu0 0.0
    %3291 = vmatmul.mubr.f32.gmra.mrb[0].mxu0 %v2294
    %v3292 = vpop.f32.mrb[0].mxu0
    %v3293 = vadd.f32 0.0, %v3292
    %v3294 = vpop.f32.mrb[0].mxu0
    %3295 = vmatprep.mubr.f32.mxu0 0.0
    %3296 = vmatmul.mubr.f32.gmra.mrb[0].mxu0 %v2297
    %v3297 = vpop.f32.mrb[0].mxu0
    %v3298 = vadd.f32 0.0, %v3297
    %v3299 = vpop.f32.mrb[0].mxu0
    %3300 = vmatprep.mubr.f32.mxu0 0.0
    %3301 = vmatmul.mubr.f32.gmra.mrb[0].mxu0 %v2300
    %v3302 = vpop.f32.mrb[0].mxu0
    %v3303 = vadd.f32 0.0, %v3302
    %v3304 = vpop.f32.mrb[0].mxu0
    %3305 = vmatprep.mubr.f32.mxu0 0.0
    %3306 = vmatmul.mubr.f32.gmra.mrb[0].mxu0 %v2303
    %v3307 = vpop.f32.mrb[0].mxu0
    %v3308 = vadd.f32 0.0, %v3307
    %v3309 = vpop.f32.mrb[0].mxu0
    %3310 = vmatprep.mubr.f32.mxu0 0.0
    %3311 = vmatmul.mubr.f32.gmra.mrb[0].mxu0 %v2306
    %v3312 = vpop.f32.mrb[0].mxu0
    %v3313 = vadd.f32 0.0, %v3312
    %v3314 = vpop.f32.mrb[0].mxu0
    %3315 = vmatprep.mubr.f32.mxu0 0.0
    %3316 = vmatmul.mubr.f32.gmra.mrb[0].mxu0 %v2309
    %v3317 = vpop.f32.mrb[0].mxu0
    %v3318 = vadd.f32 0.0, %v3317
    %v3319 = vpop.f32.mrb[0].mxu0
    %3320 = vdwg.mxu0
    %s3321 = scalar_lea.vmem %s41, 32
    %v3322 = vld [vmem:[%s3321] sm:$0xff]
    %v3323 = vld [vmem:[%s3321 + $0x8] sm:$0xff]
    %v3324 = vld [vmem:[%s3321 + $0x10] sm:$0xff]
    %v3325 = vld [vmem:[%s3321 + $0x18] sm:$0xff]
    %3326 = vmatprep.subr.mxu0 0.0
    %3327 = vmatpush1.msra.mxu0 %v3322
    %3328 = vmatprep.subr.mxu0 0.0
    %3329 = vmatpush1.msra.mxu0 %v3323
    %3330 = vmatprep.subr.mxu0 0.0
    %3331 = vmatpush1.msra.mxu0 %v3324
    %3332 = vmatprep.subr.mxu0 0.0
    %3333 = vmatpush1.msra.mxu0 %v3325
    %3334 = vmatprep.subr.mxu0 0.0
    %3335 = vmatpush1.msra.mxu0 0.0
    %3336 = vmatprep.subr.mxu0 0.0
    %3337 = vmatpush1.msra.mxu0 0.0
    %3338 = vmatprep.subr.mxu0 0.0
    %3339 = vmatpush1.msra.mxu0 0.0
    %3340 = vmatprep.subr.mxu0 0.0
    %3341 = vmatpush1.msra.mxu0 0.0
    %3342 = vmatprep.subr.mxu0 0.0
    %3343 = vmatpush1.msra.mxu0 0.0
    %3344 = vmatprep.subr.mxu0 0.0
    %3345 = vmatpush1.msra.mxu0 0.0
    %3346 = vmatprep.subr.mxu0 0.0
    %3347 = vmatpush1.msra.mxu0 0.0
    %3348 = vmatprep.subr.mxu0 0.0
    %3349 = vmatpush1.msra.mxu0 0.0
    %3350 = vmatprep.subr.mxu0 0.0
    %3351 = vmatpush1.msra.mxu0 0.0
    %3352 = vmatprep.subr.mxu0 0.0
    %3353 = vmatpush1.msra.mxu0 0.0
    %3354 = vmatprep.subr.mxu0 0.0
    %3355 = vmatpush1.msra.mxu0 0.0
    %3356 = vmatprep.subr.mxu0 0.0
    %3357 = vmatpush1.msra.mxu0 0.0
    %3358 = vmatprep.subr.mxu0 0.0
    %3359 = vmatpush1.msra.mxu0 0.0
    %3360 = vmatprep.subr.mxu0 0.0
    %3361 = vmatpush1.msra.mxu0 0.0
    %3362 = vmatprep.subr.mxu0 0.0
    %3363 = vmatpush1.msra.mxu0 0.0
    %3364 = vmatprep.subr.mxu0 0.0
    %3365 = vmatpush1.msra.mxu0 0.0
    %3366 = vmatprep.subr.mxu0 0.0
    %3367 = vmatpush1.msra.mxu0 0.0
    %3368 = vmatprep.subr.mxu0 0.0
    %3369 = vmatpush1.msra.mxu0 0.0
    %3370 = vmatprep.subr.mxu0 0.0
    %3371 = vmatpush1.msra.mxu0 0.0
    %3372 = vmatprep.subr.mxu0 0.0
    %3373 = vmatpush1.msra.mxu0 0.0
    %3374 = vmatprep.subr.mxu0 0.0
    %3375 = vmatpush1.msra.mxu0 0.0
    %3376 = vmatprep.subr.mxu0 0.0
    %3377 = vmatpush1.msra.mxu0 0.0
    %3378 = vmatprep.subr.mxu0 0.0
    %3379 = vmatpush1.msra.mxu0 0.0
    %3380 = vmatprep.subr.mxu0 0.0
    %3381 = vmatpush1.msra.mxu0 0.0
    %3382 = vmatprep.subr.mxu0 0.0
    %3383 = vmatpush1.msra.mxu0 0.0
    %3384 = vmatprep.subr.mxu0 0.0
    %3385 = vmatpush1.msra.mxu0 0.0
    %3386 = vmatprep.subr.mxu0 0.0
    %3387 = vmatpush1.msra.mxu0 0.0
    %3388 = vmatprep.subr.mxu0 0.0
    %3389 = vmatpush1.msra.mxu0 0.0
    %3390 = vmatprep.mubr.f32.mxu0 0.0
    %3391 = vmatmul.mubr.f32.gmra.mrb[0].mxu0 %v2276
    %v3392 = vpop.f32.mrb[0].mxu0
    %v3393 = vadd.f32 0.0, %v3392
    %v3394 = vpop.f32.mrb[0].mxu0
    %3395 = vmatprep.mubr.f32.mxu0 0.0
    %3396 = vmatmul.mubr.f32.gmra.mrb[0].mxu0 %v2279
    %v3397 = vpop.f32.mrb[0].mxu0
    %v3398 = vadd.f32 0.0, %v3397
    %v3399 = vpop.f32.mrb[0].mxu0
    %3400 = vmatprep.mubr.f32.mxu0 0.0
    %3401 = vmatmul.mubr.f32.gmra.mrb[0].mxu0 %v2282
    %v3402 = vpop.f32.mrb[0].mxu0
    %v3403 = vadd.f32 0.0, %v3402
    %v3404 = vpop.f32.mrb[0].mxu0
    %3405 = vmatprep.mubr.f32.mxu0 0.0
    %3406 = vmatmul.mubr.f32.gmra.mrb[0].mxu0 %v2285
    %v3407 = vpop.f32.mrb[0].mxu0
    %v3408 = vadd.f32 0.0, %v3407
    %v3409 = vpop.f32.mrb[0].mxu0
    %3410 = vmatprep.mubr.f32.mxu0 0.0
    %3411 = vmatmul.mubr.f32.gmra.mrb[0].mxu0 %v2288
    %v3412 = vpop.f32.mrb[0].mxu0
    %v3413 = vadd.f32 0.0, %v3412
    %v3414 = vpop.f32.mrb[0].mxu0
    %3415 = vmatprep.mubr.f32.mxu0 0.0
    %3416 = vmatmul.mubr.f32.gmra.mrb[0].mxu0 %v2291
    %v3417 = vpop.f32.mrb[0].mxu0
    %v3418 = vadd.f32 0.0, %v3417
    %v3419 = vpop.f32.mrb[0].mxu0
    %3420 = vmatprep.mubr.f32.mxu0 0.0
    %3421 = vmatmul.mubr.f32.gmra.mrb[0].mxu0 %v2294
    %v3422 = vpop.f32.mrb[0].mxu0
    %v3423 = vadd.f32 0.0, %v3422
    %v3424 = vpop.f32.mrb[0].mxu0
    %3425 = vmatprep.mubr.f32.mxu0 0.0
    %3426 = vmatmul.mubr.f32.gmra.mrb[0].mxu0 %v2297
    %v3427 = vpop.f32.mrb[0].mxu0
    %v3428 = vadd.f32 0.0, %v3427
    %v3429 = vpop.f32.mrb[0].mxu0
    %3430 = vmatprep.mubr.f32.mxu0 0.0
    %3431 = vmatmul.mubr.f32.gmra.mrb[0].mxu0 %v2300
    %v3432 = vpop.f32.mrb[0].mxu0
    %v3433 = vadd.f32 0.0, %v3432
    %v3434 = vpop.f32.mrb[0].mxu0
    %3435 = vmatprep.mubr.f32.mxu0 0.0
    %3436 = vmatmul.mubr.f32.gmra.mrb[0].mxu0 %v2303
    %v3437 = vpop.f32.mrb[0].mxu0
    %v3438 = vadd.f32 0.0, %v3437
    %v3439 = vpop.f32.mrb[0].mxu0
    %3440 = vmatprep.mubr.f32.mxu0 0.0
    %3441 = vmatmul.mubr.f32.gmra.mrb[0].mxu0 %v2306
    %v3442 = vpop.f32.mrb[0].mxu0
    %v3443 = vadd.f32 0.0, %v3442
    %v3444 = vpop.f32.mrb[0].mxu0
    %3445 = vmatprep.mubr.f32.mxu0 0.0
    %3446 = vmatmul.mubr.f32.gmra.mrb[0].mxu0 %v2309
    %v3447 = vpop.f32.mrb[0].mxu0
    %v3448 = vadd.f32 0.0, %v3447
    %v3449 = vpop.f32.mrb[0].mxu0
    %3450 = vdwg.mxu0
    %s3451 = scalar_lea.vmem [#allocation22], 32
    %v3452 = vld [vmem:[%s3451] sm:$0xff]
    %v3453 = vld [vmem:[%s3451 + $0x8] sm:$0xff]
    %v3454 = vld [vmem:[%s3451 + $0x10] sm:$0xff]
    %v3455 = vld [vmem:[%s3451 + $0x18] sm:$0xff]
    %3456 = vmatprep.subr.mxu0 0.0
    %3457 = vmatpush1.msra.mxu0 %v3452
    %3458 = vmatprep.subr.mxu0 0.0
    %3459 = vmatpush1.msra.mxu0 %v3453
    %3460 = vmatprep.subr.mxu0 0.0
    %3461 = vmatpush1.msra.mxu0 %v3454
    %3462 = vmatprep.subr.mxu0 0.0
    %3463 = vmatpush1.msra.mxu0 %v3455
    %3464 = vmatprep.subr.mxu0 0.0
    %3465 = vmatpush1.msra.mxu0 0.0
    %3466 = vmatprep.subr.mxu0 0.0
    %3467 = vmatpush1.msra.mxu0 0.0
    %3468 = vmatprep.subr.mxu0 0.0
    %3469 = vmatpush1.msra.mxu0 0.0
    %3470 = vmatprep.subr.mxu0 0.0
    %3471 = vmatpush1.msra.mxu0 0.0
    %3472 = vmatprep.subr.mxu0 0.0
    %3473 = vmatpush1.msra.mxu0 0.0
    %3474 = vmatprep.subr.mxu0 0.0
    %3475 = vmatpush1.msra.mxu0 0.0
    %3476 = vmatprep.subr.mxu0 0.0
    %3477 = vmatpush1.msra.mxu0 0.0
    %3478 = vmatprep.subr.mxu0 0.0
    %3479 = vmatpush1.msra.mxu0 0.0
    %3480 = vmatprep.subr.mxu0 0.0
    %3481 = vmatpush1.msra.mxu0 0.0
    %3482 = vmatprep.subr.mxu0 0.0
    %3483 = vmatpush1.msra.mxu0 0.0
    %3484 = vmatprep.subr.mxu0 0.0
    %3485 = vmatpush1.msra.mxu0 0.0
    %3486 = vmatprep.subr.mxu0 0.0
    %3487 = vmatpush1.msra.mxu0 0.0
    %3488 = vmatprep.subr.mxu0 0.0
    %3489 = vmatpush1.msra.mxu0 0.0
    %3490 = vmatprep.subr.mxu0 0.0
    %3491 = vmatpush1.msra.mxu0 0.0
    %3492 = vmatprep.subr.mxu0 0.0
    %3493 = vmatpush1.msra.mxu0 0.0
    %3494 = vmatprep.subr.mxu0 0.0
    %3495 = vmatpush1.msra.mxu0 0.0
    %3496 = vmatprep.subr.mxu0 0.0
    %3497 = vmatpush1.msra.mxu0 0.0
    %3498 = vmatprep.subr.mxu0 0.0
    %3499 = vmatpush1.msra.mxu0 0.0
    %3500 = vmatprep.subr.mxu0 0.0
    %3501 = vmatpush1.msra.mxu0 0.0
    %3502 = vmatprep.subr.mxu0 0.0
    %3503 = vmatpush1.msra.mxu0 0.0
    %3504 = vmatprep.subr.mxu0 0.0
    %3505 = vmatpush1.msra.mxu0 0.0
    %3506 = vmatprep.subr.mxu0 0.0
    %3507 = vmatpush1.msra.mxu0 0.0
    %3508 = vmatprep.subr.mxu0 0.0
    %3509 = vmatpush1.msra.mxu0 0.0
    %3510 = vmatprep.subr.mxu0 0.0
    %3511 = vmatpush1.msra.mxu0 0.0
    %3512 = vmatprep.subr.mxu0 0.0
    %3513 = vmatpush1.msra.mxu0 0.0
    %3514 = vmatprep.subr.mxu0 0.0
    %3515 = vmatpush1.msra.mxu0 0.0
    %3516 = vmatprep.subr.mxu0 0.0
    %3517 = vmatpush1.msra.mxu0 0.0
    %3518 = vmatprep.subr.mxu0 0.0
    %3519 = vmatpush1.msra.mxu0 0.0
    %3520 = vmatprep.mubr.f32.mxu0 0.0
    %3521 = vmatmul.mubr.f32.gmra.mrb[0].mxu0 %v2276
    %v3522 = vpop.f32.mrb[0].mxu0
    %v3523 = vadd.f32 0.0, %v3522
    %v3524 = vpop.f32.mrb[0].mxu0
    %3525 = vmatprep.mubr.f32.mxu0 0.0
    %3526 = vmatmul.mubr.f32.gmra.mrb[0].mxu0 %v2279
    %v3527 = vpop.f32.mrb[0].mxu0
    %v3528 = vadd.f32 0.0, %v3527
    %v3529 = vpop.f32.mrb[0].mxu0
    %3530 = vmatprep.mubr.f32.mxu0 0.0
    %3531 = vmatmul.mubr.f32.gmra.mrb[0].mxu0 %v2282
    %v3532 = vpop.f32.mrb[0].mxu0
    %v3533 = vadd.f32 0.0, %v3532
    %v3534 = vpop.f32.mrb[0].mxu0
    %3535 = vmatprep.mubr.f32.mxu0 0.0
    %3536 = vmatmul.mubr.f32.gmra.mrb[0].mxu0 %v2285
    %v3537 = vpop.f32.mrb[0].mxu0
    %v3538 = vadd.f32 0.0, %v3537
    %v3539 = vpop.f32.mrb[0].mxu0
    %3540 = vmatprep.mubr.f32.mxu0 0.0
    %3541 = vmatmul.mubr.f32.gmra.mrb[0].mxu0 %v2288
    %v3542 = vpop.f32.mrb[0].mxu0
    %v3543 = vadd.f32 0.0, %v3542
    %v3544 = vpop.f32.mrb[0].mxu0
    %3545 = vmatprep.mubr.f32.mxu0 0.0
    %3546 = vmatmul.mubr.f32.gmra.mrb[0].mxu0 %v2291
    %v3547 = vpop.f32.mrb[0].mxu0
    %v3548 = vadd.f32 0.0, %v3547
    %v3549 = vpop.f32.mrb[0].mxu0
    %3550 = vmatprep.mubr.f32.mxu0 0.0
    %3551 = vmatmul.mubr.f32.gmra.mrb[0].mxu0 %v2294
    %v3552 = vpop.f32.mrb[0].mxu0
    %v3553 = vadd.f32 0.0, %v3552
    %v3554 = vpop.f32.mrb[0].mxu0
    %3555 = vmatprep.mubr.f32.mxu0 0.0
    %3556 = vmatmul.mubr.f32.gmra.mrb[0].mxu0 %v2297
    %v3557 = vpop.f32.mrb[0].mxu0
    %v3558 = vadd.f32 0.0, %v3557
    %v3559 = vpop.f32.mrb[0].mxu0
    %3560 = vmatprep.mubr.f32.mxu0 0.0
    %3561 = vmatmul.mubr.f32.gmra.mrb[0].mxu0 %v2300
    %v3562 = vpop.f32.mrb[0].mxu0
    %v3563 = vadd.f32 0.0, %v3562
    %v3564 = vpop.f32.mrb[0].mxu0
    %3565 = vmatprep.mubr.f32.mxu0 0.0
    %3566 = vmatmul.mubr.f32.gmra.mrb[0].mxu0 %v2303
    %v3567 = vpop.f32.mrb[0].mxu0
    %v3568 = vadd.f32 0.0, %v3567
    %v3569 = vpop.f32.mrb[0].mxu0
    %3570 = vmatprep.mubr.f32.mxu0 0.0
    %3571 = vmatmul.mubr.f32.gmra.mrb[0].mxu0 %v2306
    %v3572 = vpop.f32.mrb[0].mxu0
    %v3573 = vadd.f32 0.0, %v3572
    %v3574 = vpop.f32.mrb[0].mxu0
    %3575 = vmatprep.mubr.f32.mxu0 0.0
    %3576 = vmatmul.mubr.f32.gmra.mrb[0].mxu0 %v2309
    %v3577 = vpop.f32.mrb[0].mxu0
    %v3578 = vadd.f32 0.0, %v3577
    %v3579 = vpop.f32.mrb[0].mxu0
    %3580 = vdwg.mxu0
    %v3582 = vsel %vm1019, %v3263, 0
    %v3585 = vsel %vm1019, %v3268, 0
    %v3588 = vsel %vm1019, %v3273, 0
    %v3591 = vsel %vm1019, %v3278, 0
    %v3594 = vsel %vm1019, %v3283, 0
    %v3597 = vsel %vm1019, %v3288, 0
    %v3600 = vsel %vm1019, %v3293, 0
    %v3603 = vsel %vm1019, %v3298, 0
    %v3606 = vsel %vm1019, %v3303, 0
    %v3609 = vsel %vm1019, %v3308, 0
    %v3612 = vsel %vm1019, %v3313, 0
    %v3615 = vsel %vm1019, %v3318, 0
    %v3618 = vsel %vm1019, %v3393, 0
    %v3621 = vsel %vm1019, %v3398, 0
    %v3624 = vsel %vm1019, %v3403, 0
    %v3627 = vsel %vm1019, %v3408, 0
    %v3630 = vsel %vm1019, %v3413, 0
    %v3633 = vsel %vm1019, %v3418, 0
    %v3636 = vsel %vm1019, %v3423, 0
    %v3639 = vsel %vm1019, %v3428, 0
    %v3642 = vsel %vm1019, %v3433, 0
    %v3645 = vsel %vm1019, %v3438, 0
    %v3648 = vsel %vm1019, %v3443, 0
    %v3651 = vsel %vm1019, %v3448, 0
    %3653 = vmatprep.subr.mxu0 0.0
    %3654 = vmatpush1.xpose.msra.mxu0 %v3618
    %3655 = vmatprep.subr.mxu0 0.0
    %3656 = vmatpush1.xpose.msra.mxu0 %v3621
    %3657 = vmatprep.subr.mxu0 0.0
    %3658 = vmatpush1.xpose.msra.mxu0 %v3624
    %3659 = vmatprep.subr.mxu0 0.0
    %3660 = vmatpush1.xpose.msra.mxu0 %v3627
    %3661 = vmatprep.subr.mxu0 0.0
    %3662 = vmatpush1.xpose.msra.mxu0 %v3630
    %3663 = vmatprep.subr.mxu0 0.0
    %3664 = vmatpush1.xpose.msra.mxu0 %v3633
    %3665 = vmatprep.subr.mxu0 0.0
    %3666 = vmatpush1.xpose.msra.mxu0 %v3636
    %3667 = vmatprep.subr.mxu0 0.0
    %3668 = vmatpush1.xpose.msra.mxu0 %v3639
    %3669 = vmatprep.subr.mxu0 0.0
    %3670 = vmatpush1.xpose.msra.mxu0 %v3642
    %3671 = vmatprep.subr.mxu0 0.0
    %3672 = vmatpush1.xpose.msra.mxu0 %v3645
    %3673 = vmatprep.subr.mxu0 0.0
    %3674 = vmatpush1.xpose.msra.mxu0 %v3648
    %3675 = vmatprep.subr.mxu0 0.0
    %3676 = vmatpush1.xpose.msra.mxu0 %v3651
    %3677 = vmatprep.subr.mxu0 0.0
    %3678 = vmatpush1.xpose.msra.mxu0 0.0
    %3679 = vmatprep.subr.mxu0 0.0
    %3680 = vmatpush1.xpose.msra.mxu0 0.0
    %3681 = vmatprep.subr.mxu0 0.0
    %3682 = vmatpush1.xpose.msra.mxu0 0.0
    %3683 = vmatprep.subr.mxu0 0.0
    %3684 = vmatpush1.xpose.msra.mxu0 0.0
    %3685 = vmatprep.subr.mxu0 0.0
    %3686 = vmatpush1.xpose.msra.mxu0 0.0
    %3687 = vmatprep.subr.mxu0 0.0
    %3688 = vmatpush1.xpose.msra.mxu0 0.0
    %3689 = vmatprep.subr.mxu0 0.0
    %3690 = vmatpush1.xpose.msra.mxu0 0.0
    %3691 = vmatprep.subr.mxu0 0.0
    %3692 = vmatpush1.xpose.msra.mxu0 0.0
    %3693 = vmatprep.subr.mxu0 0.0
    %3694 = vmatpush1.xpose.msra.mxu0 0.0
    %3695 = vmatprep.subr.mxu0 0.0
    %3696 = vmatpush1.xpose.msra.mxu0 0.0
    %3697 = vmatprep.subr.mxu0 0.0
    %3698 = vmatpush1.xpose.msra.mxu0 0.0
    %3699 = vmatprep.subr.mxu0 0.0
    %3700 = vmatpush1.xpose.msra.mxu0 0.0
    %3701 = vmatprep.subr.mxu0 0.0
    %3702 = vmatpush1.xpose.msra.mxu0 0.0
    %3703 = vmatprep.subr.mxu0 0.0
    %3704 = vmatpush1.xpose.msra.mxu0 0.0
    %3705 = vmatprep.subr.mxu0 0.0
    %3706 = vmatpush1.xpose.msra.mxu0 0.0
    %3707 = vmatprep.subr.mxu0 0.0
    %3708 = vmatpush1.xpose.msra.mxu0 0.0
    %3709 = vmatprep.subr.mxu0 0.0
    %3710 = vmatpush1.xpose.msra.mxu0 0.0
    %3711 = vmatprep.subr.mxu0 0.0
    %3712 = vmatpush1.xpose.msra.mxu0 0.0
    %3713 = vmatprep.subr.mxu0 0.0
    %3714 = vmatpush1.xpose.msra.mxu0 0.0
    %3715 = vmatprep.subr.mxu0 0.0
    %3716 = vmatpush1.xpose.msra.mxu0 0.0
    %3717 = vmatprep.mubr.f32.mxu0 0.0
    %3718 = vmatmul.mubr.f32.gmra.mrb[0].mxu0 %v3582
    %v3719 = vpop.f32.mrb[0].mxu0
    %v3720 = vadd.f32 %v2247, %v3719
    %v3721 = vpop.f32.mrb[0].mxu0
    %3722 = vmatprep.mubr.f32.mxu0 0.0
    %3723 = vmatmul.mubr.f32.gmra.mrb[0].mxu0 %v3585
    %v3724 = vpop.f32.mrb[0].mxu0
    %v3725 = vadd.f32 %v2248, %v3724
    %v3726 = vpop.f32.mrb[0].mxu0
    %3727 = vmatprep.mubr.f32.mxu0 0.0
    %3728 = vmatmul.mubr.f32.gmra.mrb[0].mxu0 %v3588
    %v3729 = vpop.f32.mrb[0].mxu0
    %v3730 = vadd.f32 %v2249, %v3729
    %v3731 = vpop.f32.mrb[0].mxu0
    %3732 = vmatprep.mubr.f32.mxu0 0.0
    %3733 = vmatmul.mubr.f32.gmra.mrb[0].mxu0 %v3591
    %v3734 = vpop.f32.mrb[0].mxu0
    %v3735 = vadd.f32 %v2250, %v3734
    %v3736 = vpop.f32.mrb[0].mxu0
    %3737 = vmatprep.mubr.f32.mxu0 0.0
    %3738 = vmatmul.mubr.f32.gmra.mrb[0].mxu0 %v3594
    %v3739 = vpop.f32.mrb[0].mxu0
    %v3740 = vadd.f32 %v2251, %v3739
    %v3741 = vpop.f32.mrb[0].mxu0
    %3742 = vmatprep.mubr.f32.mxu0 0.0
    %3743 = vmatmul.mubr.f32.gmra.mrb[0].mxu0 %v3597
    %v3744 = vpop.f32.mrb[0].mxu0
    %v3745 = vadd.f32 %v2252, %v3744
    %v3746 = vpop.f32.mrb[0].mxu0
    %3747 = vmatprep.mubr.f32.mxu0 0.0
    %3748 = vmatmul.mubr.f32.gmra.mrb[0].mxu0 %v3600
    %v3749 = vpop.f32.mrb[0].mxu0
    %v3750 = vadd.f32 %v2253, %v3749
    %v3751 = vpop.f32.mrb[0].mxu0
    %3752 = vmatprep.mubr.f32.mxu0 0.0
    %3753 = vmatmul.mubr.f32.gmra.mrb[0].mxu0 %v3603
    %v3754 = vpop.f32.mrb[0].mxu0
    %v3755 = vadd.f32 %v2254, %v3754
    %v3756 = vpop.f32.mrb[0].mxu0
    %3757 = vmatprep.mubr.f32.mxu0 0.0
    %3758 = vmatmul.mubr.f32.gmra.mrb[0].mxu0 %v3606
    %v3759 = vpop.f32.mrb[0].mxu0
    %v3760 = vadd.f32 %v2255, %v3759
    %v3761 = vpop.f32.mrb[0].mxu0
    %3762 = vmatprep.mubr.f32.mxu0 0.0
    %3763 = vmatmul.mubr.f32.gmra.mrb[0].mxu0 %v3609
    %v3764 = vpop.f32.mrb[0].mxu0
    %v3765 = vadd.f32 %v2256, %v3764
    %v3766 = vpop.f32.mrb[0].mxu0
    %3767 = vmatprep.mubr.f32.mxu0 0.0
    %3768 = vmatmul.mubr.f32.gmra.mrb[0].mxu0 %v3612
    %v3769 = vpop.f32.mrb[0].mxu0
    %v3770 = vadd.f32 %v2257, %v3769
    %v3771 = vpop.f32.mrb[0].mxu0
    %3772 = vmatprep.mubr.f32.mxu0 0.0
    %3773 = vmatmul.mubr.f32.gmra.mrb[0].mxu0 %v3615
    %v3774 = vpop.f32.mrb[0].mxu0
    %v3775 = vadd.f32 %v2258, %v3774
    %v3776 = vpop.f32.mrb[0].mxu0
    %3777 = vdwg.mxu0
    %v3778 = vsel %vm2891, %v3720, -inf
    %3779 = vmax.xlane.f32.xlu0 %v3778
    %v3780 = vpop.xlane.xlu0 %3779
    %v3781 = vsel %vm2891, %v3725, -inf
    %3782 = vmax.xlane.f32.xlu0 %v3781
    %v3783 = vpop.xlane.xlu0 %3782
    %v3784 = vsel %vm2891, %v3730, -inf
    %3785 = vmax.xlane.f32.xlu0 %v3784
    %v3786 = vpop.xlane.xlu0 %3785
    %v3787 = vsel %vm2891, %v3735, -inf
    %3788 = vmax.xlane.f32.xlu0 %v3787
    %v3789 = vpop.xlane.xlu0 %3788
    %v3790 = vsel %vm2891, %v3740, -inf
    %3791 = vmax.xlane.f32.xlu0 %v3790
    %v3792 = vpop.xlane.xlu0 %3791
    %v3793 = vsel %vm2891, %v3745, -inf
    %3794 = vmax.xlane.f32.xlu0 %v3793
    %v3795 = vpop.xlane.xlu0 %3794
    %v3796 = vsel %vm2891, %v3750, -inf
    %3797 = vmax.xlane.f32.xlu0 %v3796
    %v3798 = vpop.xlane.xlu0 %3797
    %v3799 = vsel %vm2891, %v3755, -inf
    %3800 = vmax.xlane.f32.xlu0 %v3799
    %v3801 = vpop.xlane.xlu0 %3800
    %v3802 = vsel %vm2891, %v3760, -inf
    %3803 = vmax.xlane.f32.xlu0 %v3802
    %v3804 = vpop.xlane.xlu0 %3803
    %v3805 = vsel %vm2891, %v3765, -inf
    %3806 = vmax.xlane.f32.xlu0 %v3805
    %v3807 = vpop.xlane.xlu0 %3806
    %v3808 = vsel %vm2891, %v3770, -inf
    %3809 = vmax.xlane.f32.xlu0 %v3808
    %v3810 = vpop.xlane.xlu0 %3809
    %v3811 = vsel %vm2925, %v3775, -inf
    %3812 = vmax.xlane.f32.xlu0 %v3811
    %v3813 = vpop.xlane.xlu0 %3812
    %v3814 = vsub.f32 %v3720, %v3780
    %v3815 = vsub.f32 %v3725, %v3783
    %v3816 = vsub.f32 %v3730, %v3786
    %v3817 = vsub.f32 %v3735, %v3789
    %v3818 = vsub.f32 %v3740, %v3792
    %v3819 = vsub.f32 %v3745, %v3795
    %v3820 = vsub.f32 %v3750, %v3798
    %v3821 = vsub.f32 %v3755, %v3801
    %v3822 = vsub.f32 %v3760, %v3804
    %v3823 = vsub.f32 %v3765, %v3807
    %v3824 = vsub.f32 %v3770, %v3810
    %v3825 = vsub.f32 %v3775, %v3813
    %v3826 = vmul.f32 %v3814, 1.442695
    %v3827 = vpow.pop %v3826
    %v3828 = vmul.f32 %v3815, 1.442695
    %v3829 = vpow.pop %v3828
    %v3830 = vmul.f32 %v3816, 1.442695
    %v3831 = vpow.pop %v3830
    %v3832 = vmul.f32 %v3817, 1.442695
    %v3833 = vpow.pop %v3832
    %v3834 = vmul.f32 %v3818, 1.442695
    %v3835 = vpow.pop %v3834
    %v3836 = vmul.f32 %v3819, 1.442695
    %v3837 = vpow.pop %v3836
    %v3838 = vmul.f32 %v3820, 1.442695
    %v3839 = vpow.pop %v3838
    %v3840 = vmul.f32 %v3821, 1.442695
    %v3841 = vpow.pop %v3840
    %v3842 = vmul.f32 %v3822, 1.442695
    %v3843 = vpow.pop %v3842
    %v3844 = vmul.f32 %v3823, 1.442695
    %v3845 = vpow.pop %v3844
    %v3846 = vmul.f32 %v3824, 1.442695
    %v3847 = vpow.pop %v3846
    %v3848 = vmul.f32 %v3825, 1.442695
    %v3849 = vpow.pop %v3848
    %v3850 = vsel %vm2891, %v3827, 0.0
    %3851 = vadd.xlane.f32.xlu0 %v3850
    %v3852 = vpop.xlane.xlu0 %3851
    %v3853 = vsel %vm2891, %v3829, 0.0
    %3854 = vadd.xlane.f32.xlu0 %v3853
    %v3855 = vpop.xlane.xlu0 %3854
    %v3856 = vsel %vm2891, %v3831, 0.0
    %3857 = vadd.xlane.f32.xlu0 %v3856
    %v3858 = vpop.xlane.xlu0 %3857
    %v3859 = vsel %vm2891, %v3833, 0.0
    %3860 = vadd.xlane.f32.xlu0 %v3859
    %v3861 = vpop.xlane.xlu0 %3860
    %v3862 = vsel %vm2891, %v3835, 0.0
    %3863 = vadd.xlane.f32.xlu0 %v3862
    %v3864 = vpop.xlane.xlu0 %3863
    %v3865 = vsel %vm2891, %v3837, 0.0
    %3866 = vadd.xlane.f32.xlu0 %v3865
    %v3867 = vpop.xlane.xlu0 %3866
    %v3868 = vsel %vm2891, %v3839, 0.0
    %3869 = vadd.xlane.f32.xlu0 %v3868
    %v3870 = vpop.xlane.xlu0 %3869
    %v3871 = vsel %vm2891, %v3841, 0.0
    %3872 = vadd.xlane.f32.xlu0 %v3871
    %v3873 = vpop.xlane.xlu0 %3872
    %v3874 = vsel %vm2891, %v3843, 0.0
    %3875 = vadd.xlane.f32.xlu0 %v3874
    %v3876 = vpop.xlane.xlu0 %3875
    %v3877 = vsel %vm2891, %v3845, 0.0
    %3878 = vadd.xlane.f32.xlu0 %v3877
    %v3879 = vpop.xlane.xlu0 %3878
    %v3880 = vsel %vm2891, %v3847, 0.0
    %3881 = vadd.xlane.f32.xlu0 %v3880
    %v3882 = vpop.xlane.xlu0 %3881
    %v3883 = vsel %vm2925, %v3849, 0.0
    %3884 = vadd.xlane.f32.xlu0 %v3883
    %v3885 = vpop.xlane.xlu0 %3884
    %v3886 = vrcp.pop %v3852
    %v3887 = vrcp.pop %v3855
    %v3888 = vrcp.pop %v3858
    %v3889 = vrcp.pop %v3861
    %v3890 = vrcp.pop %v3864
    %v3891 = vrcp.pop %v3867
    %v3892 = vrcp.pop %v3870
    %v3893 = vrcp.pop %v3873
    %v3894 = vrcp.pop %v3876
    %v3895 = vrcp.pop %v3879
    %v3896 = vrcp.pop %v3882
    %v3897 = vrcp.pop %v3885
    %v3898 = vmul.f32 %v3827, %v3886
    %v3899 = vmul.f32 %v3829, %v3887
    %v3900 = vmul.f32 %v3831, %v3888
    %v3901 = vmul.f32 %v3833, %v3889
    %v3902 = vmul.f32 %v3835, %v3890
    %v3903 = vmul.f32 %v3837, %v3891
    %v3904 = vmul.f32 %v3839, %v3892
    %v3905 = vmul.f32 %v3841, %v3893
    %v3906 = vmul.f32 %v3843, %v3894
    %v3907 = vmul.f32 %v3845, %v3895
    %v3908 = vmul.f32 %v3847, %v3896
    %v3909 = vmul.f32 %v3849, %v3897
    %v3911 = vsel %vm2891, %v3898, 0
    %v3914 = vsel %vm2891, %v3899, 0
    %v3917 = vsel %vm2891, %v3900, 0
    %v3920 = vsel %vm2891, %v3901, 0
    %v3923 = vsel %vm2891, %v3902, 0
    %v3926 = vsel %vm2891, %v3903, 0
    %v3929 = vsel %vm2891, %v3904, 0
    %v3932 = vsel %vm2891, %v3905, 0
    %v3935 = vsel %vm2891, %v3906, 0
    %v3938 = vsel %vm2891, %v3907, 0
    %v3941 = vsel %vm2891, %v3908, 0
    %v3944 = vsel %vm2891, %v3909, 0
    %v3947 = vsel %vm1844, %v3578, 0
    %3949 = vmatprep.subr.mxu0 0.0
    %3950 = vmatpush1.msra.mxu0 %v3523
    %3951 = vmatprep.subr.mxu0 0.0
    %3952 = vmatpush1.msra.mxu0 %v3528
    %3953 = vmatprep.subr.mxu0 0.0
    %3954 = vmatpush1.msra.mxu0 %v3533
    %3955 = vmatprep.subr.mxu0 0.0
    %3956 = vmatpush1.msra.mxu0 %v3538
    %3957 = vmatprep.subr.mxu0 0.0
    %3958 = vmatpush1.msra.mxu0 %v3543
    %3959 = vmatprep.subr.mxu0 0.0
    %3960 = vmatpush1.msra.mxu0 %v3548
    %3961 = vmatprep.subr.mxu0 0.0
    %3962 = vmatpush1.msra.mxu0 %v3553
    %3963 = vmatprep.subr.mxu0 0.0
    %3964 = vmatpush1.msra.mxu0 %v3558
    %3965 = vmatprep.subr.mxu0 0.0
    %3966 = vmatpush1.msra.mxu0 %v3563
    %3967 = vmatprep.subr.mxu0 0.0
    %3968 = vmatpush1.msra.mxu0 %v3568
    %3969 = vmatprep.subr.mxu0 0.0
    %3970 = vmatpush1.msra.mxu0 %v3573
    %3971 = vmatprep.subr.mxu0 0.0
    %3972 = vmatpush1.msra.mxu0 %v3947
    %3973 = vmatprep.subr.mxu0 0.0
    %3974 = vmatpush1.msra.mxu0 0.0
    %3975 = vmatprep.subr.mxu0 0.0
    %3976 = vmatpush1.msra.mxu0 0.0
    %3977 = vmatprep.subr.mxu0 0.0
    %3978 = vmatpush1.msra.mxu0 0.0
    %3979 = vmatprep.subr.mxu0 0.0
    %3980 = vmatpush1.msra.mxu0 0.0
    %3981 = vmatprep.subr.mxu0 0.0
    %3982 = vmatpush1.msra.mxu0 0.0
    %3983 = vmatprep.subr.mxu0 0.0
    %3984 = vmatpush1.msra.mxu0 0.0
    %3985 = vmatprep.subr.mxu0 0.0
    %3986 = vmatpush1.msra.mxu0 0.0
    %3987 = vmatprep.subr.mxu0 0.0
    %3988 = vmatpush1.msra.mxu0 0.0
    %3989 = vmatprep.subr.mxu0 0.0
    %3990 = vmatpush1.msra.mxu0 0.0
    %3991 = vmatprep.subr.mxu0 0.0
    %3992 = vmatpush1.msra.mxu0 0.0
    %3993 = vmatprep.subr.mxu0 0.0
    %3994 = vmatpush1.msra.mxu0 0.0
    %3995 = vmatprep.subr.mxu0 0.0
    %3996 = vmatpush1.msra.mxu0 0.0
    %3997 = vmatprep.subr.mxu0 0.0
    %3998 = vmatpush1.msra.mxu0 0.0
    %3999 = vmatprep.subr.mxu0 0.0
    %4000 = vmatpush1.msra.mxu0 0.0
    %4001 = vmatprep.subr.mxu0 0.0
    %4002 = vmatpush1.msra.mxu0 0.0
    %4003 = vmatprep.subr.mxu0 0.0
    %4004 = vmatpush1.msra.mxu0 0.0
    %4005 = vmatprep.subr.mxu0 0.0
    %4006 = vmatpush1.msra.mxu0 0.0
    %4007 = vmatprep.subr.mxu0 0.0
    %4008 = vmatpush1.msra.mxu0 0.0
    %4009 = vmatprep.subr.mxu0 0.0
    %4010 = vmatpush1.msra.mxu0 0.0
    %4011 = vmatprep.subr.mxu0 0.0
    %4012 = vmatpush1.msra.mxu0 0.0
    %4013 = vmatprep.mubr.f32.mxu0 0.0
    %4014 = vmatmul.mubr.f32.gmra.mrb[0].mxu0 %v3911
    %v4015 = vpop.f32.mrb[0].mxu0
    %v4016 = vadd.f32 0.0, %v4015
    %v4017 = vpop.f32.mrb[0].mxu0
    %4018 = vmatprep.mubr.f32.mxu0 0.0
    %4019 = vmatmul.mubr.f32.gmra.mrb[0].mxu0 %v3914
    %v4020 = vpop.f32.mrb[0].mxu0
    %v4021 = vadd.f32 0.0, %v4020
    %v4022 = vpop.f32.mrb[0].mxu0
    %4023 = vmatprep.mubr.f32.mxu0 0.0
    %4024 = vmatmul.mubr.f32.gmra.mrb[0].mxu0 %v3917
    %v4025 = vpop.f32.mrb[0].mxu0
    %v4026 = vadd.f32 0.0, %v4025
    %v4027 = vpop.f32.mrb[0].mxu0
    %4028 = vmatprep.mubr.f32.mxu0 0.0
    %4029 = vmatmul.mubr.f32.gmra.mrb[0].mxu0 %v3920
    %v4030 = vpop.f32.mrb[0].mxu0
    %v4031 = vadd.f32 0.0, %v4030
    %v4032 = vpop.f32.mrb[0].mxu0
    %4033 = vmatprep.mubr.f32.mxu0 0.0
    %4034 = vmatmul.mubr.f32.gmra.mrb[0].mxu0 %v3923
    %v4035 = vpop.f32.mrb[0].mxu0
    %v4036 = vadd.f32 0.0, %v4035
    %v4037 = vpop.f32.mrb[0].mxu0
    %4038 = vmatprep.mubr.f32.mxu0 0.0
    %4039 = vmatmul.mubr.f32.gmra.mrb[0].mxu0 %v3926
    %v4040 = vpop.f32.mrb[0].mxu0
    %v4041 = vadd.f32 0.0, %v4040
    %v4042 = vpop.f32.mrb[0].mxu0
    %4043 = vmatprep.mubr.f32.mxu0 0.0
    %4044 = vmatmul.mubr.f32.gmra.mrb[0].mxu0 %v3929
    %v4045 = vpop.f32.mrb[0].mxu0
    %v4046 = vadd.f32 0.0, %v4045
    %v4047 = vpop.f32.mrb[0].mxu0
    %4048 = vmatprep.mubr.f32.mxu0 0.0
    %4049 = vmatmul.mubr.f32.gmra.mrb[0].mxu0 %v3932
    %v4050 = vpop.f32.mrb[0].mxu0
    %v4051 = vadd.f32 0.0, %v4050
    %v4052 = vpop.f32.mrb[0].mxu0
    %4053 = vmatprep.mubr.f32.mxu0 0.0
    %4054 = vmatmul.mubr.f32.gmra.mrb[0].mxu0 %v3935
    %v4055 = vpop.f32.mrb[0].mxu0
    %v4056 = vadd.f32 0.0, %v4055
    %v4057 = vpop.f32.mrb[0].mxu0
    %4058 = vmatprep.mubr.f32.mxu0 0.0
    %4059 = vmatmul.mubr.f32.gmra.mrb[0].mxu0 %v3938
    %v4060 = vpop.f32.mrb[0].mxu0
    %v4061 = vadd.f32 0.0, %v4060
    %v4062 = vpop.f32.mrb[0].mxu0
    %4063 = vmatprep.mubr.f32.mxu0 0.0
    %4064 = vmatmul.mubr.f32.gmra.mrb[0].mxu0 %v3941
    %v4065 = vpop.f32.mrb[0].mxu0
    %v4066 = vadd.f32 0.0, %v4065
    %v4067 = vpop.f32.mrb[0].mxu0
    %4068 = vmatprep.mubr.f32.mxu0 0.0
    %4069 = vmatmul.mubr.f32.gmra.mrb[0].mxu0 %v3944
    %v4070 = vpop.f32.mrb[0].mxu0
    %v4071 = vadd.f32 0.0, %v4070
    %v4072 = vpop.f32.mrb[0].mxu0
    %4073 = vdwg.mxu0
    %s4074 = scalar_lea.vmem [#allocation23], 16
    %v4075 = vld [vmem:[%s4074] sm:$0xff]
    %v4076 = vld [vmem:[%s4074 + $0x8] sm:$0xff]
    %v4078 = vsel %vm1019, %v4016, 0
    %v4081 = vsel %vm1019, %v4021, 0
    %v4084 = vsel %vm1019, %v4026, 0
    %v4087 = vsel %vm1019, %v4031, 0
    %v4090 = vsel %vm1019, %v4036, 0
    %v4093 = vsel %vm1019, %v4041, 0
    %v4096 = vsel %vm1019, %v4046, 0
    %v4099 = vsel %vm1019, %v4051, 0
    %v4102 = vsel %vm1019, %v4056, 0
    %v4105 = vsel %vm1019, %v4061, 0
    %v4108 = vsel %vm1019, %v4066, 0
    %v4111 = vsel %vm1019, %v4071, 0
    %4113 = vmatprep.subr.mxu0 0.0
    %4114 = vmatpush1.msra.mxu0 %v4075
    %4115 = vmatprep.subr.mxu0 0.0
    %4116 = vmatpush1.msra.mxu0 %v4076
    %4117 = vmatprep.subr.mxu0 0.0
    %4118 = vmatpush1.msra.mxu0 0.0
    %4119 = vmatprep.subr.mxu0 0.0
    %4120 = vmatpush1.msra.mxu0 0.0
    %4121 = vmatprep.subr.mxu0 0.0
    %4122 = vmatpush1.msra.mxu0 0.0
    %4123 = vmatprep.subr.mxu0 0.0
    %4124 = vmatpush1.msra.mxu0 0.0
    %4125 = vmatprep.subr.mxu0 0.0
    %4126 = vmatpush1.msra.mxu0 0.0
    %4127 = vmatprep.subr.mxu0 0.0
    %4128 = vmatpush1.msra.mxu0 0.0
    %4129 = vmatprep.subr.mxu0 0.0
    %4130 = vmatpush1.msra.mxu0 0.0
    %4131 = vmatprep.subr.mxu0 0.0
    %4132 = vmatpush1.msra.mxu0 0.0
    %4133 = vmatprep.subr.mxu0 0.0
    %4134 = vmatpush1.msra.mxu0 0.0
    %4135 = vmatprep.subr.mxu0 0.0
    %4136 = vmatpush1.msra.mxu0 0.0
    %4137 = vmatprep.subr.mxu0 0.0
    %4138 = vmatpush1.msra.mxu0 0.0
    %4139 = vmatprep.subr.mxu0 0.0
    %4140 = vmatpush1.msra.mxu0 0.0
    %4141 = vmatprep.subr.mxu0 0.0
    %4142 = vmatpush1.msra.mxu0 0.0
    %4143 = vmatprep.subr.mxu0 0.0
    %4144 = vmatpush1.msra.mxu0 0.0
    %4145 = vmatprep.subr.mxu0 0.0
    %4146 = vmatpush1.msra.mxu0 0.0
    %4147 = vmatprep.subr.mxu0 0.0
    %4148 = vmatpush1.msra.mxu0 0.0
    %4149 = vmatprep.subr.mxu0 0.0
    %4150 = vmatpush1.msra.mxu0 0.0
    %4151 = vmatprep.subr.mxu0 0.0
    %4152 = vmatpush1.msra.mxu0 0.0
    %4153 = vmatprep.subr.mxu0 0.0
    %4154 = vmatpush1.msra.mxu0 0.0
    %4155 = vmatprep.subr.mxu0 0.0
    %4156 = vmatpush1.msra.mxu0 0.0
    %4157 = vmatprep.subr.mxu0 0.0
    %4158 = vmatpush1.msra.mxu0 0.0
    %4159 = vmatprep.subr.mxu0 0.0
    %4160 = vmatpush1.msra.mxu0 0.0
    %4161 = vmatprep.subr.mxu0 0.0
    %4162 = vmatpush1.msra.mxu0 0.0
    %4163 = vmatprep.subr.mxu0 0.0
    %4164 = vmatpush1.msra.mxu0 0.0
    %4165 = vmatprep.subr.mxu0 0.0
    %4166 = vmatpush1.msra.mxu0 0.0
    %4167 = vmatprep.subr.mxu0 0.0
    %4168 = vmatpush1.msra.mxu0 0.0
    %4169 = vmatprep.subr.mxu0 0.0
    %4170 = vmatpush1.msra.mxu0 0.0
    %4171 = vmatprep.subr.mxu0 0.0
    %4172 = vmatpush1.msra.mxu0 0.0
    %4173 = vmatprep.subr.mxu0 0.0
    %4174 = vmatpush1.msra.mxu0 0.0
    %4175 = vmatprep.subr.mxu0 0.0
    %4176 = vmatpush1.msra.mxu0 0.0
    %4177 = vmatprep.mubr.f32.mxu0 0.0
    %4178 = vmatmul.mubr.f32.gmra.mrb[0].mxu0 %v4078
    %v4179 = vpop.f32.mrb[0].mxu0
    %v4180 = vadd.f32 0.0, %v4179
    %v4181 = vpop.f32.mrb[0].mxu0
    %4182 = vmatprep.mubr.f32.mxu0 0.0
    %4183 = vmatmul.mubr.f32.gmra.mrb[0].mxu0 %v4081
    %v4184 = vpop.f32.mrb[0].mxu0
    %v4185 = vadd.f32 0.0, %v4184
    %v4186 = vpop.f32.mrb[0].mxu0
    %4187 = vmatprep.mubr.f32.mxu0 0.0
    %4188 = vmatmul.mubr.f32.gmra.mrb[0].mxu0 %v4084
    %v4189 = vpop.f32.mrb[0].mxu0
    %v4190 = vadd.f32 0.0, %v4189
    %v4191 = vpop.f32.mrb[0].mxu0
    %4192 = vmatprep.mubr.f32.mxu0 0.0
    %4193 = vmatmul.mubr.f32.gmra.mrb[0].mxu0 %v4087
    %v4194 = vpop.f32.mrb[0].mxu0
    %v4195 = vadd.f32 0.0, %v4194
    %v4196 = vpop.f32.mrb[0].mxu0
    %4197 = vmatprep.mubr.f32.mxu0 0.0
    %4198 = vmatmul.mubr.f32.gmra.mrb[0].mxu0 %v4090
    %v4199 = vpop.f32.mrb[0].mxu0
    %v4200 = vadd.f32 0.0, %v4199
    %v4201 = vpop.f32.mrb[0].mxu0
    %4202 = vmatprep.mubr.f32.mxu0 0.0
    %4203 = vmatmul.mubr.f32.gmra.mrb[0].mxu0 %v4093
    %v4204 = vpop.f32.mrb[0].mxu0
    %v4205 = vadd.f32 0.0, %v4204
    %v4206 = vpop.f32.mrb[0].mxu0
    %4207 = vmatprep.mubr.f32.mxu0 0.0
    %4208 = vmatmul.mubr.f32.gmra.mrb[0].mxu0 %v4096
    %v4209 = vpop.f32.mrb[0].mxu0
    %v4210 = vadd.f32 0.0, %v4209
    %v4211 = vpop.f32.mrb[0].mxu0
    %4212 = vmatprep.mubr.f32.mxu0 0.0
    %4213 = vmatmul.mubr.f32.gmra.mrb[0].mxu0 %v4099
    %v4214 = vpop.f32.mrb[0].mxu0
    %v4215 = vadd.f32 0.0, %v4214
    %v4216 = vpop.f32.mrb[0].mxu0
    %4217 = vmatprep.mubr.f32.mxu0 0.0
    %4218 = vmatmul.mubr.f32.gmra.mrb[0].mxu0 %v4102
    %v4219 = vpop.f32.mrb[0].mxu0
    %v4220 = vadd.f32 0.0, %v4219
    %v4221 = vpop.f32.mrb[0].mxu0
    %4222 = vmatprep.mubr.f32.mxu0 0.0
    %4223 = vmatmul.mubr.f32.gmra.mrb[0].mxu0 %v4105
    %v4224 = vpop.f32.mrb[0].mxu0
    %v4225 = vadd.f32 0.0, %v4224
    %v4226 = vpop.f32.mrb[0].mxu0
    %4227 = vmatprep.mubr.f32.mxu0 0.0
    %4228 = vmatmul.mubr.f32.gmra.mrb[0].mxu0 %v4108
    %v4229 = vpop.f32.mrb[0].mxu0
    %v4230 = vadd.f32 0.0, %v4229
    %v4231 = vpop.f32.mrb[0].mxu0
    %4232 = vmatprep.mubr.f32.mxu0 0.0
    %4233 = vmatmul.mubr.f32.gmra.mrb[0].mxu0 %v4111
    %v4234 = vpop.f32.mrb[0].mxu0
    %v4235 = vadd.f32 0.0, %v4234
    %v4236 = vpop.f32.mrb[0].mxu0
    %4237 = vdwg.mxu0
    %v4239 = vsel %vm1019, %v3131, 0
    %v4242 = vsel %vm1019, %v3136, 0
    %v4245 = vsel %vm1019, %v3141, 0
    %v4248 = vsel %vm1019, %v3146, 0
    %v4251 = vsel %vm1019, %v3151, 0
    %v4254 = vsel %vm1019, %v3156, 0
    %v4257 = vsel %vm1019, %v3161, 0
    %v4260 = vsel %vm1019, %v3166, 0
    %v4263 = vsel %vm1019, %v3171, 0
    %v4266 = vsel %vm1019, %v3176, 0
    %v4269 = vsel %vm1019, %v3181, 0
    %v4272 = vsel %vm1019, %v3186, 0
    %4274 = vmatprep.subr.mxu0 0.0
    %4275 = vmatpush1.msra.mxu0 %v3189
    %4276 = vmatprep.subr.mxu0 0.0
    %4277 = vmatpush1.msra.mxu0 %v3190
    %4278 = vmatprep.subr.mxu0 0.0
    %4279 = vmatpush1.msra.mxu0 0.0
    %4280 = vmatprep.subr.mxu0 0.0
    %4281 = vmatpush1.msra.mxu0 0.0
    %4282 = vmatprep.subr.mxu0 0.0
    %4283 = vmatpush1.msra.mxu0 0.0
    %4284 = vmatprep.subr.mxu0 0.0
    %4285 = vmatpush1.msra.mxu0 0.0
    %4286 = vmatprep.subr.mxu0 0.0
    %4287 = vmatpush1.msra.mxu0 0.0
    %4288 = vmatprep.subr.mxu0 0.0
    %4289 = vmatpush1.msra.mxu0 0.0
    %4290 = vmatprep.subr.mxu0 0.0
    %4291 = vmatpush1.msra.mxu0 0.0
    %4292 = vmatprep.subr.mxu0 0.0
    %4293 = vmatpush1.msra.mxu0 0.0
    %4294 = vmatprep.subr.mxu0 0.0
    %4295 = vmatpush1.msra.mxu0 0.0
    %4296 = vmatprep.subr.mxu0 0.0
    %4297 = vmatpush1.msra.mxu0 0.0
    %4298 = vmatprep.subr.mxu0 0.0
    %4299 = vmatpush1.msra.mxu0 0.0
    %4300 = vmatprep.subr.mxu0 0.0
    %4301 = vmatpush1.msra.mxu0 0.0
    %4302 = vmatprep.subr.mxu0 0.0
    %4303 = vmatpush1.msra.mxu0 0.0
    %4304 = vmatprep.subr.mxu0 0.0
    %4305 = vmatpush1.msra.mxu0 0.0
    %4306 = vmatprep.subr.mxu0 0.0
    %4307 = vmatpush1.msra.mxu0 0.0
    %4308 = vmatprep.subr.mxu0 0.0
    %4309 = vmatpush1.msra.mxu0 0.0
    %4310 = vmatprep.subr.mxu0 0.0
    %4311 = vmatpush1.msra.mxu0 0.0
    %4312 = vmatprep.subr.mxu0 0.0
    %4313 = vmatpush1.msra.mxu0 0.0
    %4314 = vmatprep.subr.mxu0 0.0
    %4315 = vmatpush1.msra.mxu0 0.0
    %4316 = vmatprep.subr.mxu0 0.0
    %4317 = vmatpush1.msra.mxu0 0.0
    %4318 = vmatprep.subr.mxu0 0.0
    %4319 = vmatpush1.msra.mxu0 0.0
    %4320 = vmatprep.subr.mxu0 0.0
    %4321 = vmatpush1.msra.mxu0 0.0
    %4322 = vmatprep.subr.mxu0 0.0
    %4323 = vmatpush1.msra.mxu0 0.0
    %4324 = vmatprep.subr.mxu0 0.0
    %4325 = vmatpush1.msra.mxu0 0.0
    %4326 = vmatprep.subr.mxu0 0.0
    %4327 = vmatpush1.msra.mxu0 0.0
    %4328 = vmatprep.subr.mxu0 0.0
    %4329 = vmatpush1.msra.mxu0 0.0
    %4330 = vmatprep.subr.mxu0 0.0
    %4331 = vmatpush1.msra.mxu0 0.0
    %4332 = vmatprep.subr.mxu0 0.0
    %4333 = vmatpush1.msra.mxu0 0.0
    %4334 = vmatprep.subr.mxu0 0.0
    %4335 = vmatpush1.msra.mxu0 0.0
    %4336 = vmatprep.subr.mxu0 0.0
    %4337 = vmatpush1.msra.mxu0 0.0
    %4338 = vmatprep.mubr.f32.mxu0 0.0
    %4339 = vmatmul.mubr.f32.gmra.mrb[0].mxu0 %v4239
    %v4340 = vpop.f32.mrb[0].mxu0
    %v4341 = vadd.f32 %v4180, %v4340
    %v4342 = vpop.f32.mrb[0].mxu0
    %4343 = vmatprep.mubr.f32.mxu0 0.0
    %4344 = vmatmul.mubr.f32.gmra.mrb[0].mxu0 %v4242
    %v4345 = vpop.f32.mrb[0].mxu0
    %v4346 = vadd.f32 %v4185, %v4345
    %v4347 = vpop.f32.mrb[0].mxu0
    %4348 = vmatprep.mubr.f32.mxu0 0.0
    %4349 = vmatmul.mubr.f32.gmra.mrb[0].mxu0 %v4245
    %v4350 = vpop.f32.mrb[0].mxu0
    %v4351 = vadd.f32 %v4190, %v4350
    %v4352 = vpop.f32.mrb[0].mxu0
    %4353 = vmatprep.mubr.f32.mxu0 0.0
    %4354 = vmatmul.mubr.f32.gmra.mrb[0].mxu0 %v4248
    %v4355 = vpop.f32.mrb[0].mxu0
    %v4356 = vadd.f32 %v4195, %v4355
    %v4357 = vpop.f32.mrb[0].mxu0
    %4358 = vmatprep.mubr.f32.mxu0 0.0
    %4359 = vmatmul.mubr.f32.gmra.mrb[0].mxu0 %v4251
    %v4360 = vpop.f32.mrb[0].mxu0
    %v4361 = vadd.f32 %v4200, %v4360
    %v4362 = vpop.f32.mrb[0].mxu0
    %4363 = vmatprep.mubr.f32.mxu0 0.0
    %4364 = vmatmul.mubr.f32.gmra.mrb[0].mxu0 %v4254
    %v4365 = vpop.f32.mrb[0].mxu0
    %v4366 = vadd.f32 %v4205, %v4365
    %v4367 = vpop.f32.mrb[0].mxu0
    %4368 = vmatprep.mubr.f32.mxu0 0.0
    %4369 = vmatmul.mubr.f32.gmra.mrb[0].mxu0 %v4257
    %v4370 = vpop.f32.mrb[0].mxu0
    %v4371 = vadd.f32 %v4210, %v4370
    %v4372 = vpop.f32.mrb[0].mxu0
    %4373 = vmatprep.mubr.f32.mxu0 0.0
    %4374 = vmatmul.mubr.f32.gmra.mrb[0].mxu0 %v4260
    %v4375 = vpop.f32.mrb[0].mxu0
    %v4376 = vadd.f32 %v4215, %v4375
    %v4377 = vpop.f32.mrb[0].mxu0
    %4378 = vmatprep.mubr.f32.mxu0 0.0
    %4379 = vmatmul.mubr.f32.gmra.mrb[0].mxu0 %v4263
    %v4380 = vpop.f32.mrb[0].mxu0
    %v4381 = vadd.f32 %v4220, %v4380
    %v4382 = vpop.f32.mrb[0].mxu0
    %4383 = vmatprep.mubr.f32.mxu0 0.0
    %4384 = vmatmul.mubr.f32.gmra.mrb[0].mxu0 %v4266
    %v4385 = vpop.f32.mrb[0].mxu0
    %v4386 = vadd.f32 %v4225, %v4385
    %v4387 = vpop.f32.mrb[0].mxu0
    %4388 = vmatprep.mubr.f32.mxu0 0.0
    %4389 = vmatmul.mubr.f32.gmra.mrb[0].mxu0 %v4269
    %v4390 = vpop.f32.mrb[0].mxu0
    %v4391 = vadd.f32 %v4230, %v4390
    %v4392 = vpop.f32.mrb[0].mxu0
    %4393 = vmatprep.mubr.f32.mxu0 0.0
    %4394 = vmatmul.mubr.f32.gmra.mrb[0].mxu0 %v4272
    %v4395 = vpop.f32.mrb[0].mxu0
    %v4396 = vadd.f32 %v4235, %v4395
    %v4397 = vpop.f32.mrb[0].mxu0
    %4398 = vdwg.mxu0
    %v4399 = vld [vmem:[#allocation25] sm:$0x1]
    %v4401 = vlaneseq
    %v4402 = vshrl.u32 %v4401, 7
    %v4403 = vsub.s32 0, %v4402
    %v4404 = vrot.slane %v4399, %v4403
    %v4406 = vadd.f32 %v4341, %v4404
    %v4407 = vadd.f32 %v4346, %v4404
    %v4408 = vadd.f32 %v4351, %v4404
    %v4409 = vadd.f32 %v4356, %v4404
    %v4410 = vadd.f32 %v4361, %v4404
    %v4411 = vadd.f32 %v4366, %v4404
    %v4412 = vadd.f32 %v4371, %v4404
    %v4413 = vadd.f32 %v4376, %v4404
    %v4414 = vadd.f32 %v4381, %v4404
    %v4415 = vadd.f32 %v4386, %v4404
    %v4416 = vadd.f32 %v4391, %v4404
    %v4417 = vadd.f32 %v4396, %v4404
    %v4418 = vadd.f32 %v4406, %v2259
    %v4419 = vadd.f32 %v4407, %v2260
    %v4420 = vadd.f32 %v4408, %v2261
    %v4421 = vadd.f32 %v4409, %v2262
    %v4422 = vadd.f32 %v4410, %v2263
    %v4423 = vadd.f32 %v4411, %v2264
    %v4424 = vadd.f32 %v4412, %v2265
    %v4425 = vadd.f32 %v4413, %v2266
    %v4426 = vadd.f32 %v4414, %v2267
    %v4427 = vadd.f32 %v4415, %v2268
    %v4428 = vadd.f32 %v4416, %v2269
    %v4429 = vadd.f32 %v4417, %v2270
    %v4430 = vld [vmem:[%s49] sm:$0x1]
    %v4431 = vld [vmem:[%s51] sm:$0x1]
    %v4432 = vsel %vm562, %v4418, 0.0
    %4433 = vadd.xlane.f32.xlu0 %v4432
    %v4434 = vpop.xlane.xlu0 %4433
    %v4435 = vsel %vm562, %v4419, 0.0
    %4436 = vadd.xlane.f32.xlu0 %v4435
    %v4437 = vpop.xlane.xlu0 %4436
    %v4438 = vsel %vm562, %v4420, 0.0
    %4439 = vadd.xlane.f32.xlu0 %v4438
    %v4440 = vpop.xlane.xlu0 %4439
    %v4441 = vsel %vm562, %v4421, 0.0
    %4442 = vadd.xlane.f32.xlu0 %v4441
    %v4443 = vpop.xlane.xlu0 %4442
    %v4444 = vsel %vm562, %v4422, 0.0
    %4445 = vadd.xlane.f32.xlu0 %v4444
    %v4446 = vpop.xlane.xlu0 %4445
    %v4447 = vsel %vm562, %v4423, 0.0
    %4448 = vadd.xlane.f32.xlu0 %v4447
    %v4449 = vpop.xlane.xlu0 %4448
    %v4450 = vsel %vm562, %v4424, 0.0
    %4451 = vadd.xlane.f32.xlu0 %v4450
    %v4452 = vpop.xlane.xlu0 %4451
    %v4453 = vsel %vm562, %v4425, 0.0
    %4454 = vadd.xlane.f32.xlu0 %v4453
    %v4455 = vpop.xlane.xlu0 %4454
    %v4456 = vsel %vm562, %v4426, 0.0
    %4457 = vadd.xlane.f32.xlu0 %v4456
    %v4458 = vpop.xlane.xlu0 %4457
    %v4459 = vsel %vm562, %v4427, 0.0
    %4460 = vadd.xlane.f32.xlu0 %v4459
    %v4461 = vpop.xlane.xlu0 %4460
    %v4462 = vsel %vm562, %v4428, 0.0
    %4463 = vadd.xlane.f32.xlu0 %v4462
    %v4464 = vpop.xlane.xlu0 %4463
    %v4465 = vsel %vm1809, %v4429, 0.0
    %4466 = vadd.xlane.f32.xlu0 %v4465
    %v4467 = vpop.xlane.xlu0 %4466
    %v4468 = vmul.f32 %v4434, %v585
    %v4469 = vmul.f32 %v4437, %v585
    %v4470 = vmul.f32 %v4440, %v585
    %v4471 = vmul.f32 %v4443, %v585
    %v4472 = vmul.f32 %v4446, %v585
    %v4473 = vmul.f32 %v4449, %v585
    %v4474 = vmul.f32 %v4452, %v585
    %v4475 = vmul.f32 %v4455, %v585
    %v4476 = vmul.f32 %v4458, %v585
    %v4477 = vmul.f32 %v4461, %v585
    %v4478 = vmul.f32 %v4464, %v585
    %v4479 = vmul.f32 %v4467, %v585
    %v4480 = vsub.f32 %v4418, %v4468
    %v4481 = vsub.f32 %v4419, %v4469
    %v4482 = vsub.f32 %v4420, %v4470
    %v4483 = vsub.f32 %v4421, %v4471
    %v4484 = vsub.f32 %v4422, %v4472
    %v4485 = vsub.f32 %v4423, %v4473
    %v4486 = vsub.f32 %v4424, %v4474
    %v4487 = vsub.f32 %v4425, %v4475
    %v4488 = vsub.f32 %v4426, %v4476
    %v4489 = vsub.f32 %v4427, %v4477
    %v4490 = vsub.f32 %v4428, %v4478
    %v4491 = vsub.f32 %v4429, %v4479
    %v4492 = vmul.f32 %v4480, %v4480
    %v4493 = vmul.f32 %v4481, %v4481
    %v4494 = vmul.f32 %v4482, %v4482
    %v4495 = vmul.f32 %v4483, %v4483
    %v4496 = vmul.f32 %v4484, %v4484
    %v4497 = vmul.f32 %v4485, %v4485
    %v4498 = vmul.f32 %v4486, %v4486
    %v4499 = vmul.f32 %v4487, %v4487
    %v4500 = vmul.f32 %v4488, %v4488
    %v4501 = vmul.f32 %v4489, %v4489
    %v4502 = vmul.f32 %v4490, %v4490
    %v4503 = vmul.f32 %v4491, %v4491
    %v4504 = vsel %vm562, %v4492, 0.0
    %4505 = vadd.xlane.f32.xlu0 %v4504
    %v4506 = vpop.xlane.xlu0 %4505
    %v4507 = vsel %vm562, %v4493, 0.0
    %4508 = vadd.xlane.f32.xlu0 %v4507
    %v4509 = vpop.xlane.xlu0 %4508
    %v4510 = vsel %vm562, %v4494, 0.0
    %4511 = vadd.xlane.f32.xlu0 %v4510
    %v4512 = vpop.xlane.xlu0 %4511
    %v4513 = vsel %vm562, %v4495, 0.0
    %4514 = vadd.xlane.f32.xlu0 %v4513
    %v4515 = vpop.xlane.xlu0 %4514
    %v4516 = vsel %vm562, %v4496, 0.0
    %4517 = vadd.xlane.f32.xlu0 %v4516
    %v4518 = vpop.xlane.xlu0 %4517
    %v4519 = vsel %vm562, %v4497, 0.0
    %4520 = vadd.xlane.f32.xlu0 %v4519
    %v4521 = vpop.xlane.xlu0 %4520
    %v4522 = vsel %vm562, %v4498, 0.0
    %4523 = vadd.xlane.f32.xlu0 %v4522
    %v4524 = vpop.xlane.xlu0 %4523
    %v4525 = vsel %vm562, %v4499, 0.0
    %4526 = vadd.xlane.f32.xlu0 %v4525
    %v4527 = vpop.xlane.xlu0 %4526
    %v4528 = vsel %vm562, %v4500, 0.0
    %4529 = vadd.xlane.f32.xlu0 %v4528
    %v4530 = vpop.xlane.xlu0 %4529
    %v4531 = vsel %vm562, %v4501, 0.0
    %4532 = vadd.xlane.f32.xlu0 %v4531
    %v4533 = vpop.xlane.xlu0 %4532
    %v4534 = vsel %vm562, %v4502, 0.0
    %4535 = vadd.xlane.f32.xlu0 %v4534
    %v4536 = vpop.xlane.xlu0 %4535
    %v4537 = vsel %vm1809, %v4503, 0.0
    %4538 = vadd.xlane.f32.xlu0 %v4537
    %v4539 = vpop.xlane.xlu0 %4538
    %v4540 = vmul.f32 %v4506, %v585
    %v4541 = vmul.f32 %v4509, %v585
    %v4542 = vmul.f32 %v4512, %v585
    %v4543 = vmul.f32 %v4515, %v585
    %v4544 = vmul.f32 %v4518, %v585
    %v4545 = vmul.f32 %v4521, %v585
    %v4546 = vmul.f32 %v4524, %v585
    %v4547 = vmul.f32 %v4527, %v585
    %v4548 = vmul.f32 %v4530, %v585
    %v4549 = vmul.f32 %v4533, %v585
    %v4550 = vmul.f32 %v4536, %v585
    %v4551 = vmul.f32 %v4539, %v585
    %v4552 = vadd.f32 %v4540, 1e-06
    %v4553 = vadd.f32 %v4541, 1e-06
    %v4554 = vadd.f32 %v4542, 1e-06
    %v4555 = vadd.f32 %v4543, 1e-06
    %v4556 = vadd.f32 %v4544, 1e-06
    %v4557 = vadd.f32 %v4545, 1e-06
    %v4558 = vadd.f32 %v4546, 1e-06
    %v4559 = vadd.f32 %v4547, 1e-06
    %v4560 = vadd.f32 %v4548, 1e-06
    %v4561 = vadd.f32 %v4549, 1e-06
    %v4562 = vadd.f32 %v4550, 1e-06
    %v4563 = vadd.f32 %v4551, 1e-06
    %v4564 = vrsqrt.pop %v4552
    %v4565 = vrsqrt.pop %v4553
    %v4566 = vrsqrt.pop %v4554
    %v4567 = vrsqrt.pop %v4555
    %v4568 = vrsqrt.pop %v4556
    %v4569 = vrsqrt.pop %v4557
    %v4570 = vrsqrt.pop %v4558
    %v4571 = vrsqrt.pop %v4559
    %v4572 = vrsqrt.pop %v4560
    %v4573 = vrsqrt.pop %v4561
    %v4574 = vrsqrt.pop %v4562
    %v4575 = vrsqrt.pop %v4563
    %v4576 = vmul.f32 %v4480, %v4564
    %v4577 = vmul.f32 %v4481, %v4565
    %v4578 = vmul.f32 %v4482, %v4566
    %v4579 = vmul.f32 %v4483, %v4567
    %v4580 = vmul.f32 %v4484, %v4568
    %v4581 = vmul.f32 %v4485, %v4569
    %v4582 = vmul.f32 %v4486, %v4570
    %v4583 = vmul.f32 %v4487, %v4571
    %v4584 = vmul.f32 %v4488, %v4572
    %v4585 = vmul.f32 %v4489, %v4573
    %v4586 = vmul.f32 %v4490, %v4574
    %v4587 = vmul.f32 %v4491, %v4575
    %v4589 = vlaneseq
    %v4590 = vshrl.u32 %v4589, 7
    %v4591 = vsub.s32 0, %v4590
    %v4592 = vrot.slane %v4430, %v4591
    %v4594 = vmul.f32 %v4576, %v4592
    %v4595 = vmul.f32 %v4577, %v4592
    %v4596 = vmul.f32 %v4578, %v4592
    %v4597 = vmul.f32 %v4579, %v4592
    %v4598 = vmul.f32 %v4580, %v4592
    %v4599 = vmul.f32 %v4581, %v4592
    %v4600 = vmul.f32 %v4582, %v4592
    %v4601 = vmul.f32 %v4583, %v4592
    %v4602 = vmul.f32 %v4584, %v4592
    %v4603 = vmul.f32 %v4585, %v4592
    %v4604 = vmul.f32 %v4586, %v4592
    %v4605 = vmul.f32 %v4587, %v4592
    %v4607 = vlaneseq
    %v4608 = vshrl.u32 %v4607, 7
    %v4609 = vsub.s32 0, %v4608
    %v4610 = vrot.slane %v4431, %v4609
    %v4612 = vadd.f32 %v4594, %v4610
    %v4613 = vadd.f32 %v4595, %v4610
    %v4614 = vadd.f32 %v4596, %v4610
    %v4615 = vadd.f32 %v4597, %v4610
    %v4616 = vadd.f32 %v4598, %v4610
    %v4617 = vadd.f32 %v4599, %v4610
    %v4618 = vadd.f32 %v4600, %v4610
    %v4619 = vadd.f32 %v4601, %v4610
    %v4620 = vadd.f32 %v4602, %v4610
    %v4621 = vadd.f32 %v4603, %v4610
    %v4622 = vadd.f32 %v4604, %v4610
    %v4623 = vadd.f32 %v4605, %v4610
    %v4624 = vld [vmem:[#allocation26] sm:$0xff]
    %v4625 = vld [vmem:[#allocation26 + $0x8] sm:$0xff]
    %v4626 = vld [vmem:[#allocation26 + $0x10] sm:$0xff]
    %v4627 = vld [vmem:[#allocation26 + $0x18] sm:$0xff]
    %v4628 = vld [vmem:[#allocation28] sm:$0x1]
    %v4630 = vlaneseq
    %v4631 = vshrl.u32 %v4630, 7
    %v4632 = vsub.s32 0, %v4631
    %v4633 = vrot.slane %v4628, %v4632
    %v4636 = vsel %vm562, %v4612, 0
    %v4639 = vsel %vm562, %v4613, 0
    %v4642 = vsel %vm562, %v4614, 0
    %v4645 = vsel %vm562, %v4615, 0
    %v4648 = vsel %vm562, %v4616, 0
    %v4651 = vsel %vm562, %v4617, 0
    %v4654 = vsel %vm562, %v4618, 0
    %v4657 = vsel %vm562, %v4619, 0
    %v4660 = vsel %vm562, %v4620, 0
    %v4663 = vsel %vm562, %v4621, 0
    %v4666 = vsel %vm562, %v4622, 0
    %v4669 = vsel %vm562, %v4623, 0
    %4671 = vmatprep.subr.mxu0 0.0
    %4672 = vmatpush1.msra.mxu0 %v4624
    %4673 = vmatprep.subr.mxu0 0.0
    %4674 = vmatpush1.msra.mxu0 %v4625
    %4675 = vmatprep.subr.mxu0 0.0
    %4676 = vmatpush1.msra.mxu0 %v4626
    %4677 = vmatprep.subr.mxu0 0.0
    %4678 = vmatpush1.msra.mxu0 %v4627
    %4679 = vmatprep.subr.mxu0 0.0
    %4680 = vmatpush1.msra.mxu0 0.0
    %4681 = vmatprep.subr.mxu0 0.0
    %4682 = vmatpush1.msra.mxu0 0.0
    %4683 = vmatprep.subr.mxu0 0.0
    %4684 = vmatpush1.msra.mxu0 0.0
    %4685 = vmatprep.subr.mxu0 0.0
    %4686 = vmatpush1.msra.mxu0 0.0
    %4687 = vmatprep.subr.mxu0 0.0
    %4688 = vmatpush1.msra.mxu0 0.0
    %4689 = vmatprep.subr.mxu0 0.0
    %4690 = vmatpush1.msra.mxu0 0.0
    %4691 = vmatprep.subr.mxu0 0.0
    %4692 = vmatpush1.msra.mxu0 0.0
    %4693 = vmatprep.subr.mxu0 0.0
    %4694 = vmatpush1.msra.mxu0 0.0
    %4695 = vmatprep.subr.mxu0 0.0
    %4696 = vmatpush1.msra.mxu0 0.0
    %4697 = vmatprep.subr.mxu0 0.0
    %4698 = vmatpush1.msra.mxu0 0.0
    %4699 = vmatprep.subr.mxu0 0.0
    %4700 = vmatpush1.msra.mxu0 0.0
    %4701 = vmatprep.subr.mxu0 0.0
    %4702 = vmatpush1.msra.mxu0 0.0
    %4703 = vmatprep.subr.mxu0 0.0
    %4704 = vmatpush1.msra.mxu0 0.0
    %4705 = vmatprep.subr.mxu0 0.0
    %4706 = vmatpush1.msra.mxu0 0.0
    %4707 = vmatprep.subr.mxu0 0.0
    %4708 = vmatpush1.msra.mxu0 0.0
    %4709 = vmatprep.subr.mxu0 0.0
    %4710 = vmatpush1.msra.mxu0 0.0
    %4711 = vmatprep.subr.mxu0 0.0
    %4712 = vmatpush1.msra.mxu0 0.0
    %4713 = vmatprep.subr.mxu0 0.0
    %4714 = vmatpush1.msra.mxu0 0.0
    %4715 = vmatprep.subr.mxu0 0.0
    %4716 = vmatpush1.msra.mxu0 0.0
    %4717 = vmatprep.subr.mxu0 0.0
    %4718 = vmatpush1.msra.mxu0 0.0
    %4719 = vmatprep.subr.mxu0 0.0
    %4720 = vmatpush1.msra.mxu0 0.0
    %4721 = vmatprep.subr.mxu0 0.0
    %4722 = vmatpush1.msra.mxu0 0.0
    %4723 = vmatprep.subr.mxu0 0.0
    %4724 = vmatpush1.msra.mxu0 0.0
    %4725 = vmatprep.subr.mxu0 0.0
    %4726 = vmatpush1.msra.mxu0 0.0
    %4727 = vmatprep.subr.mxu0 0.0
    %4728 = vmatpush1.msra.mxu0 0.0
    %4729 = vmatprep.subr.mxu0 0.0
    %4730 = vmatpush1.msra.mxu0 0.0
    %4731 = vmatprep.subr.mxu0 0.0
    %4732 = vmatpush1.msra.mxu0 0.0
    %4733 = vmatprep.subr.mxu0 0.0
    %4734 = vmatpush1.msra.mxu0 0.0
    %4735 = vmatprep.mubr.f32.mxu0 0.0
    %4736 = vmatmul.mubr.f32.gmra.mrb[0].mxu0 %v4636
    %v4737 = vpop.f32.mrb[0].mxu0
    %v4738 = vadd.f32 %v4633, %v4737
    %v4739 = vpop.f32.mrb[0].mxu0
    %4740 = vmatprep.mubr.f32.mxu0 0.0
    %4741 = vmatmul.mubr.f32.gmra.mrb[0].mxu0 %v4639
    %v4742 = vpop.f32.mrb[0].mxu0
    %v4743 = vadd.f32 %v4633, %v4742
    %v4744 = vpop.f32.mrb[0].mxu0
    %4745 = vmatprep.mubr.f32.mxu0 0.0
    %4746 = vmatmul.mubr.f32.gmra.mrb[0].mxu0 %v4642
    %v4747 = vpop.f32.mrb[0].mxu0
    %v4748 = vadd.f32 %v4633, %v4747
    %v4749 = vpop.f32.mrb[0].mxu0
    %4750 = vmatprep.mubr.f32.mxu0 0.0
    %4751 = vmatmul.mubr.f32.gmra.mrb[0].mxu0 %v4645
    %v4752 = vpop.f32.mrb[0].mxu0
    %v4753 = vadd.f32 %v4633, %v4752
    %v4754 = vpop.f32.mrb[0].mxu0
    %4755 = vmatprep.mubr.f32.mxu0 0.0
    %4756 = vmatmul.mubr.f32.gmra.mrb[0].mxu0 %v4648
    %v4757 = vpop.f32.mrb[0].mxu0
    %v4758 = vadd.f32 %v4633, %v4757
    %v4759 = vpop.f32.mrb[0].mxu0
    %4760 = vmatprep.mubr.f32.mxu0 0.0
    %4761 = vmatmul.mubr.f32.gmra.mrb[0].mxu0 %v4651
    %v4762 = vpop.f32.mrb[0].mxu0
    %v4763 = vadd.f32 %v4633, %v4762
    %v4764 = vpop.f32.mrb[0].mxu0
    %4765 = vmatprep.mubr.f32.mxu0 0.0
    %4766 = vmatmul.mubr.f32.gmra.mrb[0].mxu0 %v4654
    %v4767 = vpop.f32.mrb[0].mxu0
    %v4768 = vadd.f32 %v4633, %v4767
    %v4769 = vpop.f32.mrb[0].mxu0
    %4770 = vmatprep.mubr.f32.mxu0 0.0
    %4771 = vmatmul.mubr.f32.gmra.mrb[0].mxu0 %v4657
    %v4772 = vpop.f32.mrb[0].mxu0
    %v4773 = vadd.f32 %v4633, %v4772
    %v4774 = vpop.f32.mrb[0].mxu0
    %4775 = vmatprep.mubr.f32.mxu0 0.0
    %4776 = vmatmul.mubr.f32.gmra.mrb[0].mxu0 %v4660
    %v4777 = vpop.f32.mrb[0].mxu0
    %v4778 = vadd.f32 %v4633, %v4777
    %v4779 = vpop.f32.mrb[0].mxu0
    %4780 = vmatprep.mubr.f32.mxu0 0.0
    %4781 = vmatmul.mubr.f32.gmra.mrb[0].mxu0 %v4663
    %v4782 = vpop.f32.mrb[0].mxu0
    %v4783 = vadd.f32 %v4633, %v4782
    %v4784 = vpop.f32.mrb[0].mxu0
    %4785 = vmatprep.mubr.f32.mxu0 0.0
    %4786 = vmatmul.mubr.f32.gmra.mrb[0].mxu0 %v4666
    %v4787 = vpop.f32.mrb[0].mxu0
    %v4788 = vadd.f32 %v4633, %v4787
    %v4789 = vpop.f32.mrb[0].mxu0
    %4790 = vmatprep.mubr.f32.mxu0 0.0
    %4791 = vmatmul.mubr.f32.gmra.mrb[0].mxu0 %v4669
    %v4792 = vpop.f32.mrb[0].mxu0
    %v4793 = vadd.f32 %v4633, %v4792
    %v4794 = vpop.f32.mrb[0].mxu0
    %4795 = vdwg.mxu0
    %v4796 = vmul.f32 %v4738, %v4738
    %v4797 = vmul.f32 %v4743, %v4743
    %v4798 = vmul.f32 %v4748, %v4748
    %v4799 = vmul.f32 %v4753, %v4753
    %v4800 = vmul.f32 %v4758, %v4758
    %v4801 = vmul.f32 %v4763, %v4763
    %v4802 = vmul.f32 %v4768, %v4768
    %v4803 = vmul.f32 %v4773, %v4773
    %v4804 = vmul.f32 %v4778, %v4778
    %v4805 = vmul.f32 %v4783, %v4783
    %v4806 = vmul.f32 %v4788, %v4788
    %v4807 = vmul.f32 %v4793, %v4793
    %v4808 = vmul.f32 %v4738, %v4796
    %v4809 = vmul.f32 %v4743, %v4797
    %v4810 = vmul.f32 %v4748, %v4798
    %v4811 = vmul.f32 %v4753, %v4799
    %v4812 = vmul.f32 %v4758, %v4800
    %v4813 = vmul.f32 %v4763, %v4801
    %v4814 = vmul.f32 %v4768, %v4802
    %v4815 = vmul.f32 %v4773, %v4803
    %v4816 = vmul.f32 %v4778, %v4804
    %v4817 = vmul.f32 %v4783, %v4805
    %v4818 = vmul.f32 %v4788, %v4806
    %v4819 = vmul.f32 %v4793, %v4807
    %v4820 = vmul.f32 %v4808, 0.044715
    %v4821 = vmul.f32 %v4809, 0.044715
    %v4822 = vmul.f32 %v4810, 0.044715
    %v4823 = vmul.f32 %v4811, 0.044715
    %v4824 = vmul.f32 %v4812, 0.044715
    %v4825 = vmul.f32 %v4813, 0.044715
    %v4826 = vmul.f32 %v4814, 0.044715
    %v4827 = vmul.f32 %v4815, 0.044715
    %v4828 = vmul.f32 %v4816, 0.044715
    %v4829 = vmul.f32 %v4817, 0.044715
    %v4830 = vmul.f32 %v4818, 0.044715
    %v4831 = vmul.f32 %v4819, 0.044715
    %v4832 = vadd.f32 %v4738, %v4820
    %v4833 = vadd.f32 %v4743, %v4821
    %v4834 = vadd.f32 %v4748, %v4822
    %v4835 = vadd.f32 %v4753, %v4823
    %v4836 = vadd.f32 %v4758, %v4824
    %v4837 = vadd.f32 %v4763, %v4825
    %v4838 = vadd.f32 %v4768, %v4826
    %v4839 = vadd.f32 %v4773, %v4827
    %v4840 = vadd.f32 %v4778, %v4828
    %v4841 = vadd.f32 %v4783, %v4829
    %v4842 = vadd.f32 %v4788, %v4830
    %v4843 = vadd.f32 %v4793, %v4831
    %v4844 = vmul.f32 %v4832, 0.7978846
    %v4845 = vmul.f32 %v4833, 0.7978846
    %v4846 = vmul.f32 %v4834, 0.7978846
    %v4847 = vmul.f32 %v4835, 0.7978846
    %v4848 = vmul.f32 %v4836, 0.7978846
    %v4849 = vmul.f32 %v4837, 0.7978846
    %v4850 = vmul.f32 %v4838, 0.7978846
    %v4851 = vmul.f32 %v4839, 0.7978846
    %v4852 = vmul.f32 %v4840, 0.7978846
    %v4853 = vmul.f32 %v4841, 0.7978846
    %v4854 = vmul.f32 %v4842, 0.7978846
    %v4855 = vmul.f32 %v4843, 0.7978846
    %v4856 = vtanh.pop %v4844
    %v4857 = vtanh.pop %v4845
    %v4858 = vtanh.pop %v4846
    %v4859 = vtanh.pop %v4847
    %v4860 = vtanh.pop %v4848
    %v4861 = vtanh.pop %v4849
    %v4862 = vtanh.pop %v4850
    %v4863 = vtanh.pop %v4851
    %v4864 = vtanh.pop %v4852
    %v4865 = vtanh.pop %v4853
    %v4866 = vtanh.pop %v4854
    %v4867 = vtanh.pop %v4855
    %v4868 = vadd.f32 %v4856, 1.0
    %v4869 = vadd.f32 %v4857, 1.0
    %v4870 = vadd.f32 %v4858, 1.0
    %v4871 = vadd.f32 %v4859, 1.0
    %v4872 = vadd.f32 %v4860, 1.0
    %v4873 = vadd.f32 %v4861, 1.0
    %v4874 = vadd.f32 %v4862, 1.0
    %v4875 = vadd.f32 %v4863, 1.0
    %v4876 = vadd.f32 %v4864, 1.0
    %v4877 = vadd.f32 %v4865, 1.0
    %v4878 = vadd.f32 %v4866, 1.0
    %v4879 = vadd.f32 %v4867, 1.0
    %v4880 = vmul.f32 %v4868, 0.5
    %v4881 = vmul.f32 %v4869, 0.5
    %v4882 = vmul.f32 %v4870, 0.5
    %v4883 = vmul.f32 %v4871, 0.5
    %v4884 = vmul.f32 %v4872, 0.5
    %v4885 = vmul.f32 %v4873, 0.5
    %v4886 = vmul.f32 %v4874, 0.5
    %v4887 = vmul.f32 %v4875, 0.5
    %v4888 = vmul.f32 %v4876, 0.5
    %v4889 = vmul.f32 %v4877, 0.5
    %v4890 = vmul.f32 %v4878, 0.5
    %v4891 = vmul.f32 %v4879, 0.5
    %v4892 = vmul.f32 %v4738, %v4880
    %v4893 = vmul.f32 %v4743, %v4881
    %v4894 = vmul.f32 %v4748, %v4882
    %v4895 = vmul.f32 %v4753, %v4883
    %v4896 = vmul.f32 %v4758, %v4884
    %v4897 = vmul.f32 %v4763, %v4885
    %v4898 = vmul.f32 %v4768, %v4886
    %v4899 = vmul.f32 %v4773, %v4887
    %v4900 = vmul.f32 %v4778, %v4888
    %v4901 = vmul.f32 %v4783, %v4889
    %v4902 = vmul.f32 %v4788, %v4890
    %v4903 = vmul.f32 %v4793, %v4891
    %v4904 = vld [vmem:[#allocation29] sm:$0xff]
    %v4905 = vld [vmem:[#allocation29 + $0x8] sm:$0xff]
    %v4906 = vld [vmem:[#allocation29 + $0x10] sm:$0xff]
    %v4907 = vld [vmem:[#allocation29 + $0x18] sm:$0xff]
    %v4908 = vld [vmem:[#allocation29 + $0x20] sm:$0xff]
    %v4909 = vld [vmem:[#allocation29 + $0x28] sm:$0xff]
    %v4910 = vld [vmem:[#allocation29 + $0x30] sm:$0xff]
    %v4911 = vld [vmem:[#allocation29 + $0x38] sm:$0xff]
    %v4912 = vld [vmem:[#allocation31] sm:$0x1]
    %v4914 = vlaneseq
    %v4915 = vshrl.u32 %v4914, 7
    %v4916 = vsub.s32 0, %v4915
    %v4917 = vrot.slane %v4912, %v4916
    %vm4919 = vcmask 523264
    %v4921 = vsel %vm4919, %v4892, 0
    %v4924 = vsel %vm4919, %v4893, 0
    %v4927 = vsel %vm4919, %v4894, 0
    %v4930 = vsel %vm4919, %v4895, 0
    %v4933 = vsel %vm4919, %v4896, 0
    %v4936 = vsel %vm4919, %v4897, 0
    %v4939 = vsel %vm4919, %v4898, 0
    %v4942 = vsel %vm4919, %v4899, 0
    %v4945 = vsel %vm4919, %v4900, 0
    %v4948 = vsel %vm4919, %v4901, 0
    %v4951 = vsel %vm4919, %v4902, 0
    %v4954 = vsel %vm4919, %v4903, 0
    %4956 = vmatprep.subr.mxu0 0.0
    %4957 = vmatpush1.msra.mxu0 %v4904
    %4958 = vmatprep.subr.mxu0 0.0
    %4959 = vmatpush1.msra.mxu0 %v4905
    %4960 = vmatprep.subr.mxu0 0.0
    %4961 = vmatpush1.msra.mxu0 %v4906
    %4962 = vmatprep.subr.mxu0 0.0
    %4963 = vmatpush1.msra.mxu0 %v4907
    %4964 = vmatprep.subr.mxu0 0.0
    %4965 = vmatpush1.msra.mxu0 %v4908
    %4966 = vmatprep.subr.mxu0 0.0
    %4967 = vmatpush1.msra.mxu0 %v4909
    %4968 = vmatprep.subr.mxu0 0.0
    %4969 = vmatpush1.msra.mxu0 %v4910
    %4970 = vmatprep.subr.mxu0 0.0
    %4971 = vmatpush1.msra.mxu0 %v4911
    %4972 = vmatprep.subr.mxu0 0.0
    %4973 = vmatpush1.msra.mxu0 0.0
    %4974 = vmatprep.subr.mxu0 0.0
    %4975 = vmatpush1.msra.mxu0 0.0
    %4976 = vmatprep.subr.mxu0 0.0
    %4977 = vmatpush1.msra.mxu0 0.0
    %4978 = vmatprep.subr.mxu0 0.0
    %4979 = vmatpush1.msra.mxu0 0.0
    %4980 = vmatprep.subr.mxu0 0.0
    %4981 = vmatpush1.msra.mxu0 0.0
    %4982 = vmatprep.subr.mxu0 0.0
    %4983 = vmatpush1.msra.mxu0 0.0
    %4984 = vmatprep.subr.mxu0 0.0
    %4985 = vmatpush1.msra.mxu0 0.0
    %4986 = vmatprep.subr.mxu0 0.0
    %4987 = vmatpush1.msra.mxu0 0.0
    %4988 = vmatprep.subr.mxu0 0.0
    %4989 = vmatpush1.msra.mxu0 0.0
    %4990 = vmatprep.subr.mxu0 0.0
    %4991 = vmatpush1.msra.mxu0 0.0
    %4992 = vmatprep.subr.mxu0 0.0
    %4993 = vmatpush1.msra.mxu0 0.0
    %4994 = vmatprep.subr.mxu0 0.0
    %4995 = vmatpush1.msra.mxu0 0.0
    %4996 = vmatprep.subr.mxu0 0.0
    %4997 = vmatpush1.msra.mxu0 0.0
    %4998 = vmatprep.subr.mxu0 0.0
    %4999 = vmatpush1.msra.mxu0 0.0
    %5000 = vmatprep.subr.mxu0 0.0
    %5001 = vmatpush1.msra.mxu0 0.0
    %5002 = vmatprep.subr.mxu0 0.0
    %5003 = vmatpush1.msra.mxu0 0.0
    %5004 = vmatprep.subr.mxu0 0.0
    %5005 = vmatpush1.msra.mxu0 0.0
    %5006 = vmatprep.subr.mxu0 0.0
    %5007 = vmatpush1.msra.mxu0 0.0
    %5008 = vmatprep.subr.mxu0 0.0
    %5009 = vmatpush1.msra.mxu0 0.0
    %5010 = vmatprep.subr.mxu0 0.0
    %5011 = vmatpush1.msra.mxu0 0.0
    %5012 = vmatprep.subr.mxu0 0.0
    %5013 = vmatpush1.msra.mxu0 0.0
    %5014 = vmatprep.subr.mxu0 0.0
    %5015 = vmatpush1.msra.mxu0 0.0
    %5016 = vmatprep.subr.mxu0 0.0
    %5017 = vmatpush1.msra.mxu0 0.0
    %5018 = vmatprep.subr.mxu0 0.0
    %5019 = vmatpush1.msra.mxu0 0.0
    %5020 = vmatprep.mubr.f32.mxu0 0.0
    %5021 = vmatmul.mubr.f32.gmra.mrb[0].mxu0 %v4921
    %v5022 = vpop.f32.mrb[0].mxu0
    %v5023 = vadd.f32 %v4917, %v5022
    %v5024 = vpop.f32.mrb[0].mxu0
    %5025 = vmatprep.mubr.f32.mxu0 0.0
    %5026 = vmatmul.mubr.f32.gmra.mrb[0].mxu0 %v4924
    %v5027 = vpop.f32.mrb[0].mxu0
    %v5028 = vadd.f32 %v4917, %v5027
    %v5029 = vpop.f32.mrb[0].mxu0
    %5030 = vmatprep.mubr.f32.mxu0 0.0
    %5031 = vmatmul.mubr.f32.gmra.mrb[0].mxu0 %v4927
    %v5032 = vpop.f32.mrb[0].mxu0
    %v5033 = vadd.f32 %v4917, %v5032
    %v5034 = vpop.f32.mrb[0].mxu0
    %5035 = vmatprep.mubr.f32.mxu0 0.0
    %5036 = vmatmul.mubr.f32.gmra.mrb[0].mxu0 %v4930
    %v5037 = vpop.f32.mrb[0].mxu0
    %v5038 = vadd.f32 %v4917, %v5037
    %v5039 = vpop.f32.mrb[0].mxu0
    %5040 = vmatprep.mubr.f32.mxu0 0.0
    %5041 = vmatmul.mubr.f32.gmra.mrb[0].mxu0 %v4933
    %v5042 = vpop.f32.mrb[0].mxu0
    %v5043 = vadd.f32 %v4917, %v5042
    %v5044 = vpop.f32.mrb[0].mxu0
    %5045 = vmatprep.mubr.f32.mxu0 0.0
    %5046 = vmatmul.mubr.f32.gmra.mrb[0].mxu0 %v4936
    %v5047 = vpop.f32.mrb[0].mxu0
    %v5048 = vadd.f32 %v4917, %v5047
    %v5049 = vpop.f32.mrb[0].mxu0
    %5050 = vmatprep.mubr.f32.mxu0 0.0
    %5051 = vmatmul.mubr.f32.gmra.mrb[0].mxu0 %v4939
    %v5052 = vpop.f32.mrb[0].mxu0
    %v5053 = vadd.f32 %v4917, %v5052
    %v5054 = vpop.f32.mrb[0].mxu0
    %5055 = vmatprep.mubr.f32.mxu0 0.0
    %5056 = vmatmul.mubr.f32.gmra.mrb[0].mxu0 %v4942
    %v5057 = vpop.f32.mrb[0].mxu0
    %v5058 = vadd.f32 %v4917, %v5057
    %v5059 = vpop.f32.mrb[0].mxu0
    %5060 = vmatprep.mubr.f32.mxu0 0.0
    %5061 = vmatmul.mubr.f32.gmra.mrb[0].mxu0 %v4945
    %v5062 = vpop.f32.mrb[0].mxu0
    %v5063 = vadd.f32 %v4917, %v5062
    %v5064 = vpop.f32.mrb[0].mxu0
    %5065 = vmatprep.mubr.f32.mxu0 0.0
    %5066 = vmatmul.mubr.f32.gmra.mrb[0].mxu0 %v4948
    %v5067 = vpop.f32.mrb[0].mxu0
    %v5068 = vadd.f32 %v4917, %v5067
    %v5069 = vpop.f32.mrb[0].mxu0
    %5070 = vmatprep.mubr.f32.mxu0 0.0
    %5071 = vmatmul.mubr.f32.gmra.mrb[0].mxu0 %v4951
    %v5072 = vpop.f32.mrb[0].mxu0
    %v5073 = vadd.f32 %v4917, %v5072
    %v5074 = vpop.f32.mrb[0].mxu0
    %5075 = vmatprep.mubr.f32.mxu0 0.0
    %5076 = vmatmul.mubr.f32.gmra.mrb[0].mxu0 %v4954
    %v5077 = vpop.f32.mrb[0].mxu0
    %v5078 = vadd.f32 %v4917, %v5077
    %v5079 = vpop.f32.mrb[0].mxu0
    %5080 = vdwg.mxu0
    %v5081 = vadd.f32 %v5023, %v4612
    %v5082 = vadd.f32 %v5028, %v4613
    %v5083 = vadd.f32 %v5033, %v4614
    %v5084 = vadd.f32 %v5038, %v4615
    %v5085 = vadd.f32 %v5043, %v4616
    %v5086 = vadd.f32 %v5048, %v4617
    %v5087 = vadd.f32 %v5053, %v4618
    %v5088 = vadd.f32 %v5058, %v4619
    %v5089 = vadd.f32 %v5063, %v4620
    %v5090 = vadd.f32 %v5068, %v4621
    %v5091 = vadd.f32 %v5073, %v4622
    %v5092 = vadd.f32 %v5078, %v4623
    %v5093 = vld [vmem:[%s61] sm:$0x1]
    %v5094 = vld [vmem:[%s63] sm:$0x1]
    %v5095 = vsel %vm562, %v5081, 0.0
    %5096 = vadd.xlane.f32.xlu0 %v5095
    %v5097 = vpop.xlane.xlu0 %5096
    %v5098 = vsel %vm562, %v5082, 0.0
    %5099 = vadd.xlane.f32.xlu0 %v5098
    %v5100 = vpop.xlane.xlu0 %5099
    %v5101 = vsel %vm562, %v5083, 0.0
    %5102 = vadd.xlane.f32.xlu0 %v5101
    %v5103 = vpop.xlane.xlu0 %5102
    %v5104 = vsel %vm562, %v5084, 0.0
    %5105 = vadd.xlane.f32.xlu0 %v5104
    %v5106 = vpop.xlane.xlu0 %5105
    %v5107 = vsel %vm562, %v5085, 0.0
    %5108 = vadd.xlane.f32.xlu0 %v5107
    %v5109 = vpop.xlane.xlu0 %5108
    %v5110 = vsel %vm562, %v5086, 0.0
    %5111 = vadd.xlane.f32.xlu0 %v5110
    %v5112 = vpop.xlane.xlu0 %5111
    %v5113 = vsel %vm562, %v5087, 0.0
    %5114 = vadd.xlane.f32.xlu0 %v5113
    %v5115 = vpop.xlane.xlu0 %5114
    %v5116 = vsel %vm562, %v5088, 0.0
    %5117 = vadd.xlane.f32.xlu0 %v5116
    %v5118 = vpop.xlane.xlu0 %5117
    %v5119 = vsel %vm562, %v5089, 0.0
    %5120 = vadd.xlane.f32.xlu0 %v5119
    %v5121 = vpop.xlane.xlu0 %5120
    %v5122 = vsel %vm562, %v5090, 0.0
    %5123 = vadd.xlane.f32.xlu0 %v5122
    %v5124 = vpop.xlane.xlu0 %5123
    %v5125 = vsel %vm562, %v5091, 0.0
    %5126 = vadd.xlane.f32.xlu0 %v5125
    %v5127 = vpop.xlane.xlu0 %5126
    %v5128 = vsel %vm1809, %v5092, 0.0
    %5129 = vadd.xlane.f32.xlu0 %v5128
    %v5130 = vpop.xlane.xlu0 %5129
    %v5131 = vmul.f32 %v5097, %v585
    %v5132 = vmul.f32 %v5100, %v585
    %v5133 = vmul.f32 %v5103, %v585
    %v5134 = vmul.f32 %v5106, %v585
    %v5135 = vmul.f32 %v5109, %v585
    %v5136 = vmul.f32 %v5112, %v585
    %v5137 = vmul.f32 %v5115, %v585
    %v5138 = vmul.f32 %v5118, %v585
    %v5139 = vmul.f32 %v5121, %v585
    %v5140 = vmul.f32 %v5124, %v585
    %v5141 = vmul.f32 %v5127, %v585
    %v5142 = vmul.f32 %v5130, %v585
    %v5143 = vsub.f32 %v5081, %v5131
    %v5144 = vsub.f32 %v5082, %v5132
    %v5145 = vsub.f32 %v5083, %v5133
    %v5146 = vsub.f32 %v5084, %v5134
    %v5147 = vsub.f32 %v5085, %v5135
    %v5148 = vsub.f32 %v5086, %v5136
    %v5149 = vsub.f32 %v5087, %v5137
    %v5150 = vsub.f32 %v5088, %v5138
    %v5151 = vsub.f32 %v5089, %v5139
    %v5152 = vsub.f32 %v5090, %v5140
    %v5153 = vsub.f32 %v5091, %v5141
    %v5154 = vsub.f32 %v5092, %v5142
    %v5155 = vmul.f32 %v5143, %v5143
    %v5156 = vmul.f32 %v5144, %v5144
    %v5157 = vmul.f32 %v5145, %v5145
    %v5158 = vmul.f32 %v5146, %v5146
    %v5159 = vmul.f32 %v5147, %v5147
    %v5160 = vmul.f32 %v5148, %v5148
    %v5161 = vmul.f32 %v5149, %v5149
    %v5162 = vmul.f32 %v5150, %v5150
    %v5163 = vmul.f32 %v5151, %v5151
    %v5164 = vmul.f32 %v5152, %v5152
    %v5165 = vmul.f32 %v5153, %v5153
    %v5166 = vmul.f32 %v5154, %v5154
    %v5167 = vsel %vm562, %v5155, 0.0
    %5168 = vadd.xlane.f32.xlu0 %v5167
    %v5169 = vpop.xlane.xlu0 %5168
    %v5170 = vsel %vm562, %v5156, 0.0
    %5171 = vadd.xlane.f32.xlu0 %v5170
    %v5172 = vpop.xlane.xlu0 %5171
    %v5173 = vsel %vm562, %v5157, 0.0
    %5174 = vadd.xlane.f32.xlu0 %v5173
    %v5175 = vpop.xlane.xlu0 %5174
    %v5176 = vsel %vm562, %v5158, 0.0
    %5177 = vadd.xlane.f32.xlu0 %v5176
    %v5178 = vpop.xlane.xlu0 %5177
    %v5179 = vsel %vm562, %v5159, 0.0
    %5180 = vadd.xlane.f32.xlu0 %v5179
    %v5181 = vpop.xlane.xlu0 %5180
    %v5182 = vsel %vm562, %v5160, 0.0
    %5183 = vadd.xlane.f32.xlu0 %v5182
    %v5184 = vpop.xlane.xlu0 %5183
    %v5185 = vsel %vm562, %v5161, 0.0
    %5186 = vadd.xlane.f32.xlu0 %v5185
    %v5187 = vpop.xlane.xlu0 %5186
    %v5188 = vsel %vm562, %v5162, 0.0
    %5189 = vadd.xlane.f32.xlu0 %v5188
    %v5190 = vpop.xlane.xlu0 %5189
    %v5191 = vsel %vm562, %v5163, 0.0
    %5192 = vadd.xlane.f32.xlu0 %v5191
    %v5193 = vpop.xlane.xlu0 %5192
    %v5194 = vsel %vm562, %v5164, 0.0
    %5195 = vadd.xlane.f32.xlu0 %v5194
    %v5196 = vpop.xlane.xlu0 %5195
    %v5197 = vsel %vm562, %v5165, 0.0
    %5198 = vadd.xlane.f32.xlu0 %v5197
    %v5199 = vpop.xlane.xlu0 %5198
    %v5200 = vsel %vm1809, %v5166, 0.0
    %5201 = vadd.xlane.f32.xlu0 %v5200
    %v5202 = vpop.xlane.xlu0 %5201
    %v5203 = vmul.f32 %v5169, %v585
    %v5204 = vmul.f32 %v5172, %v585
    %v5205 = vmul.f32 %v5175, %v585
    %v5206 = vmul.f32 %v5178, %v585
    %v5207 = vmul.f32 %v5181, %v585
    %v5208 = vmul.f32 %v5184, %v585
    %v5209 = vmul.f32 %v5187, %v585
    %v5210 = vmul.f32 %v5190, %v585
    %v5211 = vmul.f32 %v5193, %v585
    %v5212 = vmul.f32 %v5196, %v585
    %v5213 = vmul.f32 %v5199, %v585
    %v5214 = vmul.f32 %v5202, %v585
    %v5215 = vadd.f32 %v5203, 1e-06
    %v5216 = vadd.f32 %v5204, 1e-06
    %v5217 = vadd.f32 %v5205, 1e-06
    %v5218 = vadd.f32 %v5206, 1e-06
    %v5219 = vadd.f32 %v5207, 1e-06
    %v5220 = vadd.f32 %v5208, 1e-06
    %v5221 = vadd.f32 %v5209, 1e-06
    %v5222 = vadd.f32 %v5210, 1e-06
    %v5223 = vadd.f32 %v5211, 1e-06
    %v5224 = vadd.f32 %v5212, 1e-06
    %v5225 = vadd.f32 %v5213, 1e-06
    %v5226 = vadd.f32 %v5214, 1e-06
    %v5227 = vrsqrt.pop %v5215
    %v5228 = vrsqrt.pop %v5216
    %v5229 = vrsqrt.pop %v5217
    %v5230 = vrsqrt.pop %v5218
    %v5231 = vrsqrt.pop %v5219
    %v5232 = vrsqrt.pop %v5220
    %v5233 = vrsqrt.pop %v5221
    %v5234 = vrsqrt.pop %v5222
    %v5235 = vrsqrt.pop %v5223
    %v5236 = vrsqrt.pop %v5224
    %v5237 = vrsqrt.pop %v5225
    %v5238 = vrsqrt.pop %v5226
    %v5239 = vmul.f32 %v5143, %v5227
    %v5240 = vmul.f32 %v5144, %v5228
    %v5241 = vmul.f32 %v5145, %v5229
    %v5242 = vmul.f32 %v5146, %v5230
    %v5243 = vmul.f32 %v5147, %v5231
    %v5244 = vmul.f32 %v5148, %v5232
    %v5245 = vmul.f32 %v5149, %v5233
    %v5246 = vmul.f32 %v5150, %v5234
    %v5247 = vmul.f32 %v5151, %v5235
    %v5248 = vmul.f32 %v5152, %v5236
    %v5249 = vmul.f32 %v5153, %v5237
    %v5250 = vmul.f32 %v5154, %v5238
    %v5252 = vlaneseq
    %v5253 = vshrl.u32 %v5252, 7
    %v5254 = vsub.s32 0, %v5253
    %v5255 = vrot.slane %v5093, %v5254
    %v5257 = vmul.f32 %v5239, %v5255
    %v5258 = vmul.f32 %v5240, %v5255
    %v5259 = vmul.f32 %v5241, %v5255
    %v5260 = vmul.f32 %v5242, %v5255
    %v5261 = vmul.f32 %v5243, %v5255
    %v5262 = vmul.f32 %v5244, %v5255
    %v5263 = vmul.f32 %v5245, %v5255
    %v5264 = vmul.f32 %v5246, %v5255
    %v5265 = vmul.f32 %v5247, %v5255
    %v5266 = vmul.f32 %v5248, %v5255
    %v5267 = vmul.f32 %v5249, %v5255
    %v5268 = vmul.f32 %v5250, %v5255
    %v5270 = vlaneseq
    %v5271 = vshrl.u32 %v5270, 7
    %v5272 = vsub.s32 0, %v5271
    %v5273 = vrot.slane %v5094, %v5272
    %v5275 = vadd.f32 %v5257, %v5273
    %v5276 = vadd.f32 %v5258, %v5273
    %v5277 = vadd.f32 %v5259, %v5273
    %v5278 = vadd.f32 %v5260, %v5273
    %v5279 = vadd.f32 %v5261, %v5273
    %v5280 = vadd.f32 %v5262, %v5273
    %v5281 = vadd.f32 %v5263, %v5273
    %v5282 = vadd.f32 %v5264, %v5273
    %v5283 = vadd.f32 %v5265, %v5273
    %v5284 = vadd.f32 %v5266, %v5273
    %v5285 = vadd.f32 %v5267, %v5273
    %v5286 = vadd.f32 %v5268, %v5273
    %s5287 = scalar_lea.vmem %s39, 64
    %v5288 = vld [vmem:[%s5287] sm:$0xff]
    %v5289 = vld [vmem:[%s5287 + $0x8] sm:$0xff]
    %v5290 = vld [vmem:[%s5287 + $0x10] sm:$0xff]
    %v5291 = vld [vmem:[%s5287 + $0x18] sm:$0xff]
    %v5293 = vsel %vm562, %v5275, 0
    %v5296 = vsel %vm562, %v5276, 0
    %v5299 = vsel %vm562, %v5277, 0
    %v5302 = vsel %vm562, %v5278, 0
    %v5305 = vsel %vm562, %v5279, 0
    %v5308 = vsel %vm562, %v5280, 0
    %v5311 = vsel %vm562, %v5281, 0
    %v5314 = vsel %vm562, %v5282, 0
    %v5317 = vsel %vm562, %v5283, 0
    %v5320 = vsel %vm562, %v5284, 0
    %v5323 = vsel %vm562, %v5285, 0
    %v5326 = vsel %vm562, %v5286, 0
    %5328 = vmatprep.subr.mxu0 0.0
    %5329 = vmatpush1.msra.mxu0 %v5288
    %5330 = vmatprep.subr.mxu0 0.0
    %5331 = vmatpush1.msra.mxu0 %v5289
    %5332 = vmatprep.subr.mxu0 0.0
    %5333 = vmatpush1.msra.mxu0 %v5290
    %5334 = vmatprep.subr.mxu0 0.0
    %5335 = vmatpush1.msra.mxu0 %v5291
    %5336 = vmatprep.subr.mxu0 0.0
    %5337 = vmatpush1.msra.mxu0 0.0
    %5338 = vmatprep.subr.mxu0 0.0
    %5339 = vmatpush1.msra.mxu0 0.0
    %5340 = vmatprep.subr.mxu0 0.0
    %5341 = vmatpush1.msra.mxu0 0.0
    %5342 = vmatprep.subr.mxu0 0.0
    %5343 = vmatpush1.msra.mxu0 0.0
    %5344 = vmatprep.subr.mxu0 0.0
    %5345 = vmatpush1.msra.mxu0 0.0
    %5346 = vmatprep.subr.mxu0 0.0
    %5347 = vmatpush1.msra.mxu0 0.0
    %5348 = vmatprep.subr.mxu0 0.0
    %5349 = vmatpush1.msra.mxu0 0.0
    %5350 = vmatprep.subr.mxu0 0.0
    %5351 = vmatpush1.msra.mxu0 0.0
    %5352 = vmatprep.subr.mxu0 0.0
    %5353 = vmatpush1.msra.mxu0 0.0
    %5354 = vmatprep.subr.mxu0 0.0
    %5355 = vmatpush1.msra.mxu0 0.0
    %5356 = vmatprep.subr.mxu0 0.0
    %5357 = vmatpush1.msra.mxu0 0.0
    %5358 = vmatprep.subr.mxu0 0.0
    %5359 = vmatpush1.msra.mxu0 0.0
    %5360 = vmatprep.subr.mxu0 0.0
    %5361 = vmatpush1.msra.mxu0 0.0
    %5362 = vmatprep.subr.mxu0 0.0
    %5363 = vmatpush1.msra.mxu0 0.0
    %5364 = vmatprep.subr.mxu0 0.0
    %5365 = vmatpush1.msra.mxu0 0.0
    %5366 = vmatprep.subr.mxu0 0.0
    %5367 = vmatpush1.msra.mxu0 0.0
    %5368 = vmatprep.subr.mxu0 0.0
    %5369 = vmatpush1.msra.mxu0 0.0
    %5370 = vmatprep.subr.mxu0 0.0
    %5371 = vmatpush1.msra.mxu0 0.0
    %5372 = vmatprep.subr.mxu0 0.0
    %5373 = vmatpush1.msra.mxu0 0.0
    %5374 = vmatprep.subr.mxu0 0.0
    %5375 = vmatpush1.msra.mxu0 0.0
    %5376 = vmatprep.subr.mxu0 0.0
    %5377 = vmatpush1.msra.mxu0 0.0
    %5378 = vmatprep.subr.mxu0 0.0
    %5379 = vmatpush1.msra.mxu0 0.0
    %5380 = vmatprep.subr.mxu0 0.0
    %5381 = vmatpush1.msra.mxu0 0.0
    %5382 = vmatprep.subr.mxu0 0.0
    %5383 = vmatpush1.msra.mxu0 0.0
    %5384 = vmatprep.subr.mxu0 0.0
    %5385 = vmatpush1.msra.mxu0 0.0
    %5386 = vmatprep.subr.mxu0 0.0
    %5387 = vmatpush1.msra.mxu0 0.0
    %5388 = vmatprep.subr.mxu0 0.0
    %5389 = vmatpush1.msra.mxu0 0.0
    %5390 = vmatprep.subr.mxu0 0.0
    %5391 = vmatpush1.msra.mxu0 0.0
    %5392 = vmatprep.mubr.f32.mxu0 0.0
    %5393 = vmatmul.mubr.f32.gmra.mrb[0].mxu0 %v5293
    %v5394 = vpop.f32.mrb[0].mxu0
    %v5395 = vadd.f32 0.0, %v5394
    %v5396 = vpop.f32.mrb[0].mxu0
    %5397 = vmatprep.mubr.f32.mxu0 0.0
    %5398 = vmatmul.mubr.f32.gmra.mrb[0].mxu0 %v5296
    %v5399 = vpop.f32.mrb[0].mxu0
    %v5400 = vadd.f32 0.0, %v5399
    %v5401 = vpop.f32.mrb[0].mxu0
    %5402 = vmatprep.mubr.f32.mxu0 0.0
    %5403 = vmatmul.mubr.f32.gmra.mrb[0].mxu0 %v5299
    %v5404 = vpop.f32.mrb[0].mxu0
    %v5405 = vadd.f32 0.0, %v5404
    %v5406 = vpop.f32.mrb[0].mxu0
    %5407 = vmatprep.mubr.f32.mxu0 0.0
    %5408 = vmatmul.mubr.f32.gmra.mrb[0].mxu0 %v5302
    %v5409 = vpop.f32.mrb[0].mxu0
    %v5410 = vadd.f32 0.0, %v5409
    %v5411 = vpop.f32.mrb[0].mxu0
    %5412 = vmatprep.mubr.f32.mxu0 0.0
    %5413 = vmatmul.mubr.f32.gmra.mrb[0].mxu0 %v5305
    %v5414 = vpop.f32.mrb[0].mxu0
    %v5415 = vadd.f32 0.0, %v5414
    %v5416 = vpop.f32.mrb[0].mxu0
    %5417 = vmatprep.mubr.f32.mxu0 0.0
    %5418 = vmatmul.mubr.f32.gmra.mrb[0].mxu0 %v5308
    %v5419 = vpop.f32.mrb[0].mxu0
    %v5420 = vadd.f32 0.0, %v5419
    %v5421 = vpop.f32.mrb[0].mxu0
    %5422 = vmatprep.mubr.f32.mxu0 0.0
    %5423 = vmatmul.mubr.f32.gmra.mrb[0].mxu0 %v5311
    %v5424 = vpop.f32.mrb[0].mxu0
    %v5425 = vadd.f32 0.0, %v5424
    %v5426 = vpop.f32.mrb[0].mxu0
    %5427 = vmatprep.mubr.f32.mxu0 0.0
    %5428 = vmatmul.mubr.f32.gmra.mrb[0].mxu0 %v5314
    %v5429 = vpop.f32.mrb[0].mxu0
    %v5430 = vadd.f32 0.0, %v5429
    %v5431 = vpop.f32.mrb[0].mxu0
    %5432 = vmatprep.mubr.f32.mxu0 0.0
    %5433 = vmatmul.mubr.f32.gmra.mrb[0].mxu0 %v5317
    %v5434 = vpop.f32.mrb[0].mxu0
    %v5435 = vadd.f32 0.0, %v5434
    %v5436 = vpop.f32.mrb[0].mxu0
    %5437 = vmatprep.mubr.f32.mxu0 0.0
    %5438 = vmatmul.mubr.f32.gmra.mrb[0].mxu0 %v5320
    %v5439 = vpop.f32.mrb[0].mxu0
    %v5440 = vadd.f32 0.0, %v5439
    %v5441 = vpop.f32.mrb[0].mxu0
    %5442 = vmatprep.mubr.f32.mxu0 0.0
    %5443 = vmatmul.mubr.f32.gmra.mrb[0].mxu0 %v5323
    %v5444 = vpop.f32.mrb[0].mxu0
    %v5445 = vadd.f32 0.0, %v5444
    %v5446 = vpop.f32.mrb[0].mxu0
    %5447 = vmatprep.mubr.f32.mxu0 0.0
    %5448 = vmatmul.mubr.f32.gmra.mrb[0].mxu0 %v5326
    %v5449 = vpop.f32.mrb[0].mxu0
    %v5450 = vadd.f32 0.0, %v5449
    %v5451 = vpop.f32.mrb[0].mxu0
    %5452 = vdwg.mxu0
    %s5453 = scalar_lea.vmem %s41, 64
    %v5454 = vld [vmem:[%s5453] sm:$0xff]
    %v5455 = vld [vmem:[%s5453 + $0x8] sm:$0xff]
    %v5456 = vld [vmem:[%s5453 + $0x10] sm:$0xff]
    %v5457 = vld [vmem:[%s5453 + $0x18] sm:$0xff]
    %5458 = vmatprep.subr.mxu0 0.0
    %5459 = vmatpush1.msra.mxu0 %v5454
    %5460 = vmatprep.subr.mxu0 0.0
    %5461 = vmatpush1.msra.mxu0 %v5455
    %5462 = vmatprep.subr.mxu0 0.0
    %5463 = vmatpush1.msra.mxu0 %v5456
    %5464 = vmatprep.subr.mxu0 0.0
    %5465 = vmatpush1.msra.mxu0 %v5457
    %5466 = vmatprep.subr.mxu0 0.0
    %5467 = vmatpush1.msra.mxu0 0.0
    %5468 = vmatprep.subr.mxu0 0.0
    %5469 = vmatpush1.msra.mxu0 0.0
    %5470 = vmatprep.subr.mxu0 0.0
    %5471 = vmatpush1.msra.mxu0 0.0
    %5472 = vmatprep.subr.mxu0 0.0
    %5473 = vmatpush1.msra.mxu0 0.0
    %5474 = vmatprep.subr.mxu0 0.0
    %5475 = vmatpush1.msra.mxu0 0.0
    %5476 = vmatprep.subr.mxu0 0.0
    %5477 = vmatpush1.msra.mxu0 0.0
    %5478 = vmatprep.subr.mxu0 0.0
    %5479 = vmatpush1.msra.mxu0 0.0
    %5480 = vmatprep.subr.mxu0 0.0
    %5481 = vmatpush1.msra.mxu0 0.0
    %5482 = vmatprep.subr.mxu0 0.0
    %5483 = vmatpush1.msra.mxu0 0.0
    %5484 = vmatprep.subr.mxu0 0.0
    %5485 = vmatpush1.msra.mxu0 0.0
    %5486 = vmatprep.subr.mxu0 0.0
    %5487 = vmatpush1.msra.mxu0 0.0
    %5488 = vmatprep.subr.mxu0 0.0
    %5489 = vmatpush1.msra.mxu0 0.0
    %5490 = vmatprep.subr.mxu0 0.0
    %5491 = vmatpush1.msra.mxu0 0.0
    %5492 = vmatprep.subr.mxu0 0.0
    %5493 = vmatpush1.msra.mxu0 0.0
    %5494 = vmatprep.subr.mxu0 0.0
    %5495 = vmatpush1.msra.mxu0 0.0
    %5496 = vmatprep.subr.mxu0 0.0
    %5497 = vmatpush1.msra.mxu0 0.0
    %5498 = vmatprep.subr.mxu0 0.0
    %5499 = vmatpush1.msra.mxu0 0.0
    %5500 = vmatprep.subr.mxu0 0.0
    %5501 = vmatpush1.msra.mxu0 0.0
    %5502 = vmatprep.subr.mxu0 0.0
    %5503 = vmatpush1.msra.mxu0 0.0
    %5504 = vmatprep.subr.mxu0 0.0
    %5505 = vmatpush1.msra.mxu0 0.0
    %5506 = vmatprep.subr.mxu0 0.0
    %5507 = vmatpush1.msra.mxu0 0.0
    %5508 = vmatprep.subr.mxu0 0.0
    %5509 = vmatpush1.msra.mxu0 0.0
    %5510 = vmatprep.subr.mxu0 0.0
    %5511 = vmatpush1.msra.mxu0 0.0
    %5512 = vmatprep.subr.mxu0 0.0
    %5513 = vmatpush1.msra.mxu0 0.0
    %5514 = vmatprep.subr.mxu0 0.0
    %5515 = vmatpush1.msra.mxu0 0.0
    %5516 = vmatprep.subr.mxu0 0.0
    %5517 = vmatpush1.msra.mxu0 0.0
    %5518 = vmatprep.subr.mxu0 0.0
    %5519 = vmatpush1.msra.mxu0 0.0
    %5520 = vmatprep.subr.mxu0 0.0
    %5521 = vmatpush1.msra.mxu0 0.0
    %5522 = vmatprep.mubr.f32.mxu0 0.0
    %5523 = vmatmul.mubr.f32.gmra.mrb[0].mxu0 %v5293
    %v5524 = vpop.f32.mrb[0].mxu0
    %v5525 = vadd.f32 0.0, %v5524
    %v5526 = vpop.f32.mrb[0].mxu0
    %5527 = vmatprep.mubr.f32.mxu0 0.0
    %5528 = vmatmul.mubr.f32.gmra.mrb[0].mxu0 %v5296
    %v5529 = vpop.f32.mrb[0].mxu0
    %v5530 = vadd.f32 0.0, %v5529
    %v5531 = vpop.f32.mrb[0].mxu0
    %5532 = vmatprep.mubr.f32.mxu0 0.0
    %5533 = vmatmul.mubr.f32.gmra.mrb[0].mxu0 %v5299
    %v5534 = vpop.f32.mrb[0].mxu0
    %v5535 = vadd.f32 0.0, %v5534
    %v5536 = vpop.f32.mrb[0].mxu0
    %5537 = vmatprep.mubr.f32.mxu0 0.0
    %5538 = vmatmul.mubr.f32.gmra.mrb[0].mxu0 %v5302
    %v5539 = vpop.f32.mrb[0].mxu0
    %v5540 = vadd.f32 0.0, %v5539
    %v5541 = vpop.f32.mrb[0].mxu0
    %5542 = vmatprep.mubr.f32.mxu0 0.0
    %5543 = vmatmul.mubr.f32.gmra.mrb[0].mxu0 %v5305
    %v5544 = vpop.f32.mrb[0].mxu0
    %v5545 = vadd.f32 0.0, %v5544
    %v5546 = vpop.f32.mrb[0].mxu0
    %5547 = vmatprep.mubr.f32.mxu0 0.0
    %5548 = vmatmul.mubr.f32.gmra.mrb[0].mxu0 %v5308
    %v5549 = vpop.f32.mrb[0].mxu0
    %v5550 = vadd.f32 0.0, %v5549
    %v5551 = vpop.f32.mrb[0].mxu0
    %5552 = vmatprep.mubr.f32.mxu0 0.0
    %5553 = vmatmul.mubr.f32.gmra.mrb[0].mxu0 %v5311
    %v5554 = vpop.f32.mrb[0].mxu0
    %v5555 = vadd.f32 0.0, %v5554
    %v5556 = vpop.f32.mrb[0].mxu0
    %5557 = vmatprep.mubr.f32.mxu0 0.0
    %5558 = vmatmul.mubr.f32.gmra.mrb[0].mxu0 %v5314
    %v5559 = vpop.f32.mrb[0].mxu0
    %v5560 = vadd.f32 0.0, %v5559
    %v5561 = vpop.f32.mrb[0].mxu0
    %5562 = vmatprep.mubr.f32.mxu0 0.0
    %5563 = vmatmul.mubr.f32.gmra.mrb[0].mxu0 %v5317
    %v5564 = vpop.f32.mrb[0].mxu0
    %v5565 = vadd.f32 0.0, %v5564
    %v5566 = vpop.f32.mrb[0].mxu0
    %5567 = vmatprep.mubr.f32.mxu0 0.0
    %5568 = vmatmul.mubr.f32.gmra.mrb[0].mxu0 %v5320
    %v5569 = vpop.f32.mrb[0].mxu0
    %v5570 = vadd.f32 0.0, %v5569
    %v5571 = vpop.f32.mrb[0].mxu0
    %5572 = vmatprep.mubr.f32.mxu0 0.0
    %5573 = vmatmul.mubr.f32.gmra.mrb[0].mxu0 %v5323
    %v5574 = vpop.f32.mrb[0].mxu0
    %v5575 = vadd.f32 0.0, %v5574
    %v5576 = vpop.f32.mrb[0].mxu0
    %5577 = vmatprep.mubr.f32.mxu0 0.0
    %5578 = vmatmul.mubr.f32.gmra.mrb[0].mxu0 %v5326
    %v5579 = vpop.f32.mrb[0].mxu0
    %v5580 = vadd.f32 0.0, %v5579
    %v5581 = vpop.f32.mrb[0].mxu0
    %5582 = vdwg.mxu0
    %s5583 = scalar_lea.vmem [#allocation22], 64
    %v5584 = vld [vmem:[%s5583] sm:$0xff]
    %v5585 = vld [vmem:[%s5583 + $0x8] sm:$0xff]
    %v5586 = vld [vmem:[%s5583 + $0x10] sm:$0xff]
    %v5587 = vld [vmem:[%s5583 + $0x18] sm:$0xff]
    %5588 = vmatprep.subr.mxu0 0.0
    %5589 = vmatpush1.msra.mxu0 %v5584
    %5590 = vmatprep.subr.mxu0 0.0
    %5591 = vmatpush1.msra.mxu0 %v5585
    %5592 = vmatprep.subr.mxu0 0.0
    %5593 = vmatpush1.msra.mxu0 %v5586
    %5594 = vmatprep.subr.mxu0 0.0
    %5595 = vmatpush1.msra.mxu0 %v5587
    %5596 = vmatprep.subr.mxu0 0.0
    %5597 = vmatpush1.msra.mxu0 0.0
    %5598 = vmatprep.subr.mxu0 0.0
    %5599 = vmatpush1.msra.mxu0 0.0
    %5600 = vmatprep.subr.mxu0 0.0
    %5601 = vmatpush1.msra.mxu0 0.0
    %5602 = vmatprep.subr.mxu0 0.0
    %5603 = vmatpush1.msra.mxu0 0.0
    %5604 = vmatprep.subr.mxu0 0.0
    %5605 = vmatpush1.msra.mxu0 0.0
    %5606 = vmatprep.subr.mxu0 0.0
    %5607 = vmatpush1.msra.mxu0 0.0
    %5608 = vmatprep.subr.mxu0 0.0
    %5609 = vmatpush1.msra.mxu0 0.0
    %5610 = vmatprep.subr.mxu0 0.0
    %5611 = vmatpush1.msra.mxu0 0.0
    %5612 = vmatprep.subr.mxu0 0.0
    %5613 = vmatpush1.msra.mxu0 0.0
    %5614 = vmatprep.subr.mxu0 0.0
    %5615 = vmatpush1.msra.mxu0 0.0
    %5616 = vmatprep.subr.mxu0 0.0
    %5617 = vmatpush1.msra.mxu0 0.0
    %5618 = vmatprep.subr.mxu0 0.0
    %5619 = vmatpush1.msra.mxu0 0.0
    %5620 = vmatprep.subr.mxu0 0.0
    %5621 = vmatpush1.msra.mxu0 0.0
    %5622 = vmatprep.subr.mxu0 0.0
    %5623 = vmatpush1.msra.mxu0 0.0
    %5624 = vmatprep.subr.mxu0 0.0
    %5625 = vmatpush1.msra.mxu0 0.0
    %5626 = vmatprep.subr.mxu0 0.0
    %5627 = vmatpush1.msra.mxu0 0.0
    %5628 = vmatprep.subr.mxu0 0.0
    %5629 = vmatpush1.msra.mxu0 0.0
    %5630 = vmatprep.subr.mxu0 0.0
    %5631 = vmatpush1.msra.mxu0 0.0
    %5632 = vmatprep.subr.mxu0 0.0
    %5633 = vmatpush1.msra.mxu0 0.0
    %5634 = vmatprep.subr.mxu0 0.0
    %5635 = vmatpush1.msra.mxu0 0.0
    %5636 = vmatprep.subr.mxu0 0.0
    %5637 = vmatpush1.msra.mxu0 0.0
    %5638 = vmatprep.subr.mxu0 0.0
    %5639 = vmatpush1.msra.mxu0 0.0
    %5640 = vmatprep.subr.mxu0 0.0
    %5641 = vmatpush1.msra.mxu0 0.0
    %5642 = vmatprep.subr.mxu0 0.0
    %5643 = vmatpush1.msra.mxu0 0.0
    %5644 = vmatprep.subr.mxu0 0.0
    %5645 = vmatpush1.msra.mxu0 0.0
    %5646 = vmatprep.subr.mxu0 0.0
    %5647 = vmatpush1.msra.mxu0 0.0
    %5648 = vmatprep.subr.mxu0 0.0
    %5649 = vmatpush1.msra.mxu0 0.0
    %5650 = vmatprep.subr.mxu0 0.0
    %5651 = vmatpush1.msra.mxu0 0.0
    %5652 = vmatprep.mubr.f32.mxu0 0.0
    %5653 = vmatmul.mubr.f32.gmra.mrb[0].mxu0 %v5293
    %v5654 = vpop.f32.mrb[0].mxu0
    %v5655 = vadd.f32 0.0, %v5654
    %v5656 = vpop.f32.mrb[0].mxu0
    %5657 = vmatprep.mubr.f32.mxu0 0.0
    %5658 = vmatmul.mubr.f32.gmra.mrb[0].mxu0 %v5296
    %v5659 = vpop.f32.mrb[0].mxu0
    %v5660 = vadd.f32 0.0, %v5659
    %v5661 = vpop.f32.mrb[0].mxu0
    %5662 = vmatprep.mubr.f32.mxu0 0.0
    %5663 = vmatmul.mubr.f32.gmra.mrb[0].mxu0 %v5299
    %v5664 = vpop.f32.mrb[0].mxu0
    %v5665 = vadd.f32 0.0, %v5664
    %v5666 = vpop.f32.mrb[0].mxu0
    %5667 = vmatprep.mubr.f32.mxu0 0.0
    %5668 = vmatmul.mubr.f32.gmra.mrb[0].mxu0 %v5302
    %v5669 = vpop.f32.mrb[0].mxu0
    %v5670 = vadd.f32 0.0, %v5669
    %v5671 = vpop.f32.mrb[0].mxu0
    %5672 = vmatprep.mubr.f32.mxu0 0.0
    %5673 = vmatmul.mubr.f32.gmra.mrb[0].mxu0 %v5305
    %v5674 = vpop.f32.mrb[0].mxu0
    %v5675 = vadd.f32 0.0, %v5674
    %v5676 = vpop.f32.mrb[0].mxu0
    %5677 = vmatprep.mubr.f32.mxu0 0.0
    %5678 = vmatmul.mubr.f32.gmra.mrb[0].mxu0 %v5308
    %v5679 = vpop.f32.mrb[0].mxu0
    %v5680 = vadd.f32 0.0, %v5679
    %v5681 = vpop.f32.mrb[0].mxu0
    %5682 = vmatprep.mubr.f32.mxu0 0.0
    %5683 = vmatmul.mubr.f32.gmra.mrb[0].mxu0 %v5311
    %v5684 = vpop.f32.mrb[0].mxu0
    %v5685 = vadd.f32 0.0, %v5684
    %v5686 = vpop.f32.mrb[0].mxu0
    %5687 = vmatprep.mubr.f32.mxu0 0.0
    %5688 = vmatmul.mubr.f32.gmra.mrb[0].mxu0 %v5314
    %v5689 = vpop.f32.mrb[0].mxu0
    %v5690 = vadd.f32 0.0, %v5689
    %v5691 = vpop.f32.mrb[0].mxu0
    %5692 = vmatprep.mubr.f32.mxu0 0.0
    %5693 = vmatmul.mubr.f32.gmra.mrb[0].mxu0 %v5317
    %v5694 = vpop.f32.mrb[0].mxu0
    %v5695 = vadd.f32 0.0, %v5694
    %v5696 = vpop.f32.mrb[0].mxu0
    %5697 = vmatprep.mubr.f32.mxu0 0.0
    %5698 = vmatmul.mubr.f32.gmra.mrb[0].mxu0 %v5320
    %v5699 = vpop.f32.mrb[0].mxu0
    %v5700 = vadd.f32 0.0, %v5699
    %v5701 = vpop.f32.mrb[0].mxu0
    %5702 = vmatprep.mubr.f32.mxu0 0.0
    %5703 = vmatmul.mubr.f32.gmra.mrb[0].mxu0 %v5323
    %v5704 = vpop.f32.mrb[0].mxu0
    %v5705 = vadd.f32 0.0, %v5704
    %v5706 = vpop.f32.mrb[0].mxu0
    %5707 = vmatprep.mubr.f32.mxu0 0.0
    %5708 = vmatmul.mubr.f32.gmra.mrb[0].mxu0 %v5326
    %v5709 = vpop.f32.mrb[0].mxu0
    %v5710 = vadd.f32 0.0, %v5709
    %v5711 = vpop.f32.mrb[0].mxu0
    %5712 = vdwg.mxu0
    %v5714 = vsel %vm1019, %v5395, 0
    %v5717 = vsel %vm1019, %v5400, 0
    %v5720 = vsel %vm1019, %v5405, 0
    %v5723 = vsel %vm1019, %v5410, 0
    %v5726 = vsel %vm1019, %v5415, 0
    %v5729 = vsel %vm1019, %v5420, 0
    %v5732 = vsel %vm1019, %v5425, 0
    %v5735 = vsel %vm1019, %v5430, 0
    %v5738 = vsel %vm1019, %v5435, 0
    %v5741 = vsel %vm1019, %v5440, 0
    %v5744 = vsel %vm1019, %v5445, 0
    %v5747 = vsel %vm1019, %v5450, 0
    %v5750 = vsel %vm1019, %v5525, 0
    %v5753 = vsel %vm1019, %v5530, 0
    %v5756 = vsel %vm1019, %v5535, 0
    %v5759 = vsel %vm1019, %v5540, 0
    %v5762 = vsel %vm1019, %v5545, 0
    %v5765 = vsel %vm1019, %v5550, 0
    %v5768 = vsel %vm1019, %v5555, 0
    %v5771 = vsel %vm1019, %v5560, 0
    %v5774 = vsel %vm1019, %v5565, 0
    %v5777 = vsel %vm1019, %v5570, 0
    %v5780 = vsel %vm1019, %v5575, 0
    %v5783 = vsel %vm1019, %v5580, 0
    %5785 = vmatprep.subr.mxu0 0.0
    %5786 = vmatpush1.xpose.msra.mxu0 %v5750
    %5787 = vmatprep.subr.mxu0 0.0
    %5788 = vmatpush1.xpose.msra.mxu0 %v5753
    %5789 = vmatprep.subr.mxu0 0.0
    %5790 = vmatpush1.xpose.msra.mxu0 %v5756
    %5791 = vmatprep.subr.mxu0 0.0
    %5792 = vmatpush1.xpose.msra.mxu0 %v5759
    %5793 = vmatprep.subr.mxu0 0.0
    %5794 = vmatpush1.xpose.msra.mxu0 %v5762
    %5795 = vmatprep.subr.mxu0 0.0
    %5796 = vmatpush1.xpose.msra.mxu0 %v5765
    %5797 = vmatprep.subr.mxu0 0.0
    %5798 = vmatpush1.xpose.msra.mxu0 %v5768
    %5799 = vmatprep.subr.mxu0 0.0
    %5800 = vmatpush1.xpose.msra.mxu0 %v5771
    %5801 = vmatprep.subr.mxu0 0.0
    %5802 = vmatpush1.xpose.msra.mxu0 %v5774
    %5803 = vmatprep.subr.mxu0 0.0
    %5804 = vmatpush1.xpose.msra.mxu0 %v5777
    %5805 = vmatprep.subr.mxu0 0.0
    %5806 = vmatpush1.xpose.msra.mxu0 %v5780
    %5807 = vmatprep.subr.mxu0 0.0
    %5808 = vmatpush1.xpose.msra.mxu0 %v5783
    %5809 = vmatprep.subr.mxu0 0.0
    %5810 = vmatpush1.xpose.msra.mxu0 0.0
    %5811 = vmatprep.subr.mxu0 0.0
    %5812 = vmatpush1.xpose.msra.mxu0 0.0
    %5813 = vmatprep.subr.mxu0 0.0
    %5814 = vmatpush1.xpose.msra.mxu0 0.0
    %5815 = vmatprep.subr.mxu0 0.0
    %5816 = vmatpush1.xpose.msra.mxu0 0.0
    %5817 = vmatprep.subr.mxu0 0.0
    %5818 = vmatpush1.xpose.msra.mxu0 0.0
    %5819 = vmatprep.subr.mxu0 0.0
    %5820 = vmatpush1.xpose.msra.mxu0 0.0
    %5821 = vmatprep.subr.mxu0 0.0
    %5822 = vmatpush1.xpose.msra.mxu0 0.0
    %5823 = vmatprep.subr.mxu0 0.0
    %5824 = vmatpush1.xpose.msra.mxu0 0.0
    %5825 = vmatprep.subr.mxu0 0.0
    %5826 = vmatpush1.xpose.msra.mxu0 0.0
    %5827 = vmatprep.subr.mxu0 0.0
    %5828 = vmatpush1.xpose.msra.mxu0 0.0
    %5829 = vmatprep.subr.mxu0 0.0
    %5830 = vmatpush1.xpose.msra.mxu0 0.0
    %5831 = vmatprep.subr.mxu0 0.0
    %5832 = vmatpush1.xpose.msra.mxu0 0.0
    %5833 = vmatprep.subr.mxu0 0.0
    %5834 = vmatpush1.xpose.msra.mxu0 0.0
    %5835 = vmatprep.subr.mxu0 0.0
    %5836 = vmatpush1.xpose.msra.mxu0 0.0
    %5837 = vmatprep.subr.mxu0 0.0
    %5838 = vmatpush1.xpose.msra.mxu0 0.0
    %5839 = vmatprep.subr.mxu0 0.0
    %5840 = vmatpush1.xpose.msra.mxu0 0.0
    %5841 = vmatprep.subr.mxu0 0.0
    %5842 = vmatpush1.xpose.msra.mxu0 0.0
    %5843 = vmatprep.subr.mxu0 0.0
    %5844 = vmatpush1.xpose.msra.mxu0 0.0
    %5845 = vmatprep.subr.mxu0 0.0
    %5846 = vmatpush1.xpose.msra.mxu0 0.0
    %5847 = vmatprep.subr.mxu0 0.0
    %5848 = vmatpush1.xpose.msra.mxu0 0.0
    %5849 = vmatprep.mubr.f32.mxu0 0.0
    %5850 = vmatmul.mubr.f32.gmra.mrb[0].mxu0 %v5714
    %v5851 = vpop.f32.mrb[0].mxu0
    %v5852 = vadd.f32 %v2247, %v5851
    %v5853 = vpop.f32.mrb[0].mxu0
    %5854 = vmatprep.mubr.f32.mxu0 0.0
    %5855 = vmatmul.mubr.f32.gmra.mrb[0].mxu0 %v5717
    %v5856 = vpop.f32.mrb[0].mxu0
    %v5857 = vadd.f32 %v2248, %v5856
    %v5858 = vpop.f32.mrb[0].mxu0
    %5859 = vmatprep.mubr.f32.mxu0 0.0
    %5860 = vmatmul.mubr.f32.gmra.mrb[0].mxu0 %v5720
    %v5861 = vpop.f32.mrb[0].mxu0
    %v5862 = vadd.f32 %v2249, %v5861
    %v5863 = vpop.f32.mrb[0].mxu0
    %5864 = vmatprep.mubr.f32.mxu0 0.0
    %5865 = vmatmul.mubr.f32.gmra.mrb[0].mxu0 %v5723
    %v5866 = vpop.f32.mrb[0].mxu0
    %v5867 = vadd.f32 %v2250, %v5866
    %v5868 = vpop.f32.mrb[0].mxu0
    %5869 = vmatprep.mubr.f32.mxu0 0.0
    %5870 = vmatmul.mubr.f32.gmra.mrb[0].mxu0 %v5726
    %v5871 = vpop.f32.mrb[0].mxu0
    %v5872 = vadd.f32 %v2251, %v5871
    %v5873 = vpop.f32.mrb[0].mxu0
    %5874 = vmatprep.mubr.f32.mxu0 0.0
    %5875 = vmatmul.mubr.f32.gmra.mrb[0].mxu0 %v5729
    %v5876 = vpop.f32.mrb[0].mxu0
    %v5877 = vadd.f32 %v2252, %v5876
    %v5878 = vpop.f32.mrb[0].mxu0
    %5879 = vmatprep.mubr.f32.mxu0 0.0
    %5880 = vmatmul.mubr.f32.gmra.mrb[0].mxu0 %v5732
    %v5881 = vpop.f32.mrb[0].mxu0
    %v5882 = vadd.f32 %v2253, %v5881
    %v5883 = vpop.f32.mrb[0].mxu0
    %5884 = vmatprep.mubr.f32.mxu0 0.0
    %5885 = vmatmul.mubr.f32.gmra.mrb[0].mxu0 %v5735
    %v5886 = vpop.f32.mrb[0].mxu0
    %v5887 = vadd.f32 %v2254, %v5886
    %v5888 = vpop.f32.mrb[0].mxu0
    %5889 = vmatprep.mubr.f32.mxu0 0.0
    %5890 = vmatmul.mubr.f32.gmra.mrb[0].mxu0 %v5738
    %v5891 = vpop.f32.mrb[0].mxu0
    %v5892 = vadd.f32 %v2255, %v5891
    %v5893 = vpop.f32.mrb[0].mxu0
    %5894 = vmatprep.mubr.f32.mxu0 0.0
    %5895 = vmatmul.mubr.f32.gmra.mrb[0].mxu0 %v5741
    %v5896 = vpop.f32.mrb[0].mxu0
    %v5897 = vadd.f32 %v2256, %v5896
    %v5898 = vpop.f32.mrb[0].mxu0
    %5899 = vmatprep.mubr.f32.mxu0 0.0
    %5900 = vmatmul.mubr.f32.gmra.mrb[0].mxu0 %v5744
    %v5901 = vpop.f32.mrb[0].mxu0
    %v5902 = vadd.f32 %v2257, %v5901
    %v5903 = vpop.f32.mrb[0].mxu0
    %5904 = vmatprep.mubr.f32.mxu0 0.0
    %5905 = vmatmul.mubr.f32.gmra.mrb[0].mxu0 %v5747
    %v5906 = vpop.f32.mrb[0].mxu0
    %v5907 = vadd.f32 %v2258, %v5906
    %v5908 = vpop.f32.mrb[0].mxu0
    %5909 = vdwg.mxu0
    %v5910 = vsel %vm2891, %v5852, -inf
    %5911 = vmax.xlane.f32.xlu0 %v5910
    %v5912 = vpop.xlane.xlu0 %5911
    %v5913 = vsel %vm2891, %v5857, -inf
    %5914 = vmax.xlane.f32.xlu0 %v5913
    %v5915 = vpop.xlane.xlu0 %5914
    %v5916 = vsel %vm2891, %v5862, -inf
    %5917 = vmax.xlane.f32.xlu0 %v5916
    %v5918 = vpop.xlane.xlu0 %5917
    %v5919 = vsel %vm2891, %v5867, -inf
    %5920 = vmax.xlane.f32.xlu0 %v5919
    %v5921 = vpop.xlane.xlu0 %5920
    %v5922 = vsel %vm2891, %v5872, -inf
    %5923 = vmax.xlane.f32.xlu0 %v5922
    %v5924 = vpop.xlane.xlu0 %5923
    %v5925 = vsel %vm2891, %v5877, -inf
    %5926 = vmax.xlane.f32.xlu0 %v5925
    %v5927 = vpop.xlane.xlu0 %5926
    %v5928 = vsel %vm2891, %v5882, -inf
    %5929 = vmax.xlane.f32.xlu0 %v5928
    %v5930 = vpop.xlane.xlu0 %5929
    %v5931 = vsel %vm2891, %v5887, -inf
    %5932 = vmax.xlane.f32.xlu0 %v5931
    %v5933 = vpop.xlane.xlu0 %5932
    %v5934 = vsel %vm2891, %v5892, -inf
    %5935 = vmax.xlane.f32.xlu0 %v5934
    %v5936 = vpop.xlane.xlu0 %5935
    %v5937 = vsel %vm2891, %v5897, -inf
    %5938 = vmax.xlane.f32.xlu0 %v5937
    %v5939 = vpop.xlane.xlu0 %5938
    %v5940 = vsel %vm2891, %v5902, -inf
    %5941 = vmax.xlane.f32.xlu0 %v5940
    %v5942 = vpop.xlane.xlu0 %5941
    %v5943 = vsel %vm2925, %v5907, -inf
    %5944 = vmax.xlane.f32.xlu0 %v5943
    %v5945 = vpop.xlane.xlu0 %5944
    %v5946 = vsub.f32 %v5852, %v5912
    %v5947 = vsub.f32 %v5857, %v5915
    %v5948 = vsub.f32 %v5862, %v5918
    %v5949 = vsub.f32 %v5867, %v5921
    %v5950 = vsub.f32 %v5872, %v5924
    %v5951 = vsub.f32 %v5877, %v5927
    %v5952 = vsub.f32 %v5882, %v5930
    %v5953 = vsub.f32 %v5887, %v5933
    %v5954 = vsub.f32 %v5892, %v5936
    %v5955 = vsub.f32 %v5897, %v5939
    %v5956 = vsub.f32 %v5902, %v5942
    %v5957 = vsub.f32 %v5907, %v5945
    %v5958 = vmul.f32 %v5946, 1.442695
    %v5959 = vpow.pop %v5958
    %v5960 = vmul.f32 %v5947, 1.442695
    %v5961 = vpow.pop %v5960
    %v5962 = vmul.f32 %v5948, 1.442695
    %v5963 = vpow.pop %v5962
    %v5964 = vmul.f32 %v5949, 1.442695
    %v5965 = vpow.pop %v5964
    %v5966 = vmul.f32 %v5950, 1.442695
    %v5967 = vpow.pop %v5966
    %v5968 = vmul.f32 %v5951, 1.442695
    %v5969 = vpow.pop %v5968
    %v5970 = vmul.f32 %v5952, 1.442695
    %v5971 = vpow.pop %v5970
    %v5972 = vmul.f32 %v5953, 1.442695
    %v5973 = vpow.pop %v5972
    %v5974 = vmul.f32 %v5954, 1.442695
    %v5975 = vpow.pop %v5974
    %v5976 = vmul.f32 %v5955, 1.442695
    %v5977 = vpow.pop %v5976
    %v5978 = vmul.f32 %v5956, 1.442695
    %v5979 = vpow.pop %v5978
    %v5980 = vmul.f32 %v5957, 1.442695
    %v5981 = vpow.pop %v5980
    %v5982 = vsel %vm2891, %v5959, 0.0
    %5983 = vadd.xlane.f32.xlu0 %v5982
    %v5984 = vpop.xlane.xlu0 %5983
    %v5985 = vsel %vm2891, %v5961, 0.0
    %5986 = vadd.xlane.f32.xlu0 %v5985
    %v5987 = vpop.xlane.xlu0 %5986
    %v5988 = vsel %vm2891, %v5963, 0.0
    %5989 = vadd.xlane.f32.xlu0 %v5988
    %v5990 = vpop.xlane.xlu0 %5989
    %v5991 = vsel %vm2891, %v5965, 0.0
    %5992 = vadd.xlane.f32.xlu0 %v5991
    %v5993 = vpop.xlane.xlu0 %5992
    %v5994 = vsel %vm2891, %v5967, 0.0
    %5995 = vadd.xlane.f32.xlu0 %v5994
    %v5996 = vpop.xlane.xlu0 %5995
    %v5997 = vsel %vm2891, %v5969, 0.0
    %5998 = vadd.xlane.f32.xlu0 %v5997
    %v5999 = vpop.xlane.xlu0 %5998
    %v6000 = vsel %vm2891, %v5971, 0.0
    %6001 = vadd.xlane.f32.xlu0 %v6000
    %v6002 = vpop.xlane.xlu0 %6001
    %v6003 = vsel %vm2891, %v5973, 0.0
    %6004 = vadd.xlane.f32.xlu0 %v6003
    %v6005 = vpop.xlane.xlu0 %6004
    %v6006 = vsel %vm2891, %v5975, 0.0
    %6007 = vadd.xlane.f32.xlu0 %v6006
    %v6008 = vpop.xlane.xlu0 %6007
    %v6009 = vsel %vm2891, %v5977, 0.0
    %6010 = vadd.xlane.f32.xlu0 %v6009
    %v6011 = vpop.xlane.xlu0 %6010
    %v6012 = vsel %vm2891, %v5979, 0.0
    %6013 = vadd.xlane.f32.xlu0 %v6012
    %v6014 = vpop.xlane.xlu0 %6013
    %v6015 = vsel %vm2925, %v5981, 0.0
    %6016 = vadd.xlane.f32.xlu0 %v6015
    %v6017 = vpop.xlane.xlu0 %6016
    %v6018 = vrcp.pop %v5984
    %v6019 = vrcp.pop %v5987
    %v6020 = vrcp.pop %v5990
    %v6021 = vrcp.pop %v5993
    %v6022 = vrcp.pop %v5996
    %v6023 = vrcp.pop %v5999
    %v6024 = vrcp.pop %v6002
    %v6025 = vrcp.pop %v6005
    %v6026 = vrcp.pop %v6008
    %v6027 = vrcp.pop %v6011
    %v6028 = vrcp.pop %v6014
    %v6029 = vrcp.pop %v6017
    %v6030 = vmul.f32 %v5959, %v6018
    %v6031 = vmul.f32 %v5961, %v6019
    %v6032 = vmul.f32 %v5963, %v6020
    %v6033 = vmul.f32 %v5965, %v6021
    %v6034 = vmul.f32 %v5967, %v6022
    %v6035 = vmul.f32 %v5969, %v6023
    %v6036 = vmul.f32 %v5971, %v6024
    %v6037 = vmul.f32 %v5973, %v6025
    %v6038 = vmul.f32 %v5975, %v6026
    %v6039 = vmul.f32 %v5977, %v6027
    %v6040 = vmul.f32 %v5979, %v6028
    %v6041 = vmul.f32 %v5981, %v6029
    %v6043 = vsel %vm2891, %v6030, 0
    %v6046 = vsel %vm2891, %v6031, 0
    %v6049 = vsel %vm2891, %v6032, 0
    %v6052 = vsel %vm2891, %v6033, 0
    %v6055 = vsel %vm2891, %v6034, 0
    %v6058 = vsel %vm2891, %v6035, 0
    %v6061 = vsel %vm2891, %v6036, 0
    %v6064 = vsel %vm2891, %v6037, 0
    %v6067 = vsel %vm2891, %v6038, 0
    %v6070 = vsel %vm2891, %v6039, 0
    %v6073 = vsel %vm2891, %v6040, 0
    %v6076 = vsel %vm2891, %v6041, 0
    %v6079 = vsel %vm1844, %v5710, 0
    %6081 = vmatprep.subr.mxu0 0.0
    %6082 = vmatpush1.msra.mxu0 %v5655
    %6083 = vmatprep.subr.mxu0 0.0
    %6084 = vmatpush1.msra.mxu0 %v5660
    %6085 = vmatprep.subr.mxu0 0.0
    %6086 = vmatpush1.msra.mxu0 %v5665
    %6087 = vmatprep.subr.mxu0 0.0
    %6088 = vmatpush1.msra.mxu0 %v5670
    %6089 = vmatprep.subr.mxu0 0.0
    %6090 = vmatpush1.msra.mxu0 %v5675
    %6091 = vmatprep.subr.mxu0 0.0
    %6092 = vmatpush1.msra.mxu0 %v5680
    %6093 = vmatprep.subr.mxu0 0.0
    %6094 = vmatpush1.msra.mxu0 %v5685
    %6095 = vmatprep.subr.mxu0 0.0
    %6096 = vmatpush1.msra.mxu0 %v5690
    %6097 = vmatprep.subr.mxu0 0.0
    %6098 = vmatpush1.msra.mxu0 %v5695
    %6099 = vmatprep.subr.mxu0 0.0
    %6100 = vmatpush1.msra.mxu0 %v5700
    %6101 = vmatprep.subr.mxu0 0.0
    %6102 = vmatpush1.msra.mxu0 %v5705
    %6103 = vmatprep.subr.mxu0 0.0
    %6104 = vmatpush1.msra.mxu0 %v6079
    %6105 = vmatprep.subr.mxu0 0.0
    %6106 = vmatpush1.msra.mxu0 0.0
    %6107 = vmatprep.subr.mxu0 0.0
    %6108 = vmatpush1.msra.mxu0 0.0
    %6109 = vmatprep.subr.mxu0 0.0
    %6110 = vmatpush1.msra.mxu0 0.0
    %6111 = vmatprep.subr.mxu0 0.0
    %6112 = vmatpush1.msra.mxu0 0.0
    %6113 = vmatprep.subr.mxu0 0.0
    %6114 = vmatpush1.msra.mxu0 0.0
    %6115 = vmatprep.subr.mxu0 0.0
    %6116 = vmatpush1.msra.mxu0 0.0
    %6117 = vmatprep.subr.mxu0 0.0
    %6118 = vmatpush1.msra.mxu0 0.0
    %6119 = vmatprep.subr.mxu0 0.0
    %6120 = vmatpush1.msra.mxu0 0.0
    %6121 = vmatprep.subr.mxu0 0.0
    %6122 = vmatpush1.msra.mxu0 0.0
    %6123 = vmatprep.subr.mxu0 0.0
    %6124 = vmatpush1.msra.mxu0 0.0
    %6125 = vmatprep.subr.mxu0 0.0
    %6126 = vmatpush1.msra.mxu0 0.0
    %6127 = vmatprep.subr.mxu0 0.0
    %6128 = vmatpush1.msra.mxu0 0.0
    %6129 = vmatprep.subr.mxu0 0.0
    %6130 = vmatpush1.msra.mxu0 0.0
    %6131 = vmatprep.subr.mxu0 0.0
    %6132 = vmatpush1.msra.mxu0 0.0
    %6133 = vmatprep.subr.mxu0 0.0
    %6134 = vmatpush1.msra.mxu0 0.0
    %6135 = vmatprep.subr.mxu0 0.0
    %6136 = vmatpush1.msra.mxu0 0.0
    %6137 = vmatprep.subr.mxu0 0.0
    %6138 = vmatpush1.msra.mxu0 0.0
    %6139 = vmatprep.subr.mxu0 0.0
    %6140 = vmatpush1.msra.mxu0 0.0
    %6141 = vmatprep.subr.mxu0 0.0
    %6142 = vmatpush1.msra.mxu0 0.0
    %6143 = vmatprep.subr.mxu0 0.0
    %6144 = vmatpush1.msra.mxu0 0.0
    %6145 = vmatprep.mubr.f32.mxu0 0.0
    %6146 = vmatmul.mubr.f32.gmra.mrb[0].mxu0 %v6043
    %v6147 = vpop.f32.mrb[0].mxu0
    %v6148 = vadd.f32 0.0, %v6147
    %v6149 = vpop.f32.mrb[0].mxu0
    %6150 = vmatprep.mubr.f32.mxu0 0.0
    %6151 = vmatmul.mubr.f32.gmra.mrb[0].mxu0 %v6046
    %v6152 = vpop.f32.mrb[0].mxu0
    %v6153 = vadd.f32 0.0, %v6152
    %v6154 = vpop.f32.mrb[0].mxu0
    %6155 = vmatprep.mubr.f32.mxu0 0.0
    %6156 = vmatmul.mubr.f32.gmra.mrb[0].mxu0 %v6049
    %v6157 = vpop.f32.mrb[0].mxu0
    %v6158 = vadd.f32 0.0, %v6157
    %v6159 = vpop.f32.mrb[0].mxu0
    %6160 = vmatprep.mubr.f32.mxu0 0.0
    %6161 = vmatmul.mubr.f32.gmra.mrb[0].mxu0 %v6052
    %v6162 = vpop.f32.mrb[0].mxu0
    %v6163 = vadd.f32 0.0, %v6162
    %v6164 = vpop.f32.mrb[0].mxu0
    %6165 = vmatprep.mubr.f32.mxu0 0.0
    %6166 = vmatmul.mubr.f32.gmra.mrb[0].mxu0 %v6055
    %v6167 = vpop.f32.mrb[0].mxu0
    %v6168 = vadd.f32 0.0, %v6167
    %v6169 = vpop.f32.mrb[0].mxu0
    %6170 = vmatprep.mubr.f32.mxu0 0.0
    %6171 = vmatmul.mubr.f32.gmra.mrb[0].mxu0 %v6058
    %v6172 = vpop.f32.mrb[0].mxu0
    %v6173 = vadd.f32 0.0, %v6172
    %v6174 = vpop.f32.mrb[0].mxu0
    %6175 = vmatprep.mubr.f32.mxu0 0.0
    %6176 = vmatmul.mubr.f32.gmra.mrb[0].mxu0 %v6061
    %v6177 = vpop.f32.mrb[0].mxu0
    %v6178 = vadd.f32 0.0, %v6177
    %v6179 = vpop.f32.mrb[0].mxu0
    %6180 = vmatprep.mubr.f32.mxu0 0.0
    %6181 = vmatmul.mubr.f32.gmra.mrb[0].mxu0 %v6064
    %v6182 = vpop.f32.mrb[0].mxu0
    %v6183 = vadd.f32 0.0, %v6182
    %v6184 = vpop.f32.mrb[0].mxu0
    %6185 = vmatprep.mubr.f32.mxu0 0.0
    %6186 = vmatmul.mubr.f32.gmra.mrb[0].mxu0 %v6067
    %v6187 = vpop.f32.mrb[0].mxu0
    %v6188 = vadd.f32 0.0, %v6187
    %v6189 = vpop.f32.mrb[0].mxu0
    %6190 = vmatprep.mubr.f32.mxu0 0.0
    %6191 = vmatmul.mubr.f32.gmra.mrb[0].mxu0 %v6070
    %v6192 = vpop.f32.mrb[0].mxu0
    %v6193 = vadd.f32 0.0, %v6192
    %v6194 = vpop.f32.mrb[0].mxu0
    %6195 = vmatprep.mubr.f32.mxu0 0.0
    %6196 = vmatmul.mubr.f32.gmra.mrb[0].mxu0 %v6073
    %v6197 = vpop.f32.mrb[0].mxu0
    %v6198 = vadd.f32 0.0, %v6197
    %v6199 = vpop.f32.mrb[0].mxu0
    %6200 = vmatprep.mubr.f32.mxu0 0.0
    %6201 = vmatmul.mubr.f32.gmra.mrb[0].mxu0 %v6076
    %v6202 = vpop.f32.mrb[0].mxu0
    %v6203 = vadd.f32 0.0, %v6202
    %v6204 = vpop.f32.mrb[0].mxu0
    %6205 = vdwg.mxu0
    %s6206 = scalar_lea.vmem [#allocation23], 32
    %v6207 = vld [vmem:[%s6206] sm:$0xff]
    %v6208 = vld [vmem:[%s6206 + $0x8] sm:$0xff]
    %s6209 = scalar_lea.vmem %s39, 96
    %v6210 = vld [vmem:[%s6209] sm:$0xff]
    %v6211 = vld [vmem:[%s6209 + $0x8] sm:$0xff]
    %v6212 = vld [vmem:[%s6209 + $0x10] sm:$0xff]
    %v6213 = vld [vmem:[%s6209 + $0x18] sm:$0xff]
    %6214 = vmatprep.subr.mxu0 0.0
    %6215 = vmatpush1.msra.mxu0 %v6210
    %6216 = vmatprep.subr.mxu0 0.0
    %6217 = vmatpush1.msra.mxu0 %v6211
    %6218 = vmatprep.subr.mxu0 0.0
    %6219 = vmatpush1.msra.mxu0 %v6212
    %6220 = vmatprep.subr.mxu0 0.0
    %6221 = vmatpush1.msra.mxu0 %v6213
    %6222 = vmatprep.subr.mxu0 0.0
    %6223 = vmatpush1.msra.mxu0 0.0
    %6224 = vmatprep.subr.mxu0 0.0
    %6225 = vmatpush1.msra.mxu0 0.0
    %6226 = vmatprep.subr.mxu0 0.0
    %6227 = vmatpush1.msra.mxu0 0.0
    %6228 = vmatprep.subr.mxu0 0.0
    %6229 = vmatpush1.msra.mxu0 0.0
    %6230 = vmatprep.subr.mxu0 0.0
    %6231 = vmatpush1.msra.mxu0 0.0
    %6232 = vmatprep.subr.mxu0 0.0
    %6233 = vmatpush1.msra.mxu0 0.0
    %6234 = vmatprep.subr.mxu0 0.0
    %6235 = vmatpush1.msra.mxu0 0.0
    %6236 = vmatprep.subr.mxu0 0.0
    %6237 = vmatpush1.msra.mxu0 0.0
    %6238 = vmatprep.subr.mxu0 0.0
    %6239 = vmatpush1.msra.mxu0 0.0
    %6240 = vmatprep.subr.mxu0 0.0
    %6241 = vmatpush1.msra.mxu0 0.0
    %6242 = vmatprep.subr.mxu0 0.0
    %6243 = vmatpush1.msra.mxu0 0.0
    %6244 = vmatprep.subr.mxu0 0.0
    %6245 = vmatpush1.msra.mxu0 0.0
    %6246 = vmatprep.subr.mxu0 0.0
    %6247 = vmatpush1.msra.mxu0 0.0
    %6248 = vmatprep.subr.mxu0 0.0
    %6249 = vmatpush1.msra.mxu0 0.0
    %6250 = vmatprep.subr.mxu0 0.0
    %6251 = vmatpush1.msra.mxu0 0.0
    %6252 = vmatprep.subr.mxu0 0.0
    %6253 = vmatpush1.msra.mxu0 0.0
    %6254 = vmatprep.subr.mxu0 0.0
    %6255 = vmatpush1.msra.mxu0 0.0
    %6256 = vmatprep.subr.mxu0 0.0
    %6257 = vmatpush1.msra.mxu0 0.0
    %6258 = vmatprep.subr.mxu0 0.0
    %6259 = vmatpush1.msra.mxu0 0.0
    %6260 = vmatprep.subr.mxu0 0.0
    %6261 = vmatpush1.msra.mxu0 0.0
    %6262 = vmatprep.subr.mxu0 0.0
    %6263 = vmatpush1.msra.mxu0 0.0
    %6264 = vmatprep.subr.mxu0 0.0
    %6265 = vmatpush1.msra.mxu0 0.0
    %6266 = vmatprep.subr.mxu0 0.0
    %6267 = vmatpush1.msra.mxu0 0.0
    %6268 = vmatprep.subr.mxu0 0.0
    %6269 = vmatpush1.msra.mxu0 0.0
    %6270 = vmatprep.subr.mxu0 0.0
    %6271 = vmatpush1.msra.mxu0 0.0
    %6272 = vmatprep.subr.mxu0 0.0
    %6273 = vmatpush1.msra.mxu0 0.0
    %6274 = vmatprep.subr.mxu0 0.0
    %6275 = vmatpush1.msra.mxu0 0.0
    %6276 = vmatprep.subr.mxu0 0.0
    %6277 = vmatpush1.msra.mxu0 0.0
    %6278 = vmatprep.mubr.f32.mxu0 0.0
    %6279 = vmatmul.mubr.f32.gmra.mrb[0].mxu0 %v5293
    %v6280 = vpop.f32.mrb[0].mxu0
    %v6281 = vadd.f32 0.0, %v6280
    %v6282 = vpop.f32.mrb[0].mxu0
    %6283 = vmatprep.mubr.f32.mxu0 0.0
    %6284 = vmatmul.mubr.f32.gmra.mrb[0].mxu0 %v5296
    %v6285 = vpop.f32.mrb[0].mxu0
    %v6286 = vadd.f32 0.0, %v6285
    %v6287 = vpop.f32.mrb[0].mxu0
    %6288 = vmatprep.mubr.f32.mxu0 0.0
    %6289 = vmatmul.mubr.f32.gmra.mrb[0].mxu0 %v5299
    %v6290 = vpop.f32.mrb[0].mxu0
    %v6291 = vadd.f32 0.0, %v6290
    %v6292 = vpop.f32.mrb[0].mxu0
    %6293 = vmatprep.mubr.f32.mxu0 0.0
    %6294 = vmatmul.mubr.f32.gmra.mrb[0].mxu0 %v5302
    %v6295 = vpop.f32.mrb[0].mxu0
    %v6296 = vadd.f32 0.0, %v6295
    %v6297 = vpop.f32.mrb[0].mxu0
    %6298 = vmatprep.mubr.f32.mxu0 0.0
    %6299 = vmatmul.mubr.f32.gmra.mrb[0].mxu0 %v5305
    %v6300 = vpop.f32.mrb[0].mxu0
    %v6301 = vadd.f32 0.0, %v6300
    %v6302 = vpop.f32.mrb[0].mxu0
    %6303 = vmatprep.mubr.f32.mxu0 0.0
    %6304 = vmatmul.mubr.f32.gmra.mrb[0].mxu0 %v5308
    %v6305 = vpop.f32.mrb[0].mxu0
    %v6306 = vadd.f32 0.0, %v6305
    %v6307 = vpop.f32.mrb[0].mxu0
    %6308 = vmatprep.mubr.f32.mxu0 0.0
    %6309 = vmatmul.mubr.f32.gmra.mrb[0].mxu0 %v5311
    %v6310 = vpop.f32.mrb[0].mxu0
    %v6311 = vadd.f32 0.0, %v6310
    %v6312 = vpop.f32.mrb[0].mxu0
    %6313 = vmatprep.mubr.f32.mxu0 0.0
    %6314 = vmatmul.mubr.f32.gmra.mrb[0].mxu0 %v5314
    %v6315 = vpop.f32.mrb[0].mxu0
    %v6316 = vadd.f32 0.0, %v6315
    %v6317 = vpop.f32.mrb[0].mxu0
    %6318 = vmatprep.mubr.f32.mxu0 0.0
    %6319 = vmatmul.mubr.f32.gmra.mrb[0].mxu0 %v5317
    %v6320 = vpop.f32.mrb[0].mxu0
    %v6321 = vadd.f32 0.0, %v6320
    %v6322 = vpop.f32.mrb[0].mxu0
    %6323 = vmatprep.mubr.f32.mxu0 0.0
    %6324 = vmatmul.mubr.f32.gmra.mrb[0].mxu0 %v5320
    %v6325 = vpop.f32.mrb[0].mxu0
    %v6326 = vadd.f32 0.0, %v6325
    %v6327 = vpop.f32.mrb[0].mxu0
    %6328 = vmatprep.mubr.f32.mxu0 0.0
    %6329 = vmatmul.mubr.f32.gmra.mrb[0].mxu0 %v5323
    %v6330 = vpop.f32.mrb[0].mxu0
    %v6331 = vadd.f32 0.0, %v6330
    %v6332 = vpop.f32.mrb[0].mxu0
    %6333 = vmatprep.mubr.f32.mxu0 0.0
    %6334 = vmatmul.mubr.f32.gmra.mrb[0].mxu0 %v5326
    %v6335 = vpop.f32.mrb[0].mxu0
    %v6336 = vadd.f32 0.0, %v6335
    %v6337 = vpop.f32.mrb[0].mxu0
    %6338 = vdwg.mxu0
    %s6339 = scalar_lea.vmem %s41, 96
    %v6340 = vld [vmem:[%s6339] sm:$0xff]
    %v6341 = vld [vmem:[%s6339 + $0x8] sm:$0xff]
    %v6342 = vld [vmem:[%s6339 + $0x10] sm:$0xff]
    %v6343 = vld [vmem:[%s6339 + $0x18] sm:$0xff]
    %6344 = vmatprep.subr.mxu0 0.0
    %6345 = vmatpush1.msra.mxu0 %v6340
    %6346 = vmatprep.subr.mxu0 0.0
    %6347 = vmatpush1.msra.mxu0 %v6341
    %6348 = vmatprep.subr.mxu0 0.0
    %6349 = vmatpush1.msra.mxu0 %v6342
    %6350 = vmatprep.subr.mxu0 0.0
    %6351 = vmatpush1.msra.mxu0 %v6343
    %6352 = vmatprep.subr.mxu0 0.0
    %6353 = vmatpush1.msra.mxu0 0.0
    %6354 = vmatprep.subr.mxu0 0.0
    %6355 = vmatpush1.msra.mxu0 0.0
    %6356 = vmatprep.subr.mxu0 0.0
    %6357 = vmatpush1.msra.mxu0 0.0
    %6358 = vmatprep.subr.mxu0 0.0
    %6359 = vmatpush1.msra.mxu0 0.0
    %6360 = vmatprep.subr.mxu0 0.0
    %6361 = vmatpush1.msra.mxu0 0.0
    %6362 = vmatprep.subr.mxu0 0.0
    %6363 = vmatpush1.msra.mxu0 0.0
    %6364 = vmatprep.subr.mxu0 0.0
    %6365 = vmatpush1.msra.mxu0 0.0
    %6366 = vmatprep.subr.mxu0 0.0
    %6367 = vmatpush1.msra.mxu0 0.0
    %6368 = vmatprep.subr.mxu0 0.0
    %6369 = vmatpush1.msra.mxu0 0.0
    %6370 = vmatprep.subr.mxu0 0.0
    %6371 = vmatpush1.msra.mxu0 0.0
    %6372 = vmatprep.subr.mxu0 0.0
    %6373 = vmatpush1.msra.mxu0 0.0
    %6374 = vmatprep.subr.mxu0 0.0
    %6375 = vmatpush1.msra.mxu0 0.0
    %6376 = vmatprep.subr.mxu0 0.0
    %6377 = vmatpush1.msra.mxu0 0.0
    %6378 = vmatprep.subr.mxu0 0.0
    %6379 = vmatpush1.msra.mxu0 0.0
    %6380 = vmatprep.subr.mxu0 0.0
    %6381 = vmatpush1.msra.mxu0 0.0
    %6382 = vmatprep.subr.mxu0 0.0
    %6383 = vmatpush1.msra.mxu0 0.0
    %6384 = vmatprep.subr.mxu0 0.0
    %6385 = vmatpush1.msra.mxu0 0.0
    %6386 = vmatprep.subr.mxu0 0.0
    %6387 = vmatpush1.msra.mxu0 0.0
    %6388 = vmatprep.subr.mxu0 0.0
    %6389 = vmatpush1.msra.mxu0 0.0
    %6390 = vmatprep.subr.mxu0 0.0
    %6391 = vmatpush1.msra.mxu0 0.0
    %6392 = vmatprep.subr.mxu0 0.0
    %6393 = vmatpush1.msra.mxu0 0.0
    %6394 = vmatprep.subr.mxu0 0.0
    %6395 = vmatpush1.msra.mxu0 0.0
    %6396 = vmatprep.subr.mxu0 0.0
    %6397 = vmatpush1.msra.mxu0 0.0
    %6398 = vmatprep.subr.mxu0 0.0
    %6399 = vmatpush1.msra.mxu0 0.0
    %6400 = vmatprep.subr.mxu0 0.0
    %6401 = vmatpush1.msra.mxu0 0.0
    %6402 = vmatprep.subr.mxu0 0.0
    %6403 = vmatpush1.msra.mxu0 0.0
    %6404 = vmatprep.subr.mxu0 0.0
    %6405 = vmatpush1.msra.mxu0 0.0
    %6406 = vmatprep.subr.mxu0 0.0
    %6407 = vmatpush1.msra.mxu0 0.0
    %6408 = vmatprep.mubr.f32.mxu0 0.0
    %6409 = vmatmul.mubr.f32.gmra.mrb[0].mxu0 %v5293
    %v6410 = vpop.f32.mrb[0].mxu0
    %v6411 = vadd.f32 0.0, %v6410
    %v6412 = vpop.f32.mrb[0].mxu0
    %6413 = vmatprep.mubr.f32.mxu0 0.0
    %6414 = vmatmul.mubr.f32.gmra.mrb[0].mxu0 %v5296
    %v6415 = vpop.f32.mrb[0].mxu0
    %v6416 = vadd.f32 0.0, %v6415
    %v6417 = vpop.f32.mrb[0].mxu0
    %6418 = vmatprep.mubr.f32.mxu0 0.0
    %6419 = vmatmul.mubr.f32.gmra.mrb[0].mxu0 %v5299
    %v6420 = vpop.f32.mrb[0].mxu0
    %v6421 = vadd.f32 0.0, %v6420
    %v6422 = vpop.f32.mrb[0].mxu0
    %6423 = vmatprep.mubr.f32.mxu0 0.0
    %6424 = vmatmul.mubr.f32.gmra.mrb[0].mxu0 %v5302
    %v6425 = vpop.f32.mrb[0].mxu0
    %v6426 = vadd.f32 0.0, %v6425
    %v6427 = vpop.f32.mrb[0].mxu0
    %6428 = vmatprep.mubr.f32.mxu0 0.0
    %6429 = vmatmul.mubr.f32.gmra.mrb[0].mxu0 %v5305
    %v6430 = vpop.f32.mrb[0].mxu0
    %v6431 = vadd.f32 0.0, %v6430
    %v6432 = vpop.f32.mrb[0].mxu0
    %6433 = vmatprep.mubr.f32.mxu0 0.0
    %6434 = vmatmul.mubr.f32.gmra.mrb[0].mxu0 %v5308
    %v6435 = vpop.f32.mrb[0].mxu0
    %v6436 = vadd.f32 0.0, %v6435
    %v6437 = vpop.f32.mrb[0].mxu0
    %6438 = vmatprep.mubr.f32.mxu0 0.0
    %6439 = vmatmul.mubr.f32.gmra.mrb[0].mxu0 %v5311
    %v6440 = vpop.f32.mrb[0].mxu0
    %v6441 = vadd.f32 0.0, %v6440
    %v6442 = vpop.f32.mrb[0].mxu0
    %6443 = vmatprep.mubr.f32.mxu0 0.0
    %6444 = vmatmul.mubr.f32.gmra.mrb[0].mxu0 %v5314
    %v6445 = vpop.f32.mrb[0].mxu0
    %v6446 = vadd.f32 0.0, %v6445
    %v6447 = vpop.f32.mrb[0].mxu0
    %6448 = vmatprep.mubr.f32.mxu0 0.0
    %6449 = vmatmul.mubr.f32.gmra.mrb[0].mxu0 %v5317
    %v6450 = vpop.f32.mrb[0].mxu0
    %v6451 = vadd.f32 0.0, %v6450
    %v6452 = vpop.f32.mrb[0].mxu0
    %6453 = vmatprep.mubr.f32.mxu0 0.0
    %6454 = vmatmul.mubr.f32.gmra.mrb[0].mxu0 %v5320
    %v6455 = vpop.f32.mrb[0].mxu0
    %v6456 = vadd.f32 0.0, %v6455
    %v6457 = vpop.f32.mrb[0].mxu0
    %6458 = vmatprep.mubr.f32.mxu0 0.0
    %6459 = vmatmul.mubr.f32.gmra.mrb[0].mxu0 %v5323
    %v6460 = vpop.f32.mrb[0].mxu0
    %v6461 = vadd.f32 0.0, %v6460
    %v6462 = vpop.f32.mrb[0].mxu0
    %6463 = vmatprep.mubr.f32.mxu0 0.0
    %6464 = vmatmul.mubr.f32.gmra.mrb[0].mxu0 %v5326
    %v6465 = vpop.f32.mrb[0].mxu0
    %v6466 = vadd.f32 0.0, %v6465
    %v6467 = vpop.f32.mrb[0].mxu0
    %6468 = vdwg.mxu0
    %s6469 = scalar_lea.vmem [#allocation22], 96
    %v6470 = vld [vmem:[%s6469] sm:$0xff]
    %v6471 = vld [vmem:[%s6469 + $0x8] sm:$0xff]
    %v6472 = vld [vmem:[%s6469 + $0x10] sm:$0xff]
    %v6473 = vld [vmem:[%s6469 + $0x18] sm:$0xff]
    %6474 = vmatprep.subr.mxu0 0.0
    %6475 = vmatpush1.msra.mxu0 %v6470
    %6476 = vmatprep.subr.mxu0 0.0
    %6477 = vmatpush1.msra.mxu0 %v6471
    %6478 = vmatprep.subr.mxu0 0.0
    %6479 = vmatpush1.msra.mxu0 %v6472
    %6480 = vmatprep.subr.mxu0 0.0
    %6481 = vmatpush1.msra.mxu0 %v6473
    %6482 = vmatprep.subr.mxu0 0.0
    %6483 = vmatpush1.msra.mxu0 0.0
    %6484 = vmatprep.subr.mxu0 0.0
    %6485 = vmatpush1.msra.mxu0 0.0
    %6486 = vmatprep.subr.mxu0 0.0
    %6487 = vmatpush1.msra.mxu0 0.0
    %6488 = vmatprep.subr.mxu0 0.0
    %6489 = vmatpush1.msra.mxu0 0.0
    %6490 = vmatprep.subr.mxu0 0.0
    %6491 = vmatpush1.msra.mxu0 0.0
    %6492 = vmatprep.subr.mxu0 0.0
    %6493 = vmatpush1.msra.mxu0 0.0
    %6494 = vmatprep.subr.mxu0 0.0
    %6495 = vmatpush1.msra.mxu0 0.0
    %6496 = vmatprep.subr.mxu0 0.0
    %6497 = vmatpush1.msra.mxu0 0.0
    %6498 = vmatprep.subr.mxu0 0.0
    %6499 = vmatpush1.msra.mxu0 0.0
    %6500 = vmatprep.subr.mxu0 0.0
    %6501 = vmatpush1.msra.mxu0 0.0
    %6502 = vmatprep.subr.mxu0 0.0
    %6503 = vmatpush1.msra.mxu0 0.0
    %6504 = vmatprep.subr.mxu0 0.0
    %6505 = vmatpush1.msra.mxu0 0.0
    %6506 = vmatprep.subr.mxu0 0.0
    %6507 = vmatpush1.msra.mxu0 0.0
    %6508 = vmatprep.subr.mxu0 0.0
    %6509 = vmatpush1.msra.mxu0 0.0
    %6510 = vmatprep.subr.mxu0 0.0
    %6511 = vmatpush1.msra.mxu0 0.0
    %6512 = vmatprep.subr.mxu0 0.0
    %6513 = vmatpush1.msra.mxu0 0.0
    %6514 = vmatprep.subr.mxu0 0.0
    %6515 = vmatpush1.msra.mxu0 0.0
    %6516 = vmatprep.subr.mxu0 0.0
    %6517 = vmatpush1.msra.mxu0 0.0
    %6518 = vmatprep.subr.mxu0 0.0
    %6519 = vmatpush1.msra.mxu0 0.0
    %6520 = vmatprep.subr.mxu0 0.0
    %6521 = vmatpush1.msra.mxu0 0.0
    %6522 = vmatprep.subr.mxu0 0.0
    %6523 = vmatpush1.msra.mxu0 0.0
    %6524 = vmatprep.subr.mxu0 0.0
    %6525 = vmatpush1.msra.mxu0 0.0
    %6526 = vmatprep.subr.mxu0 0.0
    %6527 = vmatpush1.msra.mxu0 0.0
    %6528 = vmatprep.subr.mxu0 0.0
    %6529 = vmatpush1.msra.mxu0 0.0
    %6530 = vmatprep.subr.mxu0 0.0
    %6531 = vmatpush1.msra.mxu0 0.0
    %6532 = vmatprep.subr.mxu0 0.0
    %6533 = vmatpush1.msra.mxu0 0.0
    %6534 = vmatprep.subr.mxu0 0.0
    %6535 = vmatpush1.msra.mxu0 0.0
    %6536 = vmatprep.subr.mxu0 0.0
    %6537 = vmatpush1.msra.mxu0 0.0
    %6538 = vmatprep.mubr.f32.mxu0 0.0
    %6539 = vmatmul.mubr.f32.gmra.mrb[0].mxu0 %v5293
    %v6540 = vpop.f32.mrb[0].mxu0
    %v6541 = vadd.f32 0.0, %v6540
    %v6542 = vpop.f32.mrb[0].mxu0
    %6543 = vmatprep.mubr.f32.mxu0 0.0
    %6544 = vmatmul.mubr.f32.gmra.mrb[0].mxu0 %v5296
    %v6545 = vpop.f32.mrb[0].mxu0
    %v6546 = vadd.f32 0.0, %v6545
    %v6547 = vpop.f32.mrb[0].mxu0
    %6548 = vmatprep.mubr.f32.mxu0 0.0
    %6549 = vmatmul.mubr.f32.gmra.mrb[0].mxu0 %v5299
    %v6550 = vpop.f32.mrb[0].mxu0
    %v6551 = vadd.f32 0.0, %v6550
    %v6552 = vpop.f32.mrb[0].mxu0
    %6553 = vmatprep.mubr.f32.mxu0 0.0
    %6554 = vmatmul.mubr.f32.gmra.mrb[0].mxu0 %v5302
    %v6555 = vpop.f32.mrb[0].mxu0
    %v6556 = vadd.f32 0.0, %v6555
    %v6557 = vpop.f32.mrb[0].mxu0
    %6558 = vmatprep.mubr.f32.mxu0 0.0
    %6559 = vmatmul.mubr.f32.gmra.mrb[0].mxu0 %v5305
    %v6560 = vpop.f32.mrb[0].mxu0
    %v6561 = vadd.f32 0.0, %v6560
    %v6562 = vpop.f32.mrb[0].mxu0
    %6563 = vmatprep.mubr.f32.mxu0 0.0
    %6564 = vmatmul.mubr.f32.gmra.mrb[0].mxu0 %v5308
    %v6565 = vpop.f32.mrb[0].mxu0
    %v6566 = vadd.f32 0.0, %v6565
    %v6567 = vpop.f32.mrb[0].mxu0
    %6568 = vmatprep.mubr.f32.mxu0 0.0
    %6569 = vmatmul.mubr.f32.gmra.mrb[0].mxu0 %v5311
    %v6570 = vpop.f32.mrb[0].mxu0
    %v6571 = vadd.f32 0.0, %v6570
    %v6572 = vpop.f32.mrb[0].mxu0
    %6573 = vmatprep.mubr.f32.mxu0 0.0
    %6574 = vmatmul.mubr.f32.gmra.mrb[0].mxu0 %v5314
    %v6575 = vpop.f32.mrb[0].mxu0
    %v6576 = vadd.f32 0.0, %v6575
    %v6577 = vpop.f32.mrb[0].mxu0
    %6578 = vmatprep.mubr.f32.mxu0 0.0
    %6579 = vmatmul.mubr.f32.gmra.mrb[0].mxu0 %v5317
    %v6580 = vpop.f32.mrb[0].mxu0
    %v6581 = vadd.f32 0.0, %v6580
    %v6582 = vpop.f32.mrb[0].mxu0
    %6583 = vmatprep.mubr.f32.mxu0 0.0
    %6584 = vmatmul.mubr.f32.gmra.mrb[0].mxu0 %v5320
    %v6585 = vpop.f32.mrb[0].mxu0
    %v6586 = vadd.f32 0.0, %v6585
    %v6587 = vpop.f32.mrb[0].mxu0
    %6588 = vmatprep.mubr.f32.mxu0 0.0
    %6589 = vmatmul.mubr.f32.gmra.mrb[0].mxu0 %v5323
    %v6590 = vpop.f32.mrb[0].mxu0
    %v6591 = vadd.f32 0.0, %v6590
    %v6592 = vpop.f32.mrb[0].mxu0
    %6593 = vmatprep.mubr.f32.mxu0 0.0
    %6594 = vmatmul.mubr.f32.gmra.mrb[0].mxu0 %v5326
    %v6595 = vpop.f32.mrb[0].mxu0
    %v6596 = vadd.f32 0.0, %v6595
    %v6597 = vpop.f32.mrb[0].mxu0
    %6598 = vdwg.mxu0
    %v6600 = vsel %vm1019, %v6281, 0
    %v6603 = vsel %vm1019, %v6286, 0
    %v6606 = vsel %vm1019, %v6291, 0
    %v6609 = vsel %vm1019, %v6296, 0
    %v6612 = vsel %vm1019, %v6301, 0
    %v6615 = vsel %vm1019, %v6306, 0
    %v6618 = vsel %vm1019, %v6311, 0
    %v6621 = vsel %vm1019, %v6316, 0
    %v6624 = vsel %vm1019, %v6321, 0
    %v6627 = vsel %vm1019, %v6326, 0
    %v6630 = vsel %vm1019, %v6331, 0
    %v6633 = vsel %vm1019, %v6336, 0
    %v6636 = vsel %vm1019, %v6411, 0
    %v6639 = vsel %vm1019, %v6416, 0
    %v6642 = vsel %vm1019, %v6421, 0
    %v6645 = vsel %vm1019, %v6426, 0
    %v6648 = vsel %vm1019, %v6431, 0
    %v6651 = vsel %vm1019, %v6436, 0
    %v6654 = vsel %vm1019, %v6441, 0
    %v6657 = vsel %vm1019, %v6446, 0
    %v6660 = vsel %vm1019, %v6451, 0
    %v6663 = vsel %vm1019, %v6456, 0
    %v6666 = vsel %vm1019, %v6461, 0
    %v6669 = vsel %vm1019, %v6466, 0
    %6671 = vmatprep.subr.mxu0 0.0
    %6672 = vmatpush1.xpose.msra.mxu0 %v6636
    %6673 = vmatprep.subr.mxu0 0.0
    %6674 = vmatpush1.xpose.msra.mxu0 %v6639
    %6675 = vmatprep.subr.mxu0 0.0
    %6676 = vmatpush1.xpose.msra.mxu0 %v6642
    %6677 = vmatprep.subr.mxu0 0.0
    %6678 = vmatpush1.xpose.msra.mxu0 %v6645
    %6679 = vmatprep.subr.mxu0 0.0
    %6680 = vmatpush1.xpose.msra.mxu0 %v6648
    %6681 = vmatprep.subr.mxu0 0.0
    %6682 = vmatpush1.xpose.msra.mxu0 %v6651
    %6683 = vmatprep.subr.mxu0 0.0
    %6684 = vmatpush1.xpose.msra.mxu0 %v6654
    %6685 = vmatprep.subr.mxu0 0.0
    %6686 = vmatpush1.xpose.msra.mxu0 %v6657
    %6687 = vmatprep.subr.mxu0 0.0
    %6688 = vmatpush1.xpose.msra.mxu0 %v6660
    %6689 = vmatprep.subr.mxu0 0.0
    %6690 = vmatpush1.xpose.msra.mxu0 %v6663
    %6691 = vmatprep.subr.mxu0 0.0
    %6692 = vmatpush1.xpose.msra.mxu0 %v6666
    %6693 = vmatprep.subr.mxu0 0.0
    %6694 = vmatpush1.xpose.msra.mxu0 %v6669
    %6695 = vmatprep.subr.mxu0 0.0
    %6696 = vmatpush1.xpose.msra.mxu0 0.0
    %6697 = vmatprep.subr.mxu0 0.0
    %6698 = vmatpush1.xpose.msra.mxu0 0.0
    %6699 = vmatprep.subr.mxu0 0.0
    %6700 = vmatpush1.xpose.msra.mxu0 0.0
    %6701 = vmatprep.subr.mxu0 0.0
    %6702 = vmatpush1.xpose.msra.mxu0 0.0
    %6703 = vmatprep.subr.mxu0 0.0
    %6704 = vmatpush1.xpose.msra.mxu0 0.0
    %6705 = vmatprep.subr.mxu0 0.0
    %6706 = vmatpush1.xpose.msra.mxu0 0.0
    %6707 = vmatprep.subr.mxu0 0.0
    %6708 = vmatpush1.xpose.msra.mxu0 0.0
    %6709 = vmatprep.subr.mxu0 0.0
    %6710 = vmatpush1.xpose.msra.mxu0 0.0
    %6711 = vmatprep.subr.mxu0 0.0
    %6712 = vmatpush1.xpose.msra.mxu0 0.0
    %6713 = vmatprep.subr.mxu0 0.0
    %6714 = vmatpush1.xpose.msra.mxu0 0.0
    %6715 = vmatprep.subr.mxu0 0.0
    %6716 = vmatpush1.xpose.msra.mxu0 0.0
    %6717 = vmatprep.subr.mxu0 0.0
    %6718 = vmatpush1.xpose.msra.mxu0 0.0
    %6719 = vmatprep.subr.mxu0 0.0
    %6720 = vmatpush1.xpose.msra.mxu0 0.0
    %6721 = vmatprep.subr.mxu0 0.0
    %6722 = vmatpush1.xpose.msra.mxu0 0.0
    %6723 = vmatprep.subr.mxu0 0.0
    %6724 = vmatpush1.xpose.msra.mxu0 0.0
    %6725 = vmatprep.subr.mxu0 0.0
    %6726 = vmatpush1.xpose.msra.mxu0 0.0
    %6727 = vmatprep.subr.mxu0 0.0
    %6728 = vmatpush1.xpose.msra.mxu0 0.0
    %6729 = vmatprep.subr.mxu0 0.0
    %6730 = vmatpush1.xpose.msra.mxu0 0.0
    %6731 = vmatprep.subr.mxu0 0.0
    %6732 = vmatpush1.xpose.msra.mxu0 0.0
    %6733 = vmatprep.subr.mxu0 0.0
    %6734 = vmatpush1.xpose.msra.mxu0 0.0
    %6735 = vmatprep.mubr.f32.mxu0 0.0
    %6736 = vmatmul.mubr.f32.gmra.mrb[0].mxu0 %v6600
    %v6737 = vpop.f32.mrb[0].mxu0
    %v6738 = vadd.f32 %v2247, %v6737
    %v6739 = vpop.f32.mrb[0].mxu0
    %6740 = vmatprep.mubr.f32.mxu0 0.0
    %6741 = vmatmul.mubr.f32.gmra.mrb[0].mxu0 %v6603
    %v6742 = vpop.f32.mrb[0].mxu0
    %v6743 = vadd.f32 %v2248, %v6742
    %v6744 = vpop.f32.mrb[0].mxu0
    %6745 = vmatprep.mubr.f32.mxu0 0.0
    %6746 = vmatmul.mubr.f32.gmra.mrb[0].mxu0 %v6606
    %v6747 = vpop.f32.mrb[0].mxu0
    %v6748 = vadd.f32 %v2249, %v6747
    %v6749 = vpop.f32.mrb[0].mxu0
    %6750 = vmatprep.mubr.f32.mxu0 0.0
    %6751 = vmatmul.mubr.f32.gmra.mrb[0].mxu0 %v6609
    %v6752 = vpop.f32.mrb[0].mxu0
    %v6753 = vadd.f32 %v2250, %v6752
    %v6754 = vpop.f32.mrb[0].mxu0
    %6755 = vmatprep.mubr.f32.mxu0 0.0
    %6756 = vmatmul.mubr.f32.gmra.mrb[0].mxu0 %v6612
    %v6757 = vpop.f32.mrb[0].mxu0
    %v6758 = vadd.f32 %v2251, %v6757
    %v6759 = vpop.f32.mrb[0].mxu0
    %6760 = vmatprep.mubr.f32.mxu0 0.0
    %6761 = vmatmul.mubr.f32.gmra.mrb[0].mxu0 %v6615
    %v6762 = vpop.f32.mrb[0].mxu0
    %v6763 = vadd.f32 %v2252, %v6762
    %v6764 = vpop.f32.mrb[0].mxu0
    %6765 = vmatprep.mubr.f32.mxu0 0.0
    %6766 = vmatmul.mubr.f32.gmra.mrb[0].mxu0 %v6618
    %v6767 = vpop.f32.mrb[0].mxu0
    %v6768 = vadd.f32 %v2253, %v6767
    %v6769 = vpop.f32.mrb[0].mxu0
    %6770 = vmatprep.mubr.f32.mxu0 0.0
    %6771 = vmatmul.mubr.f32.gmra.mrb[0].mxu0 %v6621
    %v6772 = vpop.f32.mrb[0].mxu0
    %v6773 = vadd.f32 %v2254, %v6772
    %v6774 = vpop.f32.mrb[0].mxu0
    %6775 = vmatprep.mubr.f32.mxu0 0.0
    %6776 = vmatmul.mubr.f32.gmra.mrb[0].mxu0 %v6624
    %v6777 = vpop.f32.mrb[0].mxu0
    %v6778 = vadd.f32 %v2255, %v6777
    %v6779 = vpop.f32.mrb[0].mxu0
    %6780 = vmatprep.mubr.f32.mxu0 0.0
    %6781 = vmatmul.mubr.f32.gmra.mrb[0].mxu0 %v6627
    %v6782 = vpop.f32.mrb[0].mxu0
    %v6783 = vadd.f32 %v2256, %v6782
    %v6784 = vpop.f32.mrb[0].mxu0
    %6785 = vmatprep.mubr.f32.mxu0 0.0
    %6786 = vmatmul.mubr.f32.gmra.mrb[0].mxu0 %v6630
    %v6787 = vpop.f32.mrb[0].mxu0
    %v6788 = vadd.f32 %v2257, %v6787
    %v6789 = vpop.f32.mrb[0].mxu0
    %6790 = vmatprep.mubr.f32.mxu0 0.0
    %6791 = vmatmul.mubr.f32.gmra.mrb[0].mxu0 %v6633
    %v6792 = vpop.f32.mrb[0].mxu0
    %v6793 = vadd.f32 %v2258, %v6792
    %v6794 = vpop.f32.mrb[0].mxu0
    %6795 = vdwg.mxu0
    %v6796 = vsel %vm2891, %v6738, -inf
    %6797 = vmax.xlane.f32.xlu0 %v6796
    %v6798 = vpop.xlane.xlu0 %6797
    %v6799 = vsel %vm2891, %v6743, -inf
    %6800 = vmax.xlane.f32.xlu0 %v6799
    %v6801 = vpop.xlane.xlu0 %6800
    %v6802 = vsel %vm2891, %v6748, -inf
    %6803 = vmax.xlane.f32.xlu0 %v6802
    %v6804 = vpop.xlane.xlu0 %6803
    %v6805 = vsel %vm2891, %v6753, -inf
    %6806 = vmax.xlane.f32.xlu0 %v6805
    %v6807 = vpop.xlane.xlu0 %6806
    %v6808 = vsel %vm2891, %v6758, -inf
    %6809 = vmax.xlane.f32.xlu0 %v6808
    %v6810 = vpop.xlane.xlu0 %6809
    %v6811 = vsel %vm2891, %v6763, -inf
    %6812 = vmax.xlane.f32.xlu0 %v6811
    %v6813 = vpop.xlane.xlu0 %6812
    %v6814 = vsel %vm2891, %v6768, -inf
    %6815 = vmax.xlane.f32.xlu0 %v6814
    %v6816 = vpop.xlane.xlu0 %6815
    %v6817 = vsel %vm2891, %v6773, -inf
    %6818 = vmax.xlane.f32.xlu0 %v6817
    %v6819 = vpop.xlane.xlu0 %6818
    %v6820 = vsel %vm2891, %v6778, -inf
    %6821 = vmax.xlane.f32.xlu0 %v6820
    %v6822 = vpop.xlane.xlu0 %6821
    %v6823 = vsel %vm2891, %v6783, -inf
    %6824 = vmax.xlane.f32.xlu0 %v6823
    %v6825 = vpop.xlane.xlu0 %6824
    %v6826 = vsel %vm2891, %v6788, -inf
    %6827 = vmax.xlane.f32.xlu0 %v6826
    %v6828 = vpop.xlane.xlu0 %6827
    %v6829 = vsel %vm2925, %v6793, -inf
    %6830 = vmax.xlane.f32.xlu0 %v6829
    %v6831 = vpop.xlane.xlu0 %6830
    %v6832 = vsub.f32 %v6738, %v6798
    %v6833 = vsub.f32 %v6743, %v6801
    %v6834 = vsub.f32 %v6748, %v6804
    %v6835 = vsub.f32 %v6753, %v6807
    %v6836 = vsub.f32 %v6758, %v6810
    %v6837 = vsub.f32 %v6763, %v6813
    %v6838 = vsub.f32 %v6768, %v6816
    %v6839 = vsub.f32 %v6773, %v6819
    %v6840 = vsub.f32 %v6778, %v6822
    %v6841 = vsub.f32 %v6783, %v6825
    %v6842 = vsub.f32 %v6788, %v6828
    %v6843 = vsub.f32 %v6793, %v6831
    %v6844 = vmul.f32 %v6832, 1.442695
    %v6845 = vpow.pop %v6844
    %v6846 = vmul.f32 %v6833, 1.442695
    %v6847 = vpow.pop %v6846
    %v6848 = vmul.f32 %v6834, 1.442695
    %v6849 = vpow.pop %v6848
    %v6850 = vmul.f32 %v6835, 1.442695
    %v6851 = vpow.pop %v6850
    %v6852 = vmul.f32 %v6836, 1.442695
    %v6853 = vpow.pop %v6852
    %v6854 = vmul.f32 %v6837, 1.442695
    %v6855 = vpow.pop %v6854
    %v6856 = vmul.f32 %v6838, 1.442695
    %v6857 = vpow.pop %v6856
    %v6858 = vmul.f32 %v6839, 1.442695
    %v6859 = vpow.pop %v6858
    %v6860 = vmul.f32 %v6840, 1.442695
    %v6861 = vpow.pop %v6860
    %v6862 = vmul.f32 %v6841, 1.442695
    %v6863 = vpow.pop %v6862
    %v6864 = vmul.f32 %v6842, 1.442695
    %v6865 = vpow.pop %v6864
    %v6866 = vmul.f32 %v6843, 1.442695
    %v6867 = vpow.pop %v6866
    %v6868 = vsel %vm2891, %v6845, 0.0
    %6869 = vadd.xlane.f32.xlu0 %v6868
    %v6870 = vpop.xlane.xlu0 %6869
    %v6871 = vsel %vm2891, %v6847, 0.0
    %6872 = vadd.xlane.f32.xlu0 %v6871
    %v6873 = vpop.xlane.xlu0 %6872
    %v6874 = vsel %vm2891, %v6849, 0.0
    %6875 = vadd.xlane.f32.xlu0 %v6874
    %v6876 = vpop.xlane.xlu0 %6875
    %v6877 = vsel %vm2891, %v6851, 0.0
    %6878 = vadd.xlane.f32.xlu0 %v6877
    %v6879 = vpop.xlane.xlu0 %6878
    %v6880 = vsel %vm2891, %v6853, 0.0
    %6881 = vadd.xlane.f32.xlu0 %v6880
    %v6882 = vpop.xlane.xlu0 %6881
    %v6883 = vsel %vm2891, %v6855, 0.0
    %6884 = vadd.xlane.f32.xlu0 %v6883
    %v6885 = vpop.xlane.xlu0 %6884
    %v6886 = vsel %vm2891, %v6857, 0.0
    %6887 = vadd.xlane.f32.xlu0 %v6886
    %v6888 = vpop.xlane.xlu0 %6887
    %v6889 = vsel %vm2891, %v6859, 0.0
    %6890 = vadd.xlane.f32.xlu0 %v6889
    %v6891 = vpop.xlane.xlu0 %6890
    %v6892 = vsel %vm2891, %v6861, 0.0
    %6893 = vadd.xlane.f32.xlu0 %v6892
    %v6894 = vpop.xlane.xlu0 %6893
    %v6895 = vsel %vm2891, %v6863, 0.0
    %6896 = vadd.xlane.f32.xlu0 %v6895
    %v6897 = vpop.xlane.xlu0 %6896
    %v6898 = vsel %vm2891, %v6865, 0.0
    %6899 = vadd.xlane.f32.xlu0 %v6898
    %v6900 = vpop.xlane.xlu0 %6899
    %v6901 = vsel %vm2925, %v6867, 0.0
    %6902 = vadd.xlane.f32.xlu0 %v6901
    %v6903 = vpop.xlane.xlu0 %6902
    %v6904 = vrcp.pop %v6870
    %v6905 = vrcp.pop %v6873
    %v6906 = vrcp.pop %v6876
    %v6907 = vrcp.pop %v6879
    %v6908 = vrcp.pop %v6882
    %v6909 = vrcp.pop %v6885
    %v6910 = vrcp.pop %v6888
    %v6911 = vrcp.pop %v6891
    %v6912 = vrcp.pop %v6894
    %v6913 = vrcp.pop %v6897
    %v6914 = vrcp.pop %v6900
    %v6915 = vrcp.pop %v6903
    %v6916 = vmul.f32 %v6845, %v6904
    %v6917 = vmul.f32 %v6847, %v6905
    %v6918 = vmul.f32 %v6849, %v6906
    %v6919 = vmul.f32 %v6851, %v6907
    %v6920 = vmul.f32 %v6853, %v6908
    %v6921 = vmul.f32 %v6855, %v6909
    %v6922 = vmul.f32 %v6857, %v6910
    %v6923 = vmul.f32 %v6859, %v6911
    %v6924 = vmul.f32 %v6861, %v6912
    %v6925 = vmul.f32 %v6863, %v6913
    %v6926 = vmul.f32 %v6865, %v6914
    %v6927 = vmul.f32 %v6867, %v6915
    %v6929 = vsel %vm2891, %v6916, 0
    %v6932 = vsel %vm2891, %v6917, 0
    %v6935 = vsel %vm2891, %v6918, 0
    %v6938 = vsel %vm2891, %v6919, 0
    %v6941 = vsel %vm2891, %v6920, 0
    %v6944 = vsel %vm2891, %v6921, 0
    %v6947 = vsel %vm2891, %v6922, 0
    %v6950 = vsel %vm2891, %v6923, 0
    %v6953 = vsel %vm2891, %v6924, 0
    %v6956 = vsel %vm2891, %v6925, 0
    %v6959 = vsel %vm2891, %v6926, 0
    %v6962 = vsel %vm2891, %v6927, 0
    %v6965 = vsel %vm1844, %v6596, 0
    %6967 = vmatprep.subr.mxu0 0.0
    %6968 = vmatpush1.msra.mxu0 %v6541
    %6969 = vmatprep.subr.mxu0 0.0
    %6970 = vmatpush1.msra.mxu0 %v6546
    %6971 = vmatprep.subr.mxu0 0.0
    %6972 = vmatpush1.msra.mxu0 %v6551
    %6973 = vmatprep.subr.mxu0 0.0
    %6974 = vmatpush1.msra.mxu0 %v6556
    %6975 = vmatprep.subr.mxu0 0.0
    %6976 = vmatpush1.msra.mxu0 %v6561
    %6977 = vmatprep.subr.mxu0 0.0
    %6978 = vmatpush1.msra.mxu0 %v6566
    %6979 = vmatprep.subr.mxu0 0.0
    %6980 = vmatpush1.msra.mxu0 %v6571
    %6981 = vmatprep.subr.mxu0 0.0
    %6982 = vmatpush1.msra.mxu0 %v6576
    %6983 = vmatprep.subr.mxu0 0.0
    %6984 = vmatpush1.msra.mxu0 %v6581
    %6985 = vmatprep.subr.mxu0 0.0
    %6986 = vmatpush1.msra.mxu0 %v6586
    %6987 = vmatprep.subr.mxu0 0.0
    %6988 = vmatpush1.msra.mxu0 %v6591
    %6989 = vmatprep.subr.mxu0 0.0
    %6990 = vmatpush1.msra.mxu0 %v6965
    %6991 = vmatprep.subr.mxu0 0.0
    %6992 = vmatpush1.msra.mxu0 0.0
    %6993 = vmatprep.subr.mxu0 0.0
    %6994 = vmatpush1.msra.mxu0 0.0
    %6995 = vmatprep.subr.mxu0 0.0
    %6996 = vmatpush1.msra.mxu0 0.0
    %6997 = vmatprep.subr.mxu0 0.0
    %6998 = vmatpush1.msra.mxu0 0.0
    %6999 = vmatprep.subr.mxu0 0.0
    %7000 = vmatpush1.msra.mxu0 0.0
    %7001 = vmatprep.subr.mxu0 0.0
    %7002 = vmatpush1.msra.mxu0 0.0
    %7003 = vmatprep.subr.mxu0 0.0
    %7004 = vmatpush1.msra.mxu0 0.0
    %7005 = vmatprep.subr.mxu0 0.0
    %7006 = vmatpush1.msra.mxu0 0.0
    %7007 = vmatprep.subr.mxu0 0.0
    %7008 = vmatpush1.msra.mxu0 0.0
    %7009 = vmatprep.subr.mxu0 0.0
    %7010 = vmatpush1.msra.mxu0 0.0
    %7011 = vmatprep.subr.mxu0 0.0
    %7012 = vmatpush1.msra.mxu0 0.0
    %7013 = vmatprep.subr.mxu0 0.0
    %7014 = vmatpush1.msra.mxu0 0.0
    %7015 = vmatprep.subr.mxu0 0.0
    %7016 = vmatpush1.msra.mxu0 0.0
    %7017 = vmatprep.subr.mxu0 0.0
    %7018 = vmatpush1.msra.mxu0 0.0
    %7019 = vmatprep.subr.mxu0 0.0
    %7020 = vmatpush1.msra.mxu0 0.0
    %7021 = vmatprep.subr.mxu0 0.0
    %7022 = vmatpush1.msra.mxu0 0.0
    %7023 = vmatprep.subr.mxu0 0.0
    %7024 = vmatpush1.msra.mxu0 0.0
    %7025 = vmatprep.subr.mxu0 0.0
    %7026 = vmatpush1.msra.mxu0 0.0
    %7027 = vmatprep.subr.mxu0 0.0
    %7028 = vmatpush1.msra.mxu0 0.0
    %7029 = vmatprep.subr.mxu0 0.0
    %7030 = vmatpush1.msra.mxu0 0.0
    %7031 = vmatprep.mubr.f32.mxu0 0.0
    %7032 = vmatmul.mubr.f32.gmra.mrb[0].mxu0 %v6929
    %v7033 = vpop.f32.mrb[0].mxu0
    %v7034 = vadd.f32 0.0, %v7033
    %v7035 = vpop.f32.mrb[0].mxu0
    %7036 = vmatprep.mubr.f32.mxu0 0.0
    %7037 = vmatmul.mubr.f32.gmra.mrb[0].mxu0 %v6932
    %v7038 = vpop.f32.mrb[0].mxu0
    %v7039 = vadd.f32 0.0, %v7038
    %v7040 = vpop.f32.mrb[0].mxu0
    %7041 = vmatprep.mubr.f32.mxu0 0.0
    %7042 = vmatmul.mubr.f32.gmra.mrb[0].mxu0 %v6935
    %v7043 = vpop.f32.mrb[0].mxu0
    %v7044 = vadd.f32 0.0, %v7043
    %v7045 = vpop.f32.mrb[0].mxu0
    %7046 = vmatprep.mubr.f32.mxu0 0.0
    %7047 = vmatmul.mubr.f32.gmra.mrb[0].mxu0 %v6938
    %v7048 = vpop.f32.mrb[0].mxu0
    %v7049 = vadd.f32 0.0, %v7048
    %v7050 = vpop.f32.mrb[0].mxu0
    %7051 = vmatprep.mubr.f32.mxu0 0.0
    %7052 = vmatmul.mubr.f32.gmra.mrb[0].mxu0 %v6941
    %v7053 = vpop.f32.mrb[0].mxu0
    %v7054 = vadd.f32 0.0, %v7053
    %v7055 = vpop.f32.mrb[0].mxu0
    %7056 = vmatprep.mubr.f32.mxu0 0.0
    %7057 = vmatmul.mubr.f32.gmra.mrb[0].mxu0 %v6944
    %v7058 = vpop.f32.mrb[0].mxu0
    %v7059 = vadd.f32 0.0, %v7058
    %v7060 = vpop.f32.mrb[0].mxu0
    %7061 = vmatprep.mubr.f32.mxu0 0.0
    %7062 = vmatmul.mubr.f32.gmra.mrb[0].mxu0 %v6947
    %v7063 = vpop.f32.mrb[0].mxu0
    %v7064 = vadd.f32 0.0, %v7063
    %v7065 = vpop.f32.mrb[0].mxu0
    %7066 = vmatprep.mubr.f32.mxu0 0.0
    %7067 = vmatmul.mubr.f32.gmra.mrb[0].mxu0 %v6950
    %v7068 = vpop.f32.mrb[0].mxu0
    %v7069 = vadd.f32 0.0, %v7068
    %v7070 = vpop.f32.mrb[0].mxu0
    %7071 = vmatprep.mubr.f32.mxu0 0.0
    %7072 = vmatmul.mubr.f32.gmra.mrb[0].mxu0 %v6953
    %v7073 = vpop.f32.mrb[0].mxu0
    %v7074 = vadd.f32 0.0, %v7073
    %v7075 = vpop.f32.mrb[0].mxu0
    %7076 = vmatprep.mubr.f32.mxu0 0.0
    %7077 = vmatmul.mubr.f32.gmra.mrb[0].mxu0 %v6956
    %v7078 = vpop.f32.mrb[0].mxu0
    %v7079 = vadd.f32 0.0, %v7078
    %v7080 = vpop.f32.mrb[0].mxu0
    %7081 = vmatprep.mubr.f32.mxu0 0.0
    %7082 = vmatmul.mubr.f32.gmra.mrb[0].mxu0 %v6959
    %v7083 = vpop.f32.mrb[0].mxu0
    %v7084 = vadd.f32 0.0, %v7083
    %v7085 = vpop.f32.mrb[0].mxu0
    %7086 = vmatprep.mubr.f32.mxu0 0.0
    %7087 = vmatmul.mubr.f32.gmra.mrb[0].mxu0 %v6962
    %v7088 = vpop.f32.mrb[0].mxu0
    %v7089 = vadd.f32 0.0, %v7088
    %v7090 = vpop.f32.mrb[0].mxu0
    %7091 = vdwg.mxu0
    %s7092 = scalar_lea.vmem [#allocation23], 48
    %v7093 = vld [vmem:[%s7092] sm:$0xff]
    %v7094 = vld [vmem:[%s7092 + $0x8] sm:$0xff]
    %v7096 = vsel %vm1019, %v7034, 0
    %v7099 = vsel %vm1019, %v7039, 0
    %v7102 = vsel %vm1019, %v7044, 0
    %v7105 = vsel %vm1019, %v7049, 0
    %v7108 = vsel %vm1019, %v7054, 0
    %v7111 = vsel %vm1019, %v7059, 0
    %v7114 = vsel %vm1019, %v7064, 0
    %v7117 = vsel %vm1019, %v7069, 0
    %v7120 = vsel %vm1019, %v7074, 0
    %v7123 = vsel %vm1019, %v7079, 0
    %v7126 = vsel %vm1019, %v7084, 0
    %v7129 = vsel %vm1019, %v7089, 0
    %7131 = vmatprep.subr.mxu0 0.0
    %7132 = vmatpush1.msra.mxu0 %v7093
    %7133 = vmatprep.subr.mxu0 0.0
    %7134 = vmatpush1.msra.mxu0 %v7094
    %7135 = vmatprep.subr.mxu0 0.0
    %7136 = vmatpush1.msra.mxu0 0.0
    %7137 = vmatprep.subr.mxu0 0.0
    %7138 = vmatpush1.msra.mxu0 0.0
    %7139 = vmatprep.subr.mxu0 0.0
    %7140 = vmatpush1.msra.mxu0 0.0
    %7141 = vmatprep.subr.mxu0 0.0
    %7142 = vmatpush1.msra.mxu0 0.0
    %7143 = vmatprep.subr.mxu0 0.0
    %7144 = vmatpush1.msra.mxu0 0.0
    %7145 = vmatprep.subr.mxu0 0.0
    %7146 = vmatpush1.msra.mxu0 0.0
    %7147 = vmatprep.subr.mxu0 0.0
    %7148 = vmatpush1.msra.mxu0 0.0
    %7149 = vmatprep.subr.mxu0 0.0
    %7150 = vmatpush1.msra.mxu0 0.0
    %7151 = vmatprep.subr.mxu0 0.0
    %7152 = vmatpush1.msra.mxu0 0.0
    %7153 = vmatprep.subr.mxu0 0.0
    %7154 = vmatpush1.msra.mxu0 0.0
    %7155 = vmatprep.subr.mxu0 0.0
    %7156 = vmatpush1.msra.mxu0 0.0
    %7157 = vmatprep.subr.mxu0 0.0
    %7158 = vmatpush1.msra.mxu0 0.0
    %7159 = vmatprep.subr.mxu0 0.0
    %7160 = vmatpush1.msra.mxu0 0.0
    %7161 = vmatprep.subr.mxu0 0.0
    %7162 = vmatpush1.msra.mxu0 0.0
    %7163 = vmatprep.subr.mxu0 0.0
    %7164 = vmatpush1.msra.mxu0 0.0
    %7165 = vmatprep.subr.mxu0 0.0
    %7166 = vmatpush1.msra.mxu0 0.0
    %7167 = vmatprep.subr.mxu0 0.0
    %7168 = vmatpush1.msra.mxu0 0.0
    %7169 = vmatprep.subr.mxu0 0.0
    %7170 = vmatpush1.msra.mxu0 0.0
    %7171 = vmatprep.subr.mxu0 0.0
    %7172 = vmatpush1.msra.mxu0 0.0
    %7173 = vmatprep.subr.mxu0 0.0
    %7174 = vmatpush1.msra.mxu0 0.0
    %7175 = vmatprep.subr.mxu0 0.0
    %7176 = vmatpush1.msra.mxu0 0.0
    %7177 = vmatprep.subr.mxu0 0.0
    %7178 = vmatpush1.msra.mxu0 0.0
    %7179 = vmatprep.subr.mxu0 0.0
    %7180 = vmatpush1.msra.mxu0 0.0
    %7181 = vmatprep.subr.mxu0 0.0
    %7182 = vmatpush1.msra.mxu0 0.0
    %7183 = vmatprep.subr.mxu0 0.0
    %7184 = vmatpush1.msra.mxu0 0.0
    %7185 = vmatprep.subr.mxu0 0.0
    %7186 = vmatpush1.msra.mxu0 0.0
    %7187 = vmatprep.subr.mxu0 0.0
    %7188 = vmatpush1.msra.mxu0 0.0
    %7189 = vmatprep.subr.mxu0 0.0
    %7190 = vmatpush1.msra.mxu0 0.0
    %7191 = vmatprep.subr.mxu0 0.0
    %7192 = vmatpush1.msra.mxu0 0.0
    %7193 = vmatprep.subr.mxu0 0.0
    %7194 = vmatpush1.msra.mxu0 0.0
    %7195 = vmatprep.mubr.f32.mxu0 0.0
    %7196 = vmatmul.mubr.f32.gmra.mrb[0].mxu0 %v7096
    %v7197 = vpop.f32.mrb[0].mxu0
    %v7198 = vadd.f32 0.0, %v7197
    %v7199 = vpop.f32.mrb[0].mxu0
    %7200 = vmatprep.mubr.f32.mxu0 0.0
    %7201 = vmatmul.mubr.f32.gmra.mrb[0].mxu0 %v7099
    %v7202 = vpop.f32.mrb[0].mxu0
    %v7203 = vadd.f32 0.0, %v7202
    %v7204 = vpop.f32.mrb[0].mxu0
    %7205 = vmatprep.mubr.f32.mxu0 0.0
    %7206 = vmatmul.mubr.f32.gmra.mrb[0].mxu0 %v7102
    %v7207 = vpop.f32.mrb[0].mxu0
    %v7208 = vadd.f32 0.0, %v7207
    %v7209 = vpop.f32.mrb[0].mxu0
    %7210 = vmatprep.mubr.f32.mxu0 0.0
    %7211 = vmatmul.mubr.f32.gmra.mrb[0].mxu0 %v7105
    %v7212 = vpop.f32.mrb[0].mxu0
    %v7213 = vadd.f32 0.0, %v7212
    %v7214 = vpop.f32.mrb[0].mxu0
    %7215 = vmatprep.mubr.f32.mxu0 0.0
    %7216 = vmatmul.mubr.f32.gmra.mrb[0].mxu0 %v7108
    %v7217 = vpop.f32.mrb[0].mxu0
    %v7218 = vadd.f32 0.0, %v7217
    %v7219 = vpop.f32.mrb[0].mxu0
    %7220 = vmatprep.mubr.f32.mxu0 0.0
    %7221 = vmatmul.mubr.f32.gmra.mrb[0].mxu0 %v7111
    %v7222 = vpop.f32.mrb[0].mxu0
    %v7223 = vadd.f32 0.0, %v7222
    %v7224 = vpop.f32.mrb[0].mxu0
    %7225 = vmatprep.mubr.f32.mxu0 0.0
    %7226 = vmatmul.mubr.f32.gmra.mrb[0].mxu0 %v7114
    %v7227 = vpop.f32.mrb[0].mxu0
    %v7228 = vadd.f32 0.0, %v7227
    %v7229 = vpop.f32.mrb[0].mxu0
    %7230 = vmatprep.mubr.f32.mxu0 0.0
    %7231 = vmatmul.mubr.f32.gmra.mrb[0].mxu0 %v7117
    %v7232 = vpop.f32.mrb[0].mxu0
    %v7233 = vadd.f32 0.0, %v7232
    %v7234 = vpop.f32.mrb[0].mxu0
    %7235 = vmatprep.mubr.f32.mxu0 0.0
    %7236 = vmatmul.mubr.f32.gmra.mrb[0].mxu0 %v7120
    %v7237 = vpop.f32.mrb[0].mxu0
    %v7238 = vadd.f32 0.0, %v7237
    %v7239 = vpop.f32.mrb[0].mxu0
    %7240 = vmatprep.mubr.f32.mxu0 0.0
    %7241 = vmatmul.mubr.f32.gmra.mrb[0].mxu0 %v7123
    %v7242 = vpop.f32.mrb[0].mxu0
    %v7243 = vadd.f32 0.0, %v7242
    %v7244 = vpop.f32.mrb[0].mxu0
    %7245 = vmatprep.mubr.f32.mxu0 0.0
    %7246 = vmatmul.mubr.f32.gmra.mrb[0].mxu0 %v7126
    %v7247 = vpop.f32.mrb[0].mxu0
    %v7248 = vadd.f32 0.0, %v7247
    %v7249 = vpop.f32.mrb[0].mxu0
    %7250 = vmatprep.mubr.f32.mxu0 0.0
    %7251 = vmatmul.mubr.f32.gmra.mrb[0].mxu0 %v7129
    %v7252 = vpop.f32.mrb[0].mxu0
    %v7253 = vadd.f32 0.0, %v7252
    %v7254 = vpop.f32.mrb[0].mxu0
    %7255 = vdwg.mxu0
    %v7257 = vsel %vm1019, %v6148, 0
    %v7260 = vsel %vm1019, %v6153, 0
    %v7263 = vsel %vm1019, %v6158, 0
    %v7266 = vsel %vm1019, %v6163, 0
    %v7269 = vsel %vm1019, %v6168, 0
    %v7272 = vsel %vm1019, %v6173, 0
    %v7275 = vsel %vm1019, %v6178, 0
    %v7278 = vsel %vm1019, %v6183, 0
    %v7281 = vsel %vm1019, %v6188, 0
    %v7284 = vsel %vm1019, %v6193, 0
    %v7287 = vsel %vm1019, %v6198, 0
    %v7290 = vsel %vm1019, %v6203, 0
    %7292 = vmatprep.subr.mxu0 0.0
    %7293 = vmatpush1.msra.mxu0 %v6207
    %7294 = vmatprep.subr.mxu0 0.0
    %7295 = vmatpush1.msra.mxu0 %v6208
    %7296 = vmatprep.subr.mxu0 0.0
    %7297 = vmatpush1.msra.mxu0 0.0
    %7298 = vmatprep.subr.mxu0 0.0
    %7299 = vmatpush1.msra.mxu0 0.0
    %7300 = vmatprep.subr.mxu0 0.0
    %7301 = vmatpush1.msra.mxu0 0.0
    %7302 = vmatprep.subr.mxu0 0.0
    %7303 = vmatpush1.msra.mxu0 0.0
    %7304 = vmatprep.subr.mxu0 0.0
    %7305 = vmatpush1.msra.mxu0 0.0
    %7306 = vmatprep.subr.mxu0 0.0
    %7307 = vmatpush1.msra.mxu0 0.0
    %7308 = vmatprep.subr.mxu0 0.0
    %7309 = vmatpush1.msra.mxu0 0.0
    %7310 = vmatprep.subr.mxu0 0.0
    %7311 = vmatpush1.msra.mxu0 0.0
    %7312 = vmatprep.subr.mxu0 0.0
    %7313 = vmatpush1.msra.mxu0 0.0
    %7314 = vmatprep.subr.mxu0 0.0
    %7315 = vmatpush1.msra.mxu0 0.0
    %7316 = vmatprep.subr.mxu0 0.0
    %7317 = vmatpush1.msra.mxu0 0.0
    %7318 = vmatprep.subr.mxu0 0.0
    %7319 = vmatpush1.msra.mxu0 0.0
    %7320 = vmatprep.subr.mxu0 0.0
    %7321 = vmatpush1.msra.mxu0 0.0
    %7322 = vmatprep.subr.mxu0 0.0
    %7323 = vmatpush1.msra.mxu0 0.0
    %7324 = vmatprep.subr.mxu0 0.0
    %7325 = vmatpush1.msra.mxu0 0.0
    %7326 = vmatprep.subr.mxu0 0.0
    %7327 = vmatpush1.msra.mxu0 0.0
    %7328 = vmatprep.subr.mxu0 0.0
    %7329 = vmatpush1.msra.mxu0 0.0
    %7330 = vmatprep.subr.mxu0 0.0
    %7331 = vmatpush1.msra.mxu0 0.0
    %7332 = vmatprep.subr.mxu0 0.0
    %7333 = vmatpush1.msra.mxu0 0.0
    %7334 = vmatprep.subr.mxu0 0.0
    %7335 = vmatpush1.msra.mxu0 0.0
    %7336 = vmatprep.subr.mxu0 0.0
    %7337 = vmatpush1.msra.mxu0 0.0
    %7338 = vmatprep.subr.mxu0 0.0
    %7339 = vmatpush1.msra.mxu0 0.0
    %7340 = vmatprep.subr.mxu0 0.0
    %7341 = vmatpush1.msra.mxu0 0.0
    %7342 = vmatprep.subr.mxu0 0.0
    %7343 = vmatpush1.msra.mxu0 0.0
    %7344 = vmatprep.subr.mxu0 0.0
    %7345 = vmatpush1.msra.mxu0 0.0
    %7346 = vmatprep.subr.mxu0 0.0
    %7347 = vmatpush1.msra.mxu0 0.0
    %7348 = vmatprep.subr.mxu0 0.0
    %7349 = vmatpush1.msra.mxu0 0.0
    %7350 = vmatprep.subr.mxu0 0.0
    %7351 = vmatpush1.msra.mxu0 0.0
    %7352 = vmatprep.subr.mxu0 0.0
    %7353 = vmatpush1.msra.mxu0 0.0
    %7354 = vmatprep.subr.mxu0 0.0
    %7355 = vmatpush1.msra.mxu0 0.0
    %7356 = vmatprep.mubr.f32.mxu0 0.0
    %7357 = vmatmul.mubr.f32.gmra.mrb[0].mxu0 %v7257
    %v7358 = vpop.f32.mrb[0].mxu0
    %v7359 = vadd.f32 %v7198, %v7358
    %v7360 = vpop.f32.mrb[0].mxu0
    %7361 = vmatprep.mubr.f32.mxu0 0.0
    %7362 = vmatmul.mubr.f32.gmra.mrb[0].mxu0 %v7260
    %v7363 = vpop.f32.mrb[0].mxu0
    %v7364 = vadd.f32 %v7203, %v7363
    %v7365 = vpop.f32.mrb[0].mxu0
    %7366 = vmatprep.mubr.f32.mxu0 0.0
    %7367 = vmatmul.mubr.f32.gmra.mrb[0].mxu0 %v7263
    %v7368 = vpop.f32.mrb[0].mxu0
    %v7369 = vadd.f32 %v7208, %v7368
    %v7370 = vpop.f32.mrb[0].mxu0
    %7371 = vmatprep.mubr.f32.mxu0 0.0
    %7372 = vmatmul.mubr.f32.gmra.mrb[0].mxu0 %v7266
    %v7373 = vpop.f32.mrb[0].mxu0
    %v7374 = vadd.f32 %v7213, %v7373
    %v7375 = vpop.f32.mrb[0].mxu0
    %7376 = vmatprep.mubr.f32.mxu0 0.0
    %7377 = vmatmul.mubr.f32.gmra.mrb[0].mxu0 %v7269
    %v7378 = vpop.f32.mrb[0].mxu0
    %v7379 = vadd.f32 %v7218, %v7378
    %v7380 = vpop.f32.mrb[0].mxu0
    %7381 = vmatprep.mubr.f32.mxu0 0.0
    %7382 = vmatmul.mubr.f32.gmra.mrb[0].mxu0 %v7272
    %v7383 = vpop.f32.mrb[0].mxu0
    %v7384 = vadd.f32 %v7223, %v7383
    %v7385 = vpop.f32.mrb[0].mxu0
    %7386 = vmatprep.mubr.f32.mxu0 0.0
    %7387 = vmatmul.mubr.f32.gmra.mrb[0].mxu0 %v7275
    %v7388 = vpop.f32.mrb[0].mxu0
    %v7389 = vadd.f32 %v7228, %v7388
    %v7390 = vpop.f32.mrb[0].mxu0
    %7391 = vmatprep.mubr.f32.mxu0 0.0
    %7392 = vmatmul.mubr.f32.gmra.mrb[0].mxu0 %v7278
    %v7393 = vpop.f32.mrb[0].mxu0
    %v7394 = vadd.f32 %v7233, %v7393
    %v7395 = vpop.f32.mrb[0].mxu0
    %7396 = vmatprep.mubr.f32.mxu0 0.0
    %7397 = vmatmul.mubr.f32.gmra.mrb[0].mxu0 %v7281
    %v7398 = vpop.f32.mrb[0].mxu0
    %v7399 = vadd.f32 %v7238, %v7398
    %v7400 = vpop.f32.mrb[0].mxu0
    %7401 = vmatprep.mubr.f32.mxu0 0.0
    %7402 = vmatmul.mubr.f32.gmra.mrb[0].mxu0 %v7284
    %v7403 = vpop.f32.mrb[0].mxu0
    %v7404 = vadd.f32 %v7243, %v7403
    %v7405 = vpop.f32.mrb[0].mxu0
    %7406 = vmatprep.mubr.f32.mxu0 0.0
    %7407 = vmatmul.mubr.f32.gmra.mrb[0].mxu0 %v7287
    %v7408 = vpop.f32.mrb[0].mxu0
    %v7409 = vadd.f32 %v7248, %v7408
    %v7410 = vpop.f32.mrb[0].mxu0
    %7411 = vmatprep.mubr.f32.mxu0 0.0
    %7412 = vmatmul.mubr.f32.gmra.mrb[0].mxu0 %v7290
    %v7413 = vpop.f32.mrb[0].mxu0
    %v7414 = vadd.f32 %v7253, %v7413
    %v7415 = vpop.f32.mrb[0].mxu0
    %7416 = vdwg.mxu0
    %s7417 = scalar_lea.vmem [#allocation25], 1
    %v7418 = vld [vmem:[%s7417] sm:$0x1]
    %v7420 = vlaneseq
    %v7421 = vshrl.u32 %v7420, 7
    %v7422 = vsub.s32 0, %v7421
    %v7423 = vrot.slane %v7418, %v7422
    %v7425 = vadd.f32 %v7359, %v7423
    %v7426 = vadd.f32 %v7364, %v7423
    %v7427 = vadd.f32 %v7369, %v7423
    %v7428 = vadd.f32 %v7374, %v7423
    %v7429 = vadd.f32 %v7379, %v7423
    %v7430 = vadd.f32 %v7384, %v7423
    %v7431 = vadd.f32 %v7389, %v7423
    %v7432 = vadd.f32 %v7394, %v7423
    %v7433 = vadd.f32 %v7399, %v7423
    %v7434 = vadd.f32 %v7404, %v7423
    %v7435 = vadd.f32 %v7409, %v7423
    %v7436 = vadd.f32 %v7414, %v7423
    %v7437 = vadd.f32 %v7425, %v5275
    %v7438 = vadd.f32 %v7426, %v5276
    %v7439 = vadd.f32 %v7427, %v5277
    %v7440 = vadd.f32 %v7428, %v5278
    %v7441 = vadd.f32 %v7429, %v5279
    %v7442 = vadd.f32 %v7430, %v5280
    %v7443 = vadd.f32 %v7431, %v5281
    %v7444 = vadd.f32 %v7432, %v5282
    %v7445 = vadd.f32 %v7433, %v5283
    %v7446 = vadd.f32 %v7434, %v5284
    %v7447 = vadd.f32 %v7435, %v5285
    %v7448 = vadd.f32 %v7436, %v5286
    %s7449 = scalar_lea.vmem %s49, 1
    %v7450 = vld [vmem:[%s7449] sm:$0x1]
    %s7451 = scalar_lea.vmem %s51, 1
    %v7452 = vld [vmem:[%s7451] sm:$0x1]
    %v7453 = vsel %vm562, %v7437, 0.0
    %7454 = vadd.xlane.f32.xlu0 %v7453
    %v7455 = vpop.xlane.xlu0 %7454
    %v7456 = vsel %vm562, %v7438, 0.0
    %7457 = vadd.xlane.f32.xlu0 %v7456
    %v7458 = vpop.xlane.xlu0 %7457
    %v7459 = vsel %vm562, %v7439, 0.0
    %7460 = vadd.xlane.f32.xlu0 %v7459
    %v7461 = vpop.xlane.xlu0 %7460
    %v7462 = vsel %vm562, %v7440, 0.0
    %7463 = vadd.xlane.f32.xlu0 %v7462
    %v7464 = vpop.xlane.xlu0 %7463
    %v7465 = vsel %vm562, %v7441, 0.0
    %7466 = vadd.xlane.f32.xlu0 %v7465
    %v7467 = vpop.xlane.xlu0 %7466
    %v7468 = vsel %vm562, %v7442, 0.0
    %7469 = vadd.xlane.f32.xlu0 %v7468
    %v7470 = vpop.xlane.xlu0 %7469
    %v7471 = vsel %vm562, %v7443, 0.0
    %7472 = vadd.xlane.f32.xlu0 %v7471
    %v7473 = vpop.xlane.xlu0 %7472
    %v7474 = vsel %vm562, %v7444, 0.0
    %7475 = vadd.xlane.f32.xlu0 %v7474
    %v7476 = vpop.xlane.xlu0 %7475
    %v7477 = vsel %vm562, %v7445, 0.0
    %7478 = vadd.xlane.f32.xlu0 %v7477
    %v7479 = vpop.xlane.xlu0 %7478
    %v7480 = vsel %vm562, %v7446, 0.0
    %7481 = vadd.xlane.f32.xlu0 %v7480
    %v7482 = vpop.xlane.xlu0 %7481
    %v7483 = vsel %vm562, %v7447, 0.0
    %7484 = vadd.xlane.f32.xlu0 %v7483
    %v7485 = vpop.xlane.xlu0 %7484
    %v7486 = vsel %vm1809, %v7448, 0.0
    %7487 = vadd.xlane.f32.xlu0 %v7486
    %v7488 = vpop.xlane.xlu0 %7487
    %v7489 = vmul.f32 %v7455, %v585
    %v7490 = vmul.f32 %v7458, %v585
    %v7491 = vmul.f32 %v7461, %v585
    %v7492 = vmul.f32 %v7464, %v585
    %v7493 = vmul.f32 %v7467, %v585
    %v7494 = vmul.f32 %v7470, %v585
    %v7495 = vmul.f32 %v7473, %v585
    %v7496 = vmul.f32 %v7476, %v585
    %v7497 = vmul.f32 %v7479, %v585
    %v7498 = vmul.f32 %v7482, %v585
    %v7499 = vmul.f32 %v7485, %v585
    %v7500 = vmul.f32 %v7488, %v585
    %v7501 = vsub.f32 %v7437, %v7489
    %v7502 = vsub.f32 %v7438, %v7490
    %v7503 = vsub.f32 %v7439, %v7491
    %v7504 = vsub.f32 %v7440, %v7492
    %v7505 = vsub.f32 %v7441, %v7493
    %v7506 = vsub.f32 %v7442, %v7494
    %v7507 = vsub.f32 %v7443, %v7495
    %v7508 = vsub.f32 %v7444, %v7496
    %v7509 = vsub.f32 %v7445, %v7497
    %v7510 = vsub.f32 %v7446, %v7498
    %v7511 = vsub.f32 %v7447, %v7499
    %v7512 = vsub.f32 %v7448, %v7500
    %v7513 = vmul.f32 %v7501, %v7501
    %v7514 = vmul.f32 %v7502, %v7502
    %v7515 = vmul.f32 %v7503, %v7503
    %v7516 = vmul.f32 %v7504, %v7504
    %v7517 = vmul.f32 %v7505, %v7505
    %v7518 = vmul.f32 %v7506, %v7506
    %v7519 = vmul.f32 %v7507, %v7507
    %v7520 = vmul.f32 %v7508, %v7508
    %v7521 = vmul.f32 %v7509, %v7509
    %v7522 = vmul.f32 %v7510, %v7510
    %v7523 = vmul.f32 %v7511, %v7511
    %v7524 = vmul.f32 %v7512, %v7512
    %v7525 = vsel %vm562, %v7513, 0.0
    %7526 = vadd.xlane.f32.xlu0 %v7525
    %v7527 = vpop.xlane.xlu0 %7526
    %v7528 = vsel %vm562, %v7514, 0.0
    %7529 = vadd.xlane.f32.xlu0 %v7528
    %v7530 = vpop.xlane.xlu0 %7529
    %v7531 = vsel %vm562, %v7515, 0.0
    %7532 = vadd.xlane.f32.xlu0 %v7531
    %v7533 = vpop.xlane.xlu0 %7532
    %v7534 = vsel %vm562, %v7516, 0.0
    %7535 = vadd.xlane.f32.xlu0 %v7534
    %v7536 = vpop.xlane.xlu0 %7535
    %v7537 = vsel %vm562, %v7517, 0.0
    %7538 = vadd.xlane.f32.xlu0 %v7537
    %v7539 = vpop.xlane.xlu0 %7538
    %v7540 = vsel %vm562, %v7518, 0.0
    %7541 = vadd.xlane.f32.xlu0 %v7540
    %v7542 = vpop.xlane.xlu0 %7541
    %v7543 = vsel %vm562, %v7519, 0.0
    %7544 = vadd.xlane.f32.xlu0 %v7543
    %v7545 = vpop.xlane.xlu0 %7544
    %v7546 = vsel %vm562, %v7520, 0.0
    %7547 = vadd.xlane.f32.xlu0 %v7546
    %v7548 = vpop.xlane.xlu0 %7547
    %v7549 = vsel %vm562, %v7521, 0.0
    %7550 = vadd.xlane.f32.xlu0 %v7549
    %v7551 = vpop.xlane.xlu0 %7550
    %v7552 = vsel %vm562, %v7522, 0.0
    %7553 = vadd.xlane.f32.xlu0 %v7552
    %v7554 = vpop.xlane.xlu0 %7553
    %v7555 = vsel %vm562, %v7523, 0.0
    %7556 = vadd.xlane.f32.xlu0 %v7555
    %v7557 = vpop.xlane.xlu0 %7556
    %v7558 = vsel %vm1809, %v7524, 0.0
    %7559 = vadd.xlane.f32.xlu0 %v7558
    %v7560 = vpop.xlane.xlu0 %7559
    %v7561 = vmul.f32 %v7527, %v585
    %v7562 = vmul.f32 %v7530, %v585
    %v7563 = vmul.f32 %v7533, %v585
    %v7564 = vmul.f32 %v7536, %v585
    %v7565 = vmul.f32 %v7539, %v585
    %v7566 = vmul.f32 %v7542, %v585
    %v7567 = vmul.f32 %v7545, %v585
    %v7568 = vmul.f32 %v7548, %v585
    %v7569 = vmul.f32 %v7551, %v585
    %v7570 = vmul.f32 %v7554, %v585
    %v7571 = vmul.f32 %v7557, %v585
    %v7572 = vmul.f32 %v7560, %v585
    %v7573 = vadd.f32 %v7561, 1e-06
    %v7574 = vadd.f32 %v7562, 1e-06
    %v7575 = vadd.f32 %v7563, 1e-06
    %v7576 = vadd.f32 %v7564, 1e-06
    %v7577 = vadd.f32 %v7565, 1e-06
    %v7578 = vadd.f32 %v7566, 1e-06
    %v7579 = vadd.f32 %v7567, 1e-06
    %v7580 = vadd.f32 %v7568, 1e-06
    %v7581 = vadd.f32 %v7569, 1e-06
    %v7582 = vadd.f32 %v7570, 1e-06
    %v7583 = vadd.f32 %v7571, 1e-06
    %v7584 = vadd.f32 %v7572, 1e-06
    %v7585 = vrsqrt.pop %v7573
    %v7586 = vrsqrt.pop %v7574
    %v7587 = vrsqrt.pop %v7575
    %v7588 = vrsqrt.pop %v7576
    %v7589 = vrsqrt.pop %v7577
    %v7590 = vrsqrt.pop %v7578
    %v7591 = vrsqrt.pop %v7579
    %v7592 = vrsqrt.pop %v7580
    %v7593 = vrsqrt.pop %v7581
    %v7594 = vrsqrt.pop %v7582
    %v7595 = vrsqrt.pop %v7583
    %v7596 = vrsqrt.pop %v7584
    %v7597 = vmul.f32 %v7501, %v7585
    %v7598 = vmul.f32 %v7502, %v7586
    %v7599 = vmul.f32 %v7503, %v7587
    %v7600 = vmul.f32 %v7504, %v7588
    %v7601 = vmul.f32 %v7505, %v7589
    %v7602 = vmul.f32 %v7506, %v7590
    %v7603 = vmul.f32 %v7507, %v7591
    %v7604 = vmul.f32 %v7508, %v7592
    %v7605 = vmul.f32 %v7509, %v7593
    %v7606 = vmul.f32 %v7510, %v7594
    %v7607 = vmul.f32 %v7511, %v7595
    %v7608 = vmul.f32 %v7512, %v7596
    %v7610 = vlaneseq
    %v7611 = vshrl.u32 %v7610, 7
    %v7612 = vsub.s32 0, %v7611
    %v7613 = vrot.slane %v7450, %v7612
    %v7615 = vmul.f32 %v7597, %v7613
    %v7616 = vmul.f32 %v7598, %v7613
    %v7617 = vmul.f32 %v7599, %v7613
    %v7618 = vmul.f32 %v7600, %v7613
    %v7619 = vmul.f32 %v7601, %v7613
    %v7620 = vmul.f32 %v7602, %v7613
    %v7621 = vmul.f32 %v7603, %v7613
    %v7622 = vmul.f32 %v7604, %v7613
    %v7623 = vmul.f32 %v7605, %v7613
    %v7624 = vmul.f32 %v7606, %v7613
    %v7625 = vmul.f32 %v7607, %v7613
    %v7626 = vmul.f32 %v7608, %v7613
    %v7628 = vlaneseq
    %v7629 = vshrl.u32 %v7628, 7
    %v7630 = vsub.s32 0, %v7629
    %v7631 = vrot.slane %v7452, %v7630
    %v7633 = vadd.f32 %v7615, %v7631
    %v7634 = vadd.f32 %v7616, %v7631
    %v7635 = vadd.f32 %v7617, %v7631
    %v7636 = vadd.f32 %v7618, %v7631
    %v7637 = vadd.f32 %v7619, %v7631
    %v7638 = vadd.f32 %v7620, %v7631
    %v7639 = vadd.f32 %v7621, %v7631
    %v7640 = vadd.f32 %v7622, %v7631
    %v7641 = vadd.f32 %v7623, %v7631
    %v7642 = vadd.f32 %v7624, %v7631
    %v7643 = vadd.f32 %v7625, %v7631
    %v7644 = vadd.f32 %v7626, %v7631
    %s7645 = scalar_lea.vmem [#allocation26], 32
    %v7646 = vld [vmem:[%s7645] sm:$0xff]
    %v7647 = vld [vmem:[%s7645 + $0x8] sm:$0xff]
    %v7648 = vld [vmem:[%s7645 + $0x10] sm:$0xff]
    %v7649 = vld [vmem:[%s7645 + $0x18] sm:$0xff]
    %s7650 = scalar_lea.vmem [#allocation28], 1
    %v7651 = vld [vmem:[%s7650] sm:$0x1]
    %v7653 = vlaneseq
    %v7654 = vshrl.u32 %v7653, 7
    %v7655 = vsub.s32 0, %v7654
    %v7656 = vrot.slane %v7651, %v7655
    %v7659 = vsel %vm562, %v7633, 0
    %v7662 = vsel %vm562, %v7634, 0
    %v7665 = vsel %vm562, %v7635, 0
    %v7668 = vsel %vm562, %v7636, 0
    %v7671 = vsel %vm562, %v7637, 0
    %v7674 = vsel %vm562, %v7638, 0
    %v7677 = vsel %vm562, %v7639, 0
    %v7680 = vsel %vm562, %v7640, 0
    %v7683 = vsel %vm562, %v7641, 0
    %v7686 = vsel %vm562, %v7642, 0
    %v7689 = vsel %vm562, %v7643, 0
    %v7692 = vsel %vm562, %v7644, 0
    %7694 = vmatprep.subr.mxu0 0.0
    %7695 = vmatpush1.msra.mxu0 %v7646
    %7696 = vmatprep.subr.mxu0 0.0
    %7697 = vmatpush1.msra.mxu0 %v7647
    %7698 = vmatprep.subr.mxu0 0.0
    %7699 = vmatpush1.msra.mxu0 %v7648
    %7700 = vmatprep.subr.mxu0 0.0
    %7701 = vmatpush1.msra.mxu0 %v7649
    %7702 = vmatprep.subr.mxu0 0.0
    %7703 = vmatpush1.msra.mxu0 0.0
    %7704 = vmatprep.subr.mxu0 0.0
    %7705 = vmatpush1.msra.mxu0 0.0
    %7706 = vmatprep.subr.mxu0 0.0
    %7707 = vmatpush1.msra.mxu0 0.0
    %7708 = vmatprep.subr.mxu0 0.0
    %7709 = vmatpush1.msra.mxu0 0.0
    %7710 = vmatprep.subr.mxu0 0.0
    %7711 = vmatpush1.msra.mxu0 0.0
    %7712 = vmatprep.subr.mxu0 0.0
    %7713 = vmatpush1.msra.mxu0 0.0
    %7714 = vmatprep.subr.mxu0 0.0
    %7715 = vmatpush1.msra.mxu0 0.0
    %7716 = vmatprep.subr.mxu0 0.0
    %7717 = vmatpush1.msra.mxu0 0.0
    %7718 = vmatprep.subr.mxu0 0.0
    %7719 = vmatpush1.msra.mxu0 0.0
    %7720 = vmatprep.subr.mxu0 0.0
    %7721 = vmatpush1.msra.mxu0 0.0
    %7722 = vmatprep.subr.mxu0 0.0
    %7723 = vmatpush1.msra.mxu0 0.0
    %7724 = vmatprep.subr.mxu0 0.0
    %7725 = vmatpush1.msra.mxu0 0.0
    %7726 = vmatprep.subr.mxu0 0.0
    %7727 = vmatpush1.msra.mxu0 0.0
    %7728 = vmatprep.subr.mxu0 0.0
    %7729 = vmatpush1.msra.mxu0 0.0
    %7730 = vmatprep.subr.mxu0 0.0
    %7731 = vmatpush1.msra.mxu0 0.0
    %7732 = vmatprep.subr.mxu0 0.0
    %7733 = vmatpush1.msra.mxu0 0.0
    %7734 = vmatprep.subr.mxu0 0.0
    %7735 = vmatpush1.msra.mxu0 0.0
    %7736 = vmatprep.subr.mxu0 0.0
    %7737 = vmatpush1.msra.mxu0 0.0
    %7738 = vmatprep.subr.mxu0 0.0
    %7739 = vmatpush1.msra.mxu0 0.0
    %7740 = vmatprep.subr.mxu0 0.0
    %7741 = vmatpush1.msra.mxu0 0.0
    %7742 = vmatprep.subr.mxu0 0.0
    %7743 = vmatpush1.msra.mxu0 0.0
    %7744 = vmatprep.subr.mxu0 0.0
    %7745 = vmatpush1.msra.mxu0 0.0
    %7746 = vmatprep.subr.mxu0 0.0
    %7747 = vmatpush1.msra.mxu0 0.0
    %7748 = vmatprep.subr.mxu0 0.0
    %7749 = vmatpush1.msra.mxu0 0.0
    %7750 = vmatprep.subr.mxu0 0.0
    %7751 = vmatpush1.msra.mxu0 0.0
    %7752 = vmatprep.subr.mxu0 0.0
    %7753 = vmatpush1.msra.mxu0 0.0
    %7754 = vmatprep.subr.mxu0 0.0
    %7755 = vmatpush1.msra.mxu0 0.0
    %7756 = vmatprep.subr.mxu0 0.0
    %7757 = vmatpush1.msra.mxu0 0.0
    %7758 = vmatprep.mubr.f32.mxu0 0.0
    %7759 = vmatmul.mubr.f32.gmra.mrb[0].mxu0 %v7659
    %v7760 = vpop.f32.mrb[0].mxu0
    %v7761 = vadd.f32 %v7656, %v7760
    %v7762 = vpop.f32.mrb[0].mxu0
    %7763 = vmatprep.mubr.f32.mxu0 0.0
    %7764 = vmatmul.mubr.f32.gmra.mrb[0].mxu0 %v7662
    %v7765 = vpop.f32.mrb[0].mxu0
    %v7766 = vadd.f32 %v7656, %v7765
    %v7767 = vpop.f32.mrb[0].mxu0
    %7768 = vmatprep.mubr.f32.mxu0 0.0
    %7769 = vmatmul.mubr.f32.gmra.mrb[0].mxu0 %v7665
    %v7770 = vpop.f32.mrb[0].mxu0
    %v7771 = vadd.f32 %v7656, %v7770
    %v7772 = vpop.f32.mrb[0].mxu0
    %7773 = vmatprep.mubr.f32.mxu0 0.0
    %7774 = vmatmul.mubr.f32.gmra.mrb[0].mxu0 %v7668
    %v7775 = vpop.f32.mrb[0].mxu0
    %v7776 = vadd.f32 %v7656, %v7775
    %v7777 = vpop.f32.mrb[0].mxu0
    %7778 = vmatprep.mubr.f32.mxu0 0.0
    %7779 = vmatmul.mubr.f32.gmra.mrb[0].mxu0 %v7671
    %v7780 = vpop.f32.mrb[0].mxu0
    %v7781 = vadd.f32 %v7656, %v7780
    %v7782 = vpop.f32.mrb[0].mxu0
    %7783 = vmatprep.mubr.f32.mxu0 0.0
    %7784 = vmatmul.mubr.f32.gmra.mrb[0].mxu0 %v7674
    %v7785 = vpop.f32.mrb[0].mxu0
    %v7786 = vadd.f32 %v7656, %v7785
    %v7787 = vpop.f32.mrb[0].mxu0
    %7788 = vmatprep.mubr.f32.mxu0 0.0
    %7789 = vmatmul.mubr.f32.gmra.mrb[0].mxu0 %v7677
    %v7790 = vpop.f32.mrb[0].mxu0
    %v7791 = vadd.f32 %v7656, %v7790
    %v7792 = vpop.f32.mrb[0].mxu0
    %7793 = vmatprep.mubr.f32.mxu0 0.0
    %7794 = vmatmul.mubr.f32.gmra.mrb[0].mxu0 %v7680
    %v7795 = vpop.f32.mrb[0].mxu0
    %v7796 = vadd.f32 %v7656, %v7795
    %v7797 = vpop.f32.mrb[0].mxu0
    %7798 = vmatprep.mubr.f32.mxu0 0.0
    %7799 = vmatmul.mubr.f32.gmra.mrb[0].mxu0 %v7683
    %v7800 = vpop.f32.mrb[0].mxu0
    %v7801 = vadd.f32 %v7656, %v7800
    %v7802 = vpop.f32.mrb[0].mxu0
    %7803 = vmatprep.mubr.f32.mxu0 0.0
    %7804 = vmatmul.mubr.f32.gmra.mrb[0].mxu0 %v7686
    %v7805 = vpop.f32.mrb[0].mxu0
    %v7806 = vadd.f32 %v7656, %v7805
    %v7807 = vpop.f32.mrb[0].mxu0
    %7808 = vmatprep.mubr.f32.mxu0 0.0
    %7809 = vmatmul.mubr.f32.gmra.mrb[0].mxu0 %v7689
    %v7810 = vpop.f32.mrb[0].mxu0
    %v7811 = vadd.f32 %v7656, %v7810
    %v7812 = vpop.f32.mrb[0].mxu0
    %7813 = vmatprep.mubr.f32.mxu0 0.0
    %7814 = vmatmul.mubr.f32.gmra.mrb[0].mxu0 %v7692
    %v7815 = vpop.f32.mrb[0].mxu0
    %v7816 = vadd.f32 %v7656, %v7815
    %v7817 = vpop.f32.mrb[0].mxu0
    %7818 = vdwg.mxu0
    %v7819 = vmul.f32 %v7761, %v7761
    %v7820 = vmul.f32 %v7766, %v7766
    %v7821 = vmul.f32 %v7771, %v7771
    %v7822 = vmul.f32 %v7776, %v7776
    %v7823 = vmul.f32 %v7781, %v7781
    %v7824 = vmul.f32 %v7786, %v7786
    %v7825 = vmul.f32 %v7791, %v7791
    %v7826 = vmul.f32 %v7796, %v7796
    %v7827 = vmul.f32 %v7801, %v7801
    %v7828 = vmul.f32 %v7806, %v7806
    %v7829 = vmul.f32 %v7811, %v7811
    %v7830 = vmul.f32 %v7816, %v7816
    %v7831 = vmul.f32 %v7761, %v7819
    %v7832 = vmul.f32 %v7766, %v7820
    %v7833 = vmul.f32 %v7771, %v7821
    %v7834 = vmul.f32 %v7776, %v7822
    %v7835 = vmul.f32 %v7781, %v7823
    %v7836 = vmul.f32 %v7786, %v7824
    %v7837 = vmul.f32 %v7791, %v7825
    %v7838 = vmul.f32 %v7796, %v7826
    %v7839 = vmul.f32 %v7801, %v7827
    %v7840 = vmul.f32 %v7806, %v7828
    %v7841 = vmul.f32 %v7811, %v7829
    %v7842 = vmul.f32 %v7816, %v7830
    %v7843 = vmul.f32 %v7831, 0.044715
    %v7844 = vmul.f32 %v7832, 0.044715
    %v7845 = vmul.f32 %v7833, 0.044715
    %v7846 = vmul.f32 %v7834, 0.044715
    %v7847 = vmul.f32 %v7835, 0.044715
    %v7848 = vmul.f32 %v7836, 0.044715
    %v7849 = vmul.f32 %v7837, 0.044715
    %v7850 = vmul.f32 %v7838, 0.044715
    %v7851 = vmul.f32 %v7839, 0.044715
    %v7852 = vmul.f32 %v7840, 0.044715
    %v7853 = vmul.f32 %v7841, 0.044715
    %v7854 = vmul.f32 %v7842, 0.044715
    %v7855 = vadd.f32 %v7761, %v7843
    %v7856 = vadd.f32 %v7766, %v7844
    %v7857 = vadd.f32 %v7771, %v7845
    %v7858 = vadd.f32 %v7776, %v7846
    %v7859 = vadd.f32 %v7781, %v7847
    %v7860 = vadd.f32 %v7786, %v7848
    %v7861 = vadd.f32 %v7791, %v7849
    %v7862 = vadd.f32 %v7796, %v7850
    %v7863 = vadd.f32 %v7801, %v7851
    %v7864 = vadd.f32 %v7806, %v7852
    %v7865 = vadd.f32 %v7811, %v7853
    %v7866 = vadd.f32 %v7816, %v7854
    %v7867 = vmul.f32 %v7855, 0.7978846
    %v7868 = vmul.f32 %v7856, 0.7978846
    %v7869 = vmul.f32 %v7857, 0.7978846
    %v7870 = vmul.f32 %v7858, 0.7978846
    %v7871 = vmul.f32 %v7859, 0.7978846
    %v7872 = vmul.f32 %v7860, 0.7978846
    %v7873 = vmul.f32 %v7861, 0.7978846
    %v7874 = vmul.f32 %v7862, 0.7978846
    %v7875 = vmul.f32 %v7863, 0.7978846
    %v7876 = vmul.f32 %v7864, 0.7978846
    %v7877 = vmul.f32 %v7865, 0.7978846
    %v7878 = vmul.f32 %v7866, 0.7978846
    %v7879 = vtanh.pop %v7867
    %v7880 = vtanh.pop %v7868
    %v7881 = vtanh.pop %v7869
    %v7882 = vtanh.pop %v7870
    %v7883 = vtanh.pop %v7871
    %v7884 = vtanh.pop %v7872
    %v7885 = vtanh.pop %v7873
    %v7886 = vtanh.pop %v7874
    %v7887 = vtanh.pop %v7875
    %v7888 = vtanh.pop %v7876
    %v7889 = vtanh.pop %v7877
    %v7890 = vtanh.pop %v7878
    %v7891 = vadd.f32 %v7879, 1.0
    %v7892 = vadd.f32 %v7880, 1.0
    %v7893 = vadd.f32 %v7881, 1.0
    %v7894 = vadd.f32 %v7882, 1.0
    %v7895 = vadd.f32 %v7883, 1.0
    %v7896 = vadd.f32 %v7884, 1.0
    %v7897 = vadd.f32 %v7885, 1.0
    %v7898 = vadd.f32 %v7886, 1.0
    %v7899 = vadd.f32 %v7887, 1.0
    %v7900 = vadd.f32 %v7888, 1.0
    %v7901 = vadd.f32 %v7889, 1.0
    %v7902 = vadd.f32 %v7890, 1.0
    %v7903 = vmul.f32 %v7891, 0.5
    %v7904 = vmul.f32 %v7892, 0.5
    %v7905 = vmul.f32 %v7893, 0.5
    %v7906 = vmul.f32 %v7894, 0.5
    %v7907 = vmul.f32 %v7895, 0.5
    %v7908 = vmul.f32 %v7896, 0.5
    %v7909 = vmul.f32 %v7897, 0.5
    %v7910 = vmul.f32 %v7898, 0.5
    %v7911 = vmul.f32 %v7899, 0.5
    %v7912 = vmul.f32 %v7900, 0.5
    %v7913 = vmul.f32 %v7901, 0.5
    %v7914 = vmul.f32 %v7902, 0.5
    %v7915 = vmul.f32 %v7761, %v7903
    %v7916 = vmul.f32 %v7766, %v7904
    %v7917 = vmul.f32 %v7771, %v7905
    %v7918 = vmul.f32 %v7776, %v7906
    %v7919 = vmul.f32 %v7781, %v7907
    %v7920 = vmul.f32 %v7786, %v7908
    %v7921 = vmul.f32 %v7791, %v7909
    %v7922 = vmul.f32 %v7796, %v7910
    %v7923 = vmul.f32 %v7801, %v7911
    %v7924 = vmul.f32 %v7806, %v7912
    %v7925 = vmul.f32 %v7811, %v7913
    %v7926 = vmul.f32 %v7816, %v7914
    %s7927 = scalar_lea.vmem [#allocation29], 64
    %v7928 = vld [vmem:[%s7927] sm:$0xff]
    %v7929 = vld [vmem:[%s7927 + $0x8] sm:$0xff]
    %v7930 = vld [vmem:[%s7927 + $0x10] sm:$0xff]
    %v7931 = vld [vmem:[%s7927 + $0x18] sm:$0xff]
    %v7932 = vld [vmem:[%s7927 + $0x20] sm:$0xff]
    %v7933 = vld [vmem:[%s7927 + $0x28] sm:$0xff]
    %v7934 = vld [vmem:[%s7927 + $0x30] sm:$0xff]
    %v7935 = vld [vmem:[%s7927 + $0x38] sm:$0xff]
    %s7936 = scalar_lea.vmem [#allocation31], 1
    %v7937 = vld [vmem:[%s7936] sm:$0x1]
    %v7939 = vlaneseq
    %v7940 = vshrl.u32 %v7939, 7
    %v7941 = vsub.s32 0, %v7940
    %v7942 = vrot.slane %v7937, %v7941
    %v7945 = vsel %vm4919, %v7915, 0
    %v7948 = vsel %vm4919, %v7916, 0
    %v7951 = vsel %vm4919, %v7917, 0
    %v7954 = vsel %vm4919, %v7918, 0
    %v7957 = vsel %vm4919, %v7919, 0
    %v7960 = vsel %vm4919, %v7920, 0
    %v7963 = vsel %vm4919, %v7921, 0
    %v7966 = vsel %vm4919, %v7922, 0
    %v7969 = vsel %vm4919, %v7923, 0
    %v7972 = vsel %vm4919, %v7924, 0
    %v7975 = vsel %vm4919, %v7925, 0
    %v7978 = vsel %vm4919, %v7926, 0
    %7980 = vmatprep.subr.mxu0 0.0
    %7981 = vmatpush1.msra.mxu0 %v7928
    %7982 = vmatprep.subr.mxu0 0.0
    %7983 = vmatpush1.msra.mxu0 %v7929
    %7984 = vmatprep.subr.mxu0 0.0
    %7985 = vmatpush1.msra.mxu0 %v7930
    %7986 = vmatprep.subr.mxu0 0.0
    %7987 = vmatpush1.msra.mxu0 %v7931
    %7988 = vmatprep.subr.mxu0 0.0
    %7989 = vmatpush1.msra.mxu0 %v7932
    %7990 = vmatprep.subr.mxu0 0.0
    %7991 = vmatpush1.msra.mxu0 %v7933
    %7992 = vmatprep.subr.mxu0 0.0
    %7993 = vmatpush1.msra.mxu0 %v7934
    %7994 = vmatprep.subr.mxu0 0.0
    %7995 = vmatpush1.msra.mxu0 %v7935
    %7996 = vmatprep.subr.mxu0 0.0
    %7997 = vmatpush1.msra.mxu0 0.0
    %7998 = vmatprep.subr.mxu0 0.0
    %7999 = vmatpush1.msra.mxu0 0.0
    %8000 = vmatprep.subr.mxu0 0.0
    %8001 = vmatpush1.msra.mxu0 0.0
    %8002 = vmatprep.subr.mxu0 0.0
    %8003 = vmatpush1.msra.mxu0 0.0
    %8004 = vmatprep.subr.mxu0 0.0
    %8005 = vmatpush1.msra.mxu0 0.0
    %8006 = vmatprep.subr.mxu0 0.0
    %8007 = vmatpush1.msra.mxu0 0.0
    %8008 = vmatprep.subr.mxu0 0.0
    %8009 = vmatpush1.msra.mxu0 0.0
    %8010 = vmatprep.subr.mxu0 0.0
    %8011 = vmatpush1.msra.mxu0 0.0
    %8012 = vmatprep.subr.mxu0 0.0
    %8013 = vmatpush1.msra.mxu0 0.0
    %8014 = vmatprep.subr.mxu0 0.0
    %8015 = vmatpush1.msra.mxu0 0.0
    %8016 = vmatprep.subr.mxu0 0.0
    %8017 = vmatpush1.msra.mxu0 0.0
    %8018 = vmatprep.subr.mxu0 0.0
    %8019 = vmatpush1.msra.mxu0 0.0
    %8020 = vmatprep.subr.mxu0 0.0
    %8021 = vmatpush1.msra.mxu0 0.0
    %8022 = vmatprep.subr.mxu0 0.0
    %8023 = vmatpush1.msra.mxu0 0.0
    %8024 = vmatprep.subr.mxu0 0.0
    %8025 = vmatpush1.msra.mxu0 0.0
    %8026 = vmatprep.subr.mxu0 0.0
    %8027 = vmatpush1.msra.mxu0 0.0
    %8028 = vmatprep.subr.mxu0 0.0
    %8029 = vmatpush1.msra.mxu0 0.0
    %8030 = vmatprep.subr.mxu0 0.0
    %8031 = vmatpush1.msra.mxu0 0.0
    %8032 = vmatprep.subr.mxu0 0.0
    %8033 = vmatpush1.msra.mxu0 0.0
    %8034 = vmatprep.subr.mxu0 0.0
    %8035 = vmatpush1.msra.mxu0 0.0
    %8036 = vmatprep.subr.mxu0 0.0
    %8037 = vmatpush1.msra.mxu0 0.0
    %8038 = vmatprep.subr.mxu0 0.0
    %8039 = vmatpush1.msra.mxu0 0.0
    %8040 = vmatprep.subr.mxu0 0.0
    %8041 = vmatpush1.msra.mxu0 0.0
    %8042 = vmatprep.subr.mxu0 0.0
    %8043 = vmatpush1.msra.mxu0 0.0
    %8044 = vmatprep.mubr.f32.mxu0 0.0
    %8045 = vmatmul.mubr.f32.gmra.mrb[0].mxu0 %v7945
    %v8046 = vpop.f32.mrb[0].mxu0
    %v8047 = vadd.f32 %v7942, %v8046
    %v8048 = vpop.f32.mrb[0].mxu0
    %8049 = vmatprep.mubr.f32.mxu0 0.0
    %8050 = vmatmul.mubr.f32.gmra.mrb[0].mxu0 %v7948
    %v8051 = vpop.f32.mrb[0].mxu0
    %v8052 = vadd.f32 %v7942, %v8051
    %v8053 = vpop.f32.mrb[0].mxu0
    %8054 = vmatprep.mubr.f32.mxu0 0.0
    %8055 = vmatmul.mubr.f32.gmra.mrb[0].mxu0 %v7951
    %v8056 = vpop.f32.mrb[0].mxu0
    %v8057 = vadd.f32 %v7942, %v8056
    %v8058 = vpop.f32.mrb[0].mxu0
    %8059 = vmatprep.mubr.f32.mxu0 0.0
    %8060 = vmatmul.mubr.f32.gmra.mrb[0].mxu0 %v7954
    %v8061 = vpop.f32.mrb[0].mxu0
    %v8062 = vadd.f32 %v7942, %v8061
    %v8063 = vpop.f32.mrb[0].mxu0
    %8064 = vmatprep.mubr.f32.mxu0 0.0
    %8065 = vmatmul.mubr.f32.gmra.mrb[0].mxu0 %v7957
    %v8066 = vpop.f32.mrb[0].mxu0
    %v8067 = vadd.f32 %v7942, %v8066
    %v8068 = vpop.f32.mrb[0].mxu0
    %8069 = vmatprep.mubr.f32.mxu0 0.0
    %8070 = vmatmul.mubr.f32.gmra.mrb[0].mxu0 %v7960
    %v8071 = vpop.f32.mrb[0].mxu0
    %v8072 = vadd.f32 %v7942, %v8071
    %v8073 = vpop.f32.mrb[0].mxu0
    %8074 = vmatprep.mubr.f32.mxu0 0.0
    %8075 = vmatmul.mubr.f32.gmra.mrb[0].mxu0 %v7963
    %v8076 = vpop.f32.mrb[0].mxu0
    %v8077 = vadd.f32 %v7942, %v8076
    %v8078 = vpop.f32.mrb[0].mxu0
    %8079 = vmatprep.mubr.f32.mxu0 0.0
    %8080 = vmatmul.mubr.f32.gmra.mrb[0].mxu0 %v7966
    %v8081 = vpop.f32.mrb[0].mxu0
    %v8082 = vadd.f32 %v7942, %v8081
    %v8083 = vpop.f32.mrb[0].mxu0
    %8084 = vmatprep.mubr.f32.mxu0 0.0
    %8085 = vmatmul.mubr.f32.gmra.mrb[0].mxu0 %v7969
    %v8086 = vpop.f32.mrb[0].mxu0
    %v8087 = vadd.f32 %v7942, %v8086
    %v8088 = vpop.f32.mrb[0].mxu0
    %8089 = vmatprep.mubr.f32.mxu0 0.0
    %8090 = vmatmul.mubr.f32.gmra.mrb[0].mxu0 %v7972
    %v8091 = vpop.f32.mrb[0].mxu0
    %v8092 = vadd.f32 %v7942, %v8091
    %v8093 = vpop.f32.mrb[0].mxu0
    %8094 = vmatprep.mubr.f32.mxu0 0.0
    %8095 = vmatmul.mubr.f32.gmra.mrb[0].mxu0 %v7975
    %v8096 = vpop.f32.mrb[0].mxu0
    %v8097 = vadd.f32 %v7942, %v8096
    %v8098 = vpop.f32.mrb[0].mxu0
    %8099 = vmatprep.mubr.f32.mxu0 0.0
    %8100 = vmatmul.mubr.f32.gmra.mrb[0].mxu0 %v7978
    %v8101 = vpop.f32.mrb[0].mxu0
    %v8102 = vadd.f32 %v7942, %v8101
    %v8103 = vpop.f32.mrb[0].mxu0
    %8104 = vdwg.mxu0
    %v8105 = vadd.f32 %v8047, %v7633
    %v8106 = vadd.f32 %v8052, %v7634
    %v8107 = vadd.f32 %v8057, %v7635
    %v8108 = vadd.f32 %v8062, %v7636
    %v8109 = vadd.f32 %v8067, %v7637
    %v8110 = vadd.f32 %v8072, %v7638
    %v8111 = vadd.f32 %v8077, %v7639
    %v8112 = vadd.f32 %v8082, %v7640
    %v8113 = vadd.f32 %v8087, %v7641
    %v8114 = vadd.f32 %v8092, %v7642
    %v8115 = vadd.f32 %v8097, %v7643
    %v8116 = vadd.f32 %v8102, %v7644
    %s8117 = scalar_lea.vmem %s61, 1
    %v8118 = vld [vmem:[%s8117] sm:$0x1]
    %s8119 = scalar_lea.vmem %s63, 1
    %v8120 = vld [vmem:[%s8119] sm:$0x1]
    %v8121 = vsel %vm562, %v8105, 0.0
    %8122 = vadd.xlane.f32.xlu0 %v8121
    %v8123 = vpop.xlane.xlu0 %8122
    %v8124 = vsel %vm562, %v8106, 0.0
    %8125 = vadd.xlane.f32.xlu0 %v8124
    %v8126 = vpop.xlane.xlu0 %8125
    %v8127 = vsel %vm562, %v8107, 0.0
    %8128 = vadd.xlane.f32.xlu0 %v8127
    %v8129 = vpop.xlane.xlu0 %8128
    %v8130 = vsel %vm562, %v8108, 0.0
    %8131 = vadd.xlane.f32.xlu0 %v8130
    %v8132 = vpop.xlane.xlu0 %8131
    %v8133 = vsel %vm562, %v8109, 0.0
    %8134 = vadd.xlane.f32.xlu0 %v8133
    %v8135 = vpop.xlane.xlu0 %8134
    %v8136 = vsel %vm562, %v8110, 0.0
    %8137 = vadd.xlane.f32.xlu0 %v8136
    %v8138 = vpop.xlane.xlu0 %8137
    %v8139 = vsel %vm562, %v8111, 0.0
    %8140 = vadd.xlane.f32.xlu0 %v8139
    %v8141 = vpop.xlane.xlu0 %8140
    %v8142 = vsel %vm562, %v8112, 0.0
    %8143 = vadd.xlane.f32.xlu0 %v8142
    %v8144 = vpop.xlane.xlu0 %8143
    %v8145 = vsel %vm562, %v8113, 0.0
    %8146 = vadd.xlane.f32.xlu0 %v8145
    %v8147 = vpop.xlane.xlu0 %8146
    %v8148 = vsel %vm562, %v8114, 0.0
    %8149 = vadd.xlane.f32.xlu0 %v8148
    %v8150 = vpop.xlane.xlu0 %8149
    %v8151 = vsel %vm562, %v8115, 0.0
    %8152 = vadd.xlane.f32.xlu0 %v8151
    %v8153 = vpop.xlane.xlu0 %8152
    %v8154 = vsel %vm1809, %v8116, 0.0
    %8155 = vadd.xlane.f32.xlu0 %v8154
    %v8156 = vpop.xlane.xlu0 %8155
    %v8157 = vmul.f32 %v8123, %v585
    %v8158 = vmul.f32 %v8126, %v585
    %v8159 = vmul.f32 %v8129, %v585
    %v8160 = vmul.f32 %v8132, %v585
    %v8161 = vmul.f32 %v8135, %v585
    %v8162 = vmul.f32 %v8138, %v585
    %v8163 = vmul.f32 %v8141, %v585
    %v8164 = vmul.f32 %v8144, %v585
    %v8165 = vmul.f32 %v8147, %v585
    %v8166 = vmul.f32 %v8150, %v585
    %v8167 = vmul.f32 %v8153, %v585
    %v8168 = vmul.f32 %v8156, %v585
    %v8169 = vsub.f32 %v8105, %v8157
    %v8170 = vsub.f32 %v8106, %v8158
    %v8171 = vsub.f32 %v8107, %v8159
    %v8172 = vsub.f32 %v8108, %v8160
    %v8173 = vsub.f32 %v8109, %v8161
    %v8174 = vsub.f32 %v8110, %v8162
    %v8175 = vsub.f32 %v8111, %v8163
    %v8176 = vsub.f32 %v8112, %v8164
    %v8177 = vsub.f32 %v8113, %v8165
    %v8178 = vsub.f32 %v8114, %v8166
    %v8179 = vsub.f32 %v8115, %v8167
    %v8180 = vsub.f32 %v8116, %v8168
    %v8181 = vmul.f32 %v8169, %v8169
    %v8182 = vmul.f32 %v8170, %v8170
    %v8183 = vmul.f32 %v8171, %v8171
    %v8184 = vmul.f32 %v8172, %v8172
    %v8185 = vmul.f32 %v8173, %v8173
    %v8186 = vmul.f32 %v8174, %v8174
    %v8187 = vmul.f32 %v8175, %v8175
    %v8188 = vmul.f32 %v8176, %v8176
    %v8189 = vmul.f32 %v8177, %v8177
    %v8190 = vmul.f32 %v8178, %v8178
    %v8191 = vmul.f32 %v8179, %v8179
    %v8192 = vmul.f32 %v8180, %v8180
    %v8193 = vsel %vm562, %v8181, 0.0
    %8194 = vadd.xlane.f32.xlu0 %v8193
    %v8195 = vpop.xlane.xlu0 %8194
    %v8196 = vsel %vm562, %v8182, 0.0
    %8197 = vadd.xlane.f32.xlu0 %v8196
    %v8198 = vpop.xlane.xlu0 %8197
    %v8199 = vsel %vm562, %v8183, 0.0
    %8200 = vadd.xlane.f32.xlu0 %v8199
    %v8201 = vpop.xlane.xlu0 %8200
    %v8202 = vsel %vm562, %v8184, 0.0
    %8203 = vadd.xlane.f32.xlu0 %v8202
    %v8204 = vpop.xlane.xlu0 %8203
    %v8205 = vsel %vm562, %v8185, 0.0
    %8206 = vadd.xlane.f32.xlu0 %v8205
    %v8207 = vpop.xlane.xlu0 %8206
    %v8208 = vsel %vm562, %v8186, 0.0
    %8209 = vadd.xlane.f32.xlu0 %v8208
    %v8210 = vpop.xlane.xlu0 %8209
    %v8211 = vsel %vm562, %v8187, 0.0
    %8212 = vadd.xlane.f32.xlu0 %v8211
    %v8213 = vpop.xlane.xlu0 %8212
    %v8214 = vsel %vm562, %v8188, 0.0
    %8215 = vadd.xlane.f32.xlu0 %v8214
    %v8216 = vpop.xlane.xlu0 %8215
    %v8217 = vsel %vm562, %v8189, 0.0
    %8218 = vadd.xlane.f32.xlu0 %v8217
    %v8219 = vpop.xlane.xlu0 %8218
    %v8220 = vsel %vm562, %v8190, 0.0
    %8221 = vadd.xlane.f32.xlu0 %v8220
    %v8222 = vpop.xlane.xlu0 %8221
    %v8223 = vsel %vm562, %v8191, 0.0
    %8224 = vadd.xlane.f32.xlu0 %v8223
    %v8225 = vpop.xlane.xlu0 %8224
    %v8226 = vsel %vm1809, %v8192, 0.0
    %8227 = vadd.xlane.f32.xlu0 %v8226
    %v8228 = vpop.xlane.xlu0 %8227
    %v8229 = vmul.f32 %v8195, %v585
    %v8230 = vmul.f32 %v8198, %v585
    %v8231 = vmul.f32 %v8201, %v585
    %v8232 = vmul.f32 %v8204, %v585
    %v8233 = vmul.f32 %v8207, %v585
    %v8234 = vmul.f32 %v8210, %v585
    %v8235 = vmul.f32 %v8213, %v585
    %v8236 = vmul.f32 %v8216, %v585
    %v8237 = vmul.f32 %v8219, %v585
    %v8238 = vmul.f32 %v8222, %v585
    %v8239 = vmul.f32 %v8225, %v585
    %v8240 = vmul.f32 %v8228, %v585
    %v8241 = vadd.f32 %v8229, 1e-06
    %v8242 = vadd.f32 %v8230, 1e-06
    %v8243 = vadd.f32 %v8231, 1e-06
    %v8244 = vadd.f32 %v8232, 1e-06
    %v8245 = vadd.f32 %v8233, 1e-06
    %v8246 = vadd.f32 %v8234, 1e-06
    %v8247 = vadd.f32 %v8235, 1e-06
    %v8248 = vadd.f32 %v8236, 1e-06
    %v8249 = vadd.f32 %v8237, 1e-06
    %v8250 = vadd.f32 %v8238, 1e-06
    %v8251 = vadd.f32 %v8239, 1e-06
    %v8252 = vadd.f32 %v8240, 1e-06
    %v8253 = vrsqrt.pop %v8241
    %v8254 = vrsqrt.pop %v8242
    %v8255 = vrsqrt.pop %v8243
    %v8256 = vrsqrt.pop %v8244
    %v8257 = vrsqrt.pop %v8245
    %v8258 = vrsqrt.pop %v8246
    %v8259 = vrsqrt.pop %v8247
    %v8260 = vrsqrt.pop %v8248
    %v8261 = vrsqrt.pop %v8249
    %v8262 = vrsqrt.pop %v8250
    %v8263 = vrsqrt.pop %v8251
    %v8264 = vrsqrt.pop %v8252
    %v8265 = vmul.f32 %v8169, %v8253
    %v8266 = vmul.f32 %v8170, %v8254
    %v8267 = vmul.f32 %v8171, %v8255
    %v8268 = vmul.f32 %v8172, %v8256
    %v8269 = vmul.f32 %v8173, %v8257
    %v8270 = vmul.f32 %v8174, %v8258
    %v8271 = vmul.f32 %v8175, %v8259
    %v8272 = vmul.f32 %v8176, %v8260
    %v8273 = vmul.f32 %v8177, %v8261
    %v8274 = vmul.f32 %v8178, %v8262
    %v8275 = vmul.f32 %v8179, %v8263
    %v8276 = vmul.f32 %v8180, %v8264
    %v8278 = vlaneseq
    %v8279 = vshrl.u32 %v8278, 7
    %v8280 = vsub.s32 0, %v8279
    %v8281 = vrot.slane %v8118, %v8280
    %v8283 = vmul.f32 %v8265, %v8281
    %v8284 = vmul.f32 %v8266, %v8281
    %v8285 = vmul.f32 %v8267, %v8281
    %v8286 = vmul.f32 %v8268, %v8281
    %v8287 = vmul.f32 %v8269, %v8281
    %v8288 = vmul.f32 %v8270, %v8281
    %v8289 = vmul.f32 %v8271, %v8281
    %v8290 = vmul.f32 %v8272, %v8281
    %v8291 = vmul.f32 %v8273, %v8281
    %v8292 = vmul.f32 %v8274, %v8281
    %v8293 = vmul.f32 %v8275, %v8281
    %v8294 = vmul.f32 %v8276, %v8281
    %v8296 = vlaneseq
    %v8297 = vshrl.u32 %v8296, 7
    %v8298 = vsub.s32 0, %v8297
    %v8299 = vrot.slane %v8120, %v8298
    %v8301 = vadd.f32 %v8283, %v8299
    %v8302 = vadd.f32 %v8284, %v8299
    %v8303 = vadd.f32 %v8285, %v8299
    %v8304 = vadd.f32 %v8286, %v8299
    %v8305 = vadd.f32 %v8287, %v8299
    %v8306 = vadd.f32 %v8288, %v8299
    %v8307 = vadd.f32 %v8289, %v8299
    %v8308 = vadd.f32 %v8290, %v8299
    %v8309 = vadd.f32 %v8291, %v8299
    %v8310 = vadd.f32 %v8292, %v8299
    %v8311 = vadd.f32 %v8293, %v8299
    %v8312 = vadd.f32 %v8294, %v8299
    %v8313 = vld [vmem:[#allocation32] sm:$0x3]
    %v8315 = vsel %vm2891, %v8313, 0
    %v8318 = vsel %vm1844, %v8312, 0
    %8320 = vmatprep.subr.mxu0 0.0
    %8321 = vmatpush1.msra.mxu0 %v8301
    %8322 = vmatprep.subr.mxu0 0.0
    %8323 = vmatpush1.msra.mxu0 %v8302
    %8324 = vmatprep.subr.mxu0 0.0
    %8325 = vmatpush1.msra.mxu0 %v8303
    %8326 = vmatprep.subr.mxu0 0.0
    %8327 = vmatpush1.msra.mxu0 %v8304
    %8328 = vmatprep.subr.mxu0 0.0
    %8329 = vmatpush1.msra.mxu0 %v8305
    %8330 = vmatprep.subr.mxu0 0.0
    %8331 = vmatpush1.msra.mxu0 %v8306
    %8332 = vmatprep.subr.mxu0 0.0
    %8333 = vmatpush1.msra.mxu0 %v8307
    %8334 = vmatprep.subr.mxu0 0.0
    %8335 = vmatpush1.msra.mxu0 %v8308
    %8336 = vmatprep.subr.mxu0 0.0
    %8337 = vmatpush1.msra.mxu0 %v8309
    %8338 = vmatprep.subr.mxu0 0.0
    %8339 = vmatpush1.msra.mxu0 %v8310
    %8340 = vmatprep.subr.mxu0 0.0
    %8341 = vmatpush1.msra.mxu0 %v8311
    %8342 = vmatprep.subr.mxu0 0.0
    %8343 = vmatpush1.msra.mxu0 %v8318
    %8344 = vmatprep.subr.mxu0 0.0
    %8345 = vmatpush1.msra.mxu0 0.0
    %8346 = vmatprep.subr.mxu0 0.0
    %8347 = vmatpush1.msra.mxu0 0.0
    %8348 = vmatprep.subr.mxu0 0.0
    %8349 = vmatpush1.msra.mxu0 0.0
    %8350 = vmatprep.subr.mxu0 0.0
    %8351 = vmatpush1.msra.mxu0 0.0
    %8352 = vmatprep.subr.mxu0 0.0
    %8353 = vmatpush1.msra.mxu0 0.0
    %8354 = vmatprep.subr.mxu0 0.0
    %8355 = vmatpush1.msra.mxu0 0.0
    %8356 = vmatprep.subr.mxu0 0.0
    %8357 = vmatpush1.msra.mxu0 0.0
    %8358 = vmatprep.subr.mxu0 0.0
    %8359 = vmatpush1.msra.mxu0 0.0
    %8360 = vmatprep.subr.mxu0 0.0
    %8361 = vmatpush1.msra.mxu0 0.0
    %8362 = vmatprep.subr.mxu0 0.0
    %8363 = vmatpush1.msra.mxu0 0.0
    %8364 = vmatprep.subr.mxu0 0.0
    %8365 = vmatpush1.msra.mxu0 0.0
    %8366 = vmatprep.subr.mxu0 0.0
    %8367 = vmatpush1.msra.mxu0 0.0
    %8368 = vmatprep.subr.mxu0 0.0
    %8369 = vmatpush1.msra.mxu0 0.0
    %8370 = vmatprep.subr.mxu0 0.0
    %8371 = vmatpush1.msra.mxu0 0.0
    %8372 = vmatprep.subr.mxu0 0.0
    %8373 = vmatpush1.msra.mxu0 0.0
    %8374 = vmatprep.subr.mxu0 0.0
    %8375 = vmatpush1.msra.mxu0 0.0
    %8376 = vmatprep.subr.mxu0 0.0
    %8377 = vmatpush1.msra.mxu0 0.0
    %8378 = vmatprep.subr.mxu0 0.0
    %8379 = vmatpush1.msra.mxu0 0.0
    %8380 = vmatprep.subr.mxu0 0.0
    %8381 = vmatpush1.msra.mxu0 0.0
    %8382 = vmatprep.subr.mxu0 0.0
    %8383 = vmatpush1.msra.mxu0 0.0
    %8384 = vmatprep.mubr.f32.mxu0 0.0
    %8385 = vmatmul.mubr.f32.gmra.mrb[0].mxu0 %v8315
    %v8386 = vpop.f32.mrb[0].mxu0
    %v8387 = vadd.f32 0.0, %v8386
    %v8388 = vpop.f32.mrb[0].mxu0
    %8389 = vdwg.mxu0
    %v8390 = vld [vmem:[#allocation34] sm:$0xff]
    %v8391 = vld [vmem:[#allocation34 + $0x8] sm:$0xff]
    %v8392 = vld [vmem:[#allocation34 + $0x10] sm:$0xff]
    %v8393 = vld [vmem:[#allocation34 + $0x18] sm:$0xff]
    %s8394 = scalar_lea.vmem [#allocation32], 2
    %v8395 = vld [vmem:[%s8394] sm:$0x3]
    %v8397 = vsel %vm2891, %v8395, 0
    %8399 = vmatprep.subr.mxu0 0.0
    %8400 = vmatpush1.msra.mxu0 %v8301
    %8401 = vmatprep.subr.mxu0 0.0
    %8402 = vmatpush1.msra.mxu0 %v8302
    %8403 = vmatprep.subr.mxu0 0.0
    %8404 = vmatpush1.msra.mxu0 %v8303
    %8405 = vmatprep.subr.mxu0 0.0
    %8406 = vmatpush1.msra.mxu0 %v8304
    %8407 = vmatprep.subr.mxu0 0.0
    %8408 = vmatpush1.msra.mxu0 %v8305
    %8409 = vmatprep.subr.mxu0 0.0
    %8410 = vmatpush1.msra.mxu0 %v8306
    %8411 = vmatprep.subr.mxu0 0.0
    %8412 = vmatpush1.msra.mxu0 %v8307
    %8413 = vmatprep.subr.mxu0 0.0
    %8414 = vmatpush1.msra.mxu0 %v8308
    %8415 = vmatprep.subr.mxu0 0.0
    %8416 = vmatpush1.msra.mxu0 %v8309
    %8417 = vmatprep.subr.mxu0 0.0
    %8418 = vmatpush1.msra.mxu0 %v8310
    %8419 = vmatprep.subr.mxu0 0.0
    %8420 = vmatpush1.msra.mxu0 %v8311
    %8421 = vmatprep.subr.mxu0 0.0
    %8422 = vmatpush1.msra.mxu0 %v8318
    %8423 = vmatprep.subr.mxu0 0.0
    %8424 = vmatpush1.msra.mxu0 0.0
    %8425 = vmatprep.subr.mxu0 0.0
    %8426 = vmatpush1.msra.mxu0 0.0
    %8427 = vmatprep.subr.mxu0 0.0
    %8428 = vmatpush1.msra.mxu0 0.0
    %8429 = vmatprep.subr.mxu0 0.0
    %8430 = vmatpush1.msra.mxu0 0.0
    %8431 = vmatprep.subr.mxu0 0.0
    %8432 = vmatpush1.msra.mxu0 0.0
    %8433 = vmatprep.subr.mxu0 0.0
    %8434 = vmatpush1.msra.mxu0 0.0
    %8435 = vmatprep.subr.mxu0 0.0
    %8436 = vmatpush1.msra.mxu0 0.0
    %8437 = vmatprep.subr.mxu0 0.0
    %8438 = vmatpush1.msra.mxu0 0.0
    %8439 = vmatprep.subr.mxu0 0.0
    %8440 = vmatpush1.msra.mxu0 0.0
    %8441 = vmatprep.subr.mxu0 0.0
    %8442 = vmatpush1.msra.mxu0 0.0
    %8443 = vmatprep.subr.mxu0 0.0
    %8444 = vmatpush1.msra.mxu0 0.0
    %8445 = vmatprep.subr.mxu0 0.0
    %8446 = vmatpush1.msra.mxu0 0.0
    %8447 = vmatprep.subr.mxu0 0.0
    %8448 = vmatpush1.msra.mxu0 0.0
    %8449 = vmatprep.subr.mxu0 0.0
    %8450 = vmatpush1.msra.mxu0 0.0
    %8451 = vmatprep.subr.mxu0 0.0
    %8452 = vmatpush1.msra.mxu0 0.0
    %8453 = vmatprep.subr.mxu0 0.0
    %8454 = vmatpush1.msra.mxu0 0.0
    %8455 = vmatprep.subr.mxu0 0.0
    %8456 = vmatpush1.msra.mxu0 0.0
    %8457 = vmatprep.subr.mxu0 0.0
    %8458 = vmatpush1.msra.mxu0 0.0
    %8459 = vmatprep.subr.mxu0 0.0
    %8460 = vmatpush1.msra.mxu0 0.0
    %8461 = vmatprep.subr.mxu0 0.0
    %8462 = vmatpush1.msra.mxu0 0.0
    %8463 = vmatprep.mubr.f32.mxu0 0.0
    %8464 = vmatmul.mubr.f32.gmra.mrb[0].mxu0 %v8397
    %v8465 = vpop.f32.mrb[0].mxu0
    %v8466 = vadd.f32 0.0, %v8465
    %v8467 = vpop.f32.mrb[0].mxu0
    %8468 = vdwg.mxu0
    %s8469 = scalar_lea.vmem [#allocation34], 32
    %v8470 = vld [vmem:[%s8469] sm:$0xff]
    %v8471 = vld [vmem:[%s8469 + $0x8] sm:$0xff]
    %v8472 = vld [vmem:[%s8469 + $0x10] sm:$0xff]
    %v8473 = vld [vmem:[%s8469 + $0x18] sm:$0xff]
    %v8475 = vsel %vm562, %v8466, 0
    %8477 = vmatprep.subr.mxu0 0.0
    %8478 = vmatpush1.msra.mxu0 %v8470
    %8479 = vmatprep.subr.mxu0 0.0
    %8480 = vmatpush1.msra.mxu0 %v8471
    %8481 = vmatprep.subr.mxu0 0.0
    %8482 = vmatpush1.msra.mxu0 %v8472
    %8483 = vmatprep.subr.mxu0 0.0
    %8484 = vmatpush1.msra.mxu0 %v8473
    %8485 = vmatprep.subr.mxu0 0.0
    %8486 = vmatpush1.msra.mxu0 0.0
    %8487 = vmatprep.subr.mxu0 0.0
    %8488 = vmatpush1.msra.mxu0 0.0
    %8489 = vmatprep.subr.mxu0 0.0
    %8490 = vmatpush1.msra.mxu0 0.0
    %8491 = vmatprep.subr.mxu0 0.0
    %8492 = vmatpush1.msra.mxu0 0.0
    %8493 = vmatprep.subr.mxu0 0.0
    %8494 = vmatpush1.msra.mxu0 0.0
    %8495 = vmatprep.subr.mxu0 0.0
    %8496 = vmatpush1.msra.mxu0 0.0
    %8497 = vmatprep.subr.mxu0 0.0
    %8498 = vmatpush1.msra.mxu0 0.0
    %8499 = vmatprep.subr.mxu0 0.0
    %8500 = vmatpush1.msra.mxu0 0.0
    %8501 = vmatprep.subr.mxu0 0.0
    %8502 = vmatpush1.msra.mxu0 0.0
    %8503 = vmatprep.subr.mxu0 0.0
    %8504 = vmatpush1.msra.mxu0 0.0
    %8505 = vmatprep.subr.mxu0 0.0
    %8506 = vmatpush1.msra.mxu0 0.0
    %8507 = vmatprep.subr.mxu0 0.0
    %8508 = vmatpush1.msra.mxu0 0.0
    %8509 = vmatprep.subr.mxu0 0.0
    %8510 = vmatpush1.msra.mxu0 0.0
    %8511 = vmatprep.subr.mxu0 0.0
    %8512 = vmatpush1.msra.mxu0 0.0
    %8513 = vmatprep.subr.mxu0 0.0
    %8514 = vmatpush1.msra.mxu0 0.0
    %8515 = vmatprep.subr.mxu0 0.0
    %8516 = vmatpush1.msra.mxu0 0.0
    %8517 = vmatprep.subr.mxu0 0.0
    %8518 = vmatpush1.msra.mxu0 0.0
    %8519 = vmatprep.subr.mxu0 0.0
    %8520 = vmatpush1.msra.mxu0 0.0
    %8521 = vmatprep.subr.mxu0 0.0
    %8522 = vmatpush1.msra.mxu0 0.0
    %8523 = vmatprep.subr.mxu0 0.0
    %8524 = vmatpush1.msra.mxu0 0.0
    %8525 = vmatprep.subr.mxu0 0.0
    %8526 = vmatpush1.msra.mxu0 0.0
    %8527 = vmatprep.subr.mxu0 0.0
    %8528 = vmatpush1.msra.mxu0 0.0
    %8529 = vmatprep.subr.mxu0 0.0
    %8530 = vmatpush1.msra.mxu0 0.0
    %8531 = vmatprep.subr.mxu0 0.0
    %8532 = vmatpush1.msra.mxu0 0.0
    %8533 = vmatprep.subr.mxu0 0.0
    %8534 = vmatpush1.msra.mxu0 0.0
    %8535 = vmatprep.subr.mxu0 0.0
    %8536 = vmatpush1.msra.mxu0 0.0
    %8537 = vmatprep.subr.mxu0 0.0
    %8538 = vmatpush1.msra.mxu0 0.0
    %8539 = vmatprep.subr.mxu0 0.0
    %8540 = vmatpush1.msra.mxu0 0.0
    %8541 = vmatprep.mubr.f32.mxu0 0.0
    %8542 = vmatmul.mubr.f32.gmra.mrb[0].mxu0 %v8475
    %v8543 = vpop.f32.mrb[0].mxu0
    %v8544 = vadd.f32 0.0, %v8543
    %v8545 = vpop.f32.mrb[0].mxu0
    %8546 = vdwg.mxu0
    %v8548 = vsel %vm562, %v8387, 0
    %8550 = vmatprep.subr.mxu0 0.0
    %8551 = vmatpush1.msra.mxu0 %v8390
    %8552 = vmatprep.subr.mxu0 0.0
    %8553 = vmatpush1.msra.mxu0 %v8391
    %8554 = vmatprep.subr.mxu0 0.0
    %8555 = vmatpush1.msra.mxu0 %v8392
    %8556 = vmatprep.subr.mxu0 0.0
    %8557 = vmatpush1.msra.mxu0 %v8393
    %8558 = vmatprep.subr.mxu0 0.0
    %8559 = vmatpush1.msra.mxu0 0.0
    %8560 = vmatprep.subr.mxu0 0.0
    %8561 = vmatpush1.msra.mxu0 0.0
    %8562 = vmatprep.subr.mxu0 0.0
    %8563 = vmatpush1.msra.mxu0 0.0
    %8564 = vmatprep.subr.mxu0 0.0
    %8565 = vmatpush1.msra.mxu0 0.0
    %8566 = vmatprep.subr.mxu0 0.0
    %8567 = vmatpush1.msra.mxu0 0.0
    %8568 = vmatprep.subr.mxu0 0.0
    %8569 = vmatpush1.msra.mxu0 0.0
    %8570 = vmatprep.subr.mxu0 0.0
    %8571 = vmatpush1.msra.mxu0 0.0
    %8572 = vmatprep.subr.mxu0 0.0
    %8573 = vmatpush1.msra.mxu0 0.0
    %8574 = vmatprep.subr.mxu0 0.0
    %8575 = vmatpush1.msra.mxu0 0.0
    %8576 = vmatprep.subr.mxu0 0.0
    %8577 = vmatpush1.msra.mxu0 0.0
    %8578 = vmatprep.subr.mxu0 0.0
    %8579 = vmatpush1.msra.mxu0 0.0
    %8580 = vmatprep.subr.mxu0 0.0
    %8581 = vmatpush1.msra.mxu0 0.0
    %8582 = vmatprep.subr.mxu0 0.0
    %8583 = vmatpush1.msra.mxu0 0.0
    %8584 = vmatprep.subr.mxu0 0.0
    %8585 = vmatpush1.msra.mxu0 0.0
    %8586 = vmatprep.subr.mxu0 0.0
    %8587 = vmatpush1.msra.mxu0 0.0
    %8588 = vmatprep.subr.mxu0 0.0
    %8589 = vmatpush1.msra.mxu0 0.0
    %8590 = vmatprep.subr.mxu0 0.0
    %8591 = vmatpush1.msra.mxu0 0.0
    %8592 = vmatprep.subr.mxu0 0.0
    %8593 = vmatpush1.msra.mxu0 0.0
    %8594 = vmatprep.subr.mxu0 0.0
    %8595 = vmatpush1.msra.mxu0 0.0
    %8596 = vmatprep.subr.mxu0 0.0
    %8597 = vmatpush1.msra.mxu0 0.0
    %8598 = vmatprep.subr.mxu0 0.0
    %8599 = vmatpush1.msra.mxu0 0.0
    %8600 = vmatprep.subr.mxu0 0.0
    %8601 = vmatpush1.msra.mxu0 0.0
    %8602 = vmatprep.subr.mxu0 0.0
    %8603 = vmatpush1.msra.mxu0 0.0
    %8604 = vmatprep.subr.mxu0 0.0
    %8605 = vmatpush1.msra.mxu0 0.0
    %8606 = vmatprep.subr.mxu0 0.0
    %8607 = vmatpush1.msra.mxu0 0.0
    %8608 = vmatprep.subr.mxu0 0.0
    %8609 = vmatpush1.msra.mxu0 0.0
    %8610 = vmatprep.subr.mxu0 0.0
    %8611 = vmatpush1.msra.mxu0 0.0
    %8612 = vmatprep.subr.mxu0 0.0
    %8613 = vmatpush1.msra.mxu0 0.0
    %8614 = vmatprep.mubr.f32.mxu0 0.0
    %8615 = vmatmul.mubr.f32.gmra.mrb[0].mxu0 %v8548
    %v8616 = vpop.f32.mrb[0].mxu0
    %v8617 = vadd.f32 %v8544, %v8616
    %v8618 = vpop.f32.mrb[0].mxu0
    %8619 = vdwg.mxu0
    %s8620 = scalar_lea.vmem [#allocation32], 4
    %v8621 = vld [vmem:[%s8620] sm:$0x3]
    %v8623 = vsel %vm2891, %v8621, 0
    %8625 = vmatprep.subr.mxu0 0.0
    %8626 = vmatpush1.msra.mxu0 %v8301
    %8627 = vmatprep.subr.mxu0 0.0
    %8628 = vmatpush1.msra.mxu0 %v8302
    %8629 = vmatprep.subr.mxu0 0.0
    %8630 = vmatpush1.msra.mxu0 %v8303
    %8631 = vmatprep.subr.mxu0 0.0
    %8632 = vmatpush1.msra.mxu0 %v8304
    %8633 = vmatprep.subr.mxu0 0.0
    %8634 = vmatpush1.msra.mxu0 %v8305
    %8635 = vmatprep.subr.mxu0 0.0
    %8636 = vmatpush1.msra.mxu0 %v8306
    %8637 = vmatprep.subr.mxu0 0.0
    %8638 = vmatpush1.msra.mxu0 %v8307
    %8639 = vmatprep.subr.mxu0 0.0
    %8640 = vmatpush1.msra.mxu0 %v8308
    %8641 = vmatprep.subr.mxu0 0.0
    %8642 = vmatpush1.msra.mxu0 %v8309
    %8643 = vmatprep.subr.mxu0 0.0
    %8644 = vmatpush1.msra.mxu0 %v8310
    %8645 = vmatprep.subr.mxu0 0.0
    %8646 = vmatpush1.msra.mxu0 %v8311
    %8647 = vmatprep.subr.mxu0 0.0
    %8648 = vmatpush1.msra.mxu0 %v8318
    %8649 = vmatprep.subr.mxu0 0.0
    %8650 = vmatpush1.msra.mxu0 0.0
    %8651 = vmatprep.subr.mxu0 0.0
    %8652 = vmatpush1.msra.mxu0 0.0
    %8653 = vmatprep.subr.mxu0 0.0
    %8654 = vmatpush1.msra.mxu0 0.0
    %8655 = vmatprep.subr.mxu0 0.0
    %8656 = vmatpush1.msra.mxu0 0.0
    %8657 = vmatprep.subr.mxu0 0.0
    %8658 = vmatpush1.msra.mxu0 0.0
    %8659 = vmatprep.subr.mxu0 0.0
    %8660 = vmatpush1.msra.mxu0 0.0
    %8661 = vmatprep.subr.mxu0 0.0
    %8662 = vmatpush1.msra.mxu0 0.0
    %8663 = vmatprep.subr.mxu0 0.0
    %8664 = vmatpush1.msra.mxu0 0.0
    %8665 = vmatprep.subr.mxu0 0.0
    %8666 = vmatpush1.msra.mxu0 0.0
    %8667 = vmatprep.subr.mxu0 0.0
    %8668 = vmatpush1.msra.mxu0 0.0
    %8669 = vmatprep.subr.mxu0 0.0
    %8670 = vmatpush1.msra.mxu0 0.0
    %8671 = vmatprep.subr.mxu0 0.0
    %8672 = vmatpush1.msra.mxu0 0.0
    %8673 = vmatprep.subr.mxu0 0.0
    %8674 = vmatpush1.msra.mxu0 0.0
    %8675 = vmatprep.subr.mxu0 0.0
    %8676 = vmatpush1.msra.mxu0 0.0
    %8677 = vmatprep.subr.mxu0 0.0
    %8678 = vmatpush1.msra.mxu0 0.0
    %8679 = vmatprep.subr.mxu0 0.0
    %8680 = vmatpush1.msra.mxu0 0.0
    %8681 = vmatprep.subr.mxu0 0.0
    %8682 = vmatpush1.msra.mxu0 0.0
    %8683 = vmatprep.subr.mxu0 0.0
    %8684 = vmatpush1.msra.mxu0 0.0
    %8685 = vmatprep.subr.mxu0 0.0
    %8686 = vmatpush1.msra.mxu0 0.0
    %8687 = vmatprep.subr.mxu0 0.0
    %8688 = vmatpush1.msra.mxu0 0.0
    %8689 = vmatprep.mubr.f32.mxu0 0.0
    %8690 = vmatmul.mubr.f32.gmra.mrb[0].mxu0 %v8623
    %v8691 = vpop.f32.mrb[0].mxu0
    %v8692 = vadd.f32 0.0, %v8691
    %v8693 = vpop.f32.mrb[0].mxu0
    %8694 = vdwg.mxu0
    %s8695 = scalar_lea.vmem [#allocation34], 64
    %v8696 = vld [vmem:[%s8695] sm:$0xff]
    %v8697 = vld [vmem:[%s8695 + $0x8] sm:$0xff]
    %v8698 = vld [vmem:[%s8695 + $0x10] sm:$0xff]
    %v8699 = vld [vmem:[%s8695 + $0x18] sm:$0xff]
    %v8701 = vsel %vm562, %v8692, 0
    %8703 = vmatprep.subr.mxu0 0.0
    %8704 = vmatpush1.msra.mxu0 %v8696
    %8705 = vmatprep.subr.mxu0 0.0
    %8706 = vmatpush1.msra.mxu0 %v8697
    %8707 = vmatprep.subr.mxu0 0.0
    %8708 = vmatpush1.msra.mxu0 %v8698
    %8709 = vmatprep.subr.mxu0 0.0
    %8710 = vmatpush1.msra.mxu0 %v8699
    %8711 = vmatprep.subr.mxu0 0.0
    %8712 = vmatpush1.msra.mxu0 0.0
    %8713 = vmatprep.subr.mxu0 0.0
    %8714 = vmatpush1.msra.mxu0 0.0
    %8715 = vmatprep.subr.mxu0 0.0
    %8716 = vmatpush1.msra.mxu0 0.0
    %8717 = vmatprep.subr.mxu0 0.0
    %8718 = vmatpush1.msra.mxu0 0.0
    %8719 = vmatprep.subr.mxu0 0.0
    %8720 = vmatpush1.msra.mxu0 0.0
    %8721 = vmatprep.subr.mxu0 0.0
    %8722 = vmatpush1.msra.mxu0 0.0
    %8723 = vmatprep.subr.mxu0 0.0
    %8724 = vmatpush1.msra.mxu0 0.0
    %8725 = vmatprep.subr.mxu0 0.0
    %8726 = vmatpush1.msra.mxu0 0.0
    %8727 = vmatprep.subr.mxu0 0.0
    %8728 = vmatpush1.msra.mxu0 0.0
    %8729 = vmatprep.subr.mxu0 0.0
    %8730 = vmatpush1.msra.mxu0 0.0
    %8731 = vmatprep.subr.mxu0 0.0
    %8732 = vmatpush1.msra.mxu0 0.0
    %8733 = vmatprep.subr.mxu0 0.0
    %8734 = vmatpush1.msra.mxu0 0.0
    %8735 = vmatprep.subr.mxu0 0.0
    %8736 = vmatpush1.msra.mxu0 0.0
    %8737 = vmatprep.subr.mxu0 0.0
    %8738 = vmatpush1.msra.mxu0 0.0
    %8739 = vmatprep.subr.mxu0 0.0
    %8740 = vmatpush1.msra.mxu0 0.0
    %8741 = vmatprep.subr.mxu0 0.0
    %8742 = vmatpush1.msra.mxu0 0.0
    %8743 = vmatprep.subr.mxu0 0.0
    %8744 = vmatpush1.msra.mxu0 0.0
    %8745 = vmatprep.subr.mxu0 0.0
    %8746 = vmatpush1.msra.mxu0 0.0
    %8747 = vmatprep.subr.mxu0 0.0
    %8748 = vmatpush1.msra.mxu0 0.0
    %8749 = vmatprep.subr.mxu0 0.0
    %8750 = vmatpush1.msra.mxu0 0.0
    %8751 = vmatprep.subr.mxu0 0.0
    %8752 = vmatpush1.msra.mxu0 0.0
    %8753 = vmatprep.subr.mxu0 0.0
    %8754 = vmatpush1.msra.mxu0 0.0
    %8755 = vmatprep.subr.mxu0 0.0
    %8756 = vmatpush1.msra.mxu0 0.0
    %8757 = vmatprep.subr.mxu0 0.0
    %8758 = vmatpush1.msra.mxu0 0.0
    %8759 = vmatprep.subr.mxu0 0.0
    %8760 = vmatpush1.msra.mxu0 0.0
    %8761 = vmatprep.subr.mxu0 0.0
    %8762 = vmatpush1.msra.mxu0 0.0
    %8763 = vmatprep.subr.mxu0 0.0
    %8764 = vmatpush1.msra.mxu0 0.0
    %8765 = vmatprep.subr.mxu0 0.0
    %8766 = vmatpush1.msra.mxu0 0.0
    %8767 = vmatprep.mubr.f32.mxu0 0.0
    %8768 = vmatmul.mubr.f32.gmra.mrb[0].mxu0 %v8701
    %v8769 = vpop.f32.mrb[0].mxu0
    %v8770 = vadd.f32 0.0, %v8769
    %v8771 = vpop.f32.mrb[0].mxu0
    %8772 = vdwg.mxu0
    %v8773 = vadd.f32 %v8617, %v8770
    %s8774 = scalar_lea.vmem [#allocation32], 6
    %v8775 = vld [vmem:[%s8774] sm:$0x3]
    %v8777 = vsel %vm2891, %v8775, 0
    %8779 = vmatprep.subr.mxu0 0.0
    %8780 = vmatpush1.msra.mxu0 %v8301
    %8781 = vmatprep.subr.mxu0 0.0
    %8782 = vmatpush1.msra.mxu0 %v8302
    %8783 = vmatprep.subr.mxu0 0.0
    %8784 = vmatpush1.msra.mxu0 %v8303
    %8785 = vmatprep.subr.mxu0 0.0
    %8786 = vmatpush1.msra.mxu0 %v8304
    %8787 = vmatprep.subr.mxu0 0.0
    %8788 = vmatpush1.msra.mxu0 %v8305
    %8789 = vmatprep.subr.mxu0 0.0
    %8790 = vmatpush1.msra.mxu0 %v8306
    %8791 = vmatprep.subr.mxu0 0.0
    %8792 = vmatpush1.msra.mxu0 %v8307
    %8793 = vmatprep.subr.mxu0 0.0
    %8794 = vmatpush1.msra.mxu0 %v8308
    %8795 = vmatprep.subr.mxu0 0.0
    %8796 = vmatpush1.msra.mxu0 %v8309
    %8797 = vmatprep.subr.mxu0 0.0
    %8798 = vmatpush1.msra.mxu0 %v8310
    %8799 = vmatprep.subr.mxu0 0.0
    %8800 = vmatpush1.msra.mxu0 %v8311
    %8801 = vmatprep.subr.mxu0 0.0
    %8802 = vmatpush1.msra.mxu0 %v8318
    %8803 = vmatprep.subr.mxu0 0.0
    %8804 = vmatpush1.msra.mxu0 0.0
    %8805 = vmatprep.subr.mxu0 0.0
    %8806 = vmatpush1.msra.mxu0 0.0
    %8807 = vmatprep.subr.mxu0 0.0
    %8808 = vmatpush1.msra.mxu0 0.0
    %8809 = vmatprep.subr.mxu0 0.0
    %8810 = vmatpush1.msra.mxu0 0.0
    %8811 = vmatprep.subr.mxu0 0.0
    %8812 = vmatpush1.msra.mxu0 0.0
    %8813 = vmatprep.subr.mxu0 0.0
    %8814 = vmatpush1.msra.mxu0 0.0
    %8815 = vmatprep.subr.mxu0 0.0
    %8816 = vmatpush1.msra.mxu0 0.0
    %8817 = vmatprep.subr.mxu0 0.0
    %8818 = vmatpush1.msra.mxu0 0.0
    %8819 = vmatprep.subr.mxu0 0.0
    %8820 = vmatpush1.msra.mxu0 0.0
    %8821 = vmatprep.subr.mxu0 0.0
    %8822 = vmatpush1.msra.mxu0 0.0
    %8823 = vmatprep.subr.mxu0 0.0
    %8824 = vmatpush1.msra.mxu0 0.0
    %8825 = vmatprep.subr.mxu0 0.0
    %8826 = vmatpush1.msra.mxu0 0.0
    %8827 = vmatprep.subr.mxu0 0.0
    %8828 = vmatpush1.msra.mxu0 0.0
    %8829 = vmatprep.subr.mxu0 0.0
    %8830 = vmatpush1.msra.mxu0 0.0
    %8831 = vmatprep.subr.mxu0 0.0
    %8832 = vmatpush1.msra.mxu0 0.0
    %8833 = vmatprep.subr.mxu0 0.0
    %8834 = vmatpush1.msra.mxu0 0.0
    %8835 = vmatprep.subr.mxu0 0.0
    %8836 = vmatpush1.msra.mxu0 0.0
    %8837 = vmatprep.subr.mxu0 0.0
    %8838 = vmatpush1.msra.mxu0 0.0
    %8839 = vmatprep.subr.mxu0 0.0
    %8840 = vmatpush1.msra.mxu0 0.0
    %8841 = vmatprep.subr.mxu0 0.0
    %8842 = vmatpush1.msra.mxu0 0.0
    %8843 = vmatprep.mubr.f32.mxu0 0.0
    %8844 = vmatmul.mubr.f32.gmra.mrb[0].mxu0 %v8777
    %v8845 = vpop.f32.mrb[0].mxu0
    %v8846 = vadd.f32 0.0, %v8845
    %v8847 = vpop.f32.mrb[0].mxu0
    %8848 = vdwg.mxu0
    %s8849 = scalar_lea.vmem [#allocation34], 96
    %v8850 = vld [vmem:[%s8849] sm:$0xff]
    %v8851 = vld [vmem:[%s8849 + $0x8] sm:$0xff]
    %v8852 = vld [vmem:[%s8849 + $0x10] sm:$0xff]
    %v8853 = vld [vmem:[%s8849 + $0x18] sm:$0xff]
    %v8855 = vsel %vm562, %v8846, 0
    %8857 = vmatprep.subr.mxu0 0.0
    %8858 = vmatpush1.msra.mxu0 %v8850
    %8859 = vmatprep.subr.mxu0 0.0
    %8860 = vmatpush1.msra.mxu0 %v8851
    %8861 = vmatprep.subr.mxu0 0.0
    %8862 = vmatpush1.msra.mxu0 %v8852
    %8863 = vmatprep.subr.mxu0 0.0
    %8864 = vmatpush1.msra.mxu0 %v8853
    %8865 = vmatprep.subr.mxu0 0.0
    %8866 = vmatpush1.msra.mxu0 0.0
    %8867 = vmatprep.subr.mxu0 0.0
    %8868 = vmatpush1.msra.mxu0 0.0
    %8869 = vmatprep.subr.mxu0 0.0
    %8870 = vmatpush1.msra.mxu0 0.0
    %8871 = vmatprep.subr.mxu0 0.0
    %8872 = vmatpush1.msra.mxu0 0.0
    %8873 = vmatprep.subr.mxu0 0.0
    %8874 = vmatpush1.msra.mxu0 0.0
    %8875 = vmatprep.subr.mxu0 0.0
    %8876 = vmatpush1.msra.mxu0 0.0
    %8877 = vmatprep.subr.mxu0 0.0
    %8878 = vmatpush1.msra.mxu0 0.0
    %8879 = vmatprep.subr.mxu0 0.0
    %8880 = vmatpush1.msra.mxu0 0.0
    %8881 = vmatprep.subr.mxu0 0.0
    %8882 = vmatpush1.msra.mxu0 0.0
    %8883 = vmatprep.subr.mxu0 0.0
    %8884 = vmatpush1.msra.mxu0 0.0
    %8885 = vmatprep.subr.mxu0 0.0
    %8886 = vmatpush1.msra.mxu0 0.0
    %8887 = vmatprep.subr.mxu0 0.0
    %8888 = vmatpush1.msra.mxu0 0.0
    %8889 = vmatprep.subr.mxu0 0.0
    %8890 = vmatpush1.msra.mxu0 0.0
    %8891 = vmatprep.subr.mxu0 0.0
    %8892 = vmatpush1.msra.mxu0 0.0
    %8893 = vmatprep.subr.mxu0 0.0
    %8894 = vmatpush1.msra.mxu0 0.0
    %8895 = vmatprep.subr.mxu0 0.0
    %8896 = vmatpush1.msra.mxu0 0.0
    %8897 = vmatprep.subr.mxu0 0.0
    %8898 = vmatpush1.msra.mxu0 0.0
    %8899 = vmatprep.subr.mxu0 0.0
    %8900 = vmatpush1.msra.mxu0 0.0
    %8901 = vmatprep.subr.mxu0 0.0
    %8902 = vmatpush1.msra.mxu0 0.0
    %8903 = vmatprep.subr.mxu0 0.0
    %8904 = vmatpush1.msra.mxu0 0.0
    %8905 = vmatprep.subr.mxu0 0.0
    %8906 = vmatpush1.msra.mxu0 0.0
    %8907 = vmatprep.subr.mxu0 0.0
    %8908 = vmatpush1.msra.mxu0 0.0
    %8909 = vmatprep.subr.mxu0 0.0
    %8910 = vmatpush1.msra.mxu0 0.0
    %8911 = vmatprep.subr.mxu0 0.0
    %8912 = vmatpush1.msra.mxu0 0.0
    %8913 = vmatprep.subr.mxu0 0.0
    %8914 = vmatpush1.msra.mxu0 0.0
    %8915 = vmatprep.subr.mxu0 0.0
    %8916 = vmatpush1.msra.mxu0 0.0
    %8917 = vmatprep.subr.mxu0 0.0
    %8918 = vmatpush1.msra.mxu0 0.0
    %8919 = vmatprep.subr.mxu0 0.0
    %8920 = vmatpush1.msra.mxu0 0.0
    %8921 = vmatprep.mubr.f32.mxu0 0.0
    %8922 = vmatmul.mubr.f32.gmra.mrb[0].mxu0 %v8855
    %v8923 = vpop.f32.mrb[0].mxu0
    %v8924 = vadd.f32 0.0, %v8923
    %v8925 = vpop.f32.mrb[0].mxu0
    %8926 = vdwg.mxu0
    %v8927 = vadd.f32 %v8773, %v8924
    %8928 = vst.msk [vmem:[%s69] sm:$0x3] %vm581, %v8927
    // Predicated region
    $region222: #{_lambda_.1} parent=1 // pred_check
      _
    $region223: #{_lambda_.1} parent=1 // pred_check_branch
      %8930 = sbr.rel (0) target = $region225
    $region224: #{_lambda_.1} parent=1 // pred_region
      _
    $region225: #{_lambda_.1} parent=1 // pred_fallthru
      _
    // Predicated region
    $region226: #{_lambda_.1} parent=1 // pred_check
      _
    $region227: #{_lambda_.1} parent=1 // pred_check_branch
      %8932 = sbr.rel (0) target = $region229
    $region228: #{_lambda_.1} parent=1 // pred_region
      _
    $region229: #{_lambda_.1} parent=1 // pred_fallthru
      _
    %8933 = vsyncpa [#allocation4], 1
    %8934 = vsyncpa [#allocation6], 1
    %8935 = vsyncpa [#allocation9], 1
    %8936 = vsyncpa [#allocation12], 1
    %8937 = vsyncpa [#allocation15], 1
    %8938 = vsyncpa [#allocation18], 1
    %8939 = vsyncpa [#allocation21], 1
    %8940 = vsyncpa [#allocation24], 1
    %8941 = vsyncpa [#allocation27], 1
    %8942 = vsyncpa [#allocation30], 1
    %8943 = vsyncpa [#allocation33], 1

</llo_original>
